<compile_context>
chip_gen: v5e
topology: v5e:2x2
jax: 0.10.0
libtpu: 0.0.40
codegen_flags: <defaults>
</compile_context>

<pallas_src>
import functools

import jax
import jax.numpy as jnp
from jax import lax
from jax.experimental import pallas as pl
from jax.experimental.pallas import tpu as pltpu


# ---------------------------------------------------------------------------
# Conv 3x3 (stride 1, pad 1) + bias + ReLU
# ---------------------------------------------------------------------------
def _pick_row_block(H, W, Cout, acc_budget_elems=16384):
    """Largest divisor of H such that the f32 accumulator (rb*W, Cout) stays
    under ~64 KiB (acc_budget_elems elements)."""
    best = 1
    for rb in range(1, H + 1):
        if H % rb == 0 and rb * W * Cout <= acc_budget_elems:
            best = rb
    return best


def _conv3x3_relu_rowblock_kernel(xp_ref, w_ref, b_ref, o_ref, *,
                                  row_block, n_blocks):
    # xp_ref: (H+2, W+2, Cin) padded input, one batch element
    # w_ref : (9, Cin, Cout)  3x3 taps flattened (HWIO order)
    # b_ref : (1, Cout)
    # o_ref : (H, W, Cout)
    H, W, Cout = o_ref.shape
    Cin = xp_ref.shape[-1]
    M = row_block * W
    bias = jnp.broadcast_to(b_ref[...], (M, Cout))   # hoisted out of the loops

    def compute_block(h0):
        acc = bias
        for dy in range(3):
            rows = xp_ref[pl.ds(h0 + dy, row_block)]          # (RB, W+2, Cin)
            for dx in range(3):
                win = rows[:, dx:dx + W, :].reshape(M, Cin)    # (RB*W, Cin)
                acc = acc + jnp.dot(win, w_ref[dy * 3 + dx],
                                    preferred_element_type=jnp.float32)
        o_ref[pl.ds(h0, row_block)] = (
            jnp.maximum(acc, 0.0).reshape(row_block, W, Cout))  # ReLU

    if n_blocks <= 8:
        # Fully unrolled: static, aligned row offsets.
        for blk in range(n_blocks):
            compute_block(blk * row_block)
    else:
        def body(blk, carry):
            compute_block(pl.multiple_of(blk * row_block, row_block))
            return carry
        lax.fori_loop(0, n_blocks, body, 0)


def _conv3x3_relu_rowloop_kernel(xp_ref, w_ref, b_ref, o_ref):
    # Fallback path (width not a multiple of 8): one output row per iteration.
    H, W, Cout = o_ref.shape
    bias = jnp.broadcast_to(b_ref[...], (W, Cout))

    def row_body(h, carry):
        acc = bias
        for dy in range(3):
            for dx in range(3):
                win = xp_ref[h + dy, dx:dx + W, :]             # (W, Cin)
                acc = acc + jnp.dot(win, w_ref[dy * 3 + dx],
                                    preferred_element_type=jnp.float32)
        o_ref[h] = jnp.maximum(acc, 0.0)
        return carry

    lax.fori_loop(0, H, row_body, 0)


def conv3x3_relu(x, w, b):
    """x: (B, H, W, Cin) f32; w: (3, 3, Cin, Cout) HWIO; b: (Cout,)."""
    B, H, W, Cin = x.shape
    Cout = w.shape[-1]
    x_pad = jnp.pad(x, ((0, 0), (1, 1), (1, 1), (0, 0)))
    w9 = w.reshape(9, Cin, Cout)
    b2 = b.reshape(1, Cout)

    if W % 8 == 0:
        row_block = _pick_row_block(H, W, Cout)
        kernel = functools.partial(_conv3x3_relu_rowblock_kernel,
                                   row_block=row_block,
                                   n_blocks=H // row_block)
    else:
        kernel = _conv3x3_relu_rowloop_kernel

    cost = pl.CostEstimate(
        flops=2 * B * H * W * 9 * Cin * Cout,
        transcendentals=0,
        bytes_accessed=4 * (B * (H + 2) * (W + 2) * Cin
                            + 9 * Cin * Cout + Cout + B * H * W * Cout),
    )
    return pl.pallas_call(
        kernel,
        out_shape=jax.ShapeDtypeStruct((B, H, W, Cout), jnp.float32),
        grid_spec=pltpu.PrefetchScalarGridSpec(
            num_scalar_prefetch=0,
            grid=(B,),
            in_specs=[
                pl.BlockSpec((None, H + 2, W + 2, Cin), lambda i: (i, 0, 0, 0)),
                pl.BlockSpec((9, Cin, Cout), lambda i: (0, 0, 0)),   # resident
                pl.BlockSpec((1, Cout), lambda i: (0, 0)),           # resident
            ],
            out_specs=pl.BlockSpec((None, H, W, Cout), lambda i: (i, 0, 0, 0)),
        ),
        compiler_params=pltpu.CompilerParams(
            dimension_semantics=("parallel",),
            vmem_limit_bytes=32 * 1024 * 1024,
        ),
        cost_estimate=cost,
    )(x_pad, w9, b2)


# ---------------------------------------------------------------------------
# MaxPool 2x2, stride 2
# ---------------------------------------------------------------------------
def _maxpool2x2_kernel(x_ref, o_ref):
    # x_ref: (H, W, C); o_ref: (H//2, W//2, C)
    H2, W2, C = o_ref.shape
    W = x_ref.shape[1]
    # Constant 0/1 selection matrices picking even / odd columns (exact in f32).
    out_col = lax.broadcasted_iota(jnp.int32, (W2, W), 0)
    in_col = lax.broadcasted_iota(jnp.int32, (W2, W), 1)
    sel_even = (in_col == 2 * out_col).astype(jnp.float32)
    sel_odd = (in_col == 2 * out_col + 1).astype(jnp.float32)

    def row_body(i, carry):
        r = jnp.maximum(x_ref[2 * i], x_ref[2 * i + 1])                 # (W, C)
        even = jnp.dot(sel_even, r, preferred_element_type=jnp.float32)  # (W2, C)
        odd = jnp.dot(sel_odd, r, preferred_element_type=jnp.float32)
        o_ref[i] = jnp.maximum(even, odd)
        return carry

    lax.fori_loop(0, H2, row_body, 0)


def maxpool2x2(x):
    """2x2 max pool, stride 2. x: (B, H, W, C) with even H, W."""
    B, H, W, C = x.shape
    H2, W2 = H // 2, W // 2
    return pl.pallas_call(
        _maxpool2x2_kernel,
        out_shape=jax.ShapeDtypeStruct((B, H2, W2, C), jnp.float32),
        grid_spec=pltpu.PrefetchScalarGridSpec(
            num_scalar_prefetch=0,
            grid=(B,),
            in_specs=[pl.BlockSpec((None, H, W, C), lambda i: (i, 0, 0, 0))],
            out_specs=pl.BlockSpec((None, H2, W2, C), lambda i: (i, 0, 0, 0)),
        ),
        compiler_params=pltpu.CompilerParams(
            dimension_semantics=("parallel",),
        ),
    )(x)


# ---------------------------------------------------------------------------
# VGG-16 trunk up to relu4_3 (FeatureExtraction)
# ---------------------------------------------------------------------------
_VGG_CFG = [
    ("conv1_1", 3, 64), ("conv1_2", 64, 64),
    ("conv2_1", 64, 128), ("conv2_2", 128, 128),
    ("conv3_1", 128, 256), ("conv3_2", 256, 256), ("conv3_3", 256, 256),
    ("conv4_1", 256, 512), ("conv4_2", 512, 512), ("conv4_3", 512, 512),
]
# model1 = conv1_1 .. relu3_3 ; model2 = pool3 .. relu4_3 (matches the PyTorch slice)
_MODEL1 = ["conv1_1", "conv1_2", "pool", "conv2_1", "conv2_2", "pool",
           "conv3_1", "conv3_2", "conv3_3"]
_MODEL2 = ["pool", "conv4_1", "conv4_2", "conv4_3"]


def init_params(key):
    params = {}
    for i, (name, cin, cout) in enumerate(_VGG_CFG):
        kw, kb = jax.random.split(jax.random.fold_in(key, i))
        std = (2.0 / (9 * cin)) ** 0.5
        params[name] = (
            std * jax.random.normal(kw, (3, 3, cin, cout), dtype=jnp.float32),
            0.01 * jax.random.normal(kb, (cout,), dtype=jnp.float32),
        )
    return params


def _run_stage(x, layers, params, conv_fn, pool_fn):
    for name in layers:
        if name == "pool":
            x = pool_fn(x)
        else:
            w, b = params[name]
            x = conv_fn(x, w, b)
    return x


def feature_extraction_forward(img, params):
    """img: (B, 3, H, W) float32 (NCHW). Returns (feat1, feat2) in NCHW."""
    x = jnp.transpose(img, (0, 2, 3, 1))          # NCHW -> NHWC (channels on lanes)
    feat1 = _run_stage(x, _MODEL1, params, conv3x3_relu, maxpool2x2)
    feat2 = _run_stage(feat1, _MODEL2, params, conv3x3_relu, maxpool2x2)
    return (jnp.transpose(feat1, (0, 3, 1, 2)),
            jnp.transpose(feat2, (0, 3, 1, 2)))


# ---------------------------------------------------------------------------
# Pure-JAX reference (for correctness check)
# ---------------------------------------------------------------------------
def _ref_conv(x, w, b):
    y = lax.conv_general_dilated(
        x, w, window_strides=(1, 1), padding="SAME",
        dimension_numbers=("NHWC", "HWIO", "NHWC"),
        precision=lax.Precision.HIGHEST)
    return jnp.maximum(y + b, 0.0)


def _ref_pool(x):
    return lax.reduce_window(x, -jnp.inf, lax.max,
                             (1, 2, 2, 1), (1, 2, 2, 1), "VALID")


def reference_forward(img, params):
    x = jnp.transpose(img, (0, 2, 3, 1))
    feat1 = _run_stage(x, _MODEL1, params, _ref_conv, _ref_pool)
    feat2 = _run_stage(feat1, _MODEL2, params, _ref_conv, _ref_pool)
    return (jnp.transpose(feat1, (0, 3, 1, 2)),
            jnp.transpose(feat2, (0, 3, 1, 2)))


if __name__ == "__main__":
    key = jax.random.PRNGKey(0)
    B, C, H, W = 2, 3, 32, 32           # small demo shapes (spatial divisible by 8)
    img = jax.random.normal(jax.random.fold_in(key, 12345), (B, C, H, W),
                            dtype=jnp.float32)
    params = init_params(key)

    feat1, feat2 = feature_extraction_forward(img, params)
    feat1 = jax.block_until_ready(feat1)
    feat2 = jax.block_until_ready(feat2)

    assert feat1.shape == (B, 256, H // 4, W // 4), feat1.shape
    assert feat2.shape == (B, 512, H // 8, W // 8), feat2.shape
    assert bool(jnp.all(jnp.isfinite(feat1))) and bool(jnp.all(jnp.isfinite(feat2)))
    assert bool(jnp.all(feat1 >= 0.0)) and bool(jnp.all(feat2 >= 0.0))

    r1, r2 = reference_forward(img, params)

    def rel_err(a, b):
        return float(jnp.linalg.norm((a - b).ravel())
                     / (jnp.linalg.norm(b.ravel()) + 1e-12))

    e1, e2 = rel_err(feat1, r1), rel_err(feat2, r2)
    assert e1 < 5e-2, f"feat1 relative error too large: {e1}"
    assert e2 < 5e-2, f"feat2 relative error too large: {e2}"

    print("KERNEL_OK")
</pallas_src>

<mosaic_0001>
module attributes {stable_mosaic.version = 11 : i64} {
  func.func @_conv3x3_relu_rowblock_kernel(%arg0: i32, %arg1: memref<1x34x34x3xf32, #tpu.memory_space<vmem>>, %arg2: memref<9x3x64xf32, #tpu.memory_space<vmem>>, %arg3: memref<1x64xf32, #tpu.memory_space<vmem>>, %arg4: memref<1x32x32x64xf32, #tpu.memory_space<vmem>>) attributes {dimension_semantics = [#tpu.dimension_semantics<parallel>], iteration_bounds = array<i64: 2>, scalar_prefetch = 0 : i64, scratch_operands = 0 : i64, tpu.core_type = #tpu.core_type<tc>, window_params = [{transform_indices = @transform_0, window_bounds = array<i64: 1, 34, 34, 3>}, {pipeline_mode = #tpu.pipeline_mode<synchronous>, transform_indices = @transform_1, window_bounds = array<i64: 9, 3, 64>}, {pipeline_mode = #tpu.pipeline_mode<synchronous>, transform_indices = @transform_2, window_bounds = array<i64: 1, 64>}, {transform_indices = @transform_3, window_bounds = array<i64: 1, 32, 32, 64>}]} {
    %c0 = arith.constant 0 : index
    %c0_0 = arith.constant 0 : index
    %0 = vector.load %arg3[%c0, %c0_0] : memref<1x64xf32, #tpu.memory_space<vmem>>, vector<1x64xf32>
    %1 = vector.shape_cast %0 : vector<1x64xf32> to vector<1x64xf32>
    %2 = vector.broadcast %1 : vector<1x64xf32> to vector<256x64xf32>
    %c0_1 = arith.constant 0 : index
    %c0_2 = arith.constant 0 : index
    %c0_3 = arith.constant 0 : index
    %c0_4 = arith.constant 0 : index
    %3 = vector.load %arg1[%c0_1, %c0_2, %c0_3, %c0_4] : memref<1x34x34x3xf32, #tpu.memory_space<vmem>>, vector<1x8x34x3xf32>
    %4 = vector.shape_cast %3 : vector<1x8x34x3xf32> to vector<8x34x3xf32>
    %5 = vector.extract_strided_slice %4 {offsets = [0, 0, 0], sizes = [8, 32, 3], strides = [1, 1, 1]} : vector<8x34x3xf32> to vector<8x32x3xf32>
    %6 = vector.shape_cast %5 : vector<8x32x3xf32> to vector<256x3xf32>
    %c0_5 = arith.constant 0 : index
    %c0_6 = arith.constant 0 : index
    %c0_7 = arith.constant 0 : index
    %7 = vector.load %arg2[%c0_5, %c0_6, %c0_7] : memref<9x3x64xf32, #tpu.memory_space<vmem>>, vector<1x3x64xf32>
    %8 = vector.shape_cast %7 : vector<1x3x64xf32> to vector<3x64xf32>
    %cst = arith.constant dense<0.000000e+00> : vector<256x64xf32>
    %9 = tpu.matmul %6, %8, %cst {dimension_numbers = #tpu.dot_dimension_numbers<[1], [0], [0], [1], [0, 0, 1, 1], [], []>} : vector<256x3xf32>, vector<3x64xf32>, vector<256x64xf32> -> vector<256x64xf32>
    %10 = arith.addf %2, %9 : vector<256x64xf32>
    %11 = vector.extract_strided_slice %4 {offsets = [0, 1, 0], sizes = [8, 32, 3], strides = [1, 1, 1]} : vector<8x34x3xf32> to vector<8x32x3xf32>
    %12 = vector.shape_cast %11 : vector<8x32x3xf32> to vector<256x3xf32>
    %c1 = arith.constant 1 : index
    %c0_8 = arith.constant 0 : index
    %c0_9 = arith.constant 0 : index
    %13 = vector.load %arg2[%c1, %c0_8, %c0_9] : memref<9x3x64xf32, #tpu.memory_space<vmem>>, vector<1x3x64xf32>
    %14 = vector.shape_cast %13 : vector<1x3x64xf32> to vector<3x64xf32>
    %cst_10 = arith.constant dense<0.000000e+00> : vector<256x64xf32>
    %15 = tpu.matmul %12, %14, %cst_10 {dimension_numbers = #tpu.dot_dimension_numbers<[1], [0], [0], [1], [0, 0, 1, 1], [], []>} : vector<256x3xf32>, vector<3x64xf32>, vector<256x64xf32> -> vector<256x64xf32>
    %16 = arith.addf %10, %15 : vector<256x64xf32>
    %17 = vector.extract_strided_slice %4 {offsets = [0, 2, 0], sizes = [8, 32, 3], strides = [1, 1, 1]} : vector<8x34x3xf32> to vector<8x32x3xf32>
    %18 = vector.shape_cast %17 : vector<8x32x3xf32> to vector<256x3xf32>
    %c2 = arith.constant 2 : index
    %c0_11 = arith.constant 0 : index
    %c0_12 = arith.constant 0 : index
    %19 = vector.load %arg2[%c2, %c0_11, %c0_12] : memref<9x3x64xf32, #tpu.memory_space<vmem>>, vector<1x3x64xf32>
    %20 = vector.shape_cast %19 : vector<1x3x64xf32> to vector<3x64xf32>
    %cst_13 = arith.constant dense<0.000000e+00> : vector<256x64xf32>
    %21 = tpu.matmul %18, %20, %cst_13 {dimension_numbers = #tpu.dot_dimension_numbers<[1], [0], [0], [1], [0, 0, 1, 1], [], []>} : vector<256x3xf32>, vector<3x64xf32>, vector<256x64xf32> -> vector<256x64xf32>
    %22 = arith.addf %16, %21 : vector<256x64xf32>
    %c0_14 = arith.constant 0 : index
    %c1_15 = arith.constant 1 : index
    %c0_16 = arith.constant 0 : index
    %c0_17 = arith.constant 0 : index
    %23 = vector.load %arg1[%c0_14, %c1_15, %c0_16, %c0_17] : memref<1x34x34x3xf32, #tpu.memory_space<vmem>>, vector<1x8x34x3xf32>
    %24 = vector.shape_cast %23 : vector<1x8x34x3xf32> to vector<8x34x3xf32>
    %25 = vector.extract_strided_slice %24 {offsets = [0, 0, 0], sizes = [8, 32, 3], strides = [1, 1, 1]} : vector<8x34x3xf32> to vector<8x32x3xf32>
    %26 = vector.shape_cast %25 : vector<8x32x3xf32> to vector<256x3xf32>
    %c3 = arith.constant 3 : index
    %c0_18 = arith.constant 0 : index
    %c0_19 = arith.constant 0 : index
    %27 = vector.load %arg2[%c3, %c0_18, %c0_19] : memref<9x3x64xf32, #tpu.memory_space<vmem>>, vector<1x3x64xf32>
    %28 = vector.shape_cast %27 : vector<1x3x64xf32> to vector<3x64xf32>
    %cst_20 = arith.constant dense<0.000000e+00> : vector<256x64xf32>
    %29 = tpu.matmul %26, %28, %cst_20 {dimension_numbers = #tpu.dot_dimension_numbers<[1], [0], [0], [1], [0, 0, 1, 1], [], []>} : vector<256x3xf32>, vector<3x64xf32>, vector<256x64xf32> -> vector<256x64xf32>
    %30 = arith.addf %22, %29 : vector<256x64xf32>
    %31 = vector.extract_strided_slice %24 {offsets = [0, 1, 0], sizes = [8, 32, 3], strides = [1, 1, 1]} : vector<8x34x3xf32> to vector<8x32x3xf32>
    %32 = vector.shape_cast %31 : vector<8x32x3xf32> to vector<256x3xf32>
    %c4 = arith.constant 4 : index
    %c0_21 = arith.constant 0 : index
    %c0_22 = arith.constant 0 : index
    %33 = vector.load %arg2[%c4, %c0_21, %c0_22] : memref<9x3x64xf32, #tpu.memory_space<vmem>>, vector<1x3x64xf32>
    %34 = vector.shape_cast %33 : vector<1x3x64xf32> to vector<3x64xf32>
    %cst_23 = arith.constant dense<0.000000e+00> : vector<256x64xf32>
    %35 = tpu.matmul %32, %34, %cst_23 {dimension_numbers = #tpu.dot_dimension_numbers<[1], [0], [0], [1], [0, 0, 1, 1], [], []>} : vector<256x3xf32>, vector<3x64xf32>, vector<256x64xf32> -> vector<256x64xf32>
    %36 = arith.addf %30, %35 : vector<256x64xf32>
    %37 = vector.extract_strided_slice %24 {offsets = [0, 2, 0], sizes = [8, 32, 3], strides = [1, 1, 1]} : vector<8x34x3xf32> to vector<8x32x3xf32>
    %38 = vector.shape_cast %37 : vector<8x32x3xf32> to vector<256x3xf32>
    %c5 = arith.constant 5 : index
    %c0_24 = arith.constant 0 : index
    %c0_25 = arith.constant 0 : index
    %39 = vector.load %arg2[%c5, %c0_24, %c0_25] : memref<9x3x64xf32, #tpu.memory_space<vmem>>, vector<1x3x64xf32>
    %40 = vector.shape_cast %39 : vector<1x3x64xf32> to vector<3x64xf32>
    %cst_26 = arith.constant dense<0.000000e+00> : vector<256x64xf32>
    %41 = tpu.matmul %38, %40, %cst_26 {dimension_numbers = #tpu.dot_dimension_numbers<[1], [0], [0], [1], [0, 0, 1, 1], [], []>} : vector<256x3xf32>, vector<3x64xf32>, vector<256x64xf32> -> vector<256x64xf32>
    %42 = arith.addf %36, %41 : vector<256x64xf32>
    %c0_27 = arith.constant 0 : index
    %c2_28 = arith.constant 2 : index
    %c0_29 = arith.constant 0 : index
    %c0_30 = arith.constant 0 : index
    %43 = vector.load %arg1[%c0_27, %c2_28, %c0_29, %c0_30] : memref<1x34x34x3xf32, #tpu.memory_space<vmem>>, vector<1x8x34x3xf32>
    %44 = vector.shape_cast %43 : vector<1x8x34x3xf32> to vector<8x34x3xf32>
    %45 = vector.extract_strided_slice %44 {offsets = [0, 0, 0], sizes = [8, 32, 3], strides = [1, 1, 1]} : vector<8x34x3xf32> to vector<8x32x3xf32>
    %46 = vector.shape_cast %45 : vector<8x32x3xf32> to vector<256x3xf32>
    %c6 = arith.constant 6 : index
    %c0_31 = arith.constant 0 : index
    %c0_32 = arith.constant 0 : index
    %47 = vector.load %arg2[%c6, %c0_31, %c0_32] : memref<9x3x64xf32, #tpu.memory_space<vmem>>, vector<1x3x64xf32>
    %48 = vector.shape_cast %47 : vector<1x3x64xf32> to vector<3x64xf32>
    %cst_33 = arith.constant dense<0.000000e+00> : vector<256x64xf32>
    %49 = tpu.matmul %46, %48, %cst_33 {dimension_numbers = #tpu.dot_dimension_numbers<[1], [0], [0], [1], [0, 0, 1, 1], [], []>} : vector<256x3xf32>, vector<3x64xf32>, vector<256x64xf32> -> vector<256x64xf32>
    %50 = arith.addf %42, %49 : vector<256x64xf32>
    %51 = vector.extract_strided_slice %44 {offsets = [0, 1, 0], sizes = [8, 32, 3], strides = [1, 1, 1]} : vector<8x34x3xf32> to vector<8x32x3xf32>
    %52 = vector.shape_cast %51 : vector<8x32x3xf32> to vector<256x3xf32>
    %c7 = arith.constant 7 : index
    %c0_34 = arith.constant 0 : index
    %c0_35 = arith.constant 0 : index
    %53 = vector.load %arg2[%c7, %c0_34, %c0_35] : memref<9x3x64xf32, #tpu.memory_space<vmem>>, vector<1x3x64xf32>
    %54 = vector.shape_cast %53 : vector<1x3x64xf32> to vector<3x64xf32>
    %cst_36 = arith.constant dense<0.000000e+00> : vector<256x64xf32>
    %55 = tpu.matmul %52, %54, %cst_36 {dimension_numbers = #tpu.dot_dimension_numbers<[1], [0], [0], [1], [0, 0, 1, 1], [], []>} : vector<256x3xf32>, vector<3x64xf32>, vector<256x64xf32> -> vector<256x64xf32>
    %56 = arith.addf %50, %55 : vector<256x64xf32>
    %57 = vector.extract_strided_slice %44 {offsets = [0, 2, 0], sizes = [8, 32, 3], strides = [1, 1, 1]} : vector<8x34x3xf32> to vector<8x32x3xf32>
    %58 = vector.shape_cast %57 : vector<8x32x3xf32> to vector<256x3xf32>
    %c8 = arith.constant 8 : index
    %c0_37 = arith.constant 0 : index
    %c0_38 = arith.constant 0 : index
    %59 = vector.load %arg2[%c8, %c0_37, %c0_38] : memref<9x3x64xf32, #tpu.memory_space<vmem>>, vector<1x3x64xf32>
    %60 = vector.shape_cast %59 : vector<1x3x64xf32> to vector<3x64xf32>
    %cst_39 = arith.constant dense<0.000000e+00> : vector<256x64xf32>
    %61 = tpu.matmul %58, %60, %cst_39 {dimension_numbers = #tpu.dot_dimension_numbers<[1], [0], [0], [1], [0, 0, 1, 1], [], []>} : vector<256x3xf32>, vector<3x64xf32>, vector<256x64xf32> -> vector<256x64xf32>
    %62 = arith.addf %56, %61 : vector<256x64xf32>
    %cst_40 = arith.constant 0.000000e+00 : f32
    %63 = vector.broadcast %cst_40 : f32 to vector<256x64xf32>
    %64 = arith.maximumf %62, %63 : vector<256x64xf32>
    %65 = vector.shape_cast %64 : vector<256x64xf32> to vector<8x32x64xf32>
    %c0_41 = arith.constant 0 : index
    %c0_42 = arith.constant 0 : index
    %c0_43 = arith.constant 0 : index
    %c0_44 = arith.constant 0 : index
    %66 = vector.load %arg4[%c0_41, %c0_42, %c0_43, %c0_44] : memref<1x32x32x64xf32, #tpu.memory_space<vmem>>, vector<1x8x32x64xf32>
    %67 = vector.shape_cast %66 : vector<1x8x32x64xf32> to vector<8x32x64xf32>
    %68 = vector.shape_cast %65 : vector<8x32x64xf32> to vector<1x8x32x64xf32>
    tpu.vector_store %arg4[%c0_41, %c0_42, %c0_43, %c0_44], %68 {strides = array<i32>} : memref<1x32x32x64xf32, #tpu.memory_space<vmem>>, vector<1x8x32x64xf32>,
    %c0_45 = arith.constant 0 : index
    %c8_46 = arith.constant 8 : index
    %c0_47 = arith.constant 0 : index
    %c0_48 = arith.constant 0 : index
    %69 = vector.load %arg1[%c0_45, %c8_46, %c0_47, %c0_48] : memref<1x34x34x3xf32, #tpu.memory_space<vmem>>, vector<1x8x34x3xf32>
    %70 = vector.shape_cast %69 : vector<1x8x34x3xf32> to vector<8x34x3xf32>
    %71 = vector.extract_strided_slice %70 {offsets = [0, 0, 0], sizes = [8, 32, 3], strides = [1, 1, 1]} : vector<8x34x3xf32> to vector<8x32x3xf32>
    %72 = vector.shape_cast %71 : vector<8x32x3xf32> to vector<256x3xf32>
    %c0_49 = arith.constant 0 : index
    %c0_50 = arith.constant 0 : index
    %c0_51 = arith.constant 0 : index
    %73 = vector.load %arg2[%c0_49, %c0_50, %c0_51] : memref<9x3x64xf32, #tpu.memory_space<vmem>>, vector<1x3x64xf32>
    %74 = vector.shape_cast %73 : vector<1x3x64xf32> to vector<3x64xf32>
    %cst_52 = arith.constant dense<0.000000e+00> : vector<256x64xf32>
    %75 = tpu.matmul %72, %74, %cst_52 {dimension_numbers = #tpu.dot_dimension_numbers<[1], [0], [0], [1], [0, 0, 1, 1], [], []>} : vector<256x3xf32>, vector<3x64xf32>, vector<256x64xf32> -> vector<256x64xf32>
    %76 = arith.addf %2, %75 : vector<256x64xf32>
    %77 = vector.extract_strided_slice %70 {offsets = [0, 1, 0], sizes = [8, 32, 3], strides = [1, 1, 1]} : vector<8x34x3xf32> to vector<8x32x3xf32>
    %78 = vector.shape_cast %77 : vector<8x32x3xf32> to vector<256x3xf32>
    %c1_53 = arith.constant 1 : index
    %c0_54 = arith.constant 0 : index
    %c0_55 = arith.constant 0 : index
    %79 = vector.load %arg2[%c1_53, %c0_54, %c0_55] : memref<9x3x64xf32, #tpu.memory_space<vmem>>, vector<1x3x64xf32>
    %80 = vector.shape_cast %79 : vector<1x3x64xf32> to vector<3x64xf32>
    %cst_56 = arith.constant dense<0.000000e+00> : vector<256x64xf32>
    %81 = tpu.matmul %78, %80, %cst_56 {dimension_numbers = #tpu.dot_dimension_numbers<[1], [0], [0], [1], [0, 0, 1, 1], [], []>} : vector<256x3xf32>, vector<3x64xf32>, vector<256x64xf32> -> vector<256x64xf32>
    %82 = arith.addf %76, %81 : vector<256x64xf32>
    %83 = vector.extract_strided_slice %70 {offsets = [0, 2, 0], sizes = [8, 32, 3], strides = [1, 1, 1]} : vector<8x34x3xf32> to vector<8x32x3xf32>
    %84 = vector.shape_cast %83 : vector<8x32x3xf32> to vector<256x3xf32>
    %c2_57 = arith.constant 2 : index
    %c0_58 = arith.constant 0 : index
    %c0_59 = arith.constant 0 : index
    %85 = vector.load %arg2[%c2_57, %c0_58, %c0_59] : memref<9x3x64xf32, #tpu.memory_space<vmem>>, vector<1x3x64xf32>
    %86 = vector.shape_cast %85 : vector<1x3x64xf32> to vector<3x64xf32>
    %cst_60 = arith.constant dense<0.000000e+00> : vector<256x64xf32>
    %87 = tpu.matmul %84, %86, %cst_60 {dimension_numbers = #tpu.dot_dimension_numbers<[1], [0], [0], [1], [0, 0, 1, 1], [], []>} : vector<256x3xf32>, vector<3x64xf32>, vector<256x64xf32> -> vector<256x64xf32>
    %88 = arith.addf %82, %87 : vector<256x64xf32>
    %c0_61 = arith.constant 0 : index
    %c9 = arith.constant 9 : index
    %c0_62 = arith.constant 0 : index
    %c0_63 = arith.constant 0 : index
    %89 = vector.load %arg1[%c0_61, %c9, %c0_62, %c0_63] : memref<1x34x34x3xf32, #tpu.memory_space<vmem>>, vector<1x8x34x3xf32>
    %90 = vector.shape_cast %89 : vector<1x8x34x3xf32> to vector<8x34x3xf32>
    %91 = vector.extract_strided_slice %90 {offsets = [0, 0, 0], sizes = [8, 32, 3], strides = [1, 1, 1]} : vector<8x34x3xf32> to vector<8x32x3xf32>
    %92 = vector.shape_cast %91 : vector<8x32x3xf32> to vector<256x3xf32>
    %c3_64 = arith.constant 3 : index
    %c0_65 = arith.constant 0 : index
    %c0_66 = arith.constant 0 : index
    %93 = vector.load %arg2[%c3_64, %c0_65, %c0_66] : memref<9x3x64xf32, #tpu.memory_space<vmem>>, vector<1x3x64xf32>
    %94 = vector.shape_cast %93 : vector<1x3x64xf32> to vector<3x64xf32>
    %cst_67 = arith.constant dense<0.000000e+00> : vector<256x64xf32>
    %95 = tpu.matmul %92, %94, %cst_67 {dimension_numbers = #tpu.dot_dimension_numbers<[1], [0], [0], [1], [0, 0, 1, 1], [], []>} : vector<256x3xf32>, vector<3x64xf32>, vector<256x64xf32> -> vector<256x64xf32>
    %96 = arith.addf %88, %95 : vector<256x64xf32>
    %97 = vector.extract_strided_slice %90 {offsets = [0, 1, 0], sizes = [8, 32, 3], strides = [1, 1, 1]} : vector<8x34x3xf32> to vector<8x32x3xf32>
    %98 = vector.shape_cast %97 : vector<8x32x3xf32> to vector<256x3xf32>
    %c4_68 = arith.constant 4 : index
    %c0_69 = arith.constant 0 : index
    %c0_70 = arith.constant 0 : index
    %99 = vector.load %arg2[%c4_68, %c0_69, %c0_70] : memref<9x3x64xf32, #tpu.memory_space<vmem>>, vector<1x3x64xf32>
    %100 = vector.shape_cast %99 : vector<1x3x64xf32> to vector<3x64xf32>
    %cst_71 = arith.constant dense<0.000000e+00> : vector<256x64xf32>
    %101 = tpu.matmul %98, %100, %cst_71 {dimension_numbers = #tpu.dot_dimension_numbers<[1], [0], [0], [1], [0, 0, 1, 1], [], []>} : vector<256x3xf32>, vector<3x64xf32>, vector<256x64xf32> -> vector<256x64xf32>
    %102 = arith.addf %96, %101 : vector<256x64xf32>
    %103 = vector.extract_strided_slice %90 {offsets = [0, 2, 0], sizes = [8, 32, 3], strides = [1, 1, 1]} : vector<8x34x3xf32> to vector<8x32x3xf32>
    %104 = vector.shape_cast %103 : vector<8x32x3xf32> to vector<256x3xf32>
    %c5_72 = arith.constant 5 : index
    %c0_73 = arith.constant 0 : index
    %c0_74 = arith.constant 0 : index
    %105 = vector.load %arg2[%c5_72, %c0_73, %c0_74] : memref<9x3x64xf32, #tpu.memory_space<vmem>>, vector<1x3x64xf32>
    %106 = vector.shape_cast %105 : vector<1x3x64xf32> to vector<3x64xf32>
    %cst_75 = arith.constant dense<0.000000e+00> : vector<256x64xf32>
    %107 = tpu.matmul %104, %106, %cst_75 {dimension_numbers = #tpu.dot_dimension_numbers<[1], [0], [0], [1], [0, 0, 1, 1], [], []>} : vector<256x3xf32>, vector<3x64xf32>, vector<256x64xf32> -> vector<256x64xf32>
    %108 = arith.addf %102, %107 : vector<256x64xf32>
    %c0_76 = arith.constant 0 : index
    %c10 = arith.constant 10 : index
    %c0_77 = arith.constant 0 : index
    %c0_78 = arith.constant 0 : index
    %109 = vector.load %arg1[%c0_76, %c10, %c0_77, %c0_78] : memref<1x34x34x3xf32, #tpu.memory_space<vmem>>, vector<1x8x34x3xf32>
    %110 = vector.shape_cast %109 : vector<1x8x34x3xf32> to vector<8x34x3xf32>
    %111 = vector.extract_strided_slice %110 {offsets = [0, 0, 0], sizes = [8, 32, 3], strides = [1, 1, 1]} : vector<8x34x3xf32> to vector<8x32x3xf32>
    %112 = vector.shape_cast %111 : vector<8x32x3xf32> to vector<256x3xf32>
    %c6_79 = arith.constant 6 : index
    %c0_80 = arith.constant 0 : index
    %c0_81 = arith.constant 0 : index
    %113 = vector.load %arg2[%c6_79, %c0_80, %c0_81] : memref<9x3x64xf32, #tpu.memory_space<vmem>>, vector<1x3x64xf32>
    %114 = vector.shape_cast %113 : vector<1x3x64xf32> to vector<3x64xf32>
    %cst_82 = arith.constant dense<0.000000e+00> : vector<256x64xf32>
    %115 = tpu.matmul %112, %114, %cst_82 {dimension_numbers = #tpu.dot_dimension_numbers<[1], [0], [0], [1], [0, 0, 1, 1], [], []>} : vector<256x3xf32>, vector<3x64xf32>, vector<256x64xf32> -> vector<256x64xf32>
    %116 = arith.addf %108, %115 : vector<256x64xf32>
    %117 = vector.extract_strided_slice %110 {offsets = [0, 1, 0], sizes = [8, 32, 3], strides = [1, 1, 1]} : vector<8x34x3xf32> to vector<8x32x3xf32>
    %118 = vector.shape_cast %117 : vector<8x32x3xf32> to vector<256x3xf32>
    %c7_83 = arith.constant 7 : index
    %c0_84 = arith.constant 0 : index
    %c0_85 = arith.constant 0 : index
    %119 = vector.load %arg2[%c7_83, %c0_84, %c0_85] : memref<9x3x64xf32, #tpu.memory_space<vmem>>, vector<1x3x64xf32>
    %120 = vector.shape_cast %119 : vector<1x3x64xf32> to vector<3x64xf32>
    %cst_86 = arith.constant dense<0.000000e+00> : vector<256x64xf32>
    %121 = tpu.matmul %118, %120, %cst_86 {dimension_numbers = #tpu.dot_dimension_numbers<[1], [0], [0], [1], [0, 0, 1, 1], [], []>} : vector<256x3xf32>, vector<3x64xf32>, vector<256x64xf32> -> vector<256x64xf32>
    %122 = arith.addf %116, %121 : vector<256x64xf32>
    %123 = vector.extract_strided_slice %110 {offsets = [0, 2, 0], sizes = [8, 32, 3], strides = [1, 1, 1]} : vector<8x34x3xf32> to vector<8x32x3xf32>
    %124 = vector.shape_cast %123 : vector<8x32x3xf32> to vector<256x3xf32>
    %c8_87 = arith.constant 8 : index
    %c0_88 = arith.constant 0 : index
    %c0_89 = arith.constant 0 : index
    %125 = vector.load %arg2[%c8_87, %c0_88, %c0_89] : memref<9x3x64xf32, #tpu.memory_space<vmem>>, vector<1x3x64xf32>
    %126 = vector.shape_cast %125 : vector<1x3x64xf32> to vector<3x64xf32>
    %cst_90 = arith.constant dense<0.000000e+00> : vector<256x64xf32>
    %127 = tpu.matmul %124, %126, %cst_90 {dimension_numbers = #tpu.dot_dimension_numbers<[1], [0], [0], [1], [0, 0, 1, 1], [], []>} : vector<256x3xf32>, vector<3x64xf32>, vector<256x64xf32> -> vector<256x64xf32>
    %128 = arith.addf %122, %127 : vector<256x64xf32>
    %cst_91 = arith.constant 0.000000e+00 : f32
    %129 = vector.broadcast %cst_91 : f32 to vector<256x64xf32>
    %130 = arith.maximumf %128, %129 : vector<256x64xf32>
    %131 = vector.shape_cast %130 : vector<256x64xf32> to vector<8x32x64xf32>
    %c0_92 = arith.constant 0 : index
    %c8_93 = arith.constant 8 : index
    %c0_94 = arith.constant 0 : index
    %c0_95 = arith.constant 0 : index
    %132 = vector.load %arg4[%c0_92, %c8_93, %c0_94, %c0_95] : memref<1x32x32x64xf32, #tpu.memory_space<vmem>>, vector<1x8x32x64xf32>
    %133 = vector.shape_cast %132 : vector<1x8x32x64xf32> to vector<8x32x64xf32>
    %134 = vector.shape_cast %131 : vector<8x32x64xf32> to vector<1x8x32x64xf32>
    tpu.vector_store %arg4[%c0_92, %c8_93, %c0_94, %c0_95], %134 {strides = array<i32>} : memref<1x32x32x64xf32, #tpu.memory_space<vmem>>, vector<1x8x32x64xf32>,
    %c0_96 = arith.constant 0 : index
    %c16 = arith.constant 16 : index
    %c0_97 = arith.constant 0 : index
    %c0_98 = arith.constant 0 : index
    %135 = vector.load %arg1[%c0_96, %c16, %c0_97, %c0_98] : memref<1x34x34x3xf32, #tpu.memory_space<vmem>>, vector<1x8x34x3xf32>
    %136 = vector.shape_cast %135 : vector<1x8x34x3xf32> to vector<8x34x3xf32>
    %137 = vector.extract_strided_slice %136 {offsets = [0, 0, 0], sizes = [8, 32, 3], strides = [1, 1, 1]} : vector<8x34x3xf32> to vector<8x32x3xf32>
    %138 = vector.shape_cast %137 : vector<8x32x3xf32> to vector<256x3xf32>
    %c0_99 = arith.constant 0 : index
    %c0_100 = arith.constant 0 : index
    %c0_101 = arith.constant 0 : index
    %139 = vector.load %arg2[%c0_99, %c0_100, %c0_101] : memref<9x3x64xf32, #tpu.memory_space<vmem>>, vector<1x3x64xf32>
    %140 = vector.shape_cast %139 : vector<1x3x64xf32> to vector<3x64xf32>
    %cst_102 = arith.constant dense<0.000000e+00> : vector<256x64xf32>
    %141 = tpu.matmul %138, %140, %cst_102 {dimension_numbers = #tpu.dot_dimension_numbers<[1], [0], [0], [1], [0, 0, 1, 1], [], []>} : vector<256x3xf32>, vector<3x64xf32>, vector<256x64xf32> -> vector<256x64xf32>
    %142 = arith.addf %2, %141 : vector<256x64xf32>
    %143 = vector.extract_strided_slice %136 {offsets = [0, 1, 0], sizes = [8, 32, 3], strides = [1, 1, 1]} : vector<8x34x3xf32> to vector<8x32x3xf32>
    %144 = vector.shape_cast %143 : vector<8x32x3xf32> to vector<256x3xf32>
    %c1_103 = arith.constant 1 : index
    %c0_104 = arith.constant 0 : index
    %c0_105 = arith.constant 0 : index
    %145 = vector.load %arg2[%c1_103, %c0_104, %c0_105] : memref<9x3x64xf32, #tpu.memory_space<vmem>>, vector<1x3x64xf32>
    %146 = vector.shape_cast %145 : vector<1x3x64xf32> to vector<3x64xf32>
    %cst_106 = arith.constant dense<0.000000e+00> : vector<256x64xf32>
    %147 = tpu.matmul %144, %146, %cst_106 {dimension_numbers = #tpu.dot_dimension_numbers<[1], [0], [0], [1], [0, 0, 1, 1], [], []>} : vector<256x3xf32>, vector<3x64xf32>, vector<256x64xf32> -> vector<256x64xf32>
    %148 = arith.addf %142, %147 : vector<256x64xf32>
    %149 = vector.extract_strided_slice %136 {offsets = [0, 2, 0], sizes = [8, 32, 3], strides = [1, 1, 1]} : vector<8x34x3xf32> to vector<8x32x3xf32>
    %150 = vector.shape_cast %149 : vector<8x32x3xf32> to vector<256x3xf32>
    %c2_107 = arith.constant 2 : index
    %c0_108 = arith.constant 0 : index
    %c0_109 = arith.constant 0 : index
    %151 = vector.load %arg2[%c2_107, %c0_108, %c0_109] : memref<9x3x64xf32, #tpu.memory_space<vmem>>, vector<1x3x64xf32>
    %152 = vector.shape_cast %151 : vector<1x3x64xf32> to vector<3x64xf32>
    %cst_110 = arith.constant dense<0.000000e+00> : vector<256x64xf32>
    %153 = tpu.matmul %150, %152, %cst_110 {dimension_numbers = #tpu.dot_dimension_numbers<[1], [0], [0], [1], [0, 0, 1, 1], [], []>} : vector<256x3xf32>, vector<3x64xf32>, vector<256x64xf32> -> vector<256x64xf32>
    %154 = arith.addf %148, %153 : vector<256x64xf32>
    %c0_111 = arith.constant 0 : index
    %c17 = arith.constant 17 : index
    %c0_112 = arith.constant 0 : index
    %c0_113 = arith.constant 0 : index
    %155 = vector.load %arg1[%c0_111, %c17, %c0_112, %c0_113] : memref<1x34x34x3xf32, #tpu.memory_space<vmem>>, vector<1x8x34x3xf32>
    %156 = vector.shape_cast %155 : vector<1x8x34x3xf32> to vector<8x34x3xf32>
    %157 = vector.extract_strided_slice %156 {offsets = [0, 0, 0], sizes = [8, 32, 3], strides = [1, 1, 1]} : vector<8x34x3xf32> to vector<8x32x3xf32>
    %158 = vector.shape_cast %157 : vector<8x32x3xf32> to vector<256x3xf32>
    %c3_114 = arith.constant 3 : index
    %c0_115 = arith.constant 0 : index
    %c0_116 = arith.constant 0 : index
    %159 = vector.load %arg2[%c3_114, %c0_115, %c0_116] : memref<9x3x64xf32, #tpu.memory_space<vmem>>, vector<1x3x64xf32>
    %160 = vector.shape_cast %159 : vector<1x3x64xf32> to vector<3x64xf32>
    %cst_117 = arith.constant dense<0.000000e+00> : vector<256x64xf32>
    %161 = tpu.matmul %158, %160, %cst_117 {dimension_numbers = #tpu.dot_dimension_numbers<[1], [0], [0], [1], [0, 0, 1, 1], [], []>} : vector<256x3xf32>, vector<3x64xf32>, vector<256x64xf32> -> vector<256x64xf32>
    %162 = arith.addf %154, %161 : vector<256x64xf32>
    %163 = vector.extract_strided_slice %156 {offsets = [0, 1, 0], sizes = [8, 32, 3], strides = [1, 1, 1]} : vector<8x34x3xf32> to vector<8x32x3xf32>
    %164 = vector.shape_cast %163 : vector<8x32x3xf32> to vector<256x3xf32>
    %c4_118 = arith.constant 4 : index
    %c0_119 = arith.constant 0 : index
    %c0_120 = arith.constant 0 : index
    %165 = vector.load %arg2[%c4_118, %c0_119, %c0_120] : memref<9x3x64xf32, #tpu.memory_space<vmem>>, vector<1x3x64xf32>
    %166 = vector.shape_cast %165 : vector<1x3x64xf32> to vector<3x64xf32>
    %cst_121 = arith.constant dense<0.000000e+00> : vector<256x64xf32>
    %167 = tpu.matmul %164, %166, %cst_121 {dimension_numbers = #tpu.dot_dimension_numbers<[1], [0], [0], [1], [0, 0, 1, 1], [], []>} : vector<256x3xf32>, vector<3x64xf32>, vector<256x64xf32> -> vector<256x64xf32>
    %168 = arith.addf %162, %167 : vector<256x64xf32>
    %169 = vector.extract_strided_slice %156 {offsets = [0, 2, 0], sizes = [8, 32, 3], strides = [1, 1, 1]} : vector<8x34x3xf32> to vector<8x32x3xf32>
    %170 = vector.shape_cast %169 : vector<8x32x3xf32> to vector<256x3xf32>
    %c5_122 = arith.constant 5 : index
    %c0_123 = arith.constant 0 : index
    %c0_124 = arith.constant 0 : index
    %171 = vector.load %arg2[%c5_122, %c0_123, %c0_124] : memref<9x3x64xf32, #tpu.memory_space<vmem>>, vector<1x3x64xf32>
    %172 = vector.shape_cast %171 : vector<1x3x64xf32> to vector<3x64xf32>
    %cst_125 = arith.constant dense<0.000000e+00> : vector<256x64xf32>
    %173 = tpu.matmul %170, %172, %cst_125 {dimension_numbers = #tpu.dot_dimension_numbers<[1], [0], [0], [1], [0, 0, 1, 1], [], []>} : vector<256x3xf32>, vector<3x64xf32>, vector<256x64xf32> -> vector<256x64xf32>
    %174 = arith.addf %168, %173 : vector<256x64xf32>
    %c0_126 = arith.constant 0 : index
    %c18 = arith.constant 18 : index
    %c0_127 = arith.constant 0 : index
    %c0_128 = arith.constant 0 : index
    %175 = vector.load %arg1[%c0_126, %c18, %c0_127, %c0_128] : memref<1x34x34x3xf32, #tpu.memory_space<vmem>>, vector<1x8x34x3xf32>
    %176 = vector.shape_cast %175 : vector<1x8x34x3xf32> to vector<8x34x3xf32>
    %177 = vector.extract_strided_slice %176 {offsets = [0, 0, 0], sizes = [8, 32, 3], strides = [1, 1, 1]} : vector<8x34x3xf32> to vector<8x32x3xf32>
    %178 = vector.shape_cast %177 : vector<8x32x3xf32> to vector<256x3xf32>
    %c6_129 = arith.constant 6 : index
    %c0_130 = arith.constant 0 : index
    %c0_131 = arith.constant 0 : index
    %179 = vector.load %arg2[%c6_129, %c0_130, %c0_131] : memref<9x3x64xf32, #tpu.memory_space<vmem>>, vector<1x3x64xf32>
    %180 = vector.shape_cast %179 : vector<1x3x64xf32> to vector<3x64xf32>
    %cst_132 = arith.constant dense<0.000000e+00> : vector<256x64xf32>
    %181 = tpu.matmul %178, %180, %cst_132 {dimension_numbers = #tpu.dot_dimension_numbers<[1], [0], [0], [1], [0, 0, 1, 1], [], []>} : vector<256x3xf32>, vector<3x64xf32>, vector<256x64xf32> -> vector<256x64xf32>
    %182 = arith.addf %174, %181 : vector<256x64xf32>
    %183 = vector.extract_strided_slice %176 {offsets = [0, 1, 0], sizes = [8, 32, 3], strides = [1, 1, 1]} : vector<8x34x3xf32> to vector<8x32x3xf32>
    %184 = vector.shape_cast %183 : vector<8x32x3xf32> to vector<256x3xf32>
    %c7_133 = arith.constant 7 : index
    %c0_134 = arith.constant 0 : index
    %c0_135 = arith.constant 0 : index
    %185 = vector.load %arg2[%c7_133, %c0_134, %c0_135] : memref<9x3x64xf32, #tpu.memory_space<vmem>>, vector<1x3x64xf32>
    %186 = vector.shape_cast %185 : vector<1x3x64xf32> to vector<3x64xf32>
    %cst_136 = arith.constant dense<0.000000e+00> : vector<256x64xf32>
    %187 = tpu.matmul %184, %186, %cst_136 {dimension_numbers = #tpu.dot_dimension_numbers<[1], [0], [0], [1], [0, 0, 1, 1], [], []>} : vector<256x3xf32>, vector<3x64xf32>, vector<256x64xf32> -> vector<256x64xf32>
    %188 = arith.addf %182, %187 : vector<256x64xf32>
    %189 = vector.extract_strided_slice %176 {offsets = [0, 2, 0], sizes = [8, 32, 3], strides = [1, 1, 1]} : vector<8x34x3xf32> to vector<8x32x3xf32>
    %190 = vector.shape_cast %189 : vector<8x32x3xf32> to vector<256x3xf32>
    %c8_137 = arith.constant 8 : index
    %c0_138 = arith.constant 0 : index
    %c0_139 = arith.constant 0 : index
    %191 = vector.load %arg2[%c8_137, %c0_138, %c0_139] : memref<9x3x64xf32, #tpu.memory_space<vmem>>, vector<1x3x64xf32>
    %192 = vector.shape_cast %191 : vector<1x3x64xf32> to vector<3x64xf32>
    %cst_140 = arith.constant dense<0.000000e+00> : vector<256x64xf32>
    %193 = tpu.matmul %190, %192, %cst_140 {dimension_numbers = #tpu.dot_dimension_numbers<[1], [0], [0], [1], [0, 0, 1, 1], [], []>} : vector<256x3xf32>, vector<3x64xf32>, vector<256x64xf32> -> vector<256x64xf32>
    %194 = arith.addf %188, %193 : vector<256x64xf32>
    %cst_141 = arith.constant 0.000000e+00 : f32
    %195 = vector.broadcast %cst_141 : f32 to vector<256x64xf32>
    %196 = arith.maximumf %194, %195 : vector<256x64xf32>
    %197 = vector.shape_cast %196 : vector<256x64xf32> to vector<8x32x64xf32>
    %c0_142 = arith.constant 0 : index
    %c16_143 = arith.constant 16 : index
    %c0_144 = arith.constant 0 : index
    %c0_145 = arith.constant 0 : index
    %198 = vector.load %arg4[%c0_142, %c16_143, %c0_144, %c0_145] : memref<1x32x32x64xf32, #tpu.memory_space<vmem>>, vector<1x8x32x64xf32>
    %199 = vector.shape_cast %198 : vector<1x8x32x64xf32> to vector<8x32x64xf32>
    %200 = vector.shape_cast %197 : vector<8x32x64xf32> to vector<1x8x32x64xf32>
    tpu.vector_store %arg4[%c0_142, %c16_143, %c0_144, %c0_145], %200 {strides = array<i32>} : memref<1x32x32x64xf32, #tpu.memory_space<vmem>>, vector<1x8x32x64xf32>,
    %c0_146 = arith.constant 0 : index
    %c24 = arith.constant 24 : index
    %c0_147 = arith.constant 0 : index
    %c0_148 = arith.constant 0 : index
    %201 = vector.load %arg1[%c0_146, %c24, %c0_147, %c0_148] : memref<1x34x34x3xf32, #tpu.memory_space<vmem>>, vector<1x8x34x3xf32>
    %202 = vector.shape_cast %201 : vector<1x8x34x3xf32> to vector<8x34x3xf32>
    %203 = vector.extract_strided_slice %202 {offsets = [0, 0, 0], sizes = [8, 32, 3], strides = [1, 1, 1]} : vector<8x34x3xf32> to vector<8x32x3xf32>
    %204 = vector.shape_cast %203 : vector<8x32x3xf32> to vector<256x3xf32>
    %c0_149 = arith.constant 0 : index
    %c0_150 = arith.constant 0 : index
    %c0_151 = arith.constant 0 : index
    %205 = vector.load %arg2[%c0_149, %c0_150, %c0_151] : memref<9x3x64xf32, #tpu.memory_space<vmem>>, vector<1x3x64xf32>
    %206 = vector.shape_cast %205 : vector<1x3x64xf32> to vector<3x64xf32>
    %cst_152 = arith.constant dense<0.000000e+00> : vector<256x64xf32>
    %207 = tpu.matmul %204, %206, %cst_152 {dimension_numbers = #tpu.dot_dimension_numbers<[1], [0], [0], [1], [0, 0, 1, 1], [], []>} : vector<256x3xf32>, vector<3x64xf32>, vector<256x64xf32> -> vector<256x64xf32>
    %208 = arith.addf %2, %207 : vector<256x64xf32>
    %209 = vector.extract_strided_slice %202 {offsets = [0, 1, 0], sizes = [8, 32, 3], strides = [1, 1, 1]} : vector<8x34x3xf32> to vector<8x32x3xf32>
    %210 = vector.shape_cast %209 : vector<8x32x3xf32> to vector<256x3xf32>
    %c1_153 = arith.constant 1 : index
    %c0_154 = arith.constant 0 : index
    %c0_155 = arith.constant 0 : index
    %211 = vector.load %arg2[%c1_153, %c0_154, %c0_155] : memref<9x3x64xf32, #tpu.memory_space<vmem>>, vector<1x3x64xf32>
    %212 = vector.shape_cast %211 : vector<1x3x64xf32> to vector<3x64xf32>
    %cst_156 = arith.constant dense<0.000000e+00> : vector<256x64xf32>
    %213 = tpu.matmul %210, %212, %cst_156 {dimension_numbers = #tpu.dot_dimension_numbers<[1], [0], [0], [1], [0, 0, 1, 1], [], []>} : vector<256x3xf32>, vector<3x64xf32>, vector<256x64xf32> -> vector<256x64xf32>
    %214 = arith.addf %208, %213 : vector<256x64xf32>
    %215 = vector.extract_strided_slice %202 {offsets = [0, 2, 0], sizes = [8, 32, 3], strides = [1, 1, 1]} : vector<8x34x3xf32> to vector<8x32x3xf32>
    %216 = vector.shape_cast %215 : vector<8x32x3xf32> to vector<256x3xf32>
    %c2_157 = arith.constant 2 : index
    %c0_158 = arith.constant 0 : index
    %c0_159 = arith.constant 0 : index
    %217 = vector.load %arg2[%c2_157, %c0_158, %c0_159] : memref<9x3x64xf32, #tpu.memory_space<vmem>>, vector<1x3x64xf32>
    %218 = vector.shape_cast %217 : vector<1x3x64xf32> to vector<3x64xf32>
    %cst_160 = arith.constant dense<0.000000e+00> : vector<256x64xf32>
    %219 = tpu.matmul %216, %218, %cst_160 {dimension_numbers = #tpu.dot_dimension_numbers<[1], [0], [0], [1], [0, 0, 1, 1], [], []>} : vector<256x3xf32>, vector<3x64xf32>, vector<256x64xf32> -> vector<256x64xf32>
    %220 = arith.addf %214, %219 : vector<256x64xf32>
    %c0_161 = arith.constant 0 : index
    %c25 = arith.constant 25 : index
    %c0_162 = arith.constant 0 : index
    %c0_163 = arith.constant 0 : index
    %221 = vector.load %arg1[%c0_161, %c25, %c0_162, %c0_163] : memref<1x34x34x3xf32, #tpu.memory_space<vmem>>, vector<1x8x34x3xf32>
    %222 = vector.shape_cast %221 : vector<1x8x34x3xf32> to vector<8x34x3xf32>
    %223 = vector.extract_strided_slice %222 {offsets = [0, 0, 0], sizes = [8, 32, 3], strides = [1, 1, 1]} : vector<8x34x3xf32> to vector<8x32x3xf32>
    %224 = vector.shape_cast %223 : vector<8x32x3xf32> to vector<256x3xf32>
    %c3_164 = arith.constant 3 : index
    %c0_165 = arith.constant 0 : index
    %c0_166 = arith.constant 0 : index
    %225 = vector.load %arg2[%c3_164, %c0_165, %c0_166] : memref<9x3x64xf32, #tpu.memory_space<vmem>>, vector<1x3x64xf32>
    %226 = vector.shape_cast %225 : vector<1x3x64xf32> to vector<3x64xf32>
    %cst_167 = arith.constant dense<0.000000e+00> : vector<256x64xf32>
    %227 = tpu.matmul %224, %226, %cst_167 {dimension_numbers = #tpu.dot_dimension_numbers<[1], [0], [0], [1], [0, 0, 1, 1], [], []>} : vector<256x3xf32>, vector<3x64xf32>, vector<256x64xf32> -> vector<256x64xf32>
    %228 = arith.addf %220, %227 : vector<256x64xf32>
    %229 = vector.extract_strided_slice %222 {offsets = [0, 1, 0], sizes = [8, 32, 3], strides = [1, 1, 1]} : vector<8x34x3xf32> to vector<8x32x3xf32>
    %230 = vector.shape_cast %229 : vector<8x32x3xf32> to vector<256x3xf32>
    %c4_168 = arith.constant 4 : index
    %c0_169 = arith.constant 0 : index
    %c0_170 = arith.constant 0 : index
    %231 = vector.load %arg2[%c4_168, %c0_169, %c0_170] : memref<9x3x64xf32, #tpu.memory_space<vmem>>, vector<1x3x64xf32>
    %232 = vector.shape_cast %231 : vector<1x3x64xf32> to vector<3x64xf32>
    %cst_171 = arith.constant dense<0.000000e+00> : vector<256x64xf32>
    %233 = tpu.matmul %230, %232, %cst_171 {dimension_numbers = #tpu.dot_dimension_numbers<[1], [0], [0], [1], [0, 0, 1, 1], [], []>} : vector<256x3xf32>, vector<3x64xf32>, vector<256x64xf32> -> vector<256x64xf32>
    %234 = arith.addf %228, %233 : vector<256x64xf32>
    %235 = vector.extract_strided_slice %222 {offsets = [0, 2, 0], sizes = [8, 32, 3], strides = [1, 1, 1]} : vector<8x34x3xf32> to vector<8x32x3xf32>
    %236 = vector.shape_cast %235 : vector<8x32x3xf32> to vector<256x3xf32>
    %c5_172 = arith.constant 5 : index
    %c0_173 = arith.constant 0 : index
    %c0_174 = arith.constant 0 : index
    %237 = vector.load %arg2[%c5_172, %c0_173, %c0_174] : memref<9x3x64xf32, #tpu.memory_space<vmem>>, vector<1x3x64xf32>
    %238 = vector.shape_cast %237 : vector<1x3x64xf32> to vector<3x64xf32>
    %cst_175 = arith.constant dense<0.000000e+00> : vector<256x64xf32>
    %239 = tpu.matmul %236, %238, %cst_175 {dimension_numbers = #tpu.dot_dimension_numbers<[1], [0], [0], [1], [0, 0, 1, 1], [], []>} : vector<256x3xf32>, vector<3x64xf32>, vector<256x64xf32> -> vector<256x64xf32>
    %240 = arith.addf %234, %239 : vector<256x64xf32>
    %c0_176 = arith.constant 0 : index
    %c26 = arith.constant 26 : index
    %c0_177 = arith.constant 0 : index
    %c0_178 = arith.constant 0 : index
    %241 = vector.load %arg1[%c0_176, %c26, %c0_177, %c0_178] : memref<1x34x34x3xf32, #tpu.memory_space<vmem>>, vector<1x8x34x3xf32>
    %242 = vector.shape_cast %241 : vector<1x8x34x3xf32> to vector<8x34x3xf32>
    %243 = vector.extract_strided_slice %242 {offsets = [0, 0, 0], sizes = [8, 32, 3], strides = [1, 1, 1]} : vector<8x34x3xf32> to vector<8x32x3xf32>
    %244 = vector.shape_cast %243 : vector<8x32x3xf32> to vector<256x3xf32>
    %c6_179 = arith.constant 6 : index
    %c0_180 = arith.constant 0 : index
    %c0_181 = arith.constant 0 : index
    %245 = vector.load %arg2[%c6_179, %c0_180, %c0_181] : memref<9x3x64xf32, #tpu.memory_space<vmem>>, vector<1x3x64xf32>
    %246 = vector.shape_cast %245 : vector<1x3x64xf32> to vector<3x64xf32>
    %cst_182 = arith.constant dense<0.000000e+00> : vector<256x64xf32>
    %247 = tpu.matmul %244, %246, %cst_182 {dimension_numbers = #tpu.dot_dimension_numbers<[1], [0], [0], [1], [0, 0, 1, 1], [], []>} : vector<256x3xf32>, vector<3x64xf32>, vector<256x64xf32> -> vector<256x64xf32>
    %248 = arith.addf %240, %247 : vector<256x64xf32>
    %249 = vector.extract_strided_slice %242 {offsets = [0, 1, 0], sizes = [8, 32, 3], strides = [1, 1, 1]} : vector<8x34x3xf32> to vector<8x32x3xf32>
    %250 = vector.shape_cast %249 : vector<8x32x3xf32> to vector<256x3xf32>
    %c7_183 = arith.constant 7 : index
    %c0_184 = arith.constant 0 : index
    %c0_185 = arith.constant 0 : index
    %251 = vector.load %arg2[%c7_183, %c0_184, %c0_185] : memref<9x3x64xf32, #tpu.memory_space<vmem>>, vector<1x3x64xf32>
    %252 = vector.shape_cast %251 : vector<1x3x64xf32> to vector<3x64xf32>
    %cst_186 = arith.constant dense<0.000000e+00> : vector<256x64xf32>
    %253 = tpu.matmul %250, %252, %cst_186 {dimension_numbers = #tpu.dot_dimension_numbers<[1], [0], [0], [1], [0, 0, 1, 1], [], []>} : vector<256x3xf32>, vector<3x64xf32>, vector<256x64xf32> -> vector<256x64xf32>
    %254 = arith.addf %248, %253 : vector<256x64xf32>
    %255 = vector.extract_strided_slice %242 {offsets = [0, 2, 0], sizes = [8, 32, 3], strides = [1, 1, 1]} : vector<8x34x3xf32> to vector<8x32x3xf32>
    %256 = vector.shape_cast %255 : vector<8x32x3xf32> to vector<256x3xf32>
    %c8_187 = arith.constant 8 : index
    %c0_188 = arith.constant 0 : index
    %c0_189 = arith.constant 0 : index
    %257 = vector.load %arg2[%c8_187, %c0_188, %c0_189] : memref<9x3x64xf32, #tpu.memory_space<vmem>>, vector<1x3x64xf32>
    %258 = vector.shape_cast %257 : vector<1x3x64xf32> to vector<3x64xf32>
    %cst_190 = arith.constant dense<0.000000e+00> : vector<256x64xf32>
    %259 = tpu.matmul %256, %258, %cst_190 {dimension_numbers = #tpu.dot_dimension_numbers<[1], [0], [0], [1], [0, 0, 1, 1], [], []>} : vector<256x3xf32>, vector<3x64xf32>, vector<256x64xf32> -> vector<256x64xf32>
    %260 = arith.addf %254, %259 : vector<256x64xf32>
    %cst_191 = arith.constant 0.000000e+00 : f32
    %261 = vector.broadcast %cst_191 : f32 to vector<256x64xf32>
    %262 = arith.maximumf %260, %261 : vector<256x64xf32>
    %263 = vector.shape_cast %262 : vector<256x64xf32> to vector<8x32x64xf32>
    %c0_192 = arith.constant 0 : index
    %c24_193 = arith.constant 24 : index
    %c0_194 = arith.constant 0 : index
    %c0_195 = arith.constant 0 : index
    %264 = vector.load %arg4[%c0_192, %c24_193, %c0_194, %c0_195] : memref<1x32x32x64xf32, #tpu.memory_space<vmem>>, vector<1x8x32x64xf32>
    %265 = vector.shape_cast %264 : vector<1x8x32x64xf32> to vector<8x32x64xf32>
    %266 = vector.shape_cast %263 : vector<8x32x64xf32> to vector<1x8x32x64xf32>
    tpu.vector_store %arg4[%c0_192, %c24_193, %c0_194, %c0_195], %266 {strides = array<i32>} : memref<1x32x32x64xf32, #tpu.memory_space<vmem>>, vector<1x8x32x64xf32>,
    return
  }
  func.func @transform_0(%arg0: i32) -> (i32, i32, i32, i32) {
    %c0_i32 = arith.constant 0 : i32
    %c0_i32_0 = arith.constant 0 : i32
    %c0_i32_1 = arith.constant 0 : i32
    %c0_i32_2 = arith.constant 0 : i32
    return %arg0, %c0_i32, %c0_i32_0, %c0_i32_1 : i32, i32, i32, i32
  }
  func.func @transform_1(%arg0: i32) -> (i32, i32, i32) {
    %c0_i32 = arith.constant 0 : i32
    %c0_i32_0 = arith.constant 0 : i32
    %c0_i32_1 = arith.constant 0 : i32
    %c0_i32_2 = arith.constant 0 : i32
    return %c0_i32, %c0_i32_0, %c0_i32_1 : i32, i32, i32
  }
  func.func @transform_2(%arg0: i32) -> (i32, i32) {
    %c0_i32 = arith.constant 0 : i32
    %c0_i32_0 = arith.constant 0 : i32
    %c0_i32_1 = arith.constant 0 : i32
    return %c0_i32, %c0_i32_0 : i32, i32
  }
  func.func @transform_3(%arg0: i32) -> (i32, i32, i32, i32) {
    %c0_i32 = arith.constant 0 : i32
    %c0_i32_0 = arith.constant 0 : i32
    %c0_i32_1 = arith.constant 0 : i32
    %c0_i32_2 = arith.constant 0 : i32
    return %arg0, %c0_i32, %c0_i32_0, %c0_i32_1 : i32, i32, i32, i32
  }
}

</mosaic_0001>

<llo_original>
// kernel: tpu_custom_call.1
$region0: #{tpu_custom_call.1}
  #allocation0 [shape = 'u32[]', space=smem, size = 0x4, offset = 0x4, fixed_abs, tag = 'smem constant byte address 0x4 - core index']
  #allocation1 [shape = 'u32[72,128]{1,0:T(1,128)}', space=vmem, size = 0x9000, scoped, tag = 'internal scratch']
  %s0 = inlined_call_operand.vmem [shape: f32[2,34,34,3], index: 0, kind: input, shape index: {}]
  %s1 = inlined_call_operand.vmem [shape: f32[9,3,64], index: 1, kind: input, shape index: {}]
  %s2 = inlined_call_operand.vmem [shape: f32[1,64], index: 2, kind: input, shape index: {}]
  %s3 = inlined_call_operand.hbm [shape: f32[2,32,32,64], index: 3, kind: output, shape index: {}]
  %s4 = sld [smem:[#allocation0]]
  $region45: #{tpu_custom_call.1} parent=0
    _
  %s6 = ssub.s32 1, %s4
  %s7 = scalar_select 0, %s6, %s4
  $region1: #{tpu_custom_call.1} parent=0
    #allocation2 [shape = 'u8[1048576]{0}', space=vmem, size = 0x100000, scoped, tag = 'output window, operand 0']
    #allocation3 [shape = 's32[2]{0}', space=sflag, size = 0x8, scoped, tag = 'scoped memory for tpu_custom_call.1']
    %8 = vsyncpa [#allocation3], 0
    %s9 = scalar_lea.sflag [#allocation3], 1
    %10 = vsyncpa %s9, 0
    loop: start=0, step=1, limit=4
    $region2: #{tpu_custom_call.1} parent=1 // loop_pre_header
      _
    $region3: #{tpu_custom_call.1} parent=1 // loop_header
      %s12 = sphi 0, %s16
      %p13 = scmp.ge.s32.totalorder %s12, 4
      %s22 = sphi 0, %s24
      %s25 = sphi 0, %s22
      %s26 = sphi 0, %s25
      %s42 = sphi 0, %s26
      %s46 = sphi 0, %s46
      %s48 = sphi 0, %s46
      %s49 = sphi 0, %s48
      %s63 = sphi 0, %s49
      %s67 = sphi 0, %s67
      %s69 = sphi 0, %s67
      %s70 = sphi 0, %s69
      %s84 = sphi 0, %s70
      %s90 = sphi 0, %s92
      %s93 = sphi 0, %s90
      %s94 = sphi 0, %s93
      %s110 = sphi 0, %s94
    $region4: #{tpu_custom_call.1} parent=1 // loop_header_branch
      %15 = sbr.rel (%p13) target = $region8
    $region5: #{tpu_custom_call.1} parent=1 // loop_body
      %s17 = ssub.s32 %s12, 1
      %s18 = ssub.s32 %s12, 2
      %s19 = sadd.s32 %s12, 1
      %s20 = ssub.s32 %s12, %s19
      %p21 = scmp.eq.s32.totalorder %s20, 0
      %s23 = sadd.s32 %s22, 1
      %s24 = scalar_select %p21, %s22, %s23
      %p27 = pneg %p21
      %p28 = scmp.eq.s32.totalorder %s12, 1
      %p29 = por %p27, %p28
      %p30 = scmp.ne.s32.totalorder %s22, %s25
      %p31 = scmp.eq.s32.totalorder %s12, 0
      %p32 = por %p30, %p31
      %p33 = scmp.ne.s32.totalorder %s22, %s25
      %p34 = scmp.eq.s32.totalorder %s17, 1
      %p35 = por %p33, %p34
      %p36 = scmp.ne.s32.totalorder %s25, %s26
      %p37 = scmp.eq.s32.totalorder %s17, 0
      %p38 = por %p36, %p37
      %p39 = scmp.ne.s32.totalorder %s25, %s26
      %p40 = scmp.eq.s32.totalorder %s18, 1
      %p41 = por %p39, %p40
      %p43 = scmp.ne.s32.totalorder %s26, %s42
      %p44 = scmp.eq.s32.totalorder %s18, 0
      %p45 = por %p43, %p44
      %s47 = sadd.s32 %s46, 1
      %p50 = scmp.eq.s32.totalorder %s12, 1
      %p51 = scmp.ne.s32.totalorder %s46, %s48
      %p52 = scmp.eq.s32.totalorder %s12, 0
      %p53 = por %p51, %p52
      %p54 = scmp.ne.s32.totalorder %s46, %s48
      %p55 = scmp.eq.s32.totalorder %s17, 1
      %p56 = por %p54, %p55
      %p57 = scmp.ne.s32.totalorder %s48, %s49
      %p58 = scmp.eq.s32.totalorder %s17, 0
      %p59 = por %p57, %p58
      %p60 = scmp.ne.s32.totalorder %s48, %s49
      %p61 = scmp.eq.s32.totalorder %s18, 1
      %p62 = por %p60, %p61
      %p64 = scmp.ne.s32.totalorder %s49, %s63
      %p65 = scmp.eq.s32.totalorder %s18, 0
      %p66 = por %p64, %p65
      %s68 = sadd.s32 %s67, 1
      %p71 = scmp.eq.s32.totalorder %s12, 1
      %p72 = scmp.ne.s32.totalorder %s67, %s69
      %p73 = scmp.eq.s32.totalorder %s12, 0
      %p74 = por %p72, %p73
      %p75 = scmp.ne.s32.totalorder %s67, %s69
      %p76 = scmp.eq.s32.totalorder %s17, 1
      %p77 = por %p75, %p76
      %p78 = scmp.ne.s32.totalorder %s69, %s70
      %p79 = scmp.eq.s32.totalorder %s17, 0
      %p80 = por %p78, %p79
      %p81 = scmp.ne.s32.totalorder %s69, %s70
      %p82 = scmp.eq.s32.totalorder %s18, 1
      %p83 = por %p81, %p82
      %p85 = scmp.ne.s32.totalorder %s70, %s84
      %p86 = scmp.eq.s32.totalorder %s18, 0
      %p87 = por %p85, %p86
      %s88 = ssub.s32 %s12, %s19
      %p89 = scmp.eq.s32.totalorder %s88, 0
      %s91 = sadd.s32 %s90, 1
      %s92 = scalar_select %p89, %s90, %s91
      %p95 = pneg %p89
      %p96 = scmp.eq.s32.totalorder %s12, 1
      %p97 = por %p95, %p96
      %p98 = scmp.ne.s32.totalorder %s90, %s93
      %p99 = scmp.eq.s32.totalorder %s12, 0
      %p100 = por %p98, %p99
      %p101 = scmp.ne.s32.totalorder %s90, %s93
      %p102 = scmp.eq.s32.totalorder %s17, 1
      %p103 = por %p101, %p102
      %p104 = scmp.ne.s32.totalorder %s93, %s94
      %p105 = scmp.eq.s32.totalorder %s17, 0
      %p106 = por %p104, %p105
      %p107 = scmp.ne.s32.totalorder %s93, %s94
      %p108 = scmp.eq.s32.totalorder %s18, 1
      %p109 = por %p107, %p108
      %p111 = scmp.ne.s32.totalorder %s94, %s110
      %p112 = scmp.eq.s32.totalorder %s18, 0
      %p113 = por %p111, %p112
      %p114 = scmp.le.s32.totalorder 1, %s12
      %p115 = scmp.lt.s32.totalorder %s12, 3
      %p116 = pnand %p114, %p115
      %p117 = pneg %p116
      // Predicated region
      $region9: #{tpu_custom_call.1} parent=5 // pred_check
        _
      $region10: #{tpu_custom_call.1} parent=5 // pred_check_branch
        %119 = sbr.rel (%p116) target = $region12
      $region11: #{tpu_custom_call.1} parent=5 // pred_region
        %s120 = ssub.s32 %s12, 1
        // Predicated region
        $region13: #{tpu_custom_call.1} parent=11 // pred_check
          %p121 = pneg %p59
        $region14: #{tpu_custom_call.1} parent=11 // pred_check_branch
          %123 = sbr.rel (%p121) target = $region16
        $region15: #{tpu_custom_call.1} parent=11 // pred_region
          _
        $region16: #{tpu_custom_call.1} parent=11 // pred_fallthru
          _
        // Predicated region
        $region17: #{tpu_custom_call.1} parent=11 // pred_check
          %p124 = pneg %p80
        $region18: #{tpu_custom_call.1} parent=11 // pred_check_branch
          %126 = sbr.rel (%p124) target = $region20
        $region19: #{tpu_custom_call.1} parent=11 // pred_region
          _
        $region20: #{tpu_custom_call.1} parent=11 // pred_fallthru
          _
      $region12: #{tpu_custom_call.1} parent=5 // pred_fallthru
        _
      %p127 = scmp.lt.s32.totalorder %s12, 2
      // Predicated region
      $region21: #{tpu_custom_call.1} parent=5 // pred_check
        %p128 = pneg %p127
      $region22: #{tpu_custom_call.1} parent=5 // pred_check_branch
        %130 = sbr.rel (%p128) target = $region24
      $region23: #{tpu_custom_call.1} parent=5 // pred_region
        // Predicated region
        $region25: #{tpu_custom_call.1} parent=23 // pred_check
          %p131 = pneg %p32
        $region26: #{tpu_custom_call.1} parent=23 // pred_check_branch
          %133 = sbr.rel (%p131) target = $region28
        $region27: #{tpu_custom_call.1} parent=23 // pred_region
          %p134 = scmp.lt.s32.totalorder %s12, 1
          %s135 = scalar_select %p134, %s12, 1
          %s136 = smul.addr %s135, 170
          %s137 = smul.addr %s136, 8
          %s138 = scalar_lea.vmem %s0, %s137
        $region28: #{tpu_custom_call.1} parent=23 // pred_fallthru
          _
      $region24: #{tpu_custom_call.1} parent=5 // pred_fallthru
        _
      %p139 = scmp.le.s32.totalorder 1, %s12
      %p140 = scmp.lt.s32.totalorder %s12, 3
      %p141 = pnand %p139, %p140
      %p142 = pneg %p141
      // Predicated region
      $region29: #{tpu_custom_call.1} parent=5 // pred_check
        _
      $region30: #{tpu_custom_call.1} parent=5 // pred_check_branch
        %144 = sbr.rel (%p141) target = $region32
      $region31: #{tpu_custom_call.1} parent=5 // pred_region
        %s145 = ssub.s32 %s12, 1
        %p146 = scmp.lt.s32.totalorder %s17, 1
        %s147 = scalar_select %p146, %s17, 1
        %s148 = smul.addr %s147, 170
        %s149 = smul.addr %s148, 8
        %s150 = scalar_lea.vmem %s0, %s149
        %p151 = pneg %p38
        %p152 = pneg %p35
        %p153 = pneg %p59
        %p154 = pneg %p56
        %p155 = pneg %p80
        %p156 = pneg %p77
        %p157 = pneg %p106
        %p158 = pneg %p103
        %s159 = sand.u32 %s93, 1
        %s160 = scalar_lea.sflag [#allocation3], %s159
        %s161 = sand.u32 %s93, 1
        %s162 = smul.addr %s161, 1024
        %s163 = scalar_lea.vmem [#allocation2], %s162
        %p164 = scmp.lt.s32.totalorder %s17, 1
        %s165 = scalar_select %p164, %s17, 1
        %s166 = smul.addr %s165, 170
        %s167 = smul.addr %s166, 8
        %s168 = scalar_lea.vmem %s0, %s167
        %v169 = vld [vmem:[%s2] sm:$0x1]
        %v171 = vperm.slane %v169, 0
        %v173 = vld [vmem:[%s168] sm:$0xff]
        %v174 = vld [vmem:[%s168 + $0x8] sm:$0xff]
        %v175 = vld [vmem:[%s168 + $0x10] sm:$0xff]
        %v176 = vld [vmem:[%s168 + $0x18] sm:$0xff]
        %v177 = vld [vmem:[%s168 + $0x20] sm:$0x3]
        %v178 = vld [vmem:[%s168 + $0x28] sm:$0xff]
        %v179 = vld [vmem:[%s168 + $0x30] sm:$0xff]
        %v180 = vld [vmem:[%s168 + $0x38] sm:$0xff]
        %v181 = vld [vmem:[%s168 + $0x40] sm:$0xff]
        %v182 = vld [vmem:[%s168 + $0x48] sm:$0x3]
        %v183 = vld [vmem:[%s168 + $0x50] sm:$0xff]
        %v184 = vld [vmem:[%s168 + $0x58] sm:$0xff]
        %v185 = vld [vmem:[%s168 + $0x60] sm:$0xff]
        %v186 = vld [vmem:[%s168 + $0x68] sm:$0xff]
        %v187 = vld [vmem:[%s168 + $0x70] sm:$0x3]
        %v188 = vld [vmem:[%s168 + $0x78] sm:$0xff]
        %v189 = vld [vmem:[%s168 + $0x80] sm:$0xff]
        %v190 = vld [vmem:[%s168 + $0x88] sm:$0xff]
        %v191 = vld [vmem:[%s168 + $0x90] sm:$0xff]
        %v192 = vld [vmem:[%s168 + $0x98] sm:$0x3]
        %v193 = vld [vmem:[%s168 + $0xa0] sm:$0xff]
        %v194 = vld [vmem:[%s168 + $0xa8] sm:$0xff]
        %v195 = vld [vmem:[%s168 + $0xb0] sm:$0xff]
        %v196 = vld [vmem:[%s168 + $0xb8] sm:$0xff]
        %v197 = vld [vmem:[%s168 + $0xc0] sm:$0x3]
        %v198 = vld [vmem:[%s168 + $0xc8] sm:$0xff]
        %v199 = vld [vmem:[%s168 + $0xd0] sm:$0xff]
        %v200 = vld [vmem:[%s168 + $0xd8] sm:$0xff]
        %v201 = vld [vmem:[%s168 + $0xe0] sm:$0xff]
        %v202 = vld [vmem:[%s168 + $0xe8] sm:$0x3]
        %v203 = vld [vmem:[%s168 + $0xf0] sm:$0xff]
        %v204 = vld [vmem:[%s168 + $0xf8] sm:$0xff]
        %v205 = vld [vmem:[%s168 + $0x100] sm:$0xff]
        %v206 = vld [vmem:[%s168 + $0x108] sm:$0xff]
        %v207 = vld [vmem:[%s168 + $0x110] sm:$0x3]
        %v208 = vld [vmem:[%s168 + $0x118] sm:$0xff]
        %v209 = vld [vmem:[%s168 + $0x120] sm:$0xff]
        %v210 = vld [vmem:[%s168 + $0x128] sm:$0xff]
        %v211 = vld [vmem:[%s168 + $0x130] sm:$0xff]
        %v212 = vld [vmem:[%s168 + $0x138] sm:$0x3]
        %v213 = vld [vmem:[%s1] sm:$0x7]
        %vm214 = vcmask 23552
        %v216 = vsel %vm214, %v173, 0
        %v219 = vsel %vm214, %v174, 0
        %v222 = vsel %vm214, %v175, 0
        %v225 = vsel %vm214, %v176, 0
        %v228 = vsel %vm214, %v178, 0
        %v231 = vsel %vm214, %v179, 0
        %v234 = vsel %vm214, %v180, 0
        %v237 = vsel %vm214, %v181, 0
        %v240 = vsel %vm214, %v183, 0
        %v243 = vsel %vm214, %v184, 0
        %v246 = vsel %vm214, %v185, 0
        %v249 = vsel %vm214, %v186, 0
        %v252 = vsel %vm214, %v188, 0
        %v255 = vsel %vm214, %v189, 0
        %v258 = vsel %vm214, %v190, 0
        %v261 = vsel %vm214, %v191, 0
        %v264 = vsel %vm214, %v193, 0
        %v267 = vsel %vm214, %v194, 0
        %v270 = vsel %vm214, %v195, 0
        %v273 = vsel %vm214, %v196, 0
        %v276 = vsel %vm214, %v198, 0
        %v279 = vsel %vm214, %v199, 0
        %v282 = vsel %vm214, %v200, 0
        %v285 = vsel %vm214, %v201, 0
        %v288 = vsel %vm214, %v203, 0
        %v291 = vsel %vm214, %v204, 0
        %v294 = vsel %vm214, %v205, 0
        %v297 = vsel %vm214, %v206, 0
        %v300 = vsel %vm214, %v208, 0
        %v303 = vsel %vm214, %v209, 0
        %v306 = vsel %vm214, %v210, 0
        %v309 = vsel %vm214, %v211, 0
        %vm311 = vcmask 1042432
        %v313 = vsel %vm311, %v213, 0
        %315 = vmatpush.msra.mxu0 0.0
        %316 = vmatpush.msra.mxu0 0.0
        %317 = vmatpush.msra.mxu0 0.0
        %318 = vmatpush.msra.mxu0 0.0
        %319 = vmatpush.msra.mxu0 0.0
        %320 = vmatpush.msra.mxu0 0.0
        %321 = vmatpush.msra.mxu0 0.0
        %322 = vmatpush.msra.mxu0 0.0
        %323 = vmatpush.msra.mxu0 0.0
        %324 = vmatpush.msra.mxu0 0.0
        %325 = vmatpush.msra.mxu0 0.0
        %326 = vmatpush.msra.mxu0 0.0
        %327 = vmatpush.msra.mxu0 0.0
        %328 = vmatpush.msra.mxu0 0.0
        %329 = vmatpush.msra.mxu0 0.0
        %330 = vmatpush.msra.mxu0 %v313
        %331 = vmatmul.f32.gmra.mxu0 %v216
        %v332 = vpop.f32.mrf.mxu0
        %v333 = vadd.f32 0.0, %v332
        %334 = vmatmul.f32.gmra.mxu0 %v219
        %v335 = vpop.f32.mrf.mxu0
        %v336 = vadd.f32 0.0, %v335
        %337 = vmatmul.f32.gmra.mxu0 %v222
        %v338 = vpop.f32.mrf.mxu0
        %v339 = vadd.f32 0.0, %v338
        %340 = vmatmul.f32.gmra.mxu0 %v225
        %v341 = vpop.f32.mrf.mxu0
        %v342 = vadd.f32 0.0, %v341
        %343 = vmatmul.f32.gmra.mxu0 %v228
        %v344 = vpop.f32.mrf.mxu0
        %v345 = vadd.f32 0.0, %v344
        %346 = vmatmul.f32.gmra.mxu0 %v231
        %v347 = vpop.f32.mrf.mxu0
        %v348 = vadd.f32 0.0, %v347
        %349 = vmatmul.f32.gmra.mxu0 %v234
        %v350 = vpop.f32.mrf.mxu0
        %v351 = vadd.f32 0.0, %v350
        %352 = vmatmul.f32.gmra.mxu0 %v237
        %v353 = vpop.f32.mrf.mxu0
        %v354 = vadd.f32 0.0, %v353
        %355 = vmatmul.f32.gmra.mxu0 %v240
        %v356 = vpop.f32.mrf.mxu0
        %v357 = vadd.f32 0.0, %v356
        %358 = vmatmul.f32.gmra.mxu0 %v243
        %v359 = vpop.f32.mrf.mxu0
        %v360 = vadd.f32 0.0, %v359
        %361 = vmatmul.f32.gmra.mxu0 %v246
        %v362 = vpop.f32.mrf.mxu0
        %v363 = vadd.f32 0.0, %v362
        %364 = vmatmul.f32.gmra.mxu0 %v249
        %v365 = vpop.f32.mrf.mxu0
        %v366 = vadd.f32 0.0, %v365
        %367 = vmatmul.f32.gmra.mxu0 %v252
        %v368 = vpop.f32.mrf.mxu0
        %v369 = vadd.f32 0.0, %v368
        %370 = vmatmul.f32.gmra.mxu0 %v255
        %v371 = vpop.f32.mrf.mxu0
        %v372 = vadd.f32 0.0, %v371
        %373 = vmatmul.f32.gmra.mxu0 %v258
        %v374 = vpop.f32.mrf.mxu0
        %v375 = vadd.f32 0.0, %v374
        %376 = vmatmul.f32.gmra.mxu0 %v261
        %v377 = vpop.f32.mrf.mxu0
        %v378 = vadd.f32 0.0, %v377
        %379 = vmatmul.f32.gmra.mxu0 %v264
        %v380 = vpop.f32.mrf.mxu0
        %v381 = vadd.f32 0.0, %v380
        %382 = vmatmul.f32.gmra.mxu0 %v267
        %v383 = vpop.f32.mrf.mxu0
        %v384 = vadd.f32 0.0, %v383
        %385 = vmatmul.f32.gmra.mxu0 %v270
        %v386 = vpop.f32.mrf.mxu0
        %v387 = vadd.f32 0.0, %v386
        %388 = vmatmul.f32.gmra.mxu0 %v273
        %v389 = vpop.f32.mrf.mxu0
        %v390 = vadd.f32 0.0, %v389
        %391 = vmatmul.f32.gmra.mxu0 %v276
        %v392 = vpop.f32.mrf.mxu0
        %v393 = vadd.f32 0.0, %v392
        %394 = vmatmul.f32.gmra.mxu0 %v279
        %v395 = vpop.f32.mrf.mxu0
        %v396 = vadd.f32 0.0, %v395
        %397 = vmatmul.f32.gmra.mxu0 %v282
        %v398 = vpop.f32.mrf.mxu0
        %v399 = vadd.f32 0.0, %v398
        %400 = vmatmul.f32.gmra.mxu0 %v285
        %v401 = vpop.f32.mrf.mxu0
        %v402 = vadd.f32 0.0, %v401
        %403 = vmatmul.f32.gmra.mxu0 %v288
        %v404 = vpop.f32.mrf.mxu0
        %v405 = vadd.f32 0.0, %v404
        %406 = vmatmul.f32.gmra.mxu0 %v291
        %v407 = vpop.f32.mrf.mxu0
        %v408 = vadd.f32 0.0, %v407
        %409 = vmatmul.f32.gmra.mxu0 %v294
        %v410 = vpop.f32.mrf.mxu0
        %v411 = vadd.f32 0.0, %v410
        %412 = vmatmul.f32.gmra.mxu0 %v297
        %v413 = vpop.f32.mrf.mxu0
        %v414 = vadd.f32 0.0, %v413
        %415 = vmatmul.f32.gmra.mxu0 %v300
        %v416 = vpop.f32.mrf.mxu0
        %v417 = vadd.f32 0.0, %v416
        %418 = vmatmul.f32.gmra.mxu0 %v303
        %v419 = vpop.f32.mrf.mxu0
        %v420 = vadd.f32 0.0, %v419
        %421 = vmatmul.f32.gmra.mxu0 %v306
        %v422 = vpop.f32.mrf.mxu0
        %v423 = vadd.f32 0.0, %v422
        %424 = vmatmul.f32.gmra.mxu0 %v309
        %v425 = vpop.f32.mrf.mxu0
        %v426 = vadd.f32 0.0, %v425
        %427 = vdwg.mxu0
        %v428 = vadd.f32 %v171, %v333
        %v429 = vadd.f32 %v171, %v336
        %v430 = vadd.f32 %v171, %v339
        %v431 = vadd.f32 %v171, %v342
        %v432 = vadd.f32 %v171, %v345
        %v433 = vadd.f32 %v171, %v348
        %v434 = vadd.f32 %v171, %v351
        %v435 = vadd.f32 %v171, %v354
        %v436 = vadd.f32 %v171, %v357
        %v437 = vadd.f32 %v171, %v360
        %v438 = vadd.f32 %v171, %v363
        %v439 = vadd.f32 %v171, %v366
        %v440 = vadd.f32 %v171, %v369
        %v441 = vadd.f32 %v171, %v372
        %v442 = vadd.f32 %v171, %v375
        %v443 = vadd.f32 %v171, %v378
        %v444 = vadd.f32 %v171, %v381
        %v445 = vadd.f32 %v171, %v384
        %v446 = vadd.f32 %v171, %v387
        %v447 = vadd.f32 %v171, %v390
        %v448 = vadd.f32 %v171, %v393
        %v449 = vadd.f32 %v171, %v396
        %v450 = vadd.f32 %v171, %v399
        %v451 = vadd.f32 %v171, %v402
        %v452 = vadd.f32 %v171, %v405
        %v453 = vadd.f32 %v171, %v408
        %v454 = vadd.f32 %v171, %v411
        %v455 = vadd.f32 %v171, %v414
        %v456 = vadd.f32 %v171, %v417
        %v457 = vadd.f32 %v171, %v420
        %v458 = vadd.f32 %v171, %v423
        %v459 = vadd.f32 %v171, %v426
        %vm468 = vcmask 1046528
        %v469 = vrot.slane %v173, 1
        %v470 = vrot.slane %v174, 1
        %v471 = vsel %vm468, %v469, %v470
        %v472 = vrot.slane %v175, 1
        %v473 = vsel %vm468, %v470, %v472
        %v474 = vrot.slane %v176, 1
        %v475 = vsel %vm468, %v472, %v474
        %v476 = vrot.slane %v177, 1
        %v477 = vsel %vm468, %v474, %v476
        %v478 = vrot.slane %v178, 1
        %v479 = vrot.slane %v179, 1
        %v480 = vsel %vm468, %v478, %v479
        %v481 = vrot.slane %v180, 1
        %v482 = vsel %vm468, %v479, %v481
        %v483 = vrot.slane %v181, 1
        %v484 = vsel %vm468, %v481, %v483
        %v485 = vrot.slane %v182, 1
        %v486 = vsel %vm468, %v483, %v485
        %v487 = vrot.slane %v183, 1
        %v488 = vrot.slane %v184, 1
        %v489 = vsel %vm468, %v487, %v488
        %v490 = vrot.slane %v185, 1
        %v491 = vsel %vm468, %v488, %v490
        %v492 = vrot.slane %v186, 1
        %v493 = vsel %vm468, %v490, %v492
        %v494 = vrot.slane %v187, 1
        %v495 = vsel %vm468, %v492, %v494
        %v496 = vrot.slane %v188, 1
        %v497 = vrot.slane %v189, 1
        %v498 = vsel %vm468, %v496, %v497
        %v499 = vrot.slane %v190, 1
        %v500 = vsel %vm468, %v497, %v499
        %v501 = vrot.slane %v191, 1
        %v502 = vsel %vm468, %v499, %v501
        %v503 = vrot.slane %v192, 1
        %v504 = vsel %vm468, %v501, %v503
        %v505 = vrot.slane %v193, 1
        %v506 = vrot.slane %v194, 1
        %v507 = vsel %vm468, %v505, %v506
        %v508 = vrot.slane %v195, 1
        %v509 = vsel %vm468, %v506, %v508
        %v510 = vrot.slane %v196, 1
        %v511 = vsel %vm468, %v508, %v510
        %v512 = vrot.slane %v197, 1
        %v513 = vsel %vm468, %v510, %v512
        %v514 = vrot.slane %v198, 1
        %v515 = vrot.slane %v199, 1
        %v516 = vsel %vm468, %v514, %v515
        %v517 = vrot.slane %v200, 1
        %v518 = vsel %vm468, %v515, %v517
        %v519 = vrot.slane %v201, 1
        %v520 = vsel %vm468, %v517, %v519
        %v521 = vrot.slane %v202, 1
        %v522 = vsel %vm468, %v519, %v521
        %v523 = vrot.slane %v203, 1
        %v524 = vrot.slane %v204, 1
        %v525 = vsel %vm468, %v523, %v524
        %v526 = vrot.slane %v205, 1
        %v527 = vsel %vm468, %v524, %v526
        %v528 = vrot.slane %v206, 1
        %v529 = vsel %vm468, %v526, %v528
        %v530 = vrot.slane %v207, 1
        %v531 = vsel %vm468, %v528, %v530
        %v532 = vrot.slane %v208, 1
        %v533 = vrot.slane %v209, 1
        %v534 = vsel %vm468, %v532, %v533
        %v535 = vrot.slane %v210, 1
        %v536 = vsel %vm468, %v533, %v535
        %v537 = vrot.slane %v211, 1
        %v538 = vsel %vm468, %v535, %v537
        %v539 = vrot.slane %v212, 1
        %v540 = vsel %vm468, %v537, %v539
        %s541 = scalar_lea.vmem %s1, 4
        %v542 = vld [vmem:[%s541] sm:$0x7]
        %v543 = vsel %vm214, %v471, 0
        %v545 = vsel %vm214, %v473, 0
        %v547 = vsel %vm214, %v475, 0
        %v549 = vsel %vm214, %v477, 0
        %v551 = vsel %vm214, %v480, 0
        %v553 = vsel %vm214, %v482, 0
        %v555 = vsel %vm214, %v484, 0
        %v557 = vsel %vm214, %v486, 0
        %v559 = vsel %vm214, %v489, 0
        %v561 = vsel %vm214, %v491, 0
        %v563 = vsel %vm214, %v493, 0
        %v565 = vsel %vm214, %v495, 0
        %v567 = vsel %vm214, %v498, 0
        %v569 = vsel %vm214, %v500, 0
        %v571 = vsel %vm214, %v502, 0
        %v573 = vsel %vm214, %v504, 0
        %v575 = vsel %vm214, %v507, 0
        %v577 = vsel %vm214, %v509, 0
        %v579 = vsel %vm214, %v511, 0
        %v581 = vsel %vm214, %v513, 0
        %v583 = vsel %vm214, %v516, 0
        %v585 = vsel %vm214, %v518, 0
        %v587 = vsel %vm214, %v520, 0
        %v589 = vsel %vm214, %v522, 0
        %v591 = vsel %vm214, %v525, 0
        %v593 = vsel %vm214, %v527, 0
        %v595 = vsel %vm214, %v529, 0
        %v597 = vsel %vm214, %v531, 0
        %v599 = vsel %vm214, %v534, 0
        %v601 = vsel %vm214, %v536, 0
        %v603 = vsel %vm214, %v538, 0
        %v605 = vsel %vm214, %v540, 0
        %v608 = vsel %vm311, %v542, 0
        %610 = vmatpush.msra.mxu0 0.0
        %611 = vmatpush.msra.mxu0 0.0
        %612 = vmatpush.msra.mxu0 0.0
        %613 = vmatpush.msra.mxu0 0.0
        %614 = vmatpush.msra.mxu0 0.0
        %615 = vmatpush.msra.mxu0 0.0
        %616 = vmatpush.msra.mxu0 0.0
        %617 = vmatpush.msra.mxu0 0.0
        %618 = vmatpush.msra.mxu0 0.0
        %619 = vmatpush.msra.mxu0 0.0
        %620 = vmatpush.msra.mxu0 0.0
        %621 = vmatpush.msra.mxu0 0.0
        %622 = vmatpush.msra.mxu0 0.0
        %623 = vmatpush.msra.mxu0 0.0
        %624 = vmatpush.msra.mxu0 0.0
        %625 = vmatpush.msra.mxu0 %v608
        %626 = vmatmul.f32.gmra.mxu0 %v543
        %v627 = vpop.f32.mrf.mxu0
        %v628 = vadd.f32 0.0, %v627
        %629 = vmatmul.f32.gmra.mxu0 %v545
        %v630 = vpop.f32.mrf.mxu0
        %v631 = vadd.f32 0.0, %v630
        %632 = vmatmul.f32.gmra.mxu0 %v547
        %v633 = vpop.f32.mrf.mxu0
        %v634 = vadd.f32 0.0, %v633
        %635 = vmatmul.f32.gmra.mxu0 %v549
        %v636 = vpop.f32.mrf.mxu0
        %v637 = vadd.f32 0.0, %v636
        %638 = vmatmul.f32.gmra.mxu0 %v551
        %v639 = vpop.f32.mrf.mxu0
        %v640 = vadd.f32 0.0, %v639
        %641 = vmatmul.f32.gmra.mxu0 %v553
        %v642 = vpop.f32.mrf.mxu0
        %v643 = vadd.f32 0.0, %v642
        %644 = vmatmul.f32.gmra.mxu0 %v555
        %v645 = vpop.f32.mrf.mxu0
        %v646 = vadd.f32 0.0, %v645
        %647 = vmatmul.f32.gmra.mxu0 %v557
        %v648 = vpop.f32.mrf.mxu0
        %v649 = vadd.f32 0.0, %v648
        %650 = vmatmul.f32.gmra.mxu0 %v559
        %v651 = vpop.f32.mrf.mxu0
        %v652 = vadd.f32 0.0, %v651
        %653 = vmatmul.f32.gmra.mxu0 %v561
        %v654 = vpop.f32.mrf.mxu0
        %v655 = vadd.f32 0.0, %v654
        %656 = vmatmul.f32.gmra.mxu0 %v563
        %v657 = vpop.f32.mrf.mxu0
        %v658 = vadd.f32 0.0, %v657
        %659 = vmatmul.f32.gmra.mxu0 %v565
        %v660 = vpop.f32.mrf.mxu0
        %v661 = vadd.f32 0.0, %v660
        %662 = vmatmul.f32.gmra.mxu0 %v567
        %v663 = vpop.f32.mrf.mxu0
        %v664 = vadd.f32 0.0, %v663
        %665 = vmatmul.f32.gmra.mxu0 %v569
        %v666 = vpop.f32.mrf.mxu0
        %v667 = vadd.f32 0.0, %v666
        %668 = vmatmul.f32.gmra.mxu0 %v571
        %v669 = vpop.f32.mrf.mxu0
        %v670 = vadd.f32 0.0, %v669
        %671 = vmatmul.f32.gmra.mxu0 %v573
        %v672 = vpop.f32.mrf.mxu0
        %v673 = vadd.f32 0.0, %v672
        %674 = vmatmul.f32.gmra.mxu0 %v575
        %v675 = vpop.f32.mrf.mxu0
        %v676 = vadd.f32 0.0, %v675
        %677 = vmatmul.f32.gmra.mxu0 %v577
        %v678 = vpop.f32.mrf.mxu0
        %v679 = vadd.f32 0.0, %v678
        %680 = vmatmul.f32.gmra.mxu0 %v579
        %v681 = vpop.f32.mrf.mxu0
        %v682 = vadd.f32 0.0, %v681
        %683 = vmatmul.f32.gmra.mxu0 %v581
        %v684 = vpop.f32.mrf.mxu0
        %v685 = vadd.f32 0.0, %v684
        %686 = vmatmul.f32.gmra.mxu0 %v583
        %v687 = vpop.f32.mrf.mxu0
        %v688 = vadd.f32 0.0, %v687
        %689 = vmatmul.f32.gmra.mxu0 %v585
        %v690 = vpop.f32.mrf.mxu0
        %v691 = vadd.f32 0.0, %v690
        %692 = vmatmul.f32.gmra.mxu0 %v587
        %v693 = vpop.f32.mrf.mxu0
        %v694 = vadd.f32 0.0, %v693
        %695 = vmatmul.f32.gmra.mxu0 %v589
        %v696 = vpop.f32.mrf.mxu0
        %v697 = vadd.f32 0.0, %v696
        %698 = vmatmul.f32.gmra.mxu0 %v591
        %v699 = vpop.f32.mrf.mxu0
        %v700 = vadd.f32 0.0, %v699
        %701 = vmatmul.f32.gmra.mxu0 %v593
        %v702 = vpop.f32.mrf.mxu0
        %v703 = vadd.f32 0.0, %v702
        %704 = vmatmul.f32.gmra.mxu0 %v595
        %v705 = vpop.f32.mrf.mxu0
        %v706 = vadd.f32 0.0, %v705
        %707 = vmatmul.f32.gmra.mxu0 %v597
        %v708 = vpop.f32.mrf.mxu0
        %v709 = vadd.f32 0.0, %v708
        %710 = vmatmul.f32.gmra.mxu0 %v599
        %v711 = vpop.f32.mrf.mxu0
        %v712 = vadd.f32 0.0, %v711
        %713 = vmatmul.f32.gmra.mxu0 %v601
        %v714 = vpop.f32.mrf.mxu0
        %v715 = vadd.f32 0.0, %v714
        %716 = vmatmul.f32.gmra.mxu0 %v603
        %v717 = vpop.f32.mrf.mxu0
        %v718 = vadd.f32 0.0, %v717
        %719 = vmatmul.f32.gmra.mxu0 %v605
        %v720 = vpop.f32.mrf.mxu0
        %v721 = vadd.f32 0.0, %v720
        %722 = vdwg.mxu0
        %v723 = vadd.f32 %v428, %v628
        %v724 = vadd.f32 %v429, %v631
        %v725 = vadd.f32 %v430, %v634
        %v726 = vadd.f32 %v431, %v637
        %v727 = vadd.f32 %v432, %v640
        %v728 = vadd.f32 %v433, %v643
        %v729 = vadd.f32 %v434, %v646
        %v730 = vadd.f32 %v435, %v649
        %v731 = vadd.f32 %v436, %v652
        %v732 = vadd.f32 %v437, %v655
        %v733 = vadd.f32 %v438, %v658
        %v734 = vadd.f32 %v439, %v661
        %v735 = vadd.f32 %v440, %v664
        %v736 = vadd.f32 %v441, %v667
        %v737 = vadd.f32 %v442, %v670
        %v738 = vadd.f32 %v443, %v673
        %v739 = vadd.f32 %v444, %v676
        %v740 = vadd.f32 %v445, %v679
        %v741 = vadd.f32 %v446, %v682
        %v742 = vadd.f32 %v447, %v685
        %v743 = vadd.f32 %v448, %v688
        %v744 = vadd.f32 %v449, %v691
        %v745 = vadd.f32 %v450, %v694
        %v746 = vadd.f32 %v451, %v697
        %v747 = vadd.f32 %v452, %v700
        %v748 = vadd.f32 %v453, %v703
        %v749 = vadd.f32 %v454, %v706
        %v750 = vadd.f32 %v455, %v709
        %v751 = vadd.f32 %v456, %v712
        %v752 = vadd.f32 %v457, %v715
        %v753 = vadd.f32 %v458, %v718
        %v754 = vadd.f32 %v459, %v721
        %vm755 = vcmask 1045504
        %v756 = vrot.slane %v173, 2
        %v757 = vrot.slane %v174, 2
        %v758 = vsel %vm755, %v756, %v757
        %v759 = vrot.slane %v175, 2
        %v760 = vsel %vm755, %v757, %v759
        %v761 = vrot.slane %v176, 2
        %v762 = vsel %vm755, %v759, %v761
        %v763 = vrot.slane %v177, 2
        %v764 = vsel %vm755, %v761, %v763
        %v765 = vrot.slane %v178, 2
        %v766 = vrot.slane %v179, 2
        %v767 = vsel %vm755, %v765, %v766
        %v768 = vrot.slane %v180, 2
        %v769 = vsel %vm755, %v766, %v768
        %v770 = vrot.slane %v181, 2
        %v771 = vsel %vm755, %v768, %v770
        %v772 = vrot.slane %v182, 2
        %v773 = vsel %vm755, %v770, %v772
        %v774 = vrot.slane %v183, 2
        %v775 = vrot.slane %v184, 2
        %v776 = vsel %vm755, %v774, %v775
        %v777 = vrot.slane %v185, 2
        %v778 = vsel %vm755, %v775, %v777
        %v779 = vrot.slane %v186, 2
        %v780 = vsel %vm755, %v777, %v779
        %v781 = vrot.slane %v187, 2
        %v782 = vsel %vm755, %v779, %v781
        %v783 = vrot.slane %v188, 2
        %v784 = vrot.slane %v189, 2
        %v785 = vsel %vm755, %v783, %v784
        %v786 = vrot.slane %v190, 2
        %v787 = vsel %vm755, %v784, %v786
        %v788 = vrot.slane %v191, 2
        %v789 = vsel %vm755, %v786, %v788
        %v790 = vrot.slane %v192, 2
        %v791 = vsel %vm755, %v788, %v790
        %v792 = vrot.slane %v193, 2
        %v793 = vrot.slane %v194, 2
        %v794 = vsel %vm755, %v792, %v793
        %v795 = vrot.slane %v195, 2
        %v796 = vsel %vm755, %v793, %v795
        %v797 = vrot.slane %v196, 2
        %v798 = vsel %vm755, %v795, %v797
        %v799 = vrot.slane %v197, 2
        %v800 = vsel %vm755, %v797, %v799
        %v801 = vrot.slane %v198, 2
        %v802 = vrot.slane %v199, 2
        %v803 = vsel %vm755, %v801, %v802
        %v804 = vrot.slane %v200, 2
        %v805 = vsel %vm755, %v802, %v804
        %v806 = vrot.slane %v201, 2
        %v807 = vsel %vm755, %v804, %v806
        %v808 = vrot.slane %v202, 2
        %v809 = vsel %vm755, %v806, %v808
        %v810 = vrot.slane %v203, 2
        %v811 = vrot.slane %v204, 2
        %v812 = vsel %vm755, %v810, %v811
        %v813 = vrot.slane %v205, 2
        %v814 = vsel %vm755, %v811, %v813
        %v815 = vrot.slane %v206, 2
        %v816 = vsel %vm755, %v813, %v815
        %v817 = vrot.slane %v207, 2
        %v818 = vsel %vm755, %v815, %v817
        %v819 = vrot.slane %v208, 2
        %v820 = vrot.slane %v209, 2
        %v821 = vsel %vm755, %v819, %v820
        %v822 = vrot.slane %v210, 2
        %v823 = vsel %vm755, %v820, %v822
        %v824 = vrot.slane %v211, 2
        %v825 = vsel %vm755, %v822, %v824
        %v826 = vrot.slane %v212, 2
        %v827 = vsel %vm755, %v824, %v826
        %s828 = scalar_lea.vmem %s1, 8
        %v829 = vld [vmem:[%s828] sm:$0x7]
        %v830 = vsel %vm214, %v758, 0
        %v832 = vsel %vm214, %v760, 0
        %v834 = vsel %vm214, %v762, 0
        %v836 = vsel %vm214, %v764, 0
        %v838 = vsel %vm214, %v767, 0
        %v840 = vsel %vm214, %v769, 0
        %v842 = vsel %vm214, %v771, 0
        %v844 = vsel %vm214, %v773, 0
        %v846 = vsel %vm214, %v776, 0
        %v848 = vsel %vm214, %v778, 0
        %v850 = vsel %vm214, %v780, 0
        %v852 = vsel %vm214, %v782, 0
        %v854 = vsel %vm214, %v785, 0
        %v856 = vsel %vm214, %v787, 0
        %v858 = vsel %vm214, %v789, 0
        %v860 = vsel %vm214, %v791, 0
        %v862 = vsel %vm214, %v794, 0
        %v864 = vsel %vm214, %v796, 0
        %v866 = vsel %vm214, %v798, 0
        %v868 = vsel %vm214, %v800, 0
        %v870 = vsel %vm214, %v803, 0
        %v872 = vsel %vm214, %v805, 0
        %v874 = vsel %vm214, %v807, 0
        %v876 = vsel %vm214, %v809, 0
        %v878 = vsel %vm214, %v812, 0
        %v880 = vsel %vm214, %v814, 0
        %v882 = vsel %vm214, %v816, 0
        %v884 = vsel %vm214, %v818, 0
        %v886 = vsel %vm214, %v821, 0
        %v888 = vsel %vm214, %v823, 0
        %v890 = vsel %vm214, %v825, 0
        %v892 = vsel %vm214, %v827, 0
        %v895 = vsel %vm311, %v829, 0
        %897 = vmatpush.msra.mxu0 0.0
        %898 = vmatpush.msra.mxu0 0.0
        %899 = vmatpush.msra.mxu0 0.0
        %900 = vmatpush.msra.mxu0 0.0
        %901 = vmatpush.msra.mxu0 0.0
        %902 = vmatpush.msra.mxu0 0.0
        %903 = vmatpush.msra.mxu0 0.0
        %904 = vmatpush.msra.mxu0 0.0
        %905 = vmatpush.msra.mxu0 0.0
        %906 = vmatpush.msra.mxu0 0.0
        %907 = vmatpush.msra.mxu0 0.0
        %908 = vmatpush.msra.mxu0 0.0
        %909 = vmatpush.msra.mxu0 0.0
        %910 = vmatpush.msra.mxu0 0.0
        %911 = vmatpush.msra.mxu0 0.0
        %912 = vmatpush.msra.mxu0 %v895
        %913 = vmatmul.f32.gmra.mxu0 %v830
        %v914 = vpop.f32.mrf.mxu0
        %v915 = vadd.f32 0.0, %v914
        %916 = vmatmul.f32.gmra.mxu0 %v832
        %v917 = vpop.f32.mrf.mxu0
        %v918 = vadd.f32 0.0, %v917
        %919 = vmatmul.f32.gmra.mxu0 %v834
        %v920 = vpop.f32.mrf.mxu0
        %v921 = vadd.f32 0.0, %v920
        %922 = vmatmul.f32.gmra.mxu0 %v836
        %v923 = vpop.f32.mrf.mxu0
        %v924 = vadd.f32 0.0, %v923
        %925 = vmatmul.f32.gmra.mxu0 %v838
        %v926 = vpop.f32.mrf.mxu0
        %v927 = vadd.f32 0.0, %v926
        %928 = vmatmul.f32.gmra.mxu0 %v840
        %v929 = vpop.f32.mrf.mxu0
        %v930 = vadd.f32 0.0, %v929
        %931 = vmatmul.f32.gmra.mxu0 %v842
        %v932 = vpop.f32.mrf.mxu0
        %v933 = vadd.f32 0.0, %v932
        %934 = vmatmul.f32.gmra.mxu0 %v844
        %v935 = vpop.f32.mrf.mxu0
        %v936 = vadd.f32 0.0, %v935
        %937 = vmatmul.f32.gmra.mxu0 %v846
        %v938 = vpop.f32.mrf.mxu0
        %v939 = vadd.f32 0.0, %v938
        %940 = vmatmul.f32.gmra.mxu0 %v848
        %v941 = vpop.f32.mrf.mxu0
        %v942 = vadd.f32 0.0, %v941
        %943 = vmatmul.f32.gmra.mxu0 %v850
        %v944 = vpop.f32.mrf.mxu0
        %v945 = vadd.f32 0.0, %v944
        %946 = vmatmul.f32.gmra.mxu0 %v852
        %v947 = vpop.f32.mrf.mxu0
        %v948 = vadd.f32 0.0, %v947
        %949 = vmatmul.f32.gmra.mxu0 %v854
        %v950 = vpop.f32.mrf.mxu0
        %v951 = vadd.f32 0.0, %v950
        %952 = vmatmul.f32.gmra.mxu0 %v856
        %v953 = vpop.f32.mrf.mxu0
        %v954 = vadd.f32 0.0, %v953
        %955 = vmatmul.f32.gmra.mxu0 %v858
        %v956 = vpop.f32.mrf.mxu0
        %v957 = vadd.f32 0.0, %v956
        %958 = vmatmul.f32.gmra.mxu0 %v860
        %v959 = vpop.f32.mrf.mxu0
        %v960 = vadd.f32 0.0, %v959
        %961 = vmatmul.f32.gmra.mxu0 %v862
        %v962 = vpop.f32.mrf.mxu0
        %v963 = vadd.f32 0.0, %v962
        %964 = vmatmul.f32.gmra.mxu0 %v864
        %v965 = vpop.f32.mrf.mxu0
        %v966 = vadd.f32 0.0, %v965
        %967 = vmatmul.f32.gmra.mxu0 %v866
        %v968 = vpop.f32.mrf.mxu0
        %v969 = vadd.f32 0.0, %v968
        %970 = vmatmul.f32.gmra.mxu0 %v868
        %v971 = vpop.f32.mrf.mxu0
        %v972 = vadd.f32 0.0, %v971
        %973 = vmatmul.f32.gmra.mxu0 %v870
        %v974 = vpop.f32.mrf.mxu0
        %v975 = vadd.f32 0.0, %v974
        %976 = vmatmul.f32.gmra.mxu0 %v872
        %v977 = vpop.f32.mrf.mxu0
        %v978 = vadd.f32 0.0, %v977
        %979 = vmatmul.f32.gmra.mxu0 %v874
        %v980 = vpop.f32.mrf.mxu0
        %v981 = vadd.f32 0.0, %v980
        %982 = vmatmul.f32.gmra.mxu0 %v876
        %v983 = vpop.f32.mrf.mxu0
        %v984 = vadd.f32 0.0, %v983
        %985 = vmatmul.f32.gmra.mxu0 %v878
        %v986 = vpop.f32.mrf.mxu0
        %v987 = vadd.f32 0.0, %v986
        %988 = vmatmul.f32.gmra.mxu0 %v880
        %v989 = vpop.f32.mrf.mxu0
        %v990 = vadd.f32 0.0, %v989
        %991 = vmatmul.f32.gmra.mxu0 %v882
        %v992 = vpop.f32.mrf.mxu0
        %v993 = vadd.f32 0.0, %v992
        %994 = vmatmul.f32.gmra.mxu0 %v884
        %v995 = vpop.f32.mrf.mxu0
        %v996 = vadd.f32 0.0, %v995
        %997 = vmatmul.f32.gmra.mxu0 %v886
        %v998 = vpop.f32.mrf.mxu0
        %v999 = vadd.f32 0.0, %v998
        %1000 = vmatmul.f32.gmra.mxu0 %v888
        %v1001 = vpop.f32.mrf.mxu0
        %v1002 = vadd.f32 0.0, %v1001
        %1003 = vmatmul.f32.gmra.mxu0 %v890
        %v1004 = vpop.f32.mrf.mxu0
        %v1005 = vadd.f32 0.0, %v1004
        %1006 = vmatmul.f32.gmra.mxu0 %v892
        %v1007 = vpop.f32.mrf.mxu0
        %v1008 = vadd.f32 0.0, %v1007
        %1009 = vdwg.mxu0
        %v1010 = vadd.f32 %v723, %v915
        %v1011 = vadd.f32 %v724, %v918
        %v1012 = vadd.f32 %v725, %v921
        %v1013 = vadd.f32 %v726, %v924
        %v1014 = vadd.f32 %v727, %v927
        %v1015 = vadd.f32 %v728, %v930
        %v1016 = vadd.f32 %v729, %v933
        %v1017 = vadd.f32 %v730, %v936
        %v1018 = vadd.f32 %v731, %v939
        %v1019 = vadd.f32 %v732, %v942
        %v1020 = vadd.f32 %v733, %v945
        %v1021 = vadd.f32 %v734, %v948
        %v1022 = vadd.f32 %v735, %v951
        %v1023 = vadd.f32 %v736, %v954
        %v1024 = vadd.f32 %v737, %v957
        %v1025 = vadd.f32 %v738, %v960
        %v1026 = vadd.f32 %v739, %v963
        %v1027 = vadd.f32 %v740, %v966
        %v1028 = vadd.f32 %v741, %v969
        %v1029 = vadd.f32 %v742, %v972
        %v1030 = vadd.f32 %v743, %v975
        %v1031 = vadd.f32 %v744, %v978
        %v1032 = vadd.f32 %v745, %v981
        %v1033 = vadd.f32 %v746, %v984
        %v1034 = vadd.f32 %v747, %v987
        %v1035 = vadd.f32 %v748, %v990
        %v1036 = vadd.f32 %v749, %v993
        %v1037 = vadd.f32 %v750, %v996
        %v1038 = vadd.f32 %v751, %v999
        %v1039 = vadd.f32 %v752, %v1002
        %v1040 = vadd.f32 %v753, %v1005
        %v1041 = vadd.f32 %v754, %v1008
        %s1042 = scalar_lea.vmem %s168, 40
        %v1043 = vld [vmem:[%s1042] sm:$0xff]
        %v1044 = vld [vmem:[%s1042 + $0x8] sm:$0xff]
        %v1045 = vld [vmem:[%s1042 + $0x10] sm:$0xff]
        %v1046 = vld [vmem:[%s1042 + $0x18] sm:$0xff]
        %v1047 = vld [vmem:[%s1042 + $0x20] sm:$0x3]
        %v1048 = vld [vmem:[%s1042 + $0x28] sm:$0xff]
        %v1049 = vld [vmem:[%s1042 + $0x30] sm:$0xff]
        %v1050 = vld [vmem:[%s1042 + $0x38] sm:$0xff]
        %v1051 = vld [vmem:[%s1042 + $0x40] sm:$0xff]
        %v1052 = vld [vmem:[%s1042 + $0x48] sm:$0x3]
        %v1053 = vld [vmem:[%s1042 + $0x50] sm:$0xff]
        %v1054 = vld [vmem:[%s1042 + $0x58] sm:$0xff]
        %v1055 = vld [vmem:[%s1042 + $0x60] sm:$0xff]
        %v1056 = vld [vmem:[%s1042 + $0x68] sm:$0xff]
        %v1057 = vld [vmem:[%s1042 + $0x70] sm:$0x3]
        %v1058 = vld [vmem:[%s1042 + $0x78] sm:$0xff]
        %v1059 = vld [vmem:[%s1042 + $0x80] sm:$0xff]
        %v1060 = vld [vmem:[%s1042 + $0x88] sm:$0xff]
        %v1061 = vld [vmem:[%s1042 + $0x90] sm:$0xff]
        %v1062 = vld [vmem:[%s1042 + $0x98] sm:$0x3]
        %v1063 = vld [vmem:[%s1042 + $0xa0] sm:$0xff]
        %v1064 = vld [vmem:[%s1042 + $0xa8] sm:$0xff]
        %v1065 = vld [vmem:[%s1042 + $0xb0] sm:$0xff]
        %v1066 = vld [vmem:[%s1042 + $0xb8] sm:$0xff]
        %v1067 = vld [vmem:[%s1042 + $0xc0] sm:$0x3]
        %v1068 = vld [vmem:[%s1042 + $0xc8] sm:$0xff]
        %v1069 = vld [vmem:[%s1042 + $0xd0] sm:$0xff]
        %v1070 = vld [vmem:[%s1042 + $0xd8] sm:$0xff]
        %v1071 = vld [vmem:[%s1042 + $0xe0] sm:$0xff]
        %v1072 = vld [vmem:[%s1042 + $0xe8] sm:$0x3]
        %v1073 = vld [vmem:[%s1042 + $0xf0] sm:$0xff]
        %v1074 = vld [vmem:[%s1042 + $0xf8] sm:$0xff]
        %v1075 = vld [vmem:[%s1042 + $0x100] sm:$0xff]
        %v1076 = vld [vmem:[%s1042 + $0x108] sm:$0xff]
        %v1077 = vld [vmem:[%s1042 + $0x110] sm:$0x3]
        %v1078 = vld [vmem:[%s1042 + $0x118] sm:$0xff]
        %v1079 = vld [vmem:[%s1042 + $0x120] sm:$0xff]
        %v1080 = vld [vmem:[%s1042 + $0x128] sm:$0xff]
        %v1081 = vld [vmem:[%s1042 + $0x130] sm:$0xff]
        %v1082 = vld [vmem:[%s1042 + $0x138] sm:$0x3]
        %s1083 = scalar_lea.vmem %s1, 12
        %v1084 = vld [vmem:[%s1083] sm:$0x7]
        %v1086 = vsel %vm214, %v1043, 0
        %v1089 = vsel %vm214, %v1044, 0
        %v1092 = vsel %vm214, %v1045, 0
        %v1095 = vsel %vm214, %v1046, 0
        %v1098 = vsel %vm214, %v1048, 0
        %v1101 = vsel %vm214, %v1049, 0
        %v1104 = vsel %vm214, %v1050, 0
        %v1107 = vsel %vm214, %v1051, 0
        %v1110 = vsel %vm214, %v1053, 0
        %v1113 = vsel %vm214, %v1054, 0
        %v1116 = vsel %vm214, %v1055, 0
        %v1119 = vsel %vm214, %v1056, 0
        %v1122 = vsel %vm214, %v1058, 0
        %v1125 = vsel %vm214, %v1059, 0
        %v1128 = vsel %vm214, %v1060, 0
        %v1131 = vsel %vm214, %v1061, 0
        %v1134 = vsel %vm214, %v1063, 0
        %v1137 = vsel %vm214, %v1064, 0
        %v1140 = vsel %vm214, %v1065, 0
        %v1143 = vsel %vm214, %v1066, 0
        %v1146 = vsel %vm214, %v1068, 0
        %v1149 = vsel %vm214, %v1069, 0
        %v1152 = vsel %vm214, %v1070, 0
        %v1155 = vsel %vm214, %v1071, 0
        %v1158 = vsel %vm214, %v1073, 0
        %v1161 = vsel %vm214, %v1074, 0
        %v1164 = vsel %vm214, %v1075, 0
        %v1167 = vsel %vm214, %v1076, 0
        %v1170 = vsel %vm214, %v1078, 0
        %v1173 = vsel %vm214, %v1079, 0
        %v1176 = vsel %vm214, %v1080, 0
        %v1179 = vsel %vm214, %v1081, 0
        %v1182 = vsel %vm311, %v1084, 0
        %1184 = vmatpush.msra.mxu0 0.0
        %1185 = vmatpush.msra.mxu0 0.0
        %1186 = vmatpush.msra.mxu0 0.0
        %1187 = vmatpush.msra.mxu0 0.0
        %1188 = vmatpush.msra.mxu0 0.0
        %1189 = vmatpush.msra.mxu0 0.0
        %1190 = vmatpush.msra.mxu0 0.0
        %1191 = vmatpush.msra.mxu0 0.0
        %1192 = vmatpush.msra.mxu0 0.0
        %1193 = vmatpush.msra.mxu0 0.0
        %1194 = vmatpush.msra.mxu0 0.0
        %1195 = vmatpush.msra.mxu0 0.0
        %1196 = vmatpush.msra.mxu0 0.0
        %1197 = vmatpush.msra.mxu0 0.0
        %1198 = vmatpush.msra.mxu0 0.0
        %1199 = vmatpush.msra.mxu0 %v1182
        %1200 = vmatmul.f32.gmra.mxu0 %v1086
        %v1201 = vpop.f32.mrf.mxu0
        %v1202 = vadd.f32 0.0, %v1201
        %1203 = vmatmul.f32.gmra.mxu0 %v1089
        %v1204 = vpop.f32.mrf.mxu0
        %v1205 = vadd.f32 0.0, %v1204
        %1206 = vmatmul.f32.gmra.mxu0 %v1092
        %v1207 = vpop.f32.mrf.mxu0
        %v1208 = vadd.f32 0.0, %v1207
        %1209 = vmatmul.f32.gmra.mxu0 %v1095
        %v1210 = vpop.f32.mrf.mxu0
        %v1211 = vadd.f32 0.0, %v1210
        %1212 = vmatmul.f32.gmra.mxu0 %v1098
        %v1213 = vpop.f32.mrf.mxu0
        %v1214 = vadd.f32 0.0, %v1213
        %1215 = vmatmul.f32.gmra.mxu0 %v1101
        %v1216 = vpop.f32.mrf.mxu0
        %v1217 = vadd.f32 0.0, %v1216
        %1218 = vmatmul.f32.gmra.mxu0 %v1104
        %v1219 = vpop.f32.mrf.mxu0
        %v1220 = vadd.f32 0.0, %v1219
        %1221 = vmatmul.f32.gmra.mxu0 %v1107
        %v1222 = vpop.f32.mrf.mxu0
        %v1223 = vadd.f32 0.0, %v1222
        %1224 = vmatmul.f32.gmra.mxu0 %v1110
        %v1225 = vpop.f32.mrf.mxu0
        %v1226 = vadd.f32 0.0, %v1225
        %1227 = vmatmul.f32.gmra.mxu0 %v1113
        %v1228 = vpop.f32.mrf.mxu0
        %v1229 = vadd.f32 0.0, %v1228
        %1230 = vmatmul.f32.gmra.mxu0 %v1116
        %v1231 = vpop.f32.mrf.mxu0
        %v1232 = vadd.f32 0.0, %v1231
        %1233 = vmatmul.f32.gmra.mxu0 %v1119
        %v1234 = vpop.f32.mrf.mxu0
        %v1235 = vadd.f32 0.0, %v1234
        %1236 = vmatmul.f32.gmra.mxu0 %v1122
        %v1237 = vpop.f32.mrf.mxu0
        %v1238 = vadd.f32 0.0, %v1237
        %1239 = vmatmul.f32.gmra.mxu0 %v1125
        %v1240 = vpop.f32.mrf.mxu0
        %v1241 = vadd.f32 0.0, %v1240
        %1242 = vmatmul.f32.gmra.mxu0 %v1128
        %v1243 = vpop.f32.mrf.mxu0
        %v1244 = vadd.f32 0.0, %v1243
        %1245 = vmatmul.f32.gmra.mxu0 %v1131
        %v1246 = vpop.f32.mrf.mxu0
        %v1247 = vadd.f32 0.0, %v1246
        %1248 = vmatmul.f32.gmra.mxu0 %v1134
        %v1249 = vpop.f32.mrf.mxu0
        %v1250 = vadd.f32 0.0, %v1249
        %1251 = vmatmul.f32.gmra.mxu0 %v1137
        %v1252 = vpop.f32.mrf.mxu0
        %v1253 = vadd.f32 0.0, %v1252
        %1254 = vmatmul.f32.gmra.mxu0 %v1140
        %v1255 = vpop.f32.mrf.mxu0
        %v1256 = vadd.f32 0.0, %v1255
        %1257 = vmatmul.f32.gmra.mxu0 %v1143
        %v1258 = vpop.f32.mrf.mxu0
        %v1259 = vadd.f32 0.0, %v1258
        %1260 = vmatmul.f32.gmra.mxu0 %v1146
        %v1261 = vpop.f32.mrf.mxu0
        %v1262 = vadd.f32 0.0, %v1261
        %1263 = vmatmul.f32.gmra.mxu0 %v1149
        %v1264 = vpop.f32.mrf.mxu0
        %v1265 = vadd.f32 0.0, %v1264
        %1266 = vmatmul.f32.gmra.mxu0 %v1152
        %v1267 = vpop.f32.mrf.mxu0
        %v1268 = vadd.f32 0.0, %v1267
        %1269 = vmatmul.f32.gmra.mxu0 %v1155
        %v1270 = vpop.f32.mrf.mxu0
        %v1271 = vadd.f32 0.0, %v1270
        %1272 = vmatmul.f32.gmra.mxu0 %v1158
        %v1273 = vpop.f32.mrf.mxu0
        %v1274 = vadd.f32 0.0, %v1273
        %1275 = vmatmul.f32.gmra.mxu0 %v1161
        %v1276 = vpop.f32.mrf.mxu0
        %v1277 = vadd.f32 0.0, %v1276
        %1278 = vmatmul.f32.gmra.mxu0 %v1164
        %v1279 = vpop.f32.mrf.mxu0
        %v1280 = vadd.f32 0.0, %v1279
        %1281 = vmatmul.f32.gmra.mxu0 %v1167
        %v1282 = vpop.f32.mrf.mxu0
        %v1283 = vadd.f32 0.0, %v1282
        %1284 = vmatmul.f32.gmra.mxu0 %v1170
        %v1285 = vpop.f32.mrf.mxu0
        %v1286 = vadd.f32 0.0, %v1285
        %1287 = vmatmul.f32.gmra.mxu0 %v1173
        %v1288 = vpop.f32.mrf.mxu0
        %v1289 = vadd.f32 0.0, %v1288
        %1290 = vmatmul.f32.gmra.mxu0 %v1176
        %v1291 = vpop.f32.mrf.mxu0
        %v1292 = vadd.f32 0.0, %v1291
        %1293 = vmatmul.f32.gmra.mxu0 %v1179
        %v1294 = vpop.f32.mrf.mxu0
        %v1295 = vadd.f32 0.0, %v1294
        %1296 = vdwg.mxu0
        %v1297 = vadd.f32 %v1010, %v1202
        %v1298 = vadd.f32 %v1011, %v1205
        %v1299 = vadd.f32 %v1012, %v1208
        %v1300 = vadd.f32 %v1013, %v1211
        %v1301 = vadd.f32 %v1014, %v1214
        %v1302 = vadd.f32 %v1015, %v1217
        %v1303 = vadd.f32 %v1016, %v1220
        %v1304 = vadd.f32 %v1017, %v1223
        %v1305 = vadd.f32 %v1018, %v1226
        %v1306 = vadd.f32 %v1019, %v1229
        %v1307 = vadd.f32 %v1020, %v1232
        %v1308 = vadd.f32 %v1021, %v1235
        %v1309 = vadd.f32 %v1022, %v1238
        %v1310 = vadd.f32 %v1023, %v1241
        %v1311 = vadd.f32 %v1024, %v1244
        %v1312 = vadd.f32 %v1025, %v1247
        %v1313 = vadd.f32 %v1026, %v1250
        %v1314 = vadd.f32 %v1027, %v1253
        %v1315 = vadd.f32 %v1028, %v1256
        %v1316 = vadd.f32 %v1029, %v1259
        %v1317 = vadd.f32 %v1030, %v1262
        %v1318 = vadd.f32 %v1031, %v1265
        %v1319 = vadd.f32 %v1032, %v1268
        %v1320 = vadd.f32 %v1033, %v1271
        %v1321 = vadd.f32 %v1034, %v1274
        %v1322 = vadd.f32 %v1035, %v1277
        %v1323 = vadd.f32 %v1036, %v1280
        %v1324 = vadd.f32 %v1037, %v1283
        %v1325 = vadd.f32 %v1038, %v1286
        %v1326 = vadd.f32 %v1039, %v1289
        %v1327 = vadd.f32 %v1040, %v1292
        %v1328 = vadd.f32 %v1041, %v1295
        %v1337 = vrot.slane %v1043, 1
        %v1338 = vrot.slane %v1044, 1
        %v1339 = vsel %vm468, %v1337, %v1338
        %v1340 = vrot.slane %v1045, 1
        %v1341 = vsel %vm468, %v1338, %v1340
        %v1342 = vrot.slane %v1046, 1
        %v1343 = vsel %vm468, %v1340, %v1342
        %v1344 = vrot.slane %v1047, 1
        %v1345 = vsel %vm468, %v1342, %v1344
        %v1346 = vrot.slane %v1048, 1
        %v1347 = vrot.slane %v1049, 1
        %v1348 = vsel %vm468, %v1346, %v1347
        %v1349 = vrot.slane %v1050, 1
        %v1350 = vsel %vm468, %v1347, %v1349
        %v1351 = vrot.slane %v1051, 1
        %v1352 = vsel %vm468, %v1349, %v1351
        %v1353 = vrot.slane %v1052, 1
        %v1354 = vsel %vm468, %v1351, %v1353
        %v1355 = vrot.slane %v1053, 1
        %v1356 = vrot.slane %v1054, 1
        %v1357 = vsel %vm468, %v1355, %v1356
        %v1358 = vrot.slane %v1055, 1
        %v1359 = vsel %vm468, %v1356, %v1358
        %v1360 = vrot.slane %v1056, 1
        %v1361 = vsel %vm468, %v1358, %v1360
        %v1362 = vrot.slane %v1057, 1
        %v1363 = vsel %vm468, %v1360, %v1362
        %v1364 = vrot.slane %v1058, 1
        %v1365 = vrot.slane %v1059, 1
        %v1366 = vsel %vm468, %v1364, %v1365
        %v1367 = vrot.slane %v1060, 1
        %v1368 = vsel %vm468, %v1365, %v1367
        %v1369 = vrot.slane %v1061, 1
        %v1370 = vsel %vm468, %v1367, %v1369
        %v1371 = vrot.slane %v1062, 1
        %v1372 = vsel %vm468, %v1369, %v1371
        %v1373 = vrot.slane %v1063, 1
        %v1374 = vrot.slane %v1064, 1
        %v1375 = vsel %vm468, %v1373, %v1374
        %v1376 = vrot.slane %v1065, 1
        %v1377 = vsel %vm468, %v1374, %v1376
        %v1378 = vrot.slane %v1066, 1
        %v1379 = vsel %vm468, %v1376, %v1378
        %v1380 = vrot.slane %v1067, 1
        %v1381 = vsel %vm468, %v1378, %v1380
        %v1382 = vrot.slane %v1068, 1
        %v1383 = vrot.slane %v1069, 1
        %v1384 = vsel %vm468, %v1382, %v1383
        %v1385 = vrot.slane %v1070, 1
        %v1386 = vsel %vm468, %v1383, %v1385
        %v1387 = vrot.slane %v1071, 1
        %v1388 = vsel %vm468, %v1385, %v1387
        %v1389 = vrot.slane %v1072, 1
        %v1390 = vsel %vm468, %v1387, %v1389
        %v1391 = vrot.slane %v1073, 1
        %v1392 = vrot.slane %v1074, 1
        %v1393 = vsel %vm468, %v1391, %v1392
        %v1394 = vrot.slane %v1075, 1
        %v1395 = vsel %vm468, %v1392, %v1394
        %v1396 = vrot.slane %v1076, 1
        %v1397 = vsel %vm468, %v1394, %v1396
        %v1398 = vrot.slane %v1077, 1
        %v1399 = vsel %vm468, %v1396, %v1398
        %v1400 = vrot.slane %v1078, 1
        %v1401 = vrot.slane %v1079, 1
        %v1402 = vsel %vm468, %v1400, %v1401
        %v1403 = vrot.slane %v1080, 1
        %v1404 = vsel %vm468, %v1401, %v1403
        %v1405 = vrot.slane %v1081, 1
        %v1406 = vsel %vm468, %v1403, %v1405
        %v1407 = vrot.slane %v1082, 1
        %v1408 = vsel %vm468, %v1405, %v1407
        %s1409 = scalar_lea.vmem %s1, 16
        %v1410 = vld [vmem:[%s1409] sm:$0x7]
        %v1411 = vsel %vm214, %v1339, 0
        %v1413 = vsel %vm214, %v1341, 0
        %v1415 = vsel %vm214, %v1343, 0
        %v1417 = vsel %vm214, %v1345, 0
        %v1419 = vsel %vm214, %v1348, 0
        %v1421 = vsel %vm214, %v1350, 0
        %v1423 = vsel %vm214, %v1352, 0
        %v1425 = vsel %vm214, %v1354, 0
        %v1427 = vsel %vm214, %v1357, 0
        %v1429 = vsel %vm214, %v1359, 0
        %v1431 = vsel %vm214, %v1361, 0
        %v1433 = vsel %vm214, %v1363, 0
        %v1435 = vsel %vm214, %v1366, 0
        %v1437 = vsel %vm214, %v1368, 0
        %v1439 = vsel %vm214, %v1370, 0
        %v1441 = vsel %vm214, %v1372, 0
        %v1443 = vsel %vm214, %v1375, 0
        %v1445 = vsel %vm214, %v1377, 0
        %v1447 = vsel %vm214, %v1379, 0
        %v1449 = vsel %vm214, %v1381, 0
        %v1451 = vsel %vm214, %v1384, 0
        %v1453 = vsel %vm214, %v1386, 0
        %v1455 = vsel %vm214, %v1388, 0
        %v1457 = vsel %vm214, %v1390, 0
        %v1459 = vsel %vm214, %v1393, 0
        %v1461 = vsel %vm214, %v1395, 0
        %v1463 = vsel %vm214, %v1397, 0
        %v1465 = vsel %vm214, %v1399, 0
        %v1467 = vsel %vm214, %v1402, 0
        %v1469 = vsel %vm214, %v1404, 0
        %v1471 = vsel %vm214, %v1406, 0
        %v1473 = vsel %vm214, %v1408, 0
        %v1476 = vsel %vm311, %v1410, 0
        %1478 = vmatpush.msra.mxu0 0.0
        %1479 = vmatpush.msra.mxu0 0.0
        %1480 = vmatpush.msra.mxu0 0.0
        %1481 = vmatpush.msra.mxu0 0.0
        %1482 = vmatpush.msra.mxu0 0.0
        %1483 = vmatpush.msra.mxu0 0.0
        %1484 = vmatpush.msra.mxu0 0.0
        %1485 = vmatpush.msra.mxu0 0.0
        %1486 = vmatpush.msra.mxu0 0.0
        %1487 = vmatpush.msra.mxu0 0.0
        %1488 = vmatpush.msra.mxu0 0.0
        %1489 = vmatpush.msra.mxu0 0.0
        %1490 = vmatpush.msra.mxu0 0.0
        %1491 = vmatpush.msra.mxu0 0.0
        %1492 = vmatpush.msra.mxu0 0.0
        %1493 = vmatpush.msra.mxu0 %v1476
        %1494 = vmatmul.f32.gmra.mxu0 %v1411
        %v1495 = vpop.f32.mrf.mxu0
        %v1496 = vadd.f32 0.0, %v1495
        %1497 = vmatmul.f32.gmra.mxu0 %v1413
        %v1498 = vpop.f32.mrf.mxu0
        %v1499 = vadd.f32 0.0, %v1498
        %1500 = vmatmul.f32.gmra.mxu0 %v1415
        %v1501 = vpop.f32.mrf.mxu0
        %v1502 = vadd.f32 0.0, %v1501
        %1503 = vmatmul.f32.gmra.mxu0 %v1417
        %v1504 = vpop.f32.mrf.mxu0
        %v1505 = vadd.f32 0.0, %v1504
        %1506 = vmatmul.f32.gmra.mxu0 %v1419
        %v1507 = vpop.f32.mrf.mxu0
        %v1508 = vadd.f32 0.0, %v1507
        %1509 = vmatmul.f32.gmra.mxu0 %v1421
        %v1510 = vpop.f32.mrf.mxu0
        %v1511 = vadd.f32 0.0, %v1510
        %1512 = vmatmul.f32.gmra.mxu0 %v1423
        %v1513 = vpop.f32.mrf.mxu0
        %v1514 = vadd.f32 0.0, %v1513
        %1515 = vmatmul.f32.gmra.mxu0 %v1425
        %v1516 = vpop.f32.mrf.mxu0
        %v1517 = vadd.f32 0.0, %v1516
        %1518 = vmatmul.f32.gmra.mxu0 %v1427
        %v1519 = vpop.f32.mrf.mxu0
        %v1520 = vadd.f32 0.0, %v1519
        %1521 = vmatmul.f32.gmra.mxu0 %v1429
        %v1522 = vpop.f32.mrf.mxu0
        %v1523 = vadd.f32 0.0, %v1522
        %1524 = vmatmul.f32.gmra.mxu0 %v1431
        %v1525 = vpop.f32.mrf.mxu0
        %v1526 = vadd.f32 0.0, %v1525
        %1527 = vmatmul.f32.gmra.mxu0 %v1433
        %v1528 = vpop.f32.mrf.mxu0
        %v1529 = vadd.f32 0.0, %v1528
        %1530 = vmatmul.f32.gmra.mxu0 %v1435
        %v1531 = vpop.f32.mrf.mxu0
        %v1532 = vadd.f32 0.0, %v1531
        %1533 = vmatmul.f32.gmra.mxu0 %v1437
        %v1534 = vpop.f32.mrf.mxu0
        %v1535 = vadd.f32 0.0, %v1534
        %1536 = vmatmul.f32.gmra.mxu0 %v1439
        %v1537 = vpop.f32.mrf.mxu0
        %v1538 = vadd.f32 0.0, %v1537
        %1539 = vmatmul.f32.gmra.mxu0 %v1441
        %v1540 = vpop.f32.mrf.mxu0
        %v1541 = vadd.f32 0.0, %v1540
        %1542 = vmatmul.f32.gmra.mxu0 %v1443
        %v1543 = vpop.f32.mrf.mxu0
        %v1544 = vadd.f32 0.0, %v1543
        %1545 = vmatmul.f32.gmra.mxu0 %v1445
        %v1546 = vpop.f32.mrf.mxu0
        %v1547 = vadd.f32 0.0, %v1546
        %1548 = vmatmul.f32.gmra.mxu0 %v1447
        %v1549 = vpop.f32.mrf.mxu0
        %v1550 = vadd.f32 0.0, %v1549
        %1551 = vmatmul.f32.gmra.mxu0 %v1449
        %v1552 = vpop.f32.mrf.mxu0
        %v1553 = vadd.f32 0.0, %v1552
        %1554 = vmatmul.f32.gmra.mxu0 %v1451
        %v1555 = vpop.f32.mrf.mxu0
        %v1556 = vadd.f32 0.0, %v1555
        %1557 = vmatmul.f32.gmra.mxu0 %v1453
        %v1558 = vpop.f32.mrf.mxu0
        %v1559 = vadd.f32 0.0, %v1558
        %1560 = vmatmul.f32.gmra.mxu0 %v1455
        %v1561 = vpop.f32.mrf.mxu0
        %v1562 = vadd.f32 0.0, %v1561
        %1563 = vmatmul.f32.gmra.mxu0 %v1457
        %v1564 = vpop.f32.mrf.mxu0
        %v1565 = vadd.f32 0.0, %v1564
        %1566 = vmatmul.f32.gmra.mxu0 %v1459
        %v1567 = vpop.f32.mrf.mxu0
        %v1568 = vadd.f32 0.0, %v1567
        %1569 = vmatmul.f32.gmra.mxu0 %v1461
        %v1570 = vpop.f32.mrf.mxu0
        %v1571 = vadd.f32 0.0, %v1570
        %1572 = vmatmul.f32.gmra.mxu0 %v1463
        %v1573 = vpop.f32.mrf.mxu0
        %v1574 = vadd.f32 0.0, %v1573
        %1575 = vmatmul.f32.gmra.mxu0 %v1465
        %v1576 = vpop.f32.mrf.mxu0
        %v1577 = vadd.f32 0.0, %v1576
        %1578 = vmatmul.f32.gmra.mxu0 %v1467
        %v1579 = vpop.f32.mrf.mxu0
        %v1580 = vadd.f32 0.0, %v1579
        %1581 = vmatmul.f32.gmra.mxu0 %v1469
        %v1582 = vpop.f32.mrf.mxu0
        %v1583 = vadd.f32 0.0, %v1582
        %1584 = vmatmul.f32.gmra.mxu0 %v1471
        %v1585 = vpop.f32.mrf.mxu0
        %v1586 = vadd.f32 0.0, %v1585
        %1587 = vmatmul.f32.gmra.mxu0 %v1473
        %v1588 = vpop.f32.mrf.mxu0
        %v1589 = vadd.f32 0.0, %v1588
        %1590 = vdwg.mxu0
        %v1591 = vadd.f32 %v1297, %v1496
        %v1592 = vadd.f32 %v1298, %v1499
        %v1593 = vadd.f32 %v1299, %v1502
        %v1594 = vadd.f32 %v1300, %v1505
        %v1595 = vadd.f32 %v1301, %v1508
        %v1596 = vadd.f32 %v1302, %v1511
        %v1597 = vadd.f32 %v1303, %v1514
        %v1598 = vadd.f32 %v1304, %v1517
        %v1599 = vadd.f32 %v1305, %v1520
        %v1600 = vadd.f32 %v1306, %v1523
        %v1601 = vadd.f32 %v1307, %v1526
        %v1602 = vadd.f32 %v1308, %v1529
        %v1603 = vadd.f32 %v1309, %v1532
        %v1604 = vadd.f32 %v1310, %v1535
        %v1605 = vadd.f32 %v1311, %v1538
        %v1606 = vadd.f32 %v1312, %v1541
        %v1607 = vadd.f32 %v1313, %v1544
        %v1608 = vadd.f32 %v1314, %v1547
        %v1609 = vadd.f32 %v1315, %v1550
        %v1610 = vadd.f32 %v1316, %v1553
        %v1611 = vadd.f32 %v1317, %v1556
        %v1612 = vadd.f32 %v1318, %v1559
        %v1613 = vadd.f32 %v1319, %v1562
        %v1614 = vadd.f32 %v1320, %v1565
        %v1615 = vadd.f32 %v1321, %v1568
        %v1616 = vadd.f32 %v1322, %v1571
        %v1617 = vadd.f32 %v1323, %v1574
        %v1618 = vadd.f32 %v1324, %v1577
        %v1619 = vadd.f32 %v1325, %v1580
        %v1620 = vadd.f32 %v1326, %v1583
        %v1621 = vadd.f32 %v1327, %v1586
        %v1622 = vadd.f32 %v1328, %v1589
        %v1623 = vrot.slane %v1043, 2
        %v1624 = vrot.slane %v1044, 2
        %v1625 = vsel %vm755, %v1623, %v1624
        %v1626 = vrot.slane %v1045, 2
        %v1627 = vsel %vm755, %v1624, %v1626
        %v1628 = vrot.slane %v1046, 2
        %v1629 = vsel %vm755, %v1626, %v1628
        %v1630 = vrot.slane %v1047, 2
        %v1631 = vsel %vm755, %v1628, %v1630
        %v1632 = vrot.slane %v1048, 2
        %v1633 = vrot.slane %v1049, 2
        %v1634 = vsel %vm755, %v1632, %v1633
        %v1635 = vrot.slane %v1050, 2
        %v1636 = vsel %vm755, %v1633, %v1635
        %v1637 = vrot.slane %v1051, 2
        %v1638 = vsel %vm755, %v1635, %v1637
        %v1639 = vrot.slane %v1052, 2
        %v1640 = vsel %vm755, %v1637, %v1639
        %v1641 = vrot.slane %v1053, 2
        %v1642 = vrot.slane %v1054, 2
        %v1643 = vsel %vm755, %v1641, %v1642
        %v1644 = vrot.slane %v1055, 2
        %v1645 = vsel %vm755, %v1642, %v1644
        %v1646 = vrot.slane %v1056, 2
        %v1647 = vsel %vm755, %v1644, %v1646
        %v1648 = vrot.slane %v1057, 2
        %v1649 = vsel %vm755, %v1646, %v1648
        %v1650 = vrot.slane %v1058, 2
        %v1651 = vrot.slane %v1059, 2
        %v1652 = vsel %vm755, %v1650, %v1651
        %v1653 = vrot.slane %v1060, 2
        %v1654 = vsel %vm755, %v1651, %v1653
        %v1655 = vrot.slane %v1061, 2
        %v1656 = vsel %vm755, %v1653, %v1655
        %v1657 = vrot.slane %v1062, 2
        %v1658 = vsel %vm755, %v1655, %v1657
        %v1659 = vrot.slane %v1063, 2
        %v1660 = vrot.slane %v1064, 2
        %v1661 = vsel %vm755, %v1659, %v1660
        %v1662 = vrot.slane %v1065, 2
        %v1663 = vsel %vm755, %v1660, %v1662
        %v1664 = vrot.slane %v1066, 2
        %v1665 = vsel %vm755, %v1662, %v1664
        %v1666 = vrot.slane %v1067, 2
        %v1667 = vsel %vm755, %v1664, %v1666
        %v1668 = vrot.slane %v1068, 2
        %v1669 = vrot.slane %v1069, 2
        %v1670 = vsel %vm755, %v1668, %v1669
        %v1671 = vrot.slane %v1070, 2
        %v1672 = vsel %vm755, %v1669, %v1671
        %v1673 = vrot.slane %v1071, 2
        %v1674 = vsel %vm755, %v1671, %v1673
        %v1675 = vrot.slane %v1072, 2
        %v1676 = vsel %vm755, %v1673, %v1675
        %v1677 = vrot.slane %v1073, 2
        %v1678 = vrot.slane %v1074, 2
        %v1679 = vsel %vm755, %v1677, %v1678
        %v1680 = vrot.slane %v1075, 2
        %v1681 = vsel %vm755, %v1678, %v1680
        %v1682 = vrot.slane %v1076, 2
        %v1683 = vsel %vm755, %v1680, %v1682
        %v1684 = vrot.slane %v1077, 2
        %v1685 = vsel %vm755, %v1682, %v1684
        %v1686 = vrot.slane %v1078, 2
        %v1687 = vrot.slane %v1079, 2
        %v1688 = vsel %vm755, %v1686, %v1687
        %v1689 = vrot.slane %v1080, 2
        %v1690 = vsel %vm755, %v1687, %v1689
        %v1691 = vrot.slane %v1081, 2
        %v1692 = vsel %vm755, %v1689, %v1691
        %v1693 = vrot.slane %v1082, 2
        %v1694 = vsel %vm755, %v1691, %v1693
        %s1695 = scalar_lea.vmem %s1, 20
        %v1696 = vld [vmem:[%s1695] sm:$0x7]
        %v1697 = vsel %vm214, %v1625, 0
        %v1699 = vsel %vm214, %v1627, 0
        %v1701 = vsel %vm214, %v1629, 0
        %v1703 = vsel %vm214, %v1631, 0
        %v1705 = vsel %vm214, %v1634, 0
        %v1707 = vsel %vm214, %v1636, 0
        %v1709 = vsel %vm214, %v1638, 0
        %v1711 = vsel %vm214, %v1640, 0
        %v1713 = vsel %vm214, %v1643, 0
        %v1715 = vsel %vm214, %v1645, 0
        %v1717 = vsel %vm214, %v1647, 0
        %v1719 = vsel %vm214, %v1649, 0
        %v1721 = vsel %vm214, %v1652, 0
        %v1723 = vsel %vm214, %v1654, 0
        %v1725 = vsel %vm214, %v1656, 0
        %v1727 = vsel %vm214, %v1658, 0
        %v1729 = vsel %vm214, %v1661, 0
        %v1731 = vsel %vm214, %v1663, 0
        %v1733 = vsel %vm214, %v1665, 0
        %v1735 = vsel %vm214, %v1667, 0
        %v1737 = vsel %vm214, %v1670, 0
        %v1739 = vsel %vm214, %v1672, 0
        %v1741 = vsel %vm214, %v1674, 0
        %v1743 = vsel %vm214, %v1676, 0
        %v1745 = vsel %vm214, %v1679, 0
        %v1747 = vsel %vm214, %v1681, 0
        %v1749 = vsel %vm214, %v1683, 0
        %v1751 = vsel %vm214, %v1685, 0
        %v1753 = vsel %vm214, %v1688, 0
        %v1755 = vsel %vm214, %v1690, 0
        %v1757 = vsel %vm214, %v1692, 0
        %v1759 = vsel %vm214, %v1694, 0
        %v1762 = vsel %vm311, %v1696, 0
        %1764 = vmatpush.msra.mxu0 0.0
        %1765 = vmatpush.msra.mxu0 0.0
        %1766 = vmatpush.msra.mxu0 0.0
        %1767 = vmatpush.msra.mxu0 0.0
        %1768 = vmatpush.msra.mxu0 0.0
        %1769 = vmatpush.msra.mxu0 0.0
        %1770 = vmatpush.msra.mxu0 0.0
        %1771 = vmatpush.msra.mxu0 0.0
        %1772 = vmatpush.msra.mxu0 0.0
        %1773 = vmatpush.msra.mxu0 0.0
        %1774 = vmatpush.msra.mxu0 0.0
        %1775 = vmatpush.msra.mxu0 0.0
        %1776 = vmatpush.msra.mxu0 0.0
        %1777 = vmatpush.msra.mxu0 0.0
        %1778 = vmatpush.msra.mxu0 0.0
        %1779 = vmatpush.msra.mxu0 %v1762
        %1780 = vmatmul.f32.gmra.mxu0 %v1697
        %v1781 = vpop.f32.mrf.mxu0
        %v1782 = vadd.f32 0.0, %v1781
        %1783 = vmatmul.f32.gmra.mxu0 %v1699
        %v1784 = vpop.f32.mrf.mxu0
        %v1785 = vadd.f32 0.0, %v1784
        %1786 = vmatmul.f32.gmra.mxu0 %v1701
        %v1787 = vpop.f32.mrf.mxu0
        %v1788 = vadd.f32 0.0, %v1787
        %1789 = vmatmul.f32.gmra.mxu0 %v1703
        %v1790 = vpop.f32.mrf.mxu0
        %v1791 = vadd.f32 0.0, %v1790
        %1792 = vmatmul.f32.gmra.mxu0 %v1705
        %v1793 = vpop.f32.mrf.mxu0
        %v1794 = vadd.f32 0.0, %v1793
        %1795 = vmatmul.f32.gmra.mxu0 %v1707
        %v1796 = vpop.f32.mrf.mxu0
        %v1797 = vadd.f32 0.0, %v1796
        %1798 = vmatmul.f32.gmra.mxu0 %v1709
        %v1799 = vpop.f32.mrf.mxu0
        %v1800 = vadd.f32 0.0, %v1799
        %1801 = vmatmul.f32.gmra.mxu0 %v1711
        %v1802 = vpop.f32.mrf.mxu0
        %v1803 = vadd.f32 0.0, %v1802
        %1804 = vmatmul.f32.gmra.mxu0 %v1713
        %v1805 = vpop.f32.mrf.mxu0
        %v1806 = vadd.f32 0.0, %v1805
        %1807 = vmatmul.f32.gmra.mxu0 %v1715
        %v1808 = vpop.f32.mrf.mxu0
        %v1809 = vadd.f32 0.0, %v1808
        %1810 = vmatmul.f32.gmra.mxu0 %v1717
        %v1811 = vpop.f32.mrf.mxu0
        %v1812 = vadd.f32 0.0, %v1811
        %1813 = vmatmul.f32.gmra.mxu0 %v1719
        %v1814 = vpop.f32.mrf.mxu0
        %v1815 = vadd.f32 0.0, %v1814
        %1816 = vmatmul.f32.gmra.mxu0 %v1721
        %v1817 = vpop.f32.mrf.mxu0
        %v1818 = vadd.f32 0.0, %v1817
        %1819 = vmatmul.f32.gmra.mxu0 %v1723
        %v1820 = vpop.f32.mrf.mxu0
        %v1821 = vadd.f32 0.0, %v1820
        %1822 = vmatmul.f32.gmra.mxu0 %v1725
        %v1823 = vpop.f32.mrf.mxu0
        %v1824 = vadd.f32 0.0, %v1823
        %1825 = vmatmul.f32.gmra.mxu0 %v1727
        %v1826 = vpop.f32.mrf.mxu0
        %v1827 = vadd.f32 0.0, %v1826
        %1828 = vmatmul.f32.gmra.mxu0 %v1729
        %v1829 = vpop.f32.mrf.mxu0
        %v1830 = vadd.f32 0.0, %v1829
        %1831 = vmatmul.f32.gmra.mxu0 %v1731
        %v1832 = vpop.f32.mrf.mxu0
        %v1833 = vadd.f32 0.0, %v1832
        %1834 = vmatmul.f32.gmra.mxu0 %v1733
        %v1835 = vpop.f32.mrf.mxu0
        %v1836 = vadd.f32 0.0, %v1835
        %1837 = vmatmul.f32.gmra.mxu0 %v1735
        %v1838 = vpop.f32.mrf.mxu0
        %v1839 = vadd.f32 0.0, %v1838
        %1840 = vmatmul.f32.gmra.mxu0 %v1737
        %v1841 = vpop.f32.mrf.mxu0
        %v1842 = vadd.f32 0.0, %v1841
        %1843 = vmatmul.f32.gmra.mxu0 %v1739
        %v1844 = vpop.f32.mrf.mxu0
        %v1845 = vadd.f32 0.0, %v1844
        %1846 = vmatmul.f32.gmra.mxu0 %v1741
        %v1847 = vpop.f32.mrf.mxu0
        %v1848 = vadd.f32 0.0, %v1847
        %1849 = vmatmul.f32.gmra.mxu0 %v1743
        %v1850 = vpop.f32.mrf.mxu0
        %v1851 = vadd.f32 0.0, %v1850
        %1852 = vmatmul.f32.gmra.mxu0 %v1745
        %v1853 = vpop.f32.mrf.mxu0
        %v1854 = vadd.f32 0.0, %v1853
        %1855 = vmatmul.f32.gmra.mxu0 %v1747
        %v1856 = vpop.f32.mrf.mxu0
        %v1857 = vadd.f32 0.0, %v1856
        %1858 = vmatmul.f32.gmra.mxu0 %v1749
        %v1859 = vpop.f32.mrf.mxu0
        %v1860 = vadd.f32 0.0, %v1859
        %1861 = vmatmul.f32.gmra.mxu0 %v1751
        %v1862 = vpop.f32.mrf.mxu0
        %v1863 = vadd.f32 0.0, %v1862
        %1864 = vmatmul.f32.gmra.mxu0 %v1753
        %v1865 = vpop.f32.mrf.mxu0
        %v1866 = vadd.f32 0.0, %v1865
        %1867 = vmatmul.f32.gmra.mxu0 %v1755
        %v1868 = vpop.f32.mrf.mxu0
        %v1869 = vadd.f32 0.0, %v1868
        %1870 = vmatmul.f32.gmra.mxu0 %v1757
        %v1871 = vpop.f32.mrf.mxu0
        %v1872 = vadd.f32 0.0, %v1871
        %1873 = vmatmul.f32.gmra.mxu0 %v1759
        %v1874 = vpop.f32.mrf.mxu0
        %v1875 = vadd.f32 0.0, %v1874
        %1876 = vdwg.mxu0
        %v1877 = vadd.f32 %v1591, %v1782
        %v1878 = vadd.f32 %v1592, %v1785
        %v1879 = vadd.f32 %v1593, %v1788
        %v1880 = vadd.f32 %v1594, %v1791
        %v1881 = vadd.f32 %v1595, %v1794
        %v1882 = vadd.f32 %v1596, %v1797
        %v1883 = vadd.f32 %v1597, %v1800
        %v1884 = vadd.f32 %v1598, %v1803
        %v1885 = vadd.f32 %v1599, %v1806
        %v1886 = vadd.f32 %v1600, %v1809
        %v1887 = vadd.f32 %v1601, %v1812
        %v1888 = vadd.f32 %v1602, %v1815
        %v1889 = vadd.f32 %v1603, %v1818
        %v1890 = vadd.f32 %v1604, %v1821
        %v1891 = vadd.f32 %v1605, %v1824
        %v1892 = vadd.f32 %v1606, %v1827
        %v1893 = vadd.f32 %v1607, %v1830
        %v1894 = vadd.f32 %v1608, %v1833
        %v1895 = vadd.f32 %v1609, %v1836
        %v1896 = vadd.f32 %v1610, %v1839
        %v1897 = vadd.f32 %v1611, %v1842
        %v1898 = vadd.f32 %v1612, %v1845
        %v1899 = vadd.f32 %v1613, %v1848
        %v1900 = vadd.f32 %v1614, %v1851
        %v1901 = vadd.f32 %v1615, %v1854
        %v1902 = vadd.f32 %v1616, %v1857
        %v1903 = vadd.f32 %v1617, %v1860
        %v1904 = vadd.f32 %v1618, %v1863
        %v1905 = vadd.f32 %v1619, %v1866
        %v1906 = vadd.f32 %v1620, %v1869
        %v1907 = vadd.f32 %v1621, %v1872
        %v1908 = vadd.f32 %v1622, %v1875
        %s1909 = scalar_lea.vmem %s168, 80
        %v1910 = vld [vmem:[%s1909] sm:$0xff]
        %v1911 = vld [vmem:[%s1909 + $0x8] sm:$0xff]
        %v1912 = vld [vmem:[%s1909 + $0x10] sm:$0xff]
        %v1913 = vld [vmem:[%s1909 + $0x18] sm:$0xff]
        %v1914 = vld [vmem:[%s1909 + $0x20] sm:$0x3]
        %v1915 = vld [vmem:[%s1909 + $0x28] sm:$0xff]
        %v1916 = vld [vmem:[%s1909 + $0x30] sm:$0xff]
        %v1917 = vld [vmem:[%s1909 + $0x38] sm:$0xff]
        %v1918 = vld [vmem:[%s1909 + $0x40] sm:$0xff]
        %v1919 = vld [vmem:[%s1909 + $0x48] sm:$0x3]
        %v1920 = vld [vmem:[%s1909 + $0x50] sm:$0xff]
        %v1921 = vld [vmem:[%s1909 + $0x58] sm:$0xff]
        %v1922 = vld [vmem:[%s1909 + $0x60] sm:$0xff]
        %v1923 = vld [vmem:[%s1909 + $0x68] sm:$0xff]
        %v1924 = vld [vmem:[%s1909 + $0x70] sm:$0x3]
        %v1925 = vld [vmem:[%s1909 + $0x78] sm:$0xff]
        %v1926 = vld [vmem:[%s1909 + $0x80] sm:$0xff]
        %v1927 = vld [vmem:[%s1909 + $0x88] sm:$0xff]
        %v1928 = vld [vmem:[%s1909 + $0x90] sm:$0xff]
        %v1929 = vld [vmem:[%s1909 + $0x98] sm:$0x3]
        %v1930 = vld [vmem:[%s1909 + $0xa0] sm:$0xff]
        %v1931 = vld [vmem:[%s1909 + $0xa8] sm:$0xff]
        %v1932 = vld [vmem:[%s1909 + $0xb0] sm:$0xff]
        %v1933 = vld [vmem:[%s1909 + $0xb8] sm:$0xff]
        %v1934 = vld [vmem:[%s1909 + $0xc0] sm:$0x3]
        %v1935 = vld [vmem:[%s1909 + $0xc8] sm:$0xff]
        %v1936 = vld [vmem:[%s1909 + $0xd0] sm:$0xff]
        %v1937 = vld [vmem:[%s1909 + $0xd8] sm:$0xff]
        %v1938 = vld [vmem:[%s1909 + $0xe0] sm:$0xff]
        %v1939 = vld [vmem:[%s1909 + $0xe8] sm:$0x3]
        %v1940 = vld [vmem:[%s1909 + $0xf0] sm:$0xff]
        %v1941 = vld [vmem:[%s1909 + $0xf8] sm:$0xff]
        %v1942 = vld [vmem:[%s1909 + $0x100] sm:$0xff]
        %v1943 = vld [vmem:[%s1909 + $0x108] sm:$0xff]
        %v1944 = vld [vmem:[%s1909 + $0x110] sm:$0x3]
        %v1945 = vld [vmem:[%s1909 + $0x118] sm:$0xff]
        %v1946 = vld [vmem:[%s1909 + $0x120] sm:$0xff]
        %v1947 = vld [vmem:[%s1909 + $0x128] sm:$0xff]
        %v1948 = vld [vmem:[%s1909 + $0x130] sm:$0xff]
        %v1949 = vld [vmem:[%s1909 + $0x138] sm:$0x3]
        %s1950 = scalar_lea.vmem %s1, 24
        %v1951 = vld [vmem:[%s1950] sm:$0x7]
        %v1953 = vsel %vm214, %v1910, 0
        %v1956 = vsel %vm214, %v1911, 0
        %v1959 = vsel %vm214, %v1912, 0
        %v1962 = vsel %vm214, %v1913, 0
        %v1965 = vsel %vm214, %v1915, 0
        %v1968 = vsel %vm214, %v1916, 0
        %v1971 = vsel %vm214, %v1917, 0
        %v1974 = vsel %vm214, %v1918, 0
        %v1977 = vsel %vm214, %v1920, 0
        %v1980 = vsel %vm214, %v1921, 0
        %v1983 = vsel %vm214, %v1922, 0
        %v1986 = vsel %vm214, %v1923, 0
        %v1989 = vsel %vm214, %v1925, 0
        %v1992 = vsel %vm214, %v1926, 0
        %v1995 = vsel %vm214, %v1927, 0
        %v1998 = vsel %vm214, %v1928, 0
        %v2001 = vsel %vm214, %v1930, 0
        %v2004 = vsel %vm214, %v1931, 0
        %v2007 = vsel %vm214, %v1932, 0
        %v2010 = vsel %vm214, %v1933, 0
        %v2013 = vsel %vm214, %v1935, 0
        %v2016 = vsel %vm214, %v1936, 0
        %v2019 = vsel %vm214, %v1937, 0
        %v2022 = vsel %vm214, %v1938, 0
        %v2025 = vsel %vm214, %v1940, 0
        %v2028 = vsel %vm214, %v1941, 0
        %v2031 = vsel %vm214, %v1942, 0
        %v2034 = vsel %vm214, %v1943, 0
        %v2037 = vsel %vm214, %v1945, 0
        %v2040 = vsel %vm214, %v1946, 0
        %v2043 = vsel %vm214, %v1947, 0
        %v2046 = vsel %vm214, %v1948, 0
        %v2049 = vsel %vm311, %v1951, 0
        %2051 = vmatpush.msra.mxu0 0.0
        %2052 = vmatpush.msra.mxu0 0.0
        %2053 = vmatpush.msra.mxu0 0.0
        %2054 = vmatpush.msra.mxu0 0.0
        %2055 = vmatpush.msra.mxu0 0.0
        %2056 = vmatpush.msra.mxu0 0.0
        %2057 = vmatpush.msra.mxu0 0.0
        %2058 = vmatpush.msra.mxu0 0.0
        %2059 = vmatpush.msra.mxu0 0.0
        %2060 = vmatpush.msra.mxu0 0.0
        %2061 = vmatpush.msra.mxu0 0.0
        %2062 = vmatpush.msra.mxu0 0.0
        %2063 = vmatpush.msra.mxu0 0.0
        %2064 = vmatpush.msra.mxu0 0.0
        %2065 = vmatpush.msra.mxu0 0.0
        %2066 = vmatpush.msra.mxu0 %v2049
        %2067 = vmatmul.f32.gmra.mxu0 %v1953
        %v2068 = vpop.f32.mrf.mxu0
        %v2069 = vadd.f32 0.0, %v2068
        %2070 = vmatmul.f32.gmra.mxu0 %v1956
        %v2071 = vpop.f32.mrf.mxu0
        %v2072 = vadd.f32 0.0, %v2071
        %2073 = vmatmul.f32.gmra.mxu0 %v1959
        %v2074 = vpop.f32.mrf.mxu0
        %v2075 = vadd.f32 0.0, %v2074
        %2076 = vmatmul.f32.gmra.mxu0 %v1962
        %v2077 = vpop.f32.mrf.mxu0
        %v2078 = vadd.f32 0.0, %v2077
        %2079 = vmatmul.f32.gmra.mxu0 %v1965
        %v2080 = vpop.f32.mrf.mxu0
        %v2081 = vadd.f32 0.0, %v2080
        %2082 = vmatmul.f32.gmra.mxu0 %v1968
        %v2083 = vpop.f32.mrf.mxu0
        %v2084 = vadd.f32 0.0, %v2083
        %2085 = vmatmul.f32.gmra.mxu0 %v1971
        %v2086 = vpop.f32.mrf.mxu0
        %v2087 = vadd.f32 0.0, %v2086
        %2088 = vmatmul.f32.gmra.mxu0 %v1974
        %v2089 = vpop.f32.mrf.mxu0
        %v2090 = vadd.f32 0.0, %v2089
        %2091 = vmatmul.f32.gmra.mxu0 %v1977
        %v2092 = vpop.f32.mrf.mxu0
        %v2093 = vadd.f32 0.0, %v2092
        %2094 = vmatmul.f32.gmra.mxu0 %v1980
        %v2095 = vpop.f32.mrf.mxu0
        %v2096 = vadd.f32 0.0, %v2095
        %2097 = vmatmul.f32.gmra.mxu0 %v1983
        %v2098 = vpop.f32.mrf.mxu0
        %v2099 = vadd.f32 0.0, %v2098
        %2100 = vmatmul.f32.gmra.mxu0 %v1986
        %v2101 = vpop.f32.mrf.mxu0
        %v2102 = vadd.f32 0.0, %v2101
        %2103 = vmatmul.f32.gmra.mxu0 %v1989
        %v2104 = vpop.f32.mrf.mxu0
        %v2105 = vadd.f32 0.0, %v2104
        %2106 = vmatmul.f32.gmra.mxu0 %v1992
        %v2107 = vpop.f32.mrf.mxu0
        %v2108 = vadd.f32 0.0, %v2107
        %2109 = vmatmul.f32.gmra.mxu0 %v1995
        %v2110 = vpop.f32.mrf.mxu0
        %v2111 = vadd.f32 0.0, %v2110
        %2112 = vmatmul.f32.gmra.mxu0 %v1998
        %v2113 = vpop.f32.mrf.mxu0
        %v2114 = vadd.f32 0.0, %v2113
        %2115 = vmatmul.f32.gmra.mxu0 %v2001
        %v2116 = vpop.f32.mrf.mxu0
        %v2117 = vadd.f32 0.0, %v2116
        %2118 = vmatmul.f32.gmra.mxu0 %v2004
        %v2119 = vpop.f32.mrf.mxu0
        %v2120 = vadd.f32 0.0, %v2119
        %2121 = vmatmul.f32.gmra.mxu0 %v2007
        %v2122 = vpop.f32.mrf.mxu0
        %v2123 = vadd.f32 0.0, %v2122
        %2124 = vmatmul.f32.gmra.mxu0 %v2010
        %v2125 = vpop.f32.mrf.mxu0
        %v2126 = vadd.f32 0.0, %v2125
        %2127 = vmatmul.f32.gmra.mxu0 %v2013
        %v2128 = vpop.f32.mrf.mxu0
        %v2129 = vadd.f32 0.0, %v2128
        %2130 = vmatmul.f32.gmra.mxu0 %v2016
        %v2131 = vpop.f32.mrf.mxu0
        %v2132 = vadd.f32 0.0, %v2131
        %2133 = vmatmul.f32.gmra.mxu0 %v2019
        %v2134 = vpop.f32.mrf.mxu0
        %v2135 = vadd.f32 0.0, %v2134
        %2136 = vmatmul.f32.gmra.mxu0 %v2022
        %v2137 = vpop.f32.mrf.mxu0
        %v2138 = vadd.f32 0.0, %v2137
        %2139 = vmatmul.f32.gmra.mxu0 %v2025
        %v2140 = vpop.f32.mrf.mxu0
        %v2141 = vadd.f32 0.0, %v2140
        %2142 = vmatmul.f32.gmra.mxu0 %v2028
        %v2143 = vpop.f32.mrf.mxu0
        %v2144 = vadd.f32 0.0, %v2143
        %2145 = vmatmul.f32.gmra.mxu0 %v2031
        %v2146 = vpop.f32.mrf.mxu0
        %v2147 = vadd.f32 0.0, %v2146
        %2148 = vmatmul.f32.gmra.mxu0 %v2034
        %v2149 = vpop.f32.mrf.mxu0
        %v2150 = vadd.f32 0.0, %v2149
        %2151 = vmatmul.f32.gmra.mxu0 %v2037
        %v2152 = vpop.f32.mrf.mxu0
        %v2153 = vadd.f32 0.0, %v2152
        %2154 = vmatmul.f32.gmra.mxu0 %v2040
        %v2155 = vpop.f32.mrf.mxu0
        %v2156 = vadd.f32 0.0, %v2155
        %2157 = vmatmul.f32.gmra.mxu0 %v2043
        %v2158 = vpop.f32.mrf.mxu0
        %v2159 = vadd.f32 0.0, %v2158
        %2160 = vmatmul.f32.gmra.mxu0 %v2046
        %v2161 = vpop.f32.mrf.mxu0
        %v2162 = vadd.f32 0.0, %v2161
        %2163 = vdwg.mxu0
        %v2164 = vadd.f32 %v1877, %v2069
        %v2165 = vadd.f32 %v1878, %v2072
        %v2166 = vadd.f32 %v1879, %v2075
        %v2167 = vadd.f32 %v1880, %v2078
        %v2168 = vadd.f32 %v1881, %v2081
        %v2169 = vadd.f32 %v1882, %v2084
        %v2170 = vadd.f32 %v1883, %v2087
        %v2171 = vadd.f32 %v1884, %v2090
        %v2172 = vadd.f32 %v1885, %v2093
        %v2173 = vadd.f32 %v1886, %v2096
        %v2174 = vadd.f32 %v1887, %v2099
        %v2175 = vadd.f32 %v1888, %v2102
        %v2176 = vadd.f32 %v1889, %v2105
        %v2177 = vadd.f32 %v1890, %v2108
        %v2178 = vadd.f32 %v1891, %v2111
        %v2179 = vadd.f32 %v1892, %v2114
        %v2180 = vadd.f32 %v1893, %v2117
        %v2181 = vadd.f32 %v1894, %v2120
        %v2182 = vadd.f32 %v1895, %v2123
        %v2183 = vadd.f32 %v1896, %v2126
        %v2184 = vadd.f32 %v1897, %v2129
        %v2185 = vadd.f32 %v1898, %v2132
        %v2186 = vadd.f32 %v1899, %v2135
        %v2187 = vadd.f32 %v1900, %v2138
        %v2188 = vadd.f32 %v1901, %v2141
        %v2189 = vadd.f32 %v1902, %v2144
        %v2190 = vadd.f32 %v1903, %v2147
        %v2191 = vadd.f32 %v1904, %v2150
        %v2192 = vadd.f32 %v1905, %v2153
        %v2193 = vadd.f32 %v1906, %v2156
        %v2194 = vadd.f32 %v1907, %v2159
        %v2195 = vadd.f32 %v1908, %v2162
        %v2204 = vrot.slane %v1910, 1
        %v2205 = vrot.slane %v1911, 1
        %v2206 = vsel %vm468, %v2204, %v2205
        %v2207 = vrot.slane %v1912, 1
        %v2208 = vsel %vm468, %v2205, %v2207
        %v2209 = vrot.slane %v1913, 1
        %v2210 = vsel %vm468, %v2207, %v2209
        %v2211 = vrot.slane %v1914, 1
        %v2212 = vsel %vm468, %v2209, %v2211
        %v2213 = vrot.slane %v1915, 1
        %v2214 = vrot.slane %v1916, 1
        %v2215 = vsel %vm468, %v2213, %v2214
        %v2216 = vrot.slane %v1917, 1
        %v2217 = vsel %vm468, %v2214, %v2216
        %v2218 = vrot.slane %v1918, 1
        %v2219 = vsel %vm468, %v2216, %v2218
        %v2220 = vrot.slane %v1919, 1
        %v2221 = vsel %vm468, %v2218, %v2220
        %v2222 = vrot.slane %v1920, 1
        %v2223 = vrot.slane %v1921, 1
        %v2224 = vsel %vm468, %v2222, %v2223
        %v2225 = vrot.slane %v1922, 1
        %v2226 = vsel %vm468, %v2223, %v2225
        %v2227 = vrot.slane %v1923, 1
        %v2228 = vsel %vm468, %v2225, %v2227
        %v2229 = vrot.slane %v1924, 1
        %v2230 = vsel %vm468, %v2227, %v2229
        %v2231 = vrot.slane %v1925, 1
        %v2232 = vrot.slane %v1926, 1
        %v2233 = vsel %vm468, %v2231, %v2232
        %v2234 = vrot.slane %v1927, 1
        %v2235 = vsel %vm468, %v2232, %v2234
        %v2236 = vrot.slane %v1928, 1
        %v2237 = vsel %vm468, %v2234, %v2236
        %v2238 = vrot.slane %v1929, 1
        %v2239 = vsel %vm468, %v2236, %v2238
        %v2240 = vrot.slane %v1930, 1
        %v2241 = vrot.slane %v1931, 1
        %v2242 = vsel %vm468, %v2240, %v2241
        %v2243 = vrot.slane %v1932, 1
        %v2244 = vsel %vm468, %v2241, %v2243
        %v2245 = vrot.slane %v1933, 1
        %v2246 = vsel %vm468, %v2243, %v2245
        %v2247 = vrot.slane %v1934, 1
        %v2248 = vsel %vm468, %v2245, %v2247
        %v2249 = vrot.slane %v1935, 1
        %v2250 = vrot.slane %v1936, 1
        %v2251 = vsel %vm468, %v2249, %v2250
        %v2252 = vrot.slane %v1937, 1
        %v2253 = vsel %vm468, %v2250, %v2252
        %v2254 = vrot.slane %v1938, 1
        %v2255 = vsel %vm468, %v2252, %v2254
        %v2256 = vrot.slane %v1939, 1
        %v2257 = vsel %vm468, %v2254, %v2256
        %v2258 = vrot.slane %v1940, 1
        %v2259 = vrot.slane %v1941, 1
        %v2260 = vsel %vm468, %v2258, %v2259
        %v2261 = vrot.slane %v1942, 1
        %v2262 = vsel %vm468, %v2259, %v2261
        %v2263 = vrot.slane %v1943, 1
        %v2264 = vsel %vm468, %v2261, %v2263
        %v2265 = vrot.slane %v1944, 1
        %v2266 = vsel %vm468, %v2263, %v2265
        %v2267 = vrot.slane %v1945, 1
        %v2268 = vrot.slane %v1946, 1
        %v2269 = vsel %vm468, %v2267, %v2268
        %v2270 = vrot.slane %v1947, 1
        %v2271 = vsel %vm468, %v2268, %v2270
        %v2272 = vrot.slane %v1948, 1
        %v2273 = vsel %vm468, %v2270, %v2272
        %v2274 = vrot.slane %v1949, 1
        %v2275 = vsel %vm468, %v2272, %v2274
        %s2276 = scalar_lea.vmem %s1, 28
        %v2277 = vld [vmem:[%s2276] sm:$0x7]
        %v2278 = vsel %vm214, %v2206, 0
        %v2280 = vsel %vm214, %v2208, 0
        %v2282 = vsel %vm214, %v2210, 0
        %v2284 = vsel %vm214, %v2212, 0
        %v2286 = vsel %vm214, %v2215, 0
        %v2288 = vsel %vm214, %v2217, 0
        %v2290 = vsel %vm214, %v2219, 0
        %v2292 = vsel %vm214, %v2221, 0
        %v2294 = vsel %vm214, %v2224, 0
        %v2296 = vsel %vm214, %v2226, 0
        %v2298 = vsel %vm214, %v2228, 0
        %v2300 = vsel %vm214, %v2230, 0
        %v2302 = vsel %vm214, %v2233, 0
        %v2304 = vsel %vm214, %v2235, 0
        %v2306 = vsel %vm214, %v2237, 0
        %v2308 = vsel %vm214, %v2239, 0
        %v2310 = vsel %vm214, %v2242, 0
        %v2312 = vsel %vm214, %v2244, 0
        %v2314 = vsel %vm214, %v2246, 0
        %v2316 = vsel %vm214, %v2248, 0
        %v2318 = vsel %vm214, %v2251, 0
        %v2320 = vsel %vm214, %v2253, 0
        %v2322 = vsel %vm214, %v2255, 0
        %v2324 = vsel %vm214, %v2257, 0
        %v2326 = vsel %vm214, %v2260, 0
        %v2328 = vsel %vm214, %v2262, 0
        %v2330 = vsel %vm214, %v2264, 0
        %v2332 = vsel %vm214, %v2266, 0
        %v2334 = vsel %vm214, %v2269, 0
        %v2336 = vsel %vm214, %v2271, 0
        %v2338 = vsel %vm214, %v2273, 0
        %v2340 = vsel %vm214, %v2275, 0
        %v2343 = vsel %vm311, %v2277, 0
        %2345 = vmatpush.msra.mxu0 0.0
        %2346 = vmatpush.msra.mxu0 0.0
        %2347 = vmatpush.msra.mxu0 0.0
        %2348 = vmatpush.msra.mxu0 0.0
        %2349 = vmatpush.msra.mxu0 0.0
        %2350 = vmatpush.msra.mxu0 0.0
        %2351 = vmatpush.msra.mxu0 0.0
        %2352 = vmatpush.msra.mxu0 0.0
        %2353 = vmatpush.msra.mxu0 0.0
        %2354 = vmatpush.msra.mxu0 0.0
        %2355 = vmatpush.msra.mxu0 0.0
        %2356 = vmatpush.msra.mxu0 0.0
        %2357 = vmatpush.msra.mxu0 0.0
        %2358 = vmatpush.msra.mxu0 0.0
        %2359 = vmatpush.msra.mxu0 0.0
        %2360 = vmatpush.msra.mxu0 %v2343
        %2361 = vmatmul.f32.gmra.mxu0 %v2278
        %v2362 = vpop.f32.mrf.mxu0
        %v2363 = vadd.f32 0.0, %v2362
        %2364 = vmatmul.f32.gmra.mxu0 %v2280
        %v2365 = vpop.f32.mrf.mxu0
        %v2366 = vadd.f32 0.0, %v2365
        %2367 = vmatmul.f32.gmra.mxu0 %v2282
        %v2368 = vpop.f32.mrf.mxu0
        %v2369 = vadd.f32 0.0, %v2368
        %2370 = vmatmul.f32.gmra.mxu0 %v2284
        %v2371 = vpop.f32.mrf.mxu0
        %v2372 = vadd.f32 0.0, %v2371
        %2373 = vmatmul.f32.gmra.mxu0 %v2286
        %v2374 = vpop.f32.mrf.mxu0
        %v2375 = vadd.f32 0.0, %v2374
        %2376 = vmatmul.f32.gmra.mxu0 %v2288
        %v2377 = vpop.f32.mrf.mxu0
        %v2378 = vadd.f32 0.0, %v2377
        %2379 = vmatmul.f32.gmra.mxu0 %v2290
        %v2380 = vpop.f32.mrf.mxu0
        %v2381 = vadd.f32 0.0, %v2380
        %2382 = vmatmul.f32.gmra.mxu0 %v2292
        %v2383 = vpop.f32.mrf.mxu0
        %v2384 = vadd.f32 0.0, %v2383
        %2385 = vmatmul.f32.gmra.mxu0 %v2294
        %v2386 = vpop.f32.mrf.mxu0
        %v2387 = vadd.f32 0.0, %v2386
        %2388 = vmatmul.f32.gmra.mxu0 %v2296
        %v2389 = vpop.f32.mrf.mxu0
        %v2390 = vadd.f32 0.0, %v2389
        %2391 = vmatmul.f32.gmra.mxu0 %v2298
        %v2392 = vpop.f32.mrf.mxu0
        %v2393 = vadd.f32 0.0, %v2392
        %2394 = vmatmul.f32.gmra.mxu0 %v2300
        %v2395 = vpop.f32.mrf.mxu0
        %v2396 = vadd.f32 0.0, %v2395
        %2397 = vmatmul.f32.gmra.mxu0 %v2302
        %v2398 = vpop.f32.mrf.mxu0
        %v2399 = vadd.f32 0.0, %v2398
        %2400 = vmatmul.f32.gmra.mxu0 %v2304
        %v2401 = vpop.f32.mrf.mxu0
        %v2402 = vadd.f32 0.0, %v2401
        %2403 = vmatmul.f32.gmra.mxu0 %v2306
        %v2404 = vpop.f32.mrf.mxu0
        %v2405 = vadd.f32 0.0, %v2404
        %2406 = vmatmul.f32.gmra.mxu0 %v2308
        %v2407 = vpop.f32.mrf.mxu0
        %v2408 = vadd.f32 0.0, %v2407
        %2409 = vmatmul.f32.gmra.mxu0 %v2310
        %v2410 = vpop.f32.mrf.mxu0
        %v2411 = vadd.f32 0.0, %v2410
        %2412 = vmatmul.f32.gmra.mxu0 %v2312
        %v2413 = vpop.f32.mrf.mxu0
        %v2414 = vadd.f32 0.0, %v2413
        %2415 = vmatmul.f32.gmra.mxu0 %v2314
        %v2416 = vpop.f32.mrf.mxu0
        %v2417 = vadd.f32 0.0, %v2416
        %2418 = vmatmul.f32.gmra.mxu0 %v2316
        %v2419 = vpop.f32.mrf.mxu0
        %v2420 = vadd.f32 0.0, %v2419
        %2421 = vmatmul.f32.gmra.mxu0 %v2318
        %v2422 = vpop.f32.mrf.mxu0
        %v2423 = vadd.f32 0.0, %v2422
        %2424 = vmatmul.f32.gmra.mxu0 %v2320
        %v2425 = vpop.f32.mrf.mxu0
        %v2426 = vadd.f32 0.0, %v2425
        %2427 = vmatmul.f32.gmra.mxu0 %v2322
        %v2428 = vpop.f32.mrf.mxu0
        %v2429 = vadd.f32 0.0, %v2428
        %2430 = vmatmul.f32.gmra.mxu0 %v2324
        %v2431 = vpop.f32.mrf.mxu0
        %v2432 = vadd.f32 0.0, %v2431
        %2433 = vmatmul.f32.gmra.mxu0 %v2326
        %v2434 = vpop.f32.mrf.mxu0
        %v2435 = vadd.f32 0.0, %v2434
        %2436 = vmatmul.f32.gmra.mxu0 %v2328
        %v2437 = vpop.f32.mrf.mxu0
        %v2438 = vadd.f32 0.0, %v2437
        %2439 = vmatmul.f32.gmra.mxu0 %v2330
        %v2440 = vpop.f32.mrf.mxu0
        %v2441 = vadd.f32 0.0, %v2440
        %2442 = vmatmul.f32.gmra.mxu0 %v2332
        %v2443 = vpop.f32.mrf.mxu0
        %v2444 = vadd.f32 0.0, %v2443
        %2445 = vmatmul.f32.gmra.mxu0 %v2334
        %v2446 = vpop.f32.mrf.mxu0
        %v2447 = vadd.f32 0.0, %v2446
        %2448 = vmatmul.f32.gmra.mxu0 %v2336
        %v2449 = vpop.f32.mrf.mxu0
        %v2450 = vadd.f32 0.0, %v2449
        %2451 = vmatmul.f32.gmra.mxu0 %v2338
        %v2452 = vpop.f32.mrf.mxu0
        %v2453 = vadd.f32 0.0, %v2452
        %2454 = vmatmul.f32.gmra.mxu0 %v2340
        %v2455 = vpop.f32.mrf.mxu0
        %v2456 = vadd.f32 0.0, %v2455
        %2457 = vdwg.mxu0
        %v2458 = vadd.f32 %v2164, %v2363
        %v2459 = vadd.f32 %v2165, %v2366
        %v2460 = vadd.f32 %v2166, %v2369
        %v2461 = vadd.f32 %v2167, %v2372
        %v2462 = vadd.f32 %v2168, %v2375
        %v2463 = vadd.f32 %v2169, %v2378
        %v2464 = vadd.f32 %v2170, %v2381
        %v2465 = vadd.f32 %v2171, %v2384
        %v2466 = vadd.f32 %v2172, %v2387
        %v2467 = vadd.f32 %v2173, %v2390
        %v2468 = vadd.f32 %v2174, %v2393
        %v2469 = vadd.f32 %v2175, %v2396
        %v2470 = vadd.f32 %v2176, %v2399
        %v2471 = vadd.f32 %v2177, %v2402
        %v2472 = vadd.f32 %v2178, %v2405
        %v2473 = vadd.f32 %v2179, %v2408
        %v2474 = vadd.f32 %v2180, %v2411
        %v2475 = vadd.f32 %v2181, %v2414
        %v2476 = vadd.f32 %v2182, %v2417
        %v2477 = vadd.f32 %v2183, %v2420
        %v2478 = vadd.f32 %v2184, %v2423
        %v2479 = vadd.f32 %v2185, %v2426
        %v2480 = vadd.f32 %v2186, %v2429
        %v2481 = vadd.f32 %v2187, %v2432
        %v2482 = vadd.f32 %v2188, %v2435
        %v2483 = vadd.f32 %v2189, %v2438
        %v2484 = vadd.f32 %v2190, %v2441
        %v2485 = vadd.f32 %v2191, %v2444
        %v2486 = vadd.f32 %v2192, %v2447
        %v2487 = vadd.f32 %v2193, %v2450
        %v2488 = vadd.f32 %v2194, %v2453
        %v2489 = vadd.f32 %v2195, %v2456
        %v2490 = vrot.slane %v1910, 2
        %v2491 = vrot.slane %v1911, 2
        %v2492 = vsel %vm755, %v2490, %v2491
        %v2493 = vrot.slane %v1912, 2
        %v2494 = vsel %vm755, %v2491, %v2493
        %v2495 = vrot.slane %v1913, 2
        %v2496 = vsel %vm755, %v2493, %v2495
        %v2497 = vrot.slane %v1914, 2
        %v2498 = vsel %vm755, %v2495, %v2497
        %v2499 = vrot.slane %v1915, 2
        %v2500 = vrot.slane %v1916, 2
        %v2501 = vsel %vm755, %v2499, %v2500
        %v2502 = vrot.slane %v1917, 2
        %v2503 = vsel %vm755, %v2500, %v2502
        %v2504 = vrot.slane %v1918, 2
        %v2505 = vsel %vm755, %v2502, %v2504
        %v2506 = vrot.slane %v1919, 2
        %v2507 = vsel %vm755, %v2504, %v2506
        %v2508 = vrot.slane %v1920, 2
        %v2509 = vrot.slane %v1921, 2
        %v2510 = vsel %vm755, %v2508, %v2509
        %v2511 = vrot.slane %v1922, 2
        %v2512 = vsel %vm755, %v2509, %v2511
        %v2513 = vrot.slane %v1923, 2
        %v2514 = vsel %vm755, %v2511, %v2513
        %v2515 = vrot.slane %v1924, 2
        %v2516 = vsel %vm755, %v2513, %v2515
        %v2517 = vrot.slane %v1925, 2
        %v2518 = vrot.slane %v1926, 2
        %v2519 = vsel %vm755, %v2517, %v2518
        %v2520 = vrot.slane %v1927, 2
        %v2521 = vsel %vm755, %v2518, %v2520
        %v2522 = vrot.slane %v1928, 2
        %v2523 = vsel %vm755, %v2520, %v2522
        %v2524 = vrot.slane %v1929, 2
        %v2525 = vsel %vm755, %v2522, %v2524
        %v2526 = vrot.slane %v1930, 2
        %v2527 = vrot.slane %v1931, 2
        %v2528 = vsel %vm755, %v2526, %v2527
        %v2529 = vrot.slane %v1932, 2
        %v2530 = vsel %vm755, %v2527, %v2529
        %v2531 = vrot.slane %v1933, 2
        %v2532 = vsel %vm755, %v2529, %v2531
        %v2533 = vrot.slane %v1934, 2
        %v2534 = vsel %vm755, %v2531, %v2533
        %v2535 = vrot.slane %v1935, 2
        %v2536 = vrot.slane %v1936, 2
        %v2537 = vsel %vm755, %v2535, %v2536
        %v2538 = vrot.slane %v1937, 2
        %v2539 = vsel %vm755, %v2536, %v2538
        %v2540 = vrot.slane %v1938, 2
        %v2541 = vsel %vm755, %v2538, %v2540
        %v2542 = vrot.slane %v1939, 2
        %v2543 = vsel %vm755, %v2540, %v2542
        %v2544 = vrot.slane %v1940, 2
        %v2545 = vrot.slane %v1941, 2
        %v2546 = vsel %vm755, %v2544, %v2545
        %v2547 = vrot.slane %v1942, 2
        %v2548 = vsel %vm755, %v2545, %v2547
        %v2549 = vrot.slane %v1943, 2
        %v2550 = vsel %vm755, %v2547, %v2549
        %v2551 = vrot.slane %v1944, 2
        %v2552 = vsel %vm755, %v2549, %v2551
        %v2553 = vrot.slane %v1945, 2
        %v2554 = vrot.slane %v1946, 2
        %v2555 = vsel %vm755, %v2553, %v2554
        %v2556 = vrot.slane %v1947, 2
        %v2557 = vsel %vm755, %v2554, %v2556
        %v2558 = vrot.slane %v1948, 2
        %v2559 = vsel %vm755, %v2556, %v2558
        %v2560 = vrot.slane %v1949, 2
        %v2561 = vsel %vm755, %v2558, %v2560
        %s2562 = scalar_lea.vmem %s1, 32
        %v2563 = vld [vmem:[%s2562] sm:$0x7]
        %v2564 = vsel %vm214, %v2492, 0
        %v2566 = vsel %vm214, %v2494, 0
        %v2568 = vsel %vm214, %v2496, 0
        %v2570 = vsel %vm214, %v2498, 0
        %v2572 = vsel %vm214, %v2501, 0
        %v2574 = vsel %vm214, %v2503, 0
        %v2576 = vsel %vm214, %v2505, 0
        %v2578 = vsel %vm214, %v2507, 0
        %v2580 = vsel %vm214, %v2510, 0
        %v2582 = vsel %vm214, %v2512, 0
        %v2584 = vsel %vm214, %v2514, 0
        %v2586 = vsel %vm214, %v2516, 0
        %v2588 = vsel %vm214, %v2519, 0
        %v2590 = vsel %vm214, %v2521, 0
        %v2592 = vsel %vm214, %v2523, 0
        %v2594 = vsel %vm214, %v2525, 0
        %v2596 = vsel %vm214, %v2528, 0
        %v2598 = vsel %vm214, %v2530, 0
        %v2600 = vsel %vm214, %v2532, 0
        %v2602 = vsel %vm214, %v2534, 0
        %v2604 = vsel %vm214, %v2537, 0
        %v2606 = vsel %vm214, %v2539, 0
        %v2608 = vsel %vm214, %v2541, 0
        %v2610 = vsel %vm214, %v2543, 0
        %v2612 = vsel %vm214, %v2546, 0
        %v2614 = vsel %vm214, %v2548, 0
        %v2616 = vsel %vm214, %v2550, 0
        %v2618 = vsel %vm214, %v2552, 0
        %v2620 = vsel %vm214, %v2555, 0
        %v2622 = vsel %vm214, %v2557, 0
        %v2624 = vsel %vm214, %v2559, 0
        %v2626 = vsel %vm214, %v2561, 0
        %v2629 = vsel %vm311, %v2563, 0
        %2631 = vmatpush.msra.mxu0 0.0
        %2632 = vmatpush.msra.mxu0 0.0
        %2633 = vmatpush.msra.mxu0 0.0
        %2634 = vmatpush.msra.mxu0 0.0
        %2635 = vmatpush.msra.mxu0 0.0
        %2636 = vmatpush.msra.mxu0 0.0
        %2637 = vmatpush.msra.mxu0 0.0
        %2638 = vmatpush.msra.mxu0 0.0
        %2639 = vmatpush.msra.mxu0 0.0
        %2640 = vmatpush.msra.mxu0 0.0
        %2641 = vmatpush.msra.mxu0 0.0
        %2642 = vmatpush.msra.mxu0 0.0
        %2643 = vmatpush.msra.mxu0 0.0
        %2644 = vmatpush.msra.mxu0 0.0
        %2645 = vmatpush.msra.mxu0 0.0
        %2646 = vmatpush.msra.mxu0 %v2629
        %2647 = vmatmul.f32.gmra.mxu0 %v2564
        %v2648 = vpop.f32.mrf.mxu0
        %v2649 = vadd.f32 0.0, %v2648
        %2650 = vmatmul.f32.gmra.mxu0 %v2566
        %v2651 = vpop.f32.mrf.mxu0
        %v2652 = vadd.f32 0.0, %v2651
        %2653 = vmatmul.f32.gmra.mxu0 %v2568
        %v2654 = vpop.f32.mrf.mxu0
        %v2655 = vadd.f32 0.0, %v2654
        %2656 = vmatmul.f32.gmra.mxu0 %v2570
        %v2657 = vpop.f32.mrf.mxu0
        %v2658 = vadd.f32 0.0, %v2657
        %2659 = vmatmul.f32.gmra.mxu0 %v2572
        %v2660 = vpop.f32.mrf.mxu0
        %v2661 = vadd.f32 0.0, %v2660
        %2662 = vmatmul.f32.gmra.mxu0 %v2574
        %v2663 = vpop.f32.mrf.mxu0
        %v2664 = vadd.f32 0.0, %v2663
        %2665 = vmatmul.f32.gmra.mxu0 %v2576
        %v2666 = vpop.f32.mrf.mxu0
        %v2667 = vadd.f32 0.0, %v2666
        %2668 = vmatmul.f32.gmra.mxu0 %v2578
        %v2669 = vpop.f32.mrf.mxu0
        %v2670 = vadd.f32 0.0, %v2669
        %2671 = vmatmul.f32.gmra.mxu0 %v2580
        %v2672 = vpop.f32.mrf.mxu0
        %v2673 = vadd.f32 0.0, %v2672
        %2674 = vmatmul.f32.gmra.mxu0 %v2582
        %v2675 = vpop.f32.mrf.mxu0
        %v2676 = vadd.f32 0.0, %v2675
        %2677 = vmatmul.f32.gmra.mxu0 %v2584
        %v2678 = vpop.f32.mrf.mxu0
        %v2679 = vadd.f32 0.0, %v2678
        %2680 = vmatmul.f32.gmra.mxu0 %v2586
        %v2681 = vpop.f32.mrf.mxu0
        %v2682 = vadd.f32 0.0, %v2681
        %2683 = vmatmul.f32.gmra.mxu0 %v2588
        %v2684 = vpop.f32.mrf.mxu0
        %v2685 = vadd.f32 0.0, %v2684
        %2686 = vmatmul.f32.gmra.mxu0 %v2590
        %v2687 = vpop.f32.mrf.mxu0
        %v2688 = vadd.f32 0.0, %v2687
        %2689 = vmatmul.f32.gmra.mxu0 %v2592
        %v2690 = vpop.f32.mrf.mxu0
        %v2691 = vadd.f32 0.0, %v2690
        %2692 = vmatmul.f32.gmra.mxu0 %v2594
        %v2693 = vpop.f32.mrf.mxu0
        %v2694 = vadd.f32 0.0, %v2693
        %2695 = vmatmul.f32.gmra.mxu0 %v2596
        %v2696 = vpop.f32.mrf.mxu0
        %v2697 = vadd.f32 0.0, %v2696
        %2698 = vmatmul.f32.gmra.mxu0 %v2598
        %v2699 = vpop.f32.mrf.mxu0
        %v2700 = vadd.f32 0.0, %v2699
        %2701 = vmatmul.f32.gmra.mxu0 %v2600
        %v2702 = vpop.f32.mrf.mxu0
        %v2703 = vadd.f32 0.0, %v2702
        %2704 = vmatmul.f32.gmra.mxu0 %v2602
        %v2705 = vpop.f32.mrf.mxu0
        %v2706 = vadd.f32 0.0, %v2705
        %2707 = vmatmul.f32.gmra.mxu0 %v2604
        %v2708 = vpop.f32.mrf.mxu0
        %v2709 = vadd.f32 0.0, %v2708
        %2710 = vmatmul.f32.gmra.mxu0 %v2606
        %v2711 = vpop.f32.mrf.mxu0
        %v2712 = vadd.f32 0.0, %v2711
        %2713 = vmatmul.f32.gmra.mxu0 %v2608
        %v2714 = vpop.f32.mrf.mxu0
        %v2715 = vadd.f32 0.0, %v2714
        %2716 = vmatmul.f32.gmra.mxu0 %v2610
        %v2717 = vpop.f32.mrf.mxu0
        %v2718 = vadd.f32 0.0, %v2717
        %2719 = vmatmul.f32.gmra.mxu0 %v2612
        %v2720 = vpop.f32.mrf.mxu0
        %v2721 = vadd.f32 0.0, %v2720
        %2722 = vmatmul.f32.gmra.mxu0 %v2614
        %v2723 = vpop.f32.mrf.mxu0
        %v2724 = vadd.f32 0.0, %v2723
        %2725 = vmatmul.f32.gmra.mxu0 %v2616
        %v2726 = vpop.f32.mrf.mxu0
        %v2727 = vadd.f32 0.0, %v2726
        %2728 = vmatmul.f32.gmra.mxu0 %v2618
        %v2729 = vpop.f32.mrf.mxu0
        %v2730 = vadd.f32 0.0, %v2729
        %2731 = vmatmul.f32.gmra.mxu0 %v2620
        %v2732 = vpop.f32.mrf.mxu0
        %v2733 = vadd.f32 0.0, %v2732
        %2734 = vmatmul.f32.gmra.mxu0 %v2622
        %v2735 = vpop.f32.mrf.mxu0
        %v2736 = vadd.f32 0.0, %v2735
        %2737 = vmatmul.f32.gmra.mxu0 %v2624
        %v2738 = vpop.f32.mrf.mxu0
        %v2739 = vadd.f32 0.0, %v2738
        %2740 = vmatmul.f32.gmra.mxu0 %v2626
        %v2741 = vpop.f32.mrf.mxu0
        %v2742 = vadd.f32 0.0, %v2741
        %2743 = vdwg.mxu0
        %v2744 = vadd.f32 %v2458, %v2649
        %v2745 = vadd.f32 %v2459, %v2652
        %v2746 = vadd.f32 %v2460, %v2655
        %v2747 = vadd.f32 %v2461, %v2658
        %v2748 = vadd.f32 %v2462, %v2661
        %v2749 = vadd.f32 %v2463, %v2664
        %v2750 = vadd.f32 %v2464, %v2667
        %v2751 = vadd.f32 %v2465, %v2670
        %v2752 = vadd.f32 %v2466, %v2673
        %v2753 = vadd.f32 %v2467, %v2676
        %v2754 = vadd.f32 %v2468, %v2679
        %v2755 = vadd.f32 %v2469, %v2682
        %v2756 = vadd.f32 %v2470, %v2685
        %v2757 = vadd.f32 %v2471, %v2688
        %v2758 = vadd.f32 %v2472, %v2691
        %v2759 = vadd.f32 %v2473, %v2694
        %v2760 = vadd.f32 %v2474, %v2697
        %v2761 = vadd.f32 %v2475, %v2700
        %v2762 = vadd.f32 %v2476, %v2703
        %v2763 = vadd.f32 %v2477, %v2706
        %v2764 = vadd.f32 %v2478, %v2709
        %v2765 = vadd.f32 %v2479, %v2712
        %v2766 = vadd.f32 %v2480, %v2715
        %v2767 = vadd.f32 %v2481, %v2718
        %v2768 = vadd.f32 %v2482, %v2721
        %v2769 = vadd.f32 %v2483, %v2724
        %v2770 = vadd.f32 %v2484, %v2727
        %v2771 = vadd.f32 %v2485, %v2730
        %v2772 = vadd.f32 %v2486, %v2733
        %v2773 = vadd.f32 %v2487, %v2736
        %v2774 = vadd.f32 %v2488, %v2739
        %v2775 = vadd.f32 %v2489, %v2742
        %v2776 = vmax.f32 %v2744, 0.0
        %v2777 = vmax.f32 %v2745, 0.0
        %v2778 = vmax.f32 %v2746, 0.0
        %v2779 = vmax.f32 %v2747, 0.0
        %v2780 = vmax.f32 %v2748, 0.0
        %v2781 = vmax.f32 %v2749, 0.0
        %v2782 = vmax.f32 %v2750, 0.0
        %v2783 = vmax.f32 %v2751, 0.0
        %v2784 = vmax.f32 %v2752, 0.0
        %v2785 = vmax.f32 %v2753, 0.0
        %v2786 = vmax.f32 %v2754, 0.0
        %v2787 = vmax.f32 %v2755, 0.0
        %v2788 = vmax.f32 %v2756, 0.0
        %v2789 = vmax.f32 %v2757, 0.0
        %v2790 = vmax.f32 %v2758, 0.0
        %v2791 = vmax.f32 %v2759, 0.0
        %v2792 = vmax.f32 %v2760, 0.0
        %v2793 = vmax.f32 %v2761, 0.0
        %v2794 = vmax.f32 %v2762, 0.0
        %v2795 = vmax.f32 %v2763, 0.0
        %v2796 = vmax.f32 %v2764, 0.0
        %v2797 = vmax.f32 %v2765, 0.0
        %v2798 = vmax.f32 %v2766, 0.0
        %v2799 = vmax.f32 %v2767, 0.0
        %v2800 = vmax.f32 %v2768, 0.0
        %v2801 = vmax.f32 %v2769, 0.0
        %v2802 = vmax.f32 %v2770, 0.0
        %v2803 = vmax.f32 %v2771, 0.0
        %v2804 = vmax.f32 %v2772, 0.0
        %v2805 = vmax.f32 %v2773, 0.0
        %v2806 = vmax.f32 %v2774, 0.0
        %v2807 = vmax.f32 %v2775, 0.0
        %vm2808 = vcmask 523264
        %2809 = vst.msk [vmem:[%s163] sm:$0xff] %vm2808, %v2776
        %2810 = vst.msk [vmem:[%s163 + $0x8] sm:$0xff] %vm2808, %v2777
        %2811 = vst.msk [vmem:[%s163 + $0x10] sm:$0xff] %vm2808, %v2778
        %2812 = vst.msk [vmem:[%s163 + $0x18] sm:$0xff] %vm2808, %v2779
        %2813 = vst.msk [vmem:[%s163 + $0x20] sm:$0xff] %vm2808, %v2780
        %2814 = vst.msk [vmem:[%s163 + $0x28] sm:$0xff] %vm2808, %v2781
        %2815 = vst.msk [vmem:[%s163 + $0x30] sm:$0xff] %vm2808, %v2782
        %2816 = vst.msk [vmem:[%s163 + $0x38] sm:$0xff] %vm2808, %v2783
        %2817 = vst.msk [vmem:[%s163 + $0x40] sm:$0xff] %vm2808, %v2784
        %2818 = vst.msk [vmem:[%s163 + $0x48] sm:$0xff] %vm2808, %v2785
        %2819 = vst.msk [vmem:[%s163 + $0x50] sm:$0xff] %vm2808, %v2786
        %2820 = vst.msk [vmem:[%s163 + $0x58] sm:$0xff] %vm2808, %v2787
        %2821 = vst.msk [vmem:[%s163 + $0x60] sm:$0xff] %vm2808, %v2788
        %2822 = vst.msk [vmem:[%s163 + $0x68] sm:$0xff] %vm2808, %v2789
        %2823 = vst.msk [vmem:[%s163 + $0x70] sm:$0xff] %vm2808, %v2790
        %2824 = vst.msk [vmem:[%s163 + $0x78] sm:$0xff] %vm2808, %v2791
        %2825 = vst.msk [vmem:[%s163 + $0x80] sm:$0xff] %vm2808, %v2792
        %2826 = vst.msk [vmem:[%s163 + $0x88] sm:$0xff] %vm2808, %v2793
        %2827 = vst.msk [vmem:[%s163 + $0x90] sm:$0xff] %vm2808, %v2794
        %2828 = vst.msk [vmem:[%s163 + $0x98] sm:$0xff] %vm2808, %v2795
        %2829 = vst.msk [vmem:[%s163 + $0xa0] sm:$0xff] %vm2808, %v2796
        %2830 = vst.msk [vmem:[%s163 + $0xa8] sm:$0xff] %vm2808, %v2797
        %2831 = vst.msk [vmem:[%s163 + $0xb0] sm:$0xff] %vm2808, %v2798
        %2832 = vst.msk [vmem:[%s163 + $0xb8] sm:$0xff] %vm2808, %v2799
        %2833 = vst.msk [vmem:[%s163 + $0xc0] sm:$0xff] %vm2808, %v2800
        %2834 = vst.msk [vmem:[%s163 + $0xc8] sm:$0xff] %vm2808, %v2801
        %2835 = vst.msk [vmem:[%s163 + $0xd0] sm:$0xff] %vm2808, %v2802
        %2836 = vst.msk [vmem:[%s163 + $0xd8] sm:$0xff] %vm2808, %v2803
        %2837 = vst.msk [vmem:[%s163 + $0xe0] sm:$0xff] %vm2808, %v2804
        %2838 = vst.msk [vmem:[%s163 + $0xe8] sm:$0xff] %vm2808, %v2805
        %2839 = vst.msk [vmem:[%s163 + $0xf0] sm:$0xff] %vm2808, %v2806
        %2840 = vst.msk [vmem:[%s163 + $0xf8] sm:$0xff] %vm2808, %v2807
        %s2841 = scalar_lea.vmem %s168, 320
        %v2842 = vld [vmem:[%s2841] sm:$0xff]
        %v2843 = vld [vmem:[%s2841 + $0x8] sm:$0xff]
        %v2844 = vld [vmem:[%s2841 + $0x10] sm:$0xff]
        %v2845 = vld [vmem:[%s2841 + $0x18] sm:$0xff]
        %v2846 = vld [vmem:[%s2841 + $0x20] sm:$0x3]
        %v2847 = vld [vmem:[%s2841 + $0x28] sm:$0xff]
        %v2848 = vld [vmem:[%s2841 + $0x30] sm:$0xff]
        %v2849 = vld [vmem:[%s2841 + $0x38] sm:$0xff]
        %v2850 = vld [vmem:[%s2841 + $0x40] sm:$0xff]
        %v2851 = vld [vmem:[%s2841 + $0x48] sm:$0x3]
        %v2852 = vld [vmem:[%s2841 + $0x50] sm:$0xff]
        %v2853 = vld [vmem:[%s2841 + $0x58] sm:$0xff]
        %v2854 = vld [vmem:[%s2841 + $0x60] sm:$0xff]
        %v2855 = vld [vmem:[%s2841 + $0x68] sm:$0xff]
        %v2856 = vld [vmem:[%s2841 + $0x70] sm:$0x3]
        %v2857 = vld [vmem:[%s2841 + $0x78] sm:$0xff]
        %v2858 = vld [vmem:[%s2841 + $0x80] sm:$0xff]
        %v2859 = vld [vmem:[%s2841 + $0x88] sm:$0xff]
        %v2860 = vld [vmem:[%s2841 + $0x90] sm:$0xff]
        %v2861 = vld [vmem:[%s2841 + $0x98] sm:$0x3]
        %v2862 = vld [vmem:[%s2841 + $0xa0] sm:$0xff]
        %v2863 = vld [vmem:[%s2841 + $0xa8] sm:$0xff]
        %v2864 = vld [vmem:[%s2841 + $0xb0] sm:$0xff]
        %v2865 = vld [vmem:[%s2841 + $0xb8] sm:$0xff]
        %v2866 = vld [vmem:[%s2841 + $0xc0] sm:$0x3]
        %v2867 = vld [vmem:[%s2841 + $0xc8] sm:$0xff]
        %v2868 = vld [vmem:[%s2841 + $0xd0] sm:$0xff]
        %v2869 = vld [vmem:[%s2841 + $0xd8] sm:$0xff]
        %v2870 = vld [vmem:[%s2841 + $0xe0] sm:$0xff]
        %v2871 = vld [vmem:[%s2841 + $0xe8] sm:$0x3]
        %v2872 = vld [vmem:[%s2841 + $0xf0] sm:$0xff]
        %v2873 = vld [vmem:[%s2841 + $0xf8] sm:$0xff]
        %v2874 = vld [vmem:[%s2841 + $0x100] sm:$0xff]
        %v2875 = vld [vmem:[%s2841 + $0x108] sm:$0xff]
        %v2876 = vld [vmem:[%s2841 + $0x110] sm:$0x3]
        %v2877 = vld [vmem:[%s2841 + $0x118] sm:$0xff]
        %v2878 = vld [vmem:[%s2841 + $0x120] sm:$0xff]
        %v2879 = vld [vmem:[%s2841 + $0x128] sm:$0xff]
        %v2880 = vld [vmem:[%s2841 + $0x130] sm:$0xff]
        %v2881 = vld [vmem:[%s2841 + $0x138] sm:$0x3]
        %v2882 = vld [vmem:[%s1] sm:$0x7]
        %v2884 = vsel %vm214, %v2842, 0
        %v2887 = vsel %vm214, %v2843, 0
        %v2890 = vsel %vm214, %v2844, 0
        %v2893 = vsel %vm214, %v2845, 0
        %v2896 = vsel %vm214, %v2847, 0
        %v2899 = vsel %vm214, %v2848, 0
        %v2902 = vsel %vm214, %v2849, 0
        %v2905 = vsel %vm214, %v2850, 0
        %v2908 = vsel %vm214, %v2852, 0
        %v2911 = vsel %vm214, %v2853, 0
        %v2914 = vsel %vm214, %v2854, 0
        %v2917 = vsel %vm214, %v2855, 0
        %v2920 = vsel %vm214, %v2857, 0
        %v2923 = vsel %vm214, %v2858, 0
        %v2926 = vsel %vm214, %v2859, 0
        %v2929 = vsel %vm214, %v2860, 0
        %v2932 = vsel %vm214, %v2862, 0
        %v2935 = vsel %vm214, %v2863, 0
        %v2938 = vsel %vm214, %v2864, 0
        %v2941 = vsel %vm214, %v2865, 0
        %v2944 = vsel %vm214, %v2867, 0
        %v2947 = vsel %vm214, %v2868, 0
        %v2950 = vsel %vm214, %v2869, 0
        %v2953 = vsel %vm214, %v2870, 0
        %v2956 = vsel %vm214, %v2872, 0
        %v2959 = vsel %vm214, %v2873, 0
        %v2962 = vsel %vm214, %v2874, 0
        %v2965 = vsel %vm214, %v2875, 0
        %v2968 = vsel %vm214, %v2877, 0
        %v2971 = vsel %vm214, %v2878, 0
        %v2974 = vsel %vm214, %v2879, 0
        %v2977 = vsel %vm214, %v2880, 0
        %v2980 = vsel %vm311, %v2882, 0
        %2982 = vmatpush.msra.mxu0 0.0
        %2983 = vmatpush.msra.mxu0 0.0
        %2984 = vmatpush.msra.mxu0 0.0
        %2985 = vmatpush.msra.mxu0 0.0
        %2986 = vmatpush.msra.mxu0 0.0
        %2987 = vmatpush.msra.mxu0 0.0
        %2988 = vmatpush.msra.mxu0 0.0
        %2989 = vmatpush.msra.mxu0 0.0
        %2990 = vmatpush.msra.mxu0 0.0
        %2991 = vmatpush.msra.mxu0 0.0
        %2992 = vmatpush.msra.mxu0 0.0
        %2993 = vmatpush.msra.mxu0 0.0
        %2994 = vmatpush.msra.mxu0 0.0
        %2995 = vmatpush.msra.mxu0 0.0
        %2996 = vmatpush.msra.mxu0 0.0
        %2997 = vmatpush.msra.mxu0 %v2980
        %2998 = vmatmul.f32.gmra.mxu0 %v2884
        %v2999 = vpop.f32.mrf.mxu0
        %v3000 = vadd.f32 0.0, %v2999
        %3001 = vmatmul.f32.gmra.mxu0 %v2887
        %v3002 = vpop.f32.mrf.mxu0
        %v3003 = vadd.f32 0.0, %v3002
        %3004 = vmatmul.f32.gmra.mxu0 %v2890
        %v3005 = vpop.f32.mrf.mxu0
        %v3006 = vadd.f32 0.0, %v3005
        %3007 = vmatmul.f32.gmra.mxu0 %v2893
        %v3008 = vpop.f32.mrf.mxu0
        %v3009 = vadd.f32 0.0, %v3008
        %3010 = vmatmul.f32.gmra.mxu0 %v2896
        %v3011 = vpop.f32.mrf.mxu0
        %v3012 = vadd.f32 0.0, %v3011
        %3013 = vmatmul.f32.gmra.mxu0 %v2899
        %v3014 = vpop.f32.mrf.mxu0
        %v3015 = vadd.f32 0.0, %v3014
        %3016 = vmatmul.f32.gmra.mxu0 %v2902
        %v3017 = vpop.f32.mrf.mxu0
        %v3018 = vadd.f32 0.0, %v3017
        %3019 = vmatmul.f32.gmra.mxu0 %v2905
        %v3020 = vpop.f32.mrf.mxu0
        %v3021 = vadd.f32 0.0, %v3020
        %3022 = vmatmul.f32.gmra.mxu0 %v2908
        %v3023 = vpop.f32.mrf.mxu0
        %v3024 = vadd.f32 0.0, %v3023
        %3025 = vmatmul.f32.gmra.mxu0 %v2911
        %v3026 = vpop.f32.mrf.mxu0
        %v3027 = vadd.f32 0.0, %v3026
        %3028 = vmatmul.f32.gmra.mxu0 %v2914
        %v3029 = vpop.f32.mrf.mxu0
        %v3030 = vadd.f32 0.0, %v3029
        %3031 = vmatmul.f32.gmra.mxu0 %v2917
        %v3032 = vpop.f32.mrf.mxu0
        %v3033 = vadd.f32 0.0, %v3032
        %3034 = vmatmul.f32.gmra.mxu0 %v2920
        %v3035 = vpop.f32.mrf.mxu0
        %v3036 = vadd.f32 0.0, %v3035
        %3037 = vmatmul.f32.gmra.mxu0 %v2923
        %v3038 = vpop.f32.mrf.mxu0
        %v3039 = vadd.f32 0.0, %v3038
        %3040 = vmatmul.f32.gmra.mxu0 %v2926
        %v3041 = vpop.f32.mrf.mxu0
        %v3042 = vadd.f32 0.0, %v3041
        %3043 = vmatmul.f32.gmra.mxu0 %v2929
        %v3044 = vpop.f32.mrf.mxu0
        %v3045 = vadd.f32 0.0, %v3044
        %3046 = vmatmul.f32.gmra.mxu0 %v2932
        %v3047 = vpop.f32.mrf.mxu0
        %v3048 = vadd.f32 0.0, %v3047
        %3049 = vmatmul.f32.gmra.mxu0 %v2935
        %v3050 = vpop.f32.mrf.mxu0
        %v3051 = vadd.f32 0.0, %v3050
        %3052 = vmatmul.f32.gmra.mxu0 %v2938
        %v3053 = vpop.f32.mrf.mxu0
        %v3054 = vadd.f32 0.0, %v3053
        %3055 = vmatmul.f32.gmra.mxu0 %v2941
        %v3056 = vpop.f32.mrf.mxu0
        %v3057 = vadd.f32 0.0, %v3056
        %3058 = vmatmul.f32.gmra.mxu0 %v2944
        %v3059 = vpop.f32.mrf.mxu0
        %v3060 = vadd.f32 0.0, %v3059
        %3061 = vmatmul.f32.gmra.mxu0 %v2947
        %v3062 = vpop.f32.mrf.mxu0
        %v3063 = vadd.f32 0.0, %v3062
        %3064 = vmatmul.f32.gmra.mxu0 %v2950
        %v3065 = vpop.f32.mrf.mxu0
        %v3066 = vadd.f32 0.0, %v3065
        %3067 = vmatmul.f32.gmra.mxu0 %v2953
        %v3068 = vpop.f32.mrf.mxu0
        %v3069 = vadd.f32 0.0, %v3068
        %3070 = vmatmul.f32.gmra.mxu0 %v2956
        %v3071 = vpop.f32.mrf.mxu0
        %v3072 = vadd.f32 0.0, %v3071
        %3073 = vmatmul.f32.gmra.mxu0 %v2959
        %v3074 = vpop.f32.mrf.mxu0
        %v3075 = vadd.f32 0.0, %v3074
        %3076 = vmatmul.f32.gmra.mxu0 %v2962
        %v3077 = vpop.f32.mrf.mxu0
        %v3078 = vadd.f32 0.0, %v3077
        %3079 = vmatmul.f32.gmra.mxu0 %v2965
        %v3080 = vpop.f32.mrf.mxu0
        %v3081 = vadd.f32 0.0, %v3080
        %3082 = vmatmul.f32.gmra.mxu0 %v2968
        %v3083 = vpop.f32.mrf.mxu0
        %v3084 = vadd.f32 0.0, %v3083
        %3085 = vmatmul.f32.gmra.mxu0 %v2971
        %v3086 = vpop.f32.mrf.mxu0
        %v3087 = vadd.f32 0.0, %v3086
        %3088 = vmatmul.f32.gmra.mxu0 %v2974
        %v3089 = vpop.f32.mrf.mxu0
        %v3090 = vadd.f32 0.0, %v3089
        %3091 = vmatmul.f32.gmra.mxu0 %v2977
        %v3092 = vpop.f32.mrf.mxu0
        %v3093 = vadd.f32 0.0, %v3092
        %3094 = vdwg.mxu0
        %v3095 = vadd.f32 %v171, %v3000
        %v3096 = vadd.f32 %v171, %v3003
        %v3097 = vadd.f32 %v171, %v3006
        %v3098 = vadd.f32 %v171, %v3009
        %v3099 = vadd.f32 %v171, %v3012
        %v3100 = vadd.f32 %v171, %v3015
        %v3101 = vadd.f32 %v171, %v3018
        %v3102 = vadd.f32 %v171, %v3021
        %v3103 = vadd.f32 %v171, %v3024
        %v3104 = vadd.f32 %v171, %v3027
        %v3105 = vadd.f32 %v171, %v3030
        %v3106 = vadd.f32 %v171, %v3033
        %v3107 = vadd.f32 %v171, %v3036
        %v3108 = vadd.f32 %v171, %v3039
        %v3109 = vadd.f32 %v171, %v3042
        %v3110 = vadd.f32 %v171, %v3045
        %v3111 = vadd.f32 %v171, %v3048
        %v3112 = vadd.f32 %v171, %v3051
        %v3113 = vadd.f32 %v171, %v3054
        %v3114 = vadd.f32 %v171, %v3057
        %v3115 = vadd.f32 %v171, %v3060
        %v3116 = vadd.f32 %v171, %v3063
        %v3117 = vadd.f32 %v171, %v3066
        %v3118 = vadd.f32 %v171, %v3069
        %v3119 = vadd.f32 %v171, %v3072
        %v3120 = vadd.f32 %v171, %v3075
        %v3121 = vadd.f32 %v171, %v3078
        %v3122 = vadd.f32 %v171, %v3081
        %v3123 = vadd.f32 %v171, %v3084
        %v3124 = vadd.f32 %v171, %v3087
        %v3125 = vadd.f32 %v171, %v3090
        %v3126 = vadd.f32 %v171, %v3093
        %v3135 = vrot.slane %v2842, 1
        %v3136 = vrot.slane %v2843, 1
        %v3137 = vsel %vm468, %v3135, %v3136
        %v3138 = vrot.slane %v2844, 1
        %v3139 = vsel %vm468, %v3136, %v3138
        %v3140 = vrot.slane %v2845, 1
        %v3141 = vsel %vm468, %v3138, %v3140
        %v3142 = vrot.slane %v2846, 1
        %v3143 = vsel %vm468, %v3140, %v3142
        %v3144 = vrot.slane %v2847, 1
        %v3145 = vrot.slane %v2848, 1
        %v3146 = vsel %vm468, %v3144, %v3145
        %v3147 = vrot.slane %v2849, 1
        %v3148 = vsel %vm468, %v3145, %v3147
        %v3149 = vrot.slane %v2850, 1
        %v3150 = vsel %vm468, %v3147, %v3149
        %v3151 = vrot.slane %v2851, 1
        %v3152 = vsel %vm468, %v3149, %v3151
        %v3153 = vrot.slane %v2852, 1
        %v3154 = vrot.slane %v2853, 1
        %v3155 = vsel %vm468, %v3153, %v3154
        %v3156 = vrot.slane %v2854, 1
        %v3157 = vsel %vm468, %v3154, %v3156
        %v3158 = vrot.slane %v2855, 1
        %v3159 = vsel %vm468, %v3156, %v3158
        %v3160 = vrot.slane %v2856, 1
        %v3161 = vsel %vm468, %v3158, %v3160
        %v3162 = vrot.slane %v2857, 1
        %v3163 = vrot.slane %v2858, 1
        %v3164 = vsel %vm468, %v3162, %v3163
        %v3165 = vrot.slane %v2859, 1
        %v3166 = vsel %vm468, %v3163, %v3165
        %v3167 = vrot.slane %v2860, 1
        %v3168 = vsel %vm468, %v3165, %v3167
        %v3169 = vrot.slane %v2861, 1
        %v3170 = vsel %vm468, %v3167, %v3169
        %v3171 = vrot.slane %v2862, 1
        %v3172 = vrot.slane %v2863, 1
        %v3173 = vsel %vm468, %v3171, %v3172
        %v3174 = vrot.slane %v2864, 1
        %v3175 = vsel %vm468, %v3172, %v3174
        %v3176 = vrot.slane %v2865, 1
        %v3177 = vsel %vm468, %v3174, %v3176
        %v3178 = vrot.slane %v2866, 1
        %v3179 = vsel %vm468, %v3176, %v3178
        %v3180 = vrot.slane %v2867, 1
        %v3181 = vrot.slane %v2868, 1
        %v3182 = vsel %vm468, %v3180, %v3181
        %v3183 = vrot.slane %v2869, 1
        %v3184 = vsel %vm468, %v3181, %v3183
        %v3185 = vrot.slane %v2870, 1
        %v3186 = vsel %vm468, %v3183, %v3185
        %v3187 = vrot.slane %v2871, 1
        %v3188 = vsel %vm468, %v3185, %v3187
        %v3189 = vrot.slane %v2872, 1
        %v3190 = vrot.slane %v2873, 1
        %v3191 = vsel %vm468, %v3189, %v3190
        %v3192 = vrot.slane %v2874, 1
        %v3193 = vsel %vm468, %v3190, %v3192
        %v3194 = vrot.slane %v2875, 1
        %v3195 = vsel %vm468, %v3192, %v3194
        %v3196 = vrot.slane %v2876, 1
        %v3197 = vsel %vm468, %v3194, %v3196
        %v3198 = vrot.slane %v2877, 1
        %v3199 = vrot.slane %v2878, 1
        %v3200 = vsel %vm468, %v3198, %v3199
        %v3201 = vrot.slane %v2879, 1
        %v3202 = vsel %vm468, %v3199, %v3201
        %v3203 = vrot.slane %v2880, 1
        %v3204 = vsel %vm468, %v3201, %v3203
        %v3205 = vrot.slane %v2881, 1
        %v3206 = vsel %vm468, %v3203, %v3205
        %v3207 = vld [vmem:[%s541] sm:$0x7]
        %v3208 = vsel %vm214, %v3137, 0
        %v3210 = vsel %vm214, %v3139, 0
        %v3212 = vsel %vm214, %v3141, 0
        %v3214 = vsel %vm214, %v3143, 0
        %v3216 = vsel %vm214, %v3146, 0
        %v3218 = vsel %vm214, %v3148, 0
        %v3220 = vsel %vm214, %v3150, 0
        %v3222 = vsel %vm214, %v3152, 0
        %v3224 = vsel %vm214, %v3155, 0
        %v3226 = vsel %vm214, %v3157, 0
        %v3228 = vsel %vm214, %v3159, 0
        %v3230 = vsel %vm214, %v3161, 0
        %v3232 = vsel %vm214, %v3164, 0
        %v3234 = vsel %vm214, %v3166, 0
        %v3236 = vsel %vm214, %v3168, 0
        %v3238 = vsel %vm214, %v3170, 0
        %v3240 = vsel %vm214, %v3173, 0
        %v3242 = vsel %vm214, %v3175, 0
        %v3244 = vsel %vm214, %v3177, 0
        %v3246 = vsel %vm214, %v3179, 0
        %v3248 = vsel %vm214, %v3182, 0
        %v3250 = vsel %vm214, %v3184, 0
        %v3252 = vsel %vm214, %v3186, 0
        %v3254 = vsel %vm214, %v3188, 0
        %v3256 = vsel %vm214, %v3191, 0
        %v3258 = vsel %vm214, %v3193, 0
        %v3260 = vsel %vm214, %v3195, 0
        %v3262 = vsel %vm214, %v3197, 0
        %v3264 = vsel %vm214, %v3200, 0
        %v3266 = vsel %vm214, %v3202, 0
        %v3268 = vsel %vm214, %v3204, 0
        %v3270 = vsel %vm214, %v3206, 0
        %v3273 = vsel %vm311, %v3207, 0
        %3275 = vmatpush.msra.mxu0 0.0
        %3276 = vmatpush.msra.mxu0 0.0
        %3277 = vmatpush.msra.mxu0 0.0
        %3278 = vmatpush.msra.mxu0 0.0
        %3279 = vmatpush.msra.mxu0 0.0
        %3280 = vmatpush.msra.mxu0 0.0
        %3281 = vmatpush.msra.mxu0 0.0
        %3282 = vmatpush.msra.mxu0 0.0
        %3283 = vmatpush.msra.mxu0 0.0
        %3284 = vmatpush.msra.mxu0 0.0
        %3285 = vmatpush.msra.mxu0 0.0
        %3286 = vmatpush.msra.mxu0 0.0
        %3287 = vmatpush.msra.mxu0 0.0
        %3288 = vmatpush.msra.mxu0 0.0
        %3289 = vmatpush.msra.mxu0 0.0
        %3290 = vmatpush.msra.mxu0 %v3273
        %3291 = vmatmul.f32.gmra.mxu0 %v3208
        %v3292 = vpop.f32.mrf.mxu0
        %v3293 = vadd.f32 0.0, %v3292
        %3294 = vmatmul.f32.gmra.mxu0 %v3210
        %v3295 = vpop.f32.mrf.mxu0
        %v3296 = vadd.f32 0.0, %v3295
        %3297 = vmatmul.f32.gmra.mxu0 %v3212
        %v3298 = vpop.f32.mrf.mxu0
        %v3299 = vadd.f32 0.0, %v3298
        %3300 = vmatmul.f32.gmra.mxu0 %v3214
        %v3301 = vpop.f32.mrf.mxu0
        %v3302 = vadd.f32 0.0, %v3301
        %3303 = vmatmul.f32.gmra.mxu0 %v3216
        %v3304 = vpop.f32.mrf.mxu0
        %v3305 = vadd.f32 0.0, %v3304
        %3306 = vmatmul.f32.gmra.mxu0 %v3218
        %v3307 = vpop.f32.mrf.mxu0
        %v3308 = vadd.f32 0.0, %v3307
        %3309 = vmatmul.f32.gmra.mxu0 %v3220
        %v3310 = vpop.f32.mrf.mxu0
        %v3311 = vadd.f32 0.0, %v3310
        %3312 = vmatmul.f32.gmra.mxu0 %v3222
        %v3313 = vpop.f32.mrf.mxu0
        %v3314 = vadd.f32 0.0, %v3313
        %3315 = vmatmul.f32.gmra.mxu0 %v3224
        %v3316 = vpop.f32.mrf.mxu0
        %v3317 = vadd.f32 0.0, %v3316
        %3318 = vmatmul.f32.gmra.mxu0 %v3226
        %v3319 = vpop.f32.mrf.mxu0
        %v3320 = vadd.f32 0.0, %v3319
        %3321 = vmatmul.f32.gmra.mxu0 %v3228
        %v3322 = vpop.f32.mrf.mxu0
        %v3323 = vadd.f32 0.0, %v3322
        %3324 = vmatmul.f32.gmra.mxu0 %v3230
        %v3325 = vpop.f32.mrf.mxu0
        %v3326 = vadd.f32 0.0, %v3325
        %3327 = vmatmul.f32.gmra.mxu0 %v3232
        %v3328 = vpop.f32.mrf.mxu0
        %v3329 = vadd.f32 0.0, %v3328
        %3330 = vmatmul.f32.gmra.mxu0 %v3234
        %v3331 = vpop.f32.mrf.mxu0
        %v3332 = vadd.f32 0.0, %v3331
        %3333 = vmatmul.f32.gmra.mxu0 %v3236
        %v3334 = vpop.f32.mrf.mxu0
        %v3335 = vadd.f32 0.0, %v3334
        %3336 = vmatmul.f32.gmra.mxu0 %v3238
        %v3337 = vpop.f32.mrf.mxu0
        %v3338 = vadd.f32 0.0, %v3337
        %3339 = vmatmul.f32.gmra.mxu0 %v3240
        %v3340 = vpop.f32.mrf.mxu0
        %v3341 = vadd.f32 0.0, %v3340
        %3342 = vmatmul.f32.gmra.mxu0 %v3242
        %v3343 = vpop.f32.mrf.mxu0
        %v3344 = vadd.f32 0.0, %v3343
        %3345 = vmatmul.f32.gmra.mxu0 %v3244
        %v3346 = vpop.f32.mrf.mxu0
        %v3347 = vadd.f32 0.0, %v3346
        %3348 = vmatmul.f32.gmra.mxu0 %v3246
        %v3349 = vpop.f32.mrf.mxu0
        %v3350 = vadd.f32 0.0, %v3349
        %3351 = vmatmul.f32.gmra.mxu0 %v3248
        %v3352 = vpop.f32.mrf.mxu0
        %v3353 = vadd.f32 0.0, %v3352
        %3354 = vmatmul.f32.gmra.mxu0 %v3250
        %v3355 = vpop.f32.mrf.mxu0
        %v3356 = vadd.f32 0.0, %v3355
        %3357 = vmatmul.f32.gmra.mxu0 %v3252
        %v3358 = vpop.f32.mrf.mxu0
        %v3359 = vadd.f32 0.0, %v3358
        %3360 = vmatmul.f32.gmra.mxu0 %v3254
        %v3361 = vpop.f32.mrf.mxu0
        %v3362 = vadd.f32 0.0, %v3361
        %3363 = vmatmul.f32.gmra.mxu0 %v3256
        %v3364 = vpop.f32.mrf.mxu0
        %v3365 = vadd.f32 0.0, %v3364
        %3366 = vmatmul.f32.gmra.mxu0 %v3258
        %v3367 = vpop.f32.mrf.mxu0
        %v3368 = vadd.f32 0.0, %v3367
        %3369 = vmatmul.f32.gmra.mxu0 %v3260
        %v3370 = vpop.f32.mrf.mxu0
        %v3371 = vadd.f32 0.0, %v3370
        %3372 = vmatmul.f32.gmra.mxu0 %v3262
        %v3373 = vpop.f32.mrf.mxu0
        %v3374 = vadd.f32 0.0, %v3373
        %3375 = vmatmul.f32.gmra.mxu0 %v3264
        %v3376 = vpop.f32.mrf.mxu0
        %v3377 = vadd.f32 0.0, %v3376
        %3378 = vmatmul.f32.gmra.mxu0 %v3266
        %v3379 = vpop.f32.mrf.mxu0
        %v3380 = vadd.f32 0.0, %v3379
        %3381 = vmatmul.f32.gmra.mxu0 %v3268
        %v3382 = vpop.f32.mrf.mxu0
        %v3383 = vadd.f32 0.0, %v3382
        %3384 = vmatmul.f32.gmra.mxu0 %v3270
        %v3385 = vpop.f32.mrf.mxu0
        %v3386 = vadd.f32 0.0, %v3385
        %3387 = vdwg.mxu0
        %v3388 = vadd.f32 %v3095, %v3293
        %v3389 = vadd.f32 %v3096, %v3296
        %v3390 = vadd.f32 %v3097, %v3299
        %v3391 = vadd.f32 %v3098, %v3302
        %v3392 = vadd.f32 %v3099, %v3305
        %v3393 = vadd.f32 %v3100, %v3308
        %v3394 = vadd.f32 %v3101, %v3311
        %v3395 = vadd.f32 %v3102, %v3314
        %v3396 = vadd.f32 %v3103, %v3317
        %v3397 = vadd.f32 %v3104, %v3320
        %v3398 = vadd.f32 %v3105, %v3323
        %v3399 = vadd.f32 %v3106, %v3326
        %v3400 = vadd.f32 %v3107, %v3329
        %v3401 = vadd.f32 %v3108, %v3332
        %v3402 = vadd.f32 %v3109, %v3335
        %v3403 = vadd.f32 %v3110, %v3338
        %v3404 = vadd.f32 %v3111, %v3341
        %v3405 = vadd.f32 %v3112, %v3344
        %v3406 = vadd.f32 %v3113, %v3347
        %v3407 = vadd.f32 %v3114, %v3350
        %v3408 = vadd.f32 %v3115, %v3353
        %v3409 = vadd.f32 %v3116, %v3356
        %v3410 = vadd.f32 %v3117, %v3359
        %v3411 = vadd.f32 %v3118, %v3362
        %v3412 = vadd.f32 %v3119, %v3365
        %v3413 = vadd.f32 %v3120, %v3368
        %v3414 = vadd.f32 %v3121, %v3371
        %v3415 = vadd.f32 %v3122, %v3374
        %v3416 = vadd.f32 %v3123, %v3377
        %v3417 = vadd.f32 %v3124, %v3380
        %v3418 = vadd.f32 %v3125, %v3383
        %v3419 = vadd.f32 %v3126, %v3386
        %v3420 = vrot.slane %v2842, 2
        %v3421 = vrot.slane %v2843, 2
        %v3422 = vsel %vm755, %v3420, %v3421
        %v3423 = vrot.slane %v2844, 2
        %v3424 = vsel %vm755, %v3421, %v3423
        %v3425 = vrot.slane %v2845, 2
        %v3426 = vsel %vm755, %v3423, %v3425
        %v3427 = vrot.slane %v2846, 2
        %v3428 = vsel %vm755, %v3425, %v3427
        %v3429 = vrot.slane %v2847, 2
        %v3430 = vrot.slane %v2848, 2
        %v3431 = vsel %vm755, %v3429, %v3430
        %v3432 = vrot.slane %v2849, 2
        %v3433 = vsel %vm755, %v3430, %v3432
        %v3434 = vrot.slane %v2850, 2
        %v3435 = vsel %vm755, %v3432, %v3434
        %v3436 = vrot.slane %v2851, 2
        %v3437 = vsel %vm755, %v3434, %v3436
        %v3438 = vrot.slane %v2852, 2
        %v3439 = vrot.slane %v2853, 2
        %v3440 = vsel %vm755, %v3438, %v3439
        %v3441 = vrot.slane %v2854, 2
        %v3442 = vsel %vm755, %v3439, %v3441
        %v3443 = vrot.slane %v2855, 2
        %v3444 = vsel %vm755, %v3441, %v3443
        %v3445 = vrot.slane %v2856, 2
        %v3446 = vsel %vm755, %v3443, %v3445
        %v3447 = vrot.slane %v2857, 2
        %v3448 = vrot.slane %v2858, 2
        %v3449 = vsel %vm755, %v3447, %v3448
        %v3450 = vrot.slane %v2859, 2
        %v3451 = vsel %vm755, %v3448, %v3450
        %v3452 = vrot.slane %v2860, 2
        %v3453 = vsel %vm755, %v3450, %v3452
        %v3454 = vrot.slane %v2861, 2
        %v3455 = vsel %vm755, %v3452, %v3454
        %v3456 = vrot.slane %v2862, 2
        %v3457 = vrot.slane %v2863, 2
        %v3458 = vsel %vm755, %v3456, %v3457
        %v3459 = vrot.slane %v2864, 2
        %v3460 = vsel %vm755, %v3457, %v3459
        %v3461 = vrot.slane %v2865, 2
        %v3462 = vsel %vm755, %v3459, %v3461
        %v3463 = vrot.slane %v2866, 2
        %v3464 = vsel %vm755, %v3461, %v3463
        %v3465 = vrot.slane %v2867, 2
        %v3466 = vrot.slane %v2868, 2
        %v3467 = vsel %vm755, %v3465, %v3466
        %v3468 = vrot.slane %v2869, 2
        %v3469 = vsel %vm755, %v3466, %v3468
        %v3470 = vrot.slane %v2870, 2
        %v3471 = vsel %vm755, %v3468, %v3470
        %v3472 = vrot.slane %v2871, 2
        %v3473 = vsel %vm755, %v3470, %v3472
        %v3474 = vrot.slane %v2872, 2
        %v3475 = vrot.slane %v2873, 2
        %v3476 = vsel %vm755, %v3474, %v3475
        %v3477 = vrot.slane %v2874, 2
        %v3478 = vsel %vm755, %v3475, %v3477
        %v3479 = vrot.slane %v2875, 2
        %v3480 = vsel %vm755, %v3477, %v3479
        %v3481 = vrot.slane %v2876, 2
        %v3482 = vsel %vm755, %v3479, %v3481
        %v3483 = vrot.slane %v2877, 2
        %v3484 = vrot.slane %v2878, 2
        %v3485 = vsel %vm755, %v3483, %v3484
        %v3486 = vrot.slane %v2879, 2
        %v3487 = vsel %vm755, %v3484, %v3486
        %v3488 = vrot.slane %v2880, 2
        %v3489 = vsel %vm755, %v3486, %v3488
        %v3490 = vrot.slane %v2881, 2
        %v3491 = vsel %vm755, %v3488, %v3490
        %v3492 = vld [vmem:[%s828] sm:$0x7]
        %v3493 = vsel %vm214, %v3422, 0
        %v3495 = vsel %vm214, %v3424, 0
        %v3497 = vsel %vm214, %v3426, 0
        %v3499 = vsel %vm214, %v3428, 0
        %v3501 = vsel %vm214, %v3431, 0
        %v3503 = vsel %vm214, %v3433, 0
        %v3505 = vsel %vm214, %v3435, 0
        %v3507 = vsel %vm214, %v3437, 0
        %v3509 = vsel %vm214, %v3440, 0
        %v3511 = vsel %vm214, %v3442, 0
        %v3513 = vsel %vm214, %v3444, 0
        %v3515 = vsel %vm214, %v3446, 0
        %v3517 = vsel %vm214, %v3449, 0
        %v3519 = vsel %vm214, %v3451, 0
        %v3521 = vsel %vm214, %v3453, 0
        %v3523 = vsel %vm214, %v3455, 0
        %v3525 = vsel %vm214, %v3458, 0
        %v3527 = vsel %vm214, %v3460, 0
        %v3529 = vsel %vm214, %v3462, 0
        %v3531 = vsel %vm214, %v3464, 0
        %v3533 = vsel %vm214, %v3467, 0
        %v3535 = vsel %vm214, %v3469, 0
        %v3537 = vsel %vm214, %v3471, 0
        %v3539 = vsel %vm214, %v3473, 0
        %v3541 = vsel %vm214, %v3476, 0
        %v3543 = vsel %vm214, %v3478, 0
        %v3545 = vsel %vm214, %v3480, 0
        %v3547 = vsel %vm214, %v3482, 0
        %v3549 = vsel %vm214, %v3485, 0
        %v3551 = vsel %vm214, %v3487, 0
        %v3553 = vsel %vm214, %v3489, 0
        %v3555 = vsel %vm214, %v3491, 0
        %v3558 = vsel %vm311, %v3492, 0
        %3560 = vmatpush.msra.mxu0 0.0
        %3561 = vmatpush.msra.mxu0 0.0
        %3562 = vmatpush.msra.mxu0 0.0
        %3563 = vmatpush.msra.mxu0 0.0
        %3564 = vmatpush.msra.mxu0 0.0
        %3565 = vmatpush.msra.mxu0 0.0
        %3566 = vmatpush.msra.mxu0 0.0
        %3567 = vmatpush.msra.mxu0 0.0
        %3568 = vmatpush.msra.mxu0 0.0
        %3569 = vmatpush.msra.mxu0 0.0
        %3570 = vmatpush.msra.mxu0 0.0
        %3571 = vmatpush.msra.mxu0 0.0
        %3572 = vmatpush.msra.mxu0 0.0
        %3573 = vmatpush.msra.mxu0 0.0
        %3574 = vmatpush.msra.mxu0 0.0
        %3575 = vmatpush.msra.mxu0 %v3558
        %3576 = vmatmul.f32.gmra.mxu0 %v3493
        %v3577 = vpop.f32.mrf.mxu0
        %v3578 = vadd.f32 0.0, %v3577
        %3579 = vmatmul.f32.gmra.mxu0 %v3495
        %v3580 = vpop.f32.mrf.mxu0
        %v3581 = vadd.f32 0.0, %v3580
        %3582 = vmatmul.f32.gmra.mxu0 %v3497
        %v3583 = vpop.f32.mrf.mxu0
        %v3584 = vadd.f32 0.0, %v3583
        %3585 = vmatmul.f32.gmra.mxu0 %v3499
        %v3586 = vpop.f32.mrf.mxu0
        %v3587 = vadd.f32 0.0, %v3586
        %3588 = vmatmul.f32.gmra.mxu0 %v3501
        %v3589 = vpop.f32.mrf.mxu0
        %v3590 = vadd.f32 0.0, %v3589
        %3591 = vmatmul.f32.gmra.mxu0 %v3503
        %v3592 = vpop.f32.mrf.mxu0
        %v3593 = vadd.f32 0.0, %v3592
        %3594 = vmatmul.f32.gmra.mxu0 %v3505
        %v3595 = vpop.f32.mrf.mxu0
        %v3596 = vadd.f32 0.0, %v3595
        %3597 = vmatmul.f32.gmra.mxu0 %v3507
        %v3598 = vpop.f32.mrf.mxu0
        %v3599 = vadd.f32 0.0, %v3598
        %3600 = vmatmul.f32.gmra.mxu0 %v3509
        %v3601 = vpop.f32.mrf.mxu0
        %v3602 = vadd.f32 0.0, %v3601
        %3603 = vmatmul.f32.gmra.mxu0 %v3511
        %v3604 = vpop.f32.mrf.mxu0
        %v3605 = vadd.f32 0.0, %v3604
        %3606 = vmatmul.f32.gmra.mxu0 %v3513
        %v3607 = vpop.f32.mrf.mxu0
        %v3608 = vadd.f32 0.0, %v3607
        %3609 = vmatmul.f32.gmra.mxu0 %v3515
        %v3610 = vpop.f32.mrf.mxu0
        %v3611 = vadd.f32 0.0, %v3610
        %3612 = vmatmul.f32.gmra.mxu0 %v3517
        %v3613 = vpop.f32.mrf.mxu0
        %v3614 = vadd.f32 0.0, %v3613
        %3615 = vmatmul.f32.gmra.mxu0 %v3519
        %v3616 = vpop.f32.mrf.mxu0
        %v3617 = vadd.f32 0.0, %v3616
        %3618 = vmatmul.f32.gmra.mxu0 %v3521
        %v3619 = vpop.f32.mrf.mxu0
        %v3620 = vadd.f32 0.0, %v3619
        %3621 = vmatmul.f32.gmra.mxu0 %v3523
        %v3622 = vpop.f32.mrf.mxu0
        %v3623 = vadd.f32 0.0, %v3622
        %3624 = vmatmul.f32.gmra.mxu0 %v3525
        %v3625 = vpop.f32.mrf.mxu0
        %v3626 = vadd.f32 0.0, %v3625
        %3627 = vmatmul.f32.gmra.mxu0 %v3527
        %v3628 = vpop.f32.mrf.mxu0
        %v3629 = vadd.f32 0.0, %v3628
        %3630 = vmatmul.f32.gmra.mxu0 %v3529
        %v3631 = vpop.f32.mrf.mxu0
        %v3632 = vadd.f32 0.0, %v3631
        %3633 = vmatmul.f32.gmra.mxu0 %v3531
        %v3634 = vpop.f32.mrf.mxu0
        %v3635 = vadd.f32 0.0, %v3634
        %3636 = vmatmul.f32.gmra.mxu0 %v3533
        %v3637 = vpop.f32.mrf.mxu0
        %v3638 = vadd.f32 0.0, %v3637
        %3639 = vmatmul.f32.gmra.mxu0 %v3535
        %v3640 = vpop.f32.mrf.mxu0
        %v3641 = vadd.f32 0.0, %v3640
        %3642 = vmatmul.f32.gmra.mxu0 %v3537
        %v3643 = vpop.f32.mrf.mxu0
        %v3644 = vadd.f32 0.0, %v3643
        %3645 = vmatmul.f32.gmra.mxu0 %v3539
        %v3646 = vpop.f32.mrf.mxu0
        %v3647 = vadd.f32 0.0, %v3646
        %3648 = vmatmul.f32.gmra.mxu0 %v3541
        %v3649 = vpop.f32.mrf.mxu0
        %v3650 = vadd.f32 0.0, %v3649
        %3651 = vmatmul.f32.gmra.mxu0 %v3543
        %v3652 = vpop.f32.mrf.mxu0
        %v3653 = vadd.f32 0.0, %v3652
        %3654 = vmatmul.f32.gmra.mxu0 %v3545
        %v3655 = vpop.f32.mrf.mxu0
        %v3656 = vadd.f32 0.0, %v3655
        %3657 = vmatmul.f32.gmra.mxu0 %v3547
        %v3658 = vpop.f32.mrf.mxu0
        %v3659 = vadd.f32 0.0, %v3658
        %3660 = vmatmul.f32.gmra.mxu0 %v3549
        %v3661 = vpop.f32.mrf.mxu0
        %v3662 = vadd.f32 0.0, %v3661
        %3663 = vmatmul.f32.gmra.mxu0 %v3551
        %v3664 = vpop.f32.mrf.mxu0
        %v3665 = vadd.f32 0.0, %v3664
        %3666 = vmatmul.f32.gmra.mxu0 %v3553
        %v3667 = vpop.f32.mrf.mxu0
        %v3668 = vadd.f32 0.0, %v3667
        %3669 = vmatmul.f32.gmra.mxu0 %v3555
        %v3670 = vpop.f32.mrf.mxu0
        %v3671 = vadd.f32 0.0, %v3670
        %3672 = vdwg.mxu0
        %v3673 = vadd.f32 %v3388, %v3578
        %v3674 = vadd.f32 %v3389, %v3581
        %v3675 = vadd.f32 %v3390, %v3584
        %v3676 = vadd.f32 %v3391, %v3587
        %v3677 = vadd.f32 %v3392, %v3590
        %v3678 = vadd.f32 %v3393, %v3593
        %v3679 = vadd.f32 %v3394, %v3596
        %v3680 = vadd.f32 %v3395, %v3599
        %v3681 = vadd.f32 %v3396, %v3602
        %v3682 = vadd.f32 %v3397, %v3605
        %v3683 = vadd.f32 %v3398, %v3608
        %v3684 = vadd.f32 %v3399, %v3611
        %v3685 = vadd.f32 %v3400, %v3614
        %v3686 = vadd.f32 %v3401, %v3617
        %v3687 = vadd.f32 %v3402, %v3620
        %v3688 = vadd.f32 %v3403, %v3623
        %v3689 = vadd.f32 %v3404, %v3626
        %v3690 = vadd.f32 %v3405, %v3629
        %v3691 = vadd.f32 %v3406, %v3632
        %v3692 = vadd.f32 %v3407, %v3635
        %v3693 = vadd.f32 %v3408, %v3638
        %v3694 = vadd.f32 %v3409, %v3641
        %v3695 = vadd.f32 %v3410, %v3644
        %v3696 = vadd.f32 %v3411, %v3647
        %v3697 = vadd.f32 %v3412, %v3650
        %v3698 = vadd.f32 %v3413, %v3653
        %v3699 = vadd.f32 %v3414, %v3656
        %v3700 = vadd.f32 %v3415, %v3659
        %v3701 = vadd.f32 %v3416, %v3662
        %v3702 = vadd.f32 %v3417, %v3665
        %v3703 = vadd.f32 %v3418, %v3668
        %v3704 = vadd.f32 %v3419, %v3671
        %s3705 = scalar_lea.vmem %s168, 360
        %v3706 = vld [vmem:[%s3705] sm:$0xff]
        %v3707 = vld [vmem:[%s3705 + $0x8] sm:$0xff]
        %v3708 = vld [vmem:[%s3705 + $0x10] sm:$0xff]
        %v3709 = vld [vmem:[%s3705 + $0x18] sm:$0xff]
        %v3710 = vld [vmem:[%s3705 + $0x20] sm:$0x3]
        %v3711 = vld [vmem:[%s3705 + $0x28] sm:$0xff]
        %v3712 = vld [vmem:[%s3705 + $0x30] sm:$0xff]
        %v3713 = vld [vmem:[%s3705 + $0x38] sm:$0xff]
        %v3714 = vld [vmem:[%s3705 + $0x40] sm:$0xff]
        %v3715 = vld [vmem:[%s3705 + $0x48] sm:$0x3]
        %v3716 = vld [vmem:[%s3705 + $0x50] sm:$0xff]
        %v3717 = vld [vmem:[%s3705 + $0x58] sm:$0xff]
        %v3718 = vld [vmem:[%s3705 + $0x60] sm:$0xff]
        %v3719 = vld [vmem:[%s3705 + $0x68] sm:$0xff]
        %v3720 = vld [vmem:[%s3705 + $0x70] sm:$0x3]
        %v3721 = vld [vmem:[%s3705 + $0x78] sm:$0xff]
        %v3722 = vld [vmem:[%s3705 + $0x80] sm:$0xff]
        %v3723 = vld [vmem:[%s3705 + $0x88] sm:$0xff]
        %v3724 = vld [vmem:[%s3705 + $0x90] sm:$0xff]
        %v3725 = vld [vmem:[%s3705 + $0x98] sm:$0x3]
        %v3726 = vld [vmem:[%s3705 + $0xa0] sm:$0xff]
        %v3727 = vld [vmem:[%s3705 + $0xa8] sm:$0xff]
        %v3728 = vld [vmem:[%s3705 + $0xb0] sm:$0xff]
        %v3729 = vld [vmem:[%s3705 + $0xb8] sm:$0xff]
        %v3730 = vld [vmem:[%s3705 + $0xc0] sm:$0x3]
        %v3731 = vld [vmem:[%s3705 + $0xc8] sm:$0xff]
        %v3732 = vld [vmem:[%s3705 + $0xd0] sm:$0xff]
        %v3733 = vld [vmem:[%s3705 + $0xd8] sm:$0xff]
        %v3734 = vld [vmem:[%s3705 + $0xe0] sm:$0xff]
        %v3735 = vld [vmem:[%s3705 + $0xe8] sm:$0x3]
        %v3736 = vld [vmem:[%s3705 + $0xf0] sm:$0xff]
        %v3737 = vld [vmem:[%s3705 + $0xf8] sm:$0xff]
        %v3738 = vld [vmem:[%s3705 + $0x100] sm:$0xff]
        %v3739 = vld [vmem:[%s3705 + $0x108] sm:$0xff]
        %v3740 = vld [vmem:[%s3705 + $0x110] sm:$0x3]
        %v3741 = vld [vmem:[%s3705 + $0x118] sm:$0xff]
        %v3742 = vld [vmem:[%s3705 + $0x120] sm:$0xff]
        %v3743 = vld [vmem:[%s3705 + $0x128] sm:$0xff]
        %v3744 = vld [vmem:[%s3705 + $0x130] sm:$0xff]
        %v3745 = vld [vmem:[%s3705 + $0x138] sm:$0x3]
        %v3746 = vld [vmem:[%s1083] sm:$0x7]
        %v3748 = vsel %vm214, %v3706, 0
        %v3751 = vsel %vm214, %v3707, 0
        %v3754 = vsel %vm214, %v3708, 0
        %v3757 = vsel %vm214, %v3709, 0
        %v3760 = vsel %vm214, %v3711, 0
        %v3763 = vsel %vm214, %v3712, 0
        %v3766 = vsel %vm214, %v3713, 0
        %v3769 = vsel %vm214, %v3714, 0
        %v3772 = vsel %vm214, %v3716, 0
        %v3775 = vsel %vm214, %v3717, 0
        %v3778 = vsel %vm214, %v3718, 0
        %v3781 = vsel %vm214, %v3719, 0
        %v3784 = vsel %vm214, %v3721, 0
        %v3787 = vsel %vm214, %v3722, 0
        %v3790 = vsel %vm214, %v3723, 0
        %v3793 = vsel %vm214, %v3724, 0
        %v3796 = vsel %vm214, %v3726, 0
        %v3799 = vsel %vm214, %v3727, 0
        %v3802 = vsel %vm214, %v3728, 0
        %v3805 = vsel %vm214, %v3729, 0
        %v3808 = vsel %vm214, %v3731, 0
        %v3811 = vsel %vm214, %v3732, 0
        %v3814 = vsel %vm214, %v3733, 0
        %v3817 = vsel %vm214, %v3734, 0
        %v3820 = vsel %vm214, %v3736, 0
        %v3823 = vsel %vm214, %v3737, 0
        %v3826 = vsel %vm214, %v3738, 0
        %v3829 = vsel %vm214, %v3739, 0
        %v3832 = vsel %vm214, %v3741, 0
        %v3835 = vsel %vm214, %v3742, 0
        %v3838 = vsel %vm214, %v3743, 0
        %v3841 = vsel %vm214, %v3744, 0
        %v3844 = vsel %vm311, %v3746, 0
        %3846 = vmatpush.msra.mxu0 0.0
        %3847 = vmatpush.msra.mxu0 0.0
        %3848 = vmatpush.msra.mxu0 0.0
        %3849 = vmatpush.msra.mxu0 0.0
        %3850 = vmatpush.msra.mxu0 0.0
        %3851 = vmatpush.msra.mxu0 0.0
        %3852 = vmatpush.msra.mxu0 0.0
        %3853 = vmatpush.msra.mxu0 0.0
        %3854 = vmatpush.msra.mxu0 0.0
        %3855 = vmatpush.msra.mxu0 0.0
        %3856 = vmatpush.msra.mxu0 0.0
        %3857 = vmatpush.msra.mxu0 0.0
        %3858 = vmatpush.msra.mxu0 0.0
        %3859 = vmatpush.msra.mxu0 0.0
        %3860 = vmatpush.msra.mxu0 0.0
        %3861 = vmatpush.msra.mxu0 %v3844
        %3862 = vmatmul.f32.gmra.mxu0 %v3748
        %v3863 = vpop.f32.mrf.mxu0
        %v3864 = vadd.f32 0.0, %v3863
        %3865 = vmatmul.f32.gmra.mxu0 %v3751
        %v3866 = vpop.f32.mrf.mxu0
        %v3867 = vadd.f32 0.0, %v3866
        %3868 = vmatmul.f32.gmra.mxu0 %v3754
        %v3869 = vpop.f32.mrf.mxu0
        %v3870 = vadd.f32 0.0, %v3869
        %3871 = vmatmul.f32.gmra.mxu0 %v3757
        %v3872 = vpop.f32.mrf.mxu0
        %v3873 = vadd.f32 0.0, %v3872
        %3874 = vmatmul.f32.gmra.mxu0 %v3760
        %v3875 = vpop.f32.mrf.mxu0
        %v3876 = vadd.f32 0.0, %v3875
        %3877 = vmatmul.f32.gmra.mxu0 %v3763
        %v3878 = vpop.f32.mrf.mxu0
        %v3879 = vadd.f32 0.0, %v3878
        %3880 = vmatmul.f32.gmra.mxu0 %v3766
        %v3881 = vpop.f32.mrf.mxu0
        %v3882 = vadd.f32 0.0, %v3881
        %3883 = vmatmul.f32.gmra.mxu0 %v3769
        %v3884 = vpop.f32.mrf.mxu0
        %v3885 = vadd.f32 0.0, %v3884
        %3886 = vmatmul.f32.gmra.mxu0 %v3772
        %v3887 = vpop.f32.mrf.mxu0
        %v3888 = vadd.f32 0.0, %v3887
        %3889 = vmatmul.f32.gmra.mxu0 %v3775
        %v3890 = vpop.f32.mrf.mxu0
        %v3891 = vadd.f32 0.0, %v3890
        %3892 = vmatmul.f32.gmra.mxu0 %v3778
        %v3893 = vpop.f32.mrf.mxu0
        %v3894 = vadd.f32 0.0, %v3893
        %3895 = vmatmul.f32.gmra.mxu0 %v3781
        %v3896 = vpop.f32.mrf.mxu0
        %v3897 = vadd.f32 0.0, %v3896
        %3898 = vmatmul.f32.gmra.mxu0 %v3784
        %v3899 = vpop.f32.mrf.mxu0
        %v3900 = vadd.f32 0.0, %v3899
        %3901 = vmatmul.f32.gmra.mxu0 %v3787
        %v3902 = vpop.f32.mrf.mxu0
        %v3903 = vadd.f32 0.0, %v3902
        %3904 = vmatmul.f32.gmra.mxu0 %v3790
        %v3905 = vpop.f32.mrf.mxu0
        %v3906 = vadd.f32 0.0, %v3905
        %3907 = vmatmul.f32.gmra.mxu0 %v3793
        %v3908 = vpop.f32.mrf.mxu0
        %v3909 = vadd.f32 0.0, %v3908
        %3910 = vmatmul.f32.gmra.mxu0 %v3796
        %v3911 = vpop.f32.mrf.mxu0
        %v3912 = vadd.f32 0.0, %v3911
        %3913 = vmatmul.f32.gmra.mxu0 %v3799
        %v3914 = vpop.f32.mrf.mxu0
        %v3915 = vadd.f32 0.0, %v3914
        %3916 = vmatmul.f32.gmra.mxu0 %v3802
        %v3917 = vpop.f32.mrf.mxu0
        %v3918 = vadd.f32 0.0, %v3917
        %3919 = vmatmul.f32.gmra.mxu0 %v3805
        %v3920 = vpop.f32.mrf.mxu0
        %v3921 = vadd.f32 0.0, %v3920
        %3922 = vmatmul.f32.gmra.mxu0 %v3808
        %v3923 = vpop.f32.mrf.mxu0
        %v3924 = vadd.f32 0.0, %v3923
        %3925 = vmatmul.f32.gmra.mxu0 %v3811
        %v3926 = vpop.f32.mrf.mxu0
        %v3927 = vadd.f32 0.0, %v3926
        %3928 = vmatmul.f32.gmra.mxu0 %v3814
        %v3929 = vpop.f32.mrf.mxu0
        %v3930 = vadd.f32 0.0, %v3929
        %3931 = vmatmul.f32.gmra.mxu0 %v3817
        %v3932 = vpop.f32.mrf.mxu0
        %v3933 = vadd.f32 0.0, %v3932
        %3934 = vmatmul.f32.gmra.mxu0 %v3820
        %v3935 = vpop.f32.mrf.mxu0
        %v3936 = vadd.f32 0.0, %v3935
        %3937 = vmatmul.f32.gmra.mxu0 %v3823
        %v3938 = vpop.f32.mrf.mxu0
        %v3939 = vadd.f32 0.0, %v3938
        %3940 = vmatmul.f32.gmra.mxu0 %v3826
        %v3941 = vpop.f32.mrf.mxu0
        %v3942 = vadd.f32 0.0, %v3941
        %3943 = vmatmul.f32.gmra.mxu0 %v3829
        %v3944 = vpop.f32.mrf.mxu0
        %v3945 = vadd.f32 0.0, %v3944
        %3946 = vmatmul.f32.gmra.mxu0 %v3832
        %v3947 = vpop.f32.mrf.mxu0
        %v3948 = vadd.f32 0.0, %v3947
        %3949 = vmatmul.f32.gmra.mxu0 %v3835
        %v3950 = vpop.f32.mrf.mxu0
        %v3951 = vadd.f32 0.0, %v3950
        %3952 = vmatmul.f32.gmra.mxu0 %v3838
        %v3953 = vpop.f32.mrf.mxu0
        %v3954 = vadd.f32 0.0, %v3953
        %3955 = vmatmul.f32.gmra.mxu0 %v3841
        %v3956 = vpop.f32.mrf.mxu0
        %v3957 = vadd.f32 0.0, %v3956
        %3958 = vdwg.mxu0
        %v3959 = vadd.f32 %v3673, %v3864
        %v3960 = vadd.f32 %v3674, %v3867
        %v3961 = vadd.f32 %v3675, %v3870
        %v3962 = vadd.f32 %v3676, %v3873
        %v3963 = vadd.f32 %v3677, %v3876
        %v3964 = vadd.f32 %v3678, %v3879
        %v3965 = vadd.f32 %v3679, %v3882
        %v3966 = vadd.f32 %v3680, %v3885
        %v3967 = vadd.f32 %v3681, %v3888
        %v3968 = vadd.f32 %v3682, %v3891
        %v3969 = vadd.f32 %v3683, %v3894
        %v3970 = vadd.f32 %v3684, %v3897
        %v3971 = vadd.f32 %v3685, %v3900
        %v3972 = vadd.f32 %v3686, %v3903
        %v3973 = vadd.f32 %v3687, %v3906
        %v3974 = vadd.f32 %v3688, %v3909
        %v3975 = vadd.f32 %v3689, %v3912
        %v3976 = vadd.f32 %v3690, %v3915
        %v3977 = vadd.f32 %v3691, %v3918
        %v3978 = vadd.f32 %v3692, %v3921
        %v3979 = vadd.f32 %v3693, %v3924
        %v3980 = vadd.f32 %v3694, %v3927
        %v3981 = vadd.f32 %v3695, %v3930
        %v3982 = vadd.f32 %v3696, %v3933
        %v3983 = vadd.f32 %v3697, %v3936
        %v3984 = vadd.f32 %v3698, %v3939
        %v3985 = vadd.f32 %v3699, %v3942
        %v3986 = vadd.f32 %v3700, %v3945
        %v3987 = vadd.f32 %v3701, %v3948
        %v3988 = vadd.f32 %v3702, %v3951
        %v3989 = vadd.f32 %v3703, %v3954
        %v3990 = vadd.f32 %v3704, %v3957
        %v3999 = vrot.slane %v3706, 1
        %v4000 = vrot.slane %v3707, 1
        %v4001 = vsel %vm468, %v3999, %v4000
        %v4002 = vrot.slane %v3708, 1
        %v4003 = vsel %vm468, %v4000, %v4002
        %v4004 = vrot.slane %v3709, 1
        %v4005 = vsel %vm468, %v4002, %v4004
        %v4006 = vrot.slane %v3710, 1
        %v4007 = vsel %vm468, %v4004, %v4006
        %v4008 = vrot.slane %v3711, 1
        %v4009 = vrot.slane %v3712, 1
        %v4010 = vsel %vm468, %v4008, %v4009
        %v4011 = vrot.slane %v3713, 1
        %v4012 = vsel %vm468, %v4009, %v4011
        %v4013 = vrot.slane %v3714, 1
        %v4014 = vsel %vm468, %v4011, %v4013
        %v4015 = vrot.slane %v3715, 1
        %v4016 = vsel %vm468, %v4013, %v4015
        %v4017 = vrot.slane %v3716, 1
        %v4018 = vrot.slane %v3717, 1
        %v4019 = vsel %vm468, %v4017, %v4018
        %v4020 = vrot.slane %v3718, 1
        %v4021 = vsel %vm468, %v4018, %v4020
        %v4022 = vrot.slane %v3719, 1
        %v4023 = vsel %vm468, %v4020, %v4022
        %v4024 = vrot.slane %v3720, 1
        %v4025 = vsel %vm468, %v4022, %v4024
        %v4026 = vrot.slane %v3721, 1
        %v4027 = vrot.slane %v3722, 1
        %v4028 = vsel %vm468, %v4026, %v4027
        %v4029 = vrot.slane %v3723, 1
        %v4030 = vsel %vm468, %v4027, %v4029
        %v4031 = vrot.slane %v3724, 1
        %v4032 = vsel %vm468, %v4029, %v4031
        %v4033 = vrot.slane %v3725, 1
        %v4034 = vsel %vm468, %v4031, %v4033
        %v4035 = vrot.slane %v3726, 1
        %v4036 = vrot.slane %v3727, 1
        %v4037 = vsel %vm468, %v4035, %v4036
        %v4038 = vrot.slane %v3728, 1
        %v4039 = vsel %vm468, %v4036, %v4038
        %v4040 = vrot.slane %v3729, 1
        %v4041 = vsel %vm468, %v4038, %v4040
        %v4042 = vrot.slane %v3730, 1
        %v4043 = vsel %vm468, %v4040, %v4042
        %v4044 = vrot.slane %v3731, 1
        %v4045 = vrot.slane %v3732, 1
        %v4046 = vsel %vm468, %v4044, %v4045
        %v4047 = vrot.slane %v3733, 1
        %v4048 = vsel %vm468, %v4045, %v4047
        %v4049 = vrot.slane %v3734, 1
        %v4050 = vsel %vm468, %v4047, %v4049
        %v4051 = vrot.slane %v3735, 1
        %v4052 = vsel %vm468, %v4049, %v4051
        %v4053 = vrot.slane %v3736, 1
        %v4054 = vrot.slane %v3737, 1
        %v4055 = vsel %vm468, %v4053, %v4054
        %v4056 = vrot.slane %v3738, 1
        %v4057 = vsel %vm468, %v4054, %v4056
        %v4058 = vrot.slane %v3739, 1
        %v4059 = vsel %vm468, %v4056, %v4058
        %v4060 = vrot.slane %v3740, 1
        %v4061 = vsel %vm468, %v4058, %v4060
        %v4062 = vrot.slane %v3741, 1
        %v4063 = vrot.slane %v3742, 1
        %v4064 = vsel %vm468, %v4062, %v4063
        %v4065 = vrot.slane %v3743, 1
        %v4066 = vsel %vm468, %v4063, %v4065
        %v4067 = vrot.slane %v3744, 1
        %v4068 = vsel %vm468, %v4065, %v4067
        %v4069 = vrot.slane %v3745, 1
        %v4070 = vsel %vm468, %v4067, %v4069
        %v4071 = vld [vmem:[%s1409] sm:$0x7]
        %v4072 = vsel %vm214, %v4001, 0
        %v4074 = vsel %vm214, %v4003, 0
        %v4076 = vsel %vm214, %v4005, 0
        %v4078 = vsel %vm214, %v4007, 0
        %v4080 = vsel %vm214, %v4010, 0
        %v4082 = vsel %vm214, %v4012, 0
        %v4084 = vsel %vm214, %v4014, 0
        %v4086 = vsel %vm214, %v4016, 0
        %v4088 = vsel %vm214, %v4019, 0
        %v4090 = vsel %vm214, %v4021, 0
        %v4092 = vsel %vm214, %v4023, 0
        %v4094 = vsel %vm214, %v4025, 0
        %v4096 = vsel %vm214, %v4028, 0
        %v4098 = vsel %vm214, %v4030, 0
        %v4100 = vsel %vm214, %v4032, 0
        %v4102 = vsel %vm214, %v4034, 0
        %v4104 = vsel %vm214, %v4037, 0
        %v4106 = vsel %vm214, %v4039, 0
        %v4108 = vsel %vm214, %v4041, 0
        %v4110 = vsel %vm214, %v4043, 0
        %v4112 = vsel %vm214, %v4046, 0
        %v4114 = vsel %vm214, %v4048, 0
        %v4116 = vsel %vm214, %v4050, 0
        %v4118 = vsel %vm214, %v4052, 0
        %v4120 = vsel %vm214, %v4055, 0
        %v4122 = vsel %vm214, %v4057, 0
        %v4124 = vsel %vm214, %v4059, 0
        %v4126 = vsel %vm214, %v4061, 0
        %v4128 = vsel %vm214, %v4064, 0
        %v4130 = vsel %vm214, %v4066, 0
        %v4132 = vsel %vm214, %v4068, 0
        %v4134 = vsel %vm214, %v4070, 0
        %v4137 = vsel %vm311, %v4071, 0
        %4139 = vmatpush.msra.mxu0 0.0
        %4140 = vmatpush.msra.mxu0 0.0
        %4141 = vmatpush.msra.mxu0 0.0
        %4142 = vmatpush.msra.mxu0 0.0
        %4143 = vmatpush.msra.mxu0 0.0
        %4144 = vmatpush.msra.mxu0 0.0
        %4145 = vmatpush.msra.mxu0 0.0
        %4146 = vmatpush.msra.mxu0 0.0
        %4147 = vmatpush.msra.mxu0 0.0
        %4148 = vmatpush.msra.mxu0 0.0
        %4149 = vmatpush.msra.mxu0 0.0
        %4150 = vmatpush.msra.mxu0 0.0
        %4151 = vmatpush.msra.mxu0 0.0
        %4152 = vmatpush.msra.mxu0 0.0
        %4153 = vmatpush.msra.mxu0 0.0
        %4154 = vmatpush.msra.mxu0 %v4137
        %4155 = vmatmul.f32.gmra.mxu0 %v4072
        %v4156 = vpop.f32.mrf.mxu0
        %v4157 = vadd.f32 0.0, %v4156
        %4158 = vmatmul.f32.gmra.mxu0 %v4074
        %v4159 = vpop.f32.mrf.mxu0
        %v4160 = vadd.f32 0.0, %v4159
        %4161 = vmatmul.f32.gmra.mxu0 %v4076
        %v4162 = vpop.f32.mrf.mxu0
        %v4163 = vadd.f32 0.0, %v4162
        %4164 = vmatmul.f32.gmra.mxu0 %v4078
        %v4165 = vpop.f32.mrf.mxu0
        %v4166 = vadd.f32 0.0, %v4165
        %4167 = vmatmul.f32.gmra.mxu0 %v4080
        %v4168 = vpop.f32.mrf.mxu0
        %v4169 = vadd.f32 0.0, %v4168
        %4170 = vmatmul.f32.gmra.mxu0 %v4082
        %v4171 = vpop.f32.mrf.mxu0
        %v4172 = vadd.f32 0.0, %v4171
        %4173 = vmatmul.f32.gmra.mxu0 %v4084
        %v4174 = vpop.f32.mrf.mxu0
        %v4175 = vadd.f32 0.0, %v4174
        %4176 = vmatmul.f32.gmra.mxu0 %v4086
        %v4177 = vpop.f32.mrf.mxu0
        %v4178 = vadd.f32 0.0, %v4177
        %4179 = vmatmul.f32.gmra.mxu0 %v4088
        %v4180 = vpop.f32.mrf.mxu0
        %v4181 = vadd.f32 0.0, %v4180
        %4182 = vmatmul.f32.gmra.mxu0 %v4090
        %v4183 = vpop.f32.mrf.mxu0
        %v4184 = vadd.f32 0.0, %v4183
        %4185 = vmatmul.f32.gmra.mxu0 %v4092
        %v4186 = vpop.f32.mrf.mxu0
        %v4187 = vadd.f32 0.0, %v4186
        %4188 = vmatmul.f32.gmra.mxu0 %v4094
        %v4189 = vpop.f32.mrf.mxu0
        %v4190 = vadd.f32 0.0, %v4189
        %4191 = vmatmul.f32.gmra.mxu0 %v4096
        %v4192 = vpop.f32.mrf.mxu0
        %v4193 = vadd.f32 0.0, %v4192
        %4194 = vmatmul.f32.gmra.mxu0 %v4098
        %v4195 = vpop.f32.mrf.mxu0
        %v4196 = vadd.f32 0.0, %v4195
        %4197 = vmatmul.f32.gmra.mxu0 %v4100
        %v4198 = vpop.f32.mrf.mxu0
        %v4199 = vadd.f32 0.0, %v4198
        %4200 = vmatmul.f32.gmra.mxu0 %v4102
        %v4201 = vpop.f32.mrf.mxu0
        %v4202 = vadd.f32 0.0, %v4201
        %4203 = vmatmul.f32.gmra.mxu0 %v4104
        %v4204 = vpop.f32.mrf.mxu0
        %v4205 = vadd.f32 0.0, %v4204
        %4206 = vmatmul.f32.gmra.mxu0 %v4106
        %v4207 = vpop.f32.mrf.mxu0
        %v4208 = vadd.f32 0.0, %v4207
        %4209 = vmatmul.f32.gmra.mxu0 %v4108
        %v4210 = vpop.f32.mrf.mxu0
        %v4211 = vadd.f32 0.0, %v4210
        %4212 = vmatmul.f32.gmra.mxu0 %v4110
        %v4213 = vpop.f32.mrf.mxu0
        %v4214 = vadd.f32 0.0, %v4213
        %4215 = vmatmul.f32.gmra.mxu0 %v4112
        %v4216 = vpop.f32.mrf.mxu0
        %v4217 = vadd.f32 0.0, %v4216
        %4218 = vmatmul.f32.gmra.mxu0 %v4114
        %v4219 = vpop.f32.mrf.mxu0
        %v4220 = vadd.f32 0.0, %v4219
        %4221 = vmatmul.f32.gmra.mxu0 %v4116
        %v4222 = vpop.f32.mrf.mxu0
        %v4223 = vadd.f32 0.0, %v4222
        %4224 = vmatmul.f32.gmra.mxu0 %v4118
        %v4225 = vpop.f32.mrf.mxu0
        %v4226 = vadd.f32 0.0, %v4225
        %4227 = vmatmul.f32.gmra.mxu0 %v4120
        %v4228 = vpop.f32.mrf.mxu0
        %v4229 = vadd.f32 0.0, %v4228
        %4230 = vmatmul.f32.gmra.mxu0 %v4122
        %v4231 = vpop.f32.mrf.mxu0
        %v4232 = vadd.f32 0.0, %v4231
        %4233 = vmatmul.f32.gmra.mxu0 %v4124
        %v4234 = vpop.f32.mrf.mxu0
        %v4235 = vadd.f32 0.0, %v4234
        %4236 = vmatmul.f32.gmra.mxu0 %v4126
        %v4237 = vpop.f32.mrf.mxu0
        %v4238 = vadd.f32 0.0, %v4237
        %4239 = vmatmul.f32.gmra.mxu0 %v4128
        %v4240 = vpop.f32.mrf.mxu0
        %v4241 = vadd.f32 0.0, %v4240
        %4242 = vmatmul.f32.gmra.mxu0 %v4130
        %v4243 = vpop.f32.mrf.mxu0
        %v4244 = vadd.f32 0.0, %v4243
        %4245 = vmatmul.f32.gmra.mxu0 %v4132
        %v4246 = vpop.f32.mrf.mxu0
        %v4247 = vadd.f32 0.0, %v4246
        %4248 = vmatmul.f32.gmra.mxu0 %v4134
        %v4249 = vpop.f32.mrf.mxu0
        %v4250 = vadd.f32 0.0, %v4249
        %4251 = vdwg.mxu0
        %v4252 = vadd.f32 %v3959, %v4157
        %v4253 = vadd.f32 %v3960, %v4160
        %v4254 = vadd.f32 %v3961, %v4163
        %v4255 = vadd.f32 %v3962, %v4166
        %v4256 = vadd.f32 %v3963, %v4169
        %v4257 = vadd.f32 %v3964, %v4172
        %v4258 = vadd.f32 %v3965, %v4175
        %v4259 = vadd.f32 %v3966, %v4178
        %v4260 = vadd.f32 %v3967, %v4181
        %v4261 = vadd.f32 %v3968, %v4184
        %v4262 = vadd.f32 %v3969, %v4187
        %v4263 = vadd.f32 %v3970, %v4190
        %v4264 = vadd.f32 %v3971, %v4193
        %v4265 = vadd.f32 %v3972, %v4196
        %v4266 = vadd.f32 %v3973, %v4199
        %v4267 = vadd.f32 %v3974, %v4202
        %v4268 = vadd.f32 %v3975, %v4205
        %v4269 = vadd.f32 %v3976, %v4208
        %v4270 = vadd.f32 %v3977, %v4211
        %v4271 = vadd.f32 %v3978, %v4214
        %v4272 = vadd.f32 %v3979, %v4217
        %v4273 = vadd.f32 %v3980, %v4220
        %v4274 = vadd.f32 %v3981, %v4223
        %v4275 = vadd.f32 %v3982, %v4226
        %v4276 = vadd.f32 %v3983, %v4229
        %v4277 = vadd.f32 %v3984, %v4232
        %v4278 = vadd.f32 %v3985, %v4235
        %v4279 = vadd.f32 %v3986, %v4238
        %v4280 = vadd.f32 %v3987, %v4241
        %v4281 = vadd.f32 %v3988, %v4244
        %v4282 = vadd.f32 %v3989, %v4247
        %v4283 = vadd.f32 %v3990, %v4250
        %v4284 = vrot.slane %v3706, 2
        %v4285 = vrot.slane %v3707, 2
        %v4286 = vsel %vm755, %v4284, %v4285
        %v4287 = vrot.slane %v3708, 2
        %v4288 = vsel %vm755, %v4285, %v4287
        %v4289 = vrot.slane %v3709, 2
        %v4290 = vsel %vm755, %v4287, %v4289
        %v4291 = vrot.slane %v3710, 2
        %v4292 = vsel %vm755, %v4289, %v4291
        %v4293 = vrot.slane %v3711, 2
        %v4294 = vrot.slane %v3712, 2
        %v4295 = vsel %vm755, %v4293, %v4294
        %v4296 = vrot.slane %v3713, 2
        %v4297 = vsel %vm755, %v4294, %v4296
        %v4298 = vrot.slane %v3714, 2
        %v4299 = vsel %vm755, %v4296, %v4298
        %v4300 = vrot.slane %v3715, 2
        %v4301 = vsel %vm755, %v4298, %v4300
        %v4302 = vrot.slane %v3716, 2
        %v4303 = vrot.slane %v3717, 2
        %v4304 = vsel %vm755, %v4302, %v4303
        %v4305 = vrot.slane %v3718, 2
        %v4306 = vsel %vm755, %v4303, %v4305
        %v4307 = vrot.slane %v3719, 2
        %v4308 = vsel %vm755, %v4305, %v4307
        %v4309 = vrot.slane %v3720, 2
        %v4310 = vsel %vm755, %v4307, %v4309
        %v4311 = vrot.slane %v3721, 2
        %v4312 = vrot.slane %v3722, 2
        %v4313 = vsel %vm755, %v4311, %v4312
        %v4314 = vrot.slane %v3723, 2
        %v4315 = vsel %vm755, %v4312, %v4314
        %v4316 = vrot.slane %v3724, 2
        %v4317 = vsel %vm755, %v4314, %v4316
        %v4318 = vrot.slane %v3725, 2
        %v4319 = vsel %vm755, %v4316, %v4318
        %v4320 = vrot.slane %v3726, 2
        %v4321 = vrot.slane %v3727, 2
        %v4322 = vsel %vm755, %v4320, %v4321
        %v4323 = vrot.slane %v3728, 2
        %v4324 = vsel %vm755, %v4321, %v4323
        %v4325 = vrot.slane %v3729, 2
        %v4326 = vsel %vm755, %v4323, %v4325
        %v4327 = vrot.slane %v3730, 2
        %v4328 = vsel %vm755, %v4325, %v4327
        %v4329 = vrot.slane %v3731, 2
        %v4330 = vrot.slane %v3732, 2
        %v4331 = vsel %vm755, %v4329, %v4330
        %v4332 = vrot.slane %v3733, 2
        %v4333 = vsel %vm755, %v4330, %v4332
        %v4334 = vrot.slane %v3734, 2
        %v4335 = vsel %vm755, %v4332, %v4334
        %v4336 = vrot.slane %v3735, 2
        %v4337 = vsel %vm755, %v4334, %v4336
        %v4338 = vrot.slane %v3736, 2
        %v4339 = vrot.slane %v3737, 2
        %v4340 = vsel %vm755, %v4338, %v4339
        %v4341 = vrot.slane %v3738, 2
        %v4342 = vsel %vm755, %v4339, %v4341
        %v4343 = vrot.slane %v3739, 2
        %v4344 = vsel %vm755, %v4341, %v4343
        %v4345 = vrot.slane %v3740, 2
        %v4346 = vsel %vm755, %v4343, %v4345
        %v4347 = vrot.slane %v3741, 2
        %v4348 = vrot.slane %v3742, 2
        %v4349 = vsel %vm755, %v4347, %v4348
        %v4350 = vrot.slane %v3743, 2
        %v4351 = vsel %vm755, %v4348, %v4350
        %v4352 = vrot.slane %v3744, 2
        %v4353 = vsel %vm755, %v4350, %v4352
        %v4354 = vrot.slane %v3745, 2
        %v4355 = vsel %vm755, %v4352, %v4354
        %v4356 = vld [vmem:[%s1695] sm:$0x7]
        %v4357 = vsel %vm214, %v4286, 0
        %v4359 = vsel %vm214, %v4288, 0
        %v4361 = vsel %vm214, %v4290, 0
        %v4363 = vsel %vm214, %v4292, 0
        %v4365 = vsel %vm214, %v4295, 0
        %v4367 = vsel %vm214, %v4297, 0
        %v4369 = vsel %vm214, %v4299, 0
        %v4371 = vsel %vm214, %v4301, 0
        %v4373 = vsel %vm214, %v4304, 0
        %v4375 = vsel %vm214, %v4306, 0
        %v4377 = vsel %vm214, %v4308, 0
        %v4379 = vsel %vm214, %v4310, 0
        %v4381 = vsel %vm214, %v4313, 0
        %v4383 = vsel %vm214, %v4315, 0
        %v4385 = vsel %vm214, %v4317, 0
        %v4387 = vsel %vm214, %v4319, 0
        %v4389 = vsel %vm214, %v4322, 0
        %v4391 = vsel %vm214, %v4324, 0
        %v4393 = vsel %vm214, %v4326, 0
        %v4395 = vsel %vm214, %v4328, 0
        %v4397 = vsel %vm214, %v4331, 0
        %v4399 = vsel %vm214, %v4333, 0
        %v4401 = vsel %vm214, %v4335, 0
        %v4403 = vsel %vm214, %v4337, 0
        %v4405 = vsel %vm214, %v4340, 0
        %v4407 = vsel %vm214, %v4342, 0
        %v4409 = vsel %vm214, %v4344, 0
        %v4411 = vsel %vm214, %v4346, 0
        %v4413 = vsel %vm214, %v4349, 0
        %v4415 = vsel %vm214, %v4351, 0
        %v4417 = vsel %vm214, %v4353, 0
        %v4419 = vsel %vm214, %v4355, 0
        %v4422 = vsel %vm311, %v4356, 0
        %4424 = vmatpush.msra.mxu0 0.0
        %4425 = vmatpush.msra.mxu0 0.0
        %4426 = vmatpush.msra.mxu0 0.0
        %4427 = vmatpush.msra.mxu0 0.0
        %4428 = vmatpush.msra.mxu0 0.0
        %4429 = vmatpush.msra.mxu0 0.0
        %4430 = vmatpush.msra.mxu0 0.0
        %4431 = vmatpush.msra.mxu0 0.0
        %4432 = vmatpush.msra.mxu0 0.0
        %4433 = vmatpush.msra.mxu0 0.0
        %4434 = vmatpush.msra.mxu0 0.0
        %4435 = vmatpush.msra.mxu0 0.0
        %4436 = vmatpush.msra.mxu0 0.0
        %4437 = vmatpush.msra.mxu0 0.0
        %4438 = vmatpush.msra.mxu0 0.0
        %4439 = vmatpush.msra.mxu0 %v4422
        %4440 = vmatmul.f32.gmra.mxu0 %v4357
        %v4441 = vpop.f32.mrf.mxu0
        %v4442 = vadd.f32 0.0, %v4441
        %4443 = vmatmul.f32.gmra.mxu0 %v4359
        %v4444 = vpop.f32.mrf.mxu0
        %v4445 = vadd.f32 0.0, %v4444
        %4446 = vmatmul.f32.gmra.mxu0 %v4361
        %v4447 = vpop.f32.mrf.mxu0
        %v4448 = vadd.f32 0.0, %v4447
        %4449 = vmatmul.f32.gmra.mxu0 %v4363
        %v4450 = vpop.f32.mrf.mxu0
        %v4451 = vadd.f32 0.0, %v4450
        %4452 = vmatmul.f32.gmra.mxu0 %v4365
        %v4453 = vpop.f32.mrf.mxu0
        %v4454 = vadd.f32 0.0, %v4453
        %4455 = vmatmul.f32.gmra.mxu0 %v4367
        %v4456 = vpop.f32.mrf.mxu0
        %v4457 = vadd.f32 0.0, %v4456
        %4458 = vmatmul.f32.gmra.mxu0 %v4369
        %v4459 = vpop.f32.mrf.mxu0
        %v4460 = vadd.f32 0.0, %v4459
        %4461 = vmatmul.f32.gmra.mxu0 %v4371
        %v4462 = vpop.f32.mrf.mxu0
        %v4463 = vadd.f32 0.0, %v4462
        %4464 = vmatmul.f32.gmra.mxu0 %v4373
        %v4465 = vpop.f32.mrf.mxu0
        %v4466 = vadd.f32 0.0, %v4465
        %4467 = vmatmul.f32.gmra.mxu0 %v4375
        %v4468 = vpop.f32.mrf.mxu0
        %v4469 = vadd.f32 0.0, %v4468
        %4470 = vmatmul.f32.gmra.mxu0 %v4377
        %v4471 = vpop.f32.mrf.mxu0
        %v4472 = vadd.f32 0.0, %v4471
        %4473 = vmatmul.f32.gmra.mxu0 %v4379
        %v4474 = vpop.f32.mrf.mxu0
        %v4475 = vadd.f32 0.0, %v4474
        %4476 = vmatmul.f32.gmra.mxu0 %v4381
        %v4477 = vpop.f32.mrf.mxu0
        %v4478 = vadd.f32 0.0, %v4477
        %4479 = vmatmul.f32.gmra.mxu0 %v4383
        %v4480 = vpop.f32.mrf.mxu0
        %v4481 = vadd.f32 0.0, %v4480
        %4482 = vmatmul.f32.gmra.mxu0 %v4385
        %v4483 = vpop.f32.mrf.mxu0
        %v4484 = vadd.f32 0.0, %v4483
        %4485 = vmatmul.f32.gmra.mxu0 %v4387
        %v4486 = vpop.f32.mrf.mxu0
        %v4487 = vadd.f32 0.0, %v4486
        %4488 = vmatmul.f32.gmra.mxu0 %v4389
        %v4489 = vpop.f32.mrf.mxu0
        %v4490 = vadd.f32 0.0, %v4489
        %4491 = vmatmul.f32.gmra.mxu0 %v4391
        %v4492 = vpop.f32.mrf.mxu0
        %v4493 = vadd.f32 0.0, %v4492
        %4494 = vmatmul.f32.gmra.mxu0 %v4393
        %v4495 = vpop.f32.mrf.mxu0
        %v4496 = vadd.f32 0.0, %v4495
        %4497 = vmatmul.f32.gmra.mxu0 %v4395
        %v4498 = vpop.f32.mrf.mxu0
        %v4499 = vadd.f32 0.0, %v4498
        %4500 = vmatmul.f32.gmra.mxu0 %v4397
        %v4501 = vpop.f32.mrf.mxu0
        %v4502 = vadd.f32 0.0, %v4501
        %4503 = vmatmul.f32.gmra.mxu0 %v4399
        %v4504 = vpop.f32.mrf.mxu0
        %v4505 = vadd.f32 0.0, %v4504
        %4506 = vmatmul.f32.gmra.mxu0 %v4401
        %v4507 = vpop.f32.mrf.mxu0
        %v4508 = vadd.f32 0.0, %v4507
        %4509 = vmatmul.f32.gmra.mxu0 %v4403
        %v4510 = vpop.f32.mrf.mxu0
        %v4511 = vadd.f32 0.0, %v4510
        %4512 = vmatmul.f32.gmra.mxu0 %v4405
        %v4513 = vpop.f32.mrf.mxu0
        %v4514 = vadd.f32 0.0, %v4513
        %4515 = vmatmul.f32.gmra.mxu0 %v4407
        %v4516 = vpop.f32.mrf.mxu0
        %v4517 = vadd.f32 0.0, %v4516
        %4518 = vmatmul.f32.gmra.mxu0 %v4409
        %v4519 = vpop.f32.mrf.mxu0
        %v4520 = vadd.f32 0.0, %v4519
        %4521 = vmatmul.f32.gmra.mxu0 %v4411
        %v4522 = vpop.f32.mrf.mxu0
        %v4523 = vadd.f32 0.0, %v4522
        %4524 = vmatmul.f32.gmra.mxu0 %v4413
        %v4525 = vpop.f32.mrf.mxu0
        %v4526 = vadd.f32 0.0, %v4525
        %4527 = vmatmul.f32.gmra.mxu0 %v4415
        %v4528 = vpop.f32.mrf.mxu0
        %v4529 = vadd.f32 0.0, %v4528
        %4530 = vmatmul.f32.gmra.mxu0 %v4417
        %v4531 = vpop.f32.mrf.mxu0
        %v4532 = vadd.f32 0.0, %v4531
        %4533 = vmatmul.f32.gmra.mxu0 %v4419
        %v4534 = vpop.f32.mrf.mxu0
        %v4535 = vadd.f32 0.0, %v4534
        %4536 = vdwg.mxu0
        %v4537 = vadd.f32 %v4252, %v4442
        %v4538 = vadd.f32 %v4253, %v4445
        %v4539 = vadd.f32 %v4254, %v4448
        %v4540 = vadd.f32 %v4255, %v4451
        %v4541 = vadd.f32 %v4256, %v4454
        %v4542 = vadd.f32 %v4257, %v4457
        %v4543 = vadd.f32 %v4258, %v4460
        %v4544 = vadd.f32 %v4259, %v4463
        %v4545 = vadd.f32 %v4260, %v4466
        %v4546 = vadd.f32 %v4261, %v4469
        %v4547 = vadd.f32 %v4262, %v4472
        %v4548 = vadd.f32 %v4263, %v4475
        %v4549 = vadd.f32 %v4264, %v4478
        %v4550 = vadd.f32 %v4265, %v4481
        %v4551 = vadd.f32 %v4266, %v4484
        %v4552 = vadd.f32 %v4267, %v4487
        %v4553 = vadd.f32 %v4268, %v4490
        %v4554 = vadd.f32 %v4269, %v4493
        %v4555 = vadd.f32 %v4270, %v4496
        %v4556 = vadd.f32 %v4271, %v4499
        %v4557 = vadd.f32 %v4272, %v4502
        %v4558 = vadd.f32 %v4273, %v4505
        %v4559 = vadd.f32 %v4274, %v4508
        %v4560 = vadd.f32 %v4275, %v4511
        %v4561 = vadd.f32 %v4276, %v4514
        %v4562 = vadd.f32 %v4277, %v4517
        %v4563 = vadd.f32 %v4278, %v4520
        %v4564 = vadd.f32 %v4279, %v4523
        %v4565 = vadd.f32 %v4280, %v4526
        %v4566 = vadd.f32 %v4281, %v4529
        %v4567 = vadd.f32 %v4282, %v4532
        %v4568 = vadd.f32 %v4283, %v4535
        %s4569 = scalar_lea.vmem %s168, 400
        %v4570 = vld [vmem:[%s4569] sm:$0xff]
        %v4571 = vld [vmem:[%s4569 + $0x8] sm:$0xff]
        %v4572 = vld [vmem:[%s4569 + $0x10] sm:$0xff]
        %v4573 = vld [vmem:[%s4569 + $0x18] sm:$0xff]
        %v4574 = vld [vmem:[%s4569 + $0x20] sm:$0x3]
        %v4575 = vld [vmem:[%s4569 + $0x28] sm:$0xff]
        %v4576 = vld [vmem:[%s4569 + $0x30] sm:$0xff]
        %v4577 = vld [vmem:[%s4569 + $0x38] sm:$0xff]
        %v4578 = vld [vmem:[%s4569 + $0x40] sm:$0xff]
        %v4579 = vld [vmem:[%s4569 + $0x48] sm:$0x3]
        %v4580 = vld [vmem:[%s4569 + $0x50] sm:$0xff]
        %v4581 = vld [vmem:[%s4569 + $0x58] sm:$0xff]
        %v4582 = vld [vmem:[%s4569 + $0x60] sm:$0xff]
        %v4583 = vld [vmem:[%s4569 + $0x68] sm:$0xff]
        %v4584 = vld [vmem:[%s4569 + $0x70] sm:$0x3]
        %v4585 = vld [vmem:[%s4569 + $0x78] sm:$0xff]
        %v4586 = vld [vmem:[%s4569 + $0x80] sm:$0xff]
        %v4587 = vld [vmem:[%s4569 + $0x88] sm:$0xff]
        %v4588 = vld [vmem:[%s4569 + $0x90] sm:$0xff]
        %v4589 = vld [vmem:[%s4569 + $0x98] sm:$0x3]
        %v4590 = vld [vmem:[%s4569 + $0xa0] sm:$0xff]
        %v4591 = vld [vmem:[%s4569 + $0xa8] sm:$0xff]
        %v4592 = vld [vmem:[%s4569 + $0xb0] sm:$0xff]
        %v4593 = vld [vmem:[%s4569 + $0xb8] sm:$0xff]
        %v4594 = vld [vmem:[%s4569 + $0xc0] sm:$0x3]
        %v4595 = vld [vmem:[%s4569 + $0xc8] sm:$0xff]
        %v4596 = vld [vmem:[%s4569 + $0xd0] sm:$0xff]
        %v4597 = vld [vmem:[%s4569 + $0xd8] sm:$0xff]
        %v4598 = vld [vmem:[%s4569 + $0xe0] sm:$0xff]
        %v4599 = vld [vmem:[%s4569 + $0xe8] sm:$0x3]
        %v4600 = vld [vmem:[%s4569 + $0xf0] sm:$0xff]
        %v4601 = vld [vmem:[%s4569 + $0xf8] sm:$0xff]
        %v4602 = vld [vmem:[%s4569 + $0x100] sm:$0xff]
        %v4603 = vld [vmem:[%s4569 + $0x108] sm:$0xff]
        %v4604 = vld [vmem:[%s4569 + $0x110] sm:$0x3]
        %v4605 = vld [vmem:[%s4569 + $0x118] sm:$0xff]
        %v4606 = vld [vmem:[%s4569 + $0x120] sm:$0xff]
        %v4607 = vld [vmem:[%s4569 + $0x128] sm:$0xff]
        %v4608 = vld [vmem:[%s4569 + $0x130] sm:$0xff]
        %v4609 = vld [vmem:[%s4569 + $0x138] sm:$0x3]
        %v4610 = vld [vmem:[%s1950] sm:$0x7]
        %v4612 = vsel %vm214, %v4570, 0
        %v4615 = vsel %vm214, %v4571, 0
        %v4618 = vsel %vm214, %v4572, 0
        %v4621 = vsel %vm214, %v4573, 0
        %v4624 = vsel %vm214, %v4575, 0
        %v4627 = vsel %vm214, %v4576, 0
        %v4630 = vsel %vm214, %v4577, 0
        %v4633 = vsel %vm214, %v4578, 0
        %v4636 = vsel %vm214, %v4580, 0
        %v4639 = vsel %vm214, %v4581, 0
        %v4642 = vsel %vm214, %v4582, 0
        %v4645 = vsel %vm214, %v4583, 0
        %v4648 = vsel %vm214, %v4585, 0
        %v4651 = vsel %vm214, %v4586, 0
        %v4654 = vsel %vm214, %v4587, 0
        %v4657 = vsel %vm214, %v4588, 0
        %v4660 = vsel %vm214, %v4590, 0
        %v4663 = vsel %vm214, %v4591, 0
        %v4666 = vsel %vm214, %v4592, 0
        %v4669 = vsel %vm214, %v4593, 0
        %v4672 = vsel %vm214, %v4595, 0
        %v4675 = vsel %vm214, %v4596, 0
        %v4678 = vsel %vm214, %v4597, 0
        %v4681 = vsel %vm214, %v4598, 0
        %v4684 = vsel %vm214, %v4600, 0
        %v4687 = vsel %vm214, %v4601, 0
        %v4690 = vsel %vm214, %v4602, 0
        %v4693 = vsel %vm214, %v4603, 0
        %v4696 = vsel %vm214, %v4605, 0
        %v4699 = vsel %vm214, %v4606, 0
        %v4702 = vsel %vm214, %v4607, 0
        %v4705 = vsel %vm214, %v4608, 0
        %v4708 = vsel %vm311, %v4610, 0
        %4710 = vmatpush.msra.mxu0 0.0
        %4711 = vmatpush.msra.mxu0 0.0
        %4712 = vmatpush.msra.mxu0 0.0
        %4713 = vmatpush.msra.mxu0 0.0
        %4714 = vmatpush.msra.mxu0 0.0
        %4715 = vmatpush.msra.mxu0 0.0
        %4716 = vmatpush.msra.mxu0 0.0
        %4717 = vmatpush.msra.mxu0 0.0
        %4718 = vmatpush.msra.mxu0 0.0
        %4719 = vmatpush.msra.mxu0 0.0
        %4720 = vmatpush.msra.mxu0 0.0
        %4721 = vmatpush.msra.mxu0 0.0
        %4722 = vmatpush.msra.mxu0 0.0
        %4723 = vmatpush.msra.mxu0 0.0
        %4724 = vmatpush.msra.mxu0 0.0
        %4725 = vmatpush.msra.mxu0 %v4708
        %4726 = vmatmul.f32.gmra.mxu0 %v4612
        %v4727 = vpop.f32.mrf.mxu0
        %v4728 = vadd.f32 0.0, %v4727
        %4729 = vmatmul.f32.gmra.mxu0 %v4615
        %v4730 = vpop.f32.mrf.mxu0
        %v4731 = vadd.f32 0.0, %v4730
        %4732 = vmatmul.f32.gmra.mxu0 %v4618
        %v4733 = vpop.f32.mrf.mxu0
        %v4734 = vadd.f32 0.0, %v4733
        %4735 = vmatmul.f32.gmra.mxu0 %v4621
        %v4736 = vpop.f32.mrf.mxu0
        %v4737 = vadd.f32 0.0, %v4736
        %4738 = vmatmul.f32.gmra.mxu0 %v4624
        %v4739 = vpop.f32.mrf.mxu0
        %v4740 = vadd.f32 0.0, %v4739
        %4741 = vmatmul.f32.gmra.mxu0 %v4627
        %v4742 = vpop.f32.mrf.mxu0
        %v4743 = vadd.f32 0.0, %v4742
        %4744 = vmatmul.f32.gmra.mxu0 %v4630
        %v4745 = vpop.f32.mrf.mxu0
        %v4746 = vadd.f32 0.0, %v4745
        %4747 = vmatmul.f32.gmra.mxu0 %v4633
        %v4748 = vpop.f32.mrf.mxu0
        %v4749 = vadd.f32 0.0, %v4748
        %4750 = vmatmul.f32.gmra.mxu0 %v4636
        %v4751 = vpop.f32.mrf.mxu0
        %v4752 = vadd.f32 0.0, %v4751
        %4753 = vmatmul.f32.gmra.mxu0 %v4639
        %v4754 = vpop.f32.mrf.mxu0
        %v4755 = vadd.f32 0.0, %v4754
        %4756 = vmatmul.f32.gmra.mxu0 %v4642
        %v4757 = vpop.f32.mrf.mxu0
        %v4758 = vadd.f32 0.0, %v4757
        %4759 = vmatmul.f32.gmra.mxu0 %v4645
        %v4760 = vpop.f32.mrf.mxu0
        %v4761 = vadd.f32 0.0, %v4760
        %4762 = vmatmul.f32.gmra.mxu0 %v4648
        %v4763 = vpop.f32.mrf.mxu0
        %v4764 = vadd.f32 0.0, %v4763
        %4765 = vmatmul.f32.gmra.mxu0 %v4651
        %v4766 = vpop.f32.mrf.mxu0
        %v4767 = vadd.f32 0.0, %v4766
        %4768 = vmatmul.f32.gmra.mxu0 %v4654
        %v4769 = vpop.f32.mrf.mxu0
        %v4770 = vadd.f32 0.0, %v4769
        %4771 = vmatmul.f32.gmra.mxu0 %v4657
        %v4772 = vpop.f32.mrf.mxu0
        %v4773 = vadd.f32 0.0, %v4772
        %4774 = vmatmul.f32.gmra.mxu0 %v4660
        %v4775 = vpop.f32.mrf.mxu0
        %v4776 = vadd.f32 0.0, %v4775
        %4777 = vmatmul.f32.gmra.mxu0 %v4663
        %v4778 = vpop.f32.mrf.mxu0
        %v4779 = vadd.f32 0.0, %v4778
        %4780 = vmatmul.f32.gmra.mxu0 %v4666
        %v4781 = vpop.f32.mrf.mxu0
        %v4782 = vadd.f32 0.0, %v4781
        %4783 = vmatmul.f32.gmra.mxu0 %v4669
        %v4784 = vpop.f32.mrf.mxu0
        %v4785 = vadd.f32 0.0, %v4784
        %4786 = vmatmul.f32.gmra.mxu0 %v4672
        %v4787 = vpop.f32.mrf.mxu0
        %v4788 = vadd.f32 0.0, %v4787
        %4789 = vmatmul.f32.gmra.mxu0 %v4675
        %v4790 = vpop.f32.mrf.mxu0
        %v4791 = vadd.f32 0.0, %v4790
        %4792 = vmatmul.f32.gmra.mxu0 %v4678
        %v4793 = vpop.f32.mrf.mxu0
        %v4794 = vadd.f32 0.0, %v4793
        %4795 = vmatmul.f32.gmra.mxu0 %v4681
        %v4796 = vpop.f32.mrf.mxu0
        %v4797 = vadd.f32 0.0, %v4796
        %4798 = vmatmul.f32.gmra.mxu0 %v4684
        %v4799 = vpop.f32.mrf.mxu0
        %v4800 = vadd.f32 0.0, %v4799
        %4801 = vmatmul.f32.gmra.mxu0 %v4687
        %v4802 = vpop.f32.mrf.mxu0
        %v4803 = vadd.f32 0.0, %v4802
        %4804 = vmatmul.f32.gmra.mxu0 %v4690
        %v4805 = vpop.f32.mrf.mxu0
        %v4806 = vadd.f32 0.0, %v4805
        %4807 = vmatmul.f32.gmra.mxu0 %v4693
        %v4808 = vpop.f32.mrf.mxu0
        %v4809 = vadd.f32 0.0, %v4808
        %4810 = vmatmul.f32.gmra.mxu0 %v4696
        %v4811 = vpop.f32.mrf.mxu0
        %v4812 = vadd.f32 0.0, %v4811
        %4813 = vmatmul.f32.gmra.mxu0 %v4699
        %v4814 = vpop.f32.mrf.mxu0
        %v4815 = vadd.f32 0.0, %v4814
        %4816 = vmatmul.f32.gmra.mxu0 %v4702
        %v4817 = vpop.f32.mrf.mxu0
        %v4818 = vadd.f32 0.0, %v4817
        %4819 = vmatmul.f32.gmra.mxu0 %v4705
        %v4820 = vpop.f32.mrf.mxu0
        %v4821 = vadd.f32 0.0, %v4820
        %4822 = vdwg.mxu0
        %v4823 = vadd.f32 %v4537, %v4728
        %v4824 = vadd.f32 %v4538, %v4731
        %v4825 = vadd.f32 %v4539, %v4734
        %v4826 = vadd.f32 %v4540, %v4737
        %v4827 = vadd.f32 %v4541, %v4740
        %v4828 = vadd.f32 %v4542, %v4743
        %v4829 = vadd.f32 %v4543, %v4746
        %v4830 = vadd.f32 %v4544, %v4749
        %v4831 = vadd.f32 %v4545, %v4752
        %v4832 = vadd.f32 %v4546, %v4755
        %v4833 = vadd.f32 %v4547, %v4758
        %v4834 = vadd.f32 %v4548, %v4761
        %v4835 = vadd.f32 %v4549, %v4764
        %v4836 = vadd.f32 %v4550, %v4767
        %v4837 = vadd.f32 %v4551, %v4770
        %v4838 = vadd.f32 %v4552, %v4773
        %v4839 = vadd.f32 %v4553, %v4776
        %v4840 = vadd.f32 %v4554, %v4779
        %v4841 = vadd.f32 %v4555, %v4782
        %v4842 = vadd.f32 %v4556, %v4785
        %v4843 = vadd.f32 %v4557, %v4788
        %v4844 = vadd.f32 %v4558, %v4791
        %v4845 = vadd.f32 %v4559, %v4794
        %v4846 = vadd.f32 %v4560, %v4797
        %v4847 = vadd.f32 %v4561, %v4800
        %v4848 = vadd.f32 %v4562, %v4803
        %v4849 = vadd.f32 %v4563, %v4806
        %v4850 = vadd.f32 %v4564, %v4809
        %v4851 = vadd.f32 %v4565, %v4812
        %v4852 = vadd.f32 %v4566, %v4815
        %v4853 = vadd.f32 %v4567, %v4818
        %v4854 = vadd.f32 %v4568, %v4821
        %v4863 = vrot.slane %v4570, 1
        %v4864 = vrot.slane %v4571, 1
        %v4865 = vsel %vm468, %v4863, %v4864
        %v4866 = vrot.slane %v4572, 1
        %v4867 = vsel %vm468, %v4864, %v4866
        %v4868 = vrot.slane %v4573, 1
        %v4869 = vsel %vm468, %v4866, %v4868
        %v4870 = vrot.slane %v4574, 1
        %v4871 = vsel %vm468, %v4868, %v4870
        %v4872 = vrot.slane %v4575, 1
        %v4873 = vrot.slane %v4576, 1
        %v4874 = vsel %vm468, %v4872, %v4873
        %v4875 = vrot.slane %v4577, 1
        %v4876 = vsel %vm468, %v4873, %v4875
        %v4877 = vrot.slane %v4578, 1
        %v4878 = vsel %vm468, %v4875, %v4877
        %v4879 = vrot.slane %v4579, 1
        %v4880 = vsel %vm468, %v4877, %v4879
        %v4881 = vrot.slane %v4580, 1
        %v4882 = vrot.slane %v4581, 1
        %v4883 = vsel %vm468, %v4881, %v4882
        %v4884 = vrot.slane %v4582, 1
        %v4885 = vsel %vm468, %v4882, %v4884
        %v4886 = vrot.slane %v4583, 1
        %v4887 = vsel %vm468, %v4884, %v4886
        %v4888 = vrot.slane %v4584, 1
        %v4889 = vsel %vm468, %v4886, %v4888
        %v4890 = vrot.slane %v4585, 1
        %v4891 = vrot.slane %v4586, 1
        %v4892 = vsel %vm468, %v4890, %v4891
        %v4893 = vrot.slane %v4587, 1
        %v4894 = vsel %vm468, %v4891, %v4893
        %v4895 = vrot.slane %v4588, 1
        %v4896 = vsel %vm468, %v4893, %v4895
        %v4897 = vrot.slane %v4589, 1
        %v4898 = vsel %vm468, %v4895, %v4897
        %v4899 = vrot.slane %v4590, 1
        %v4900 = vrot.slane %v4591, 1
        %v4901 = vsel %vm468, %v4899, %v4900
        %v4902 = vrot.slane %v4592, 1
        %v4903 = vsel %vm468, %v4900, %v4902
        %v4904 = vrot.slane %v4593, 1
        %v4905 = vsel %vm468, %v4902, %v4904
        %v4906 = vrot.slane %v4594, 1
        %v4907 = vsel %vm468, %v4904, %v4906
        %v4908 = vrot.slane %v4595, 1
        %v4909 = vrot.slane %v4596, 1
        %v4910 = vsel %vm468, %v4908, %v4909
        %v4911 = vrot.slane %v4597, 1
        %v4912 = vsel %vm468, %v4909, %v4911
        %v4913 = vrot.slane %v4598, 1
        %v4914 = vsel %vm468, %v4911, %v4913
        %v4915 = vrot.slane %v4599, 1
        %v4916 = vsel %vm468, %v4913, %v4915
        %v4917 = vrot.slane %v4600, 1
        %v4918 = vrot.slane %v4601, 1
        %v4919 = vsel %vm468, %v4917, %v4918
        %v4920 = vrot.slane %v4602, 1
        %v4921 = vsel %vm468, %v4918, %v4920
        %v4922 = vrot.slane %v4603, 1
        %v4923 = vsel %vm468, %v4920, %v4922
        %v4924 = vrot.slane %v4604, 1
        %v4925 = vsel %vm468, %v4922, %v4924
        %v4926 = vrot.slane %v4605, 1
        %v4927 = vrot.slane %v4606, 1
        %v4928 = vsel %vm468, %v4926, %v4927
        %v4929 = vrot.slane %v4607, 1
        %v4930 = vsel %vm468, %v4927, %v4929
        %v4931 = vrot.slane %v4608, 1
        %v4932 = vsel %vm468, %v4929, %v4931
        %v4933 = vrot.slane %v4609, 1
        %v4934 = vsel %vm468, %v4931, %v4933
        %v4935 = vld [vmem:[%s2276] sm:$0x7]
        %v4936 = vsel %vm214, %v4865, 0
        %v4938 = vsel %vm214, %v4867, 0
        %v4940 = vsel %vm214, %v4869, 0
        %v4942 = vsel %vm214, %v4871, 0
        %v4944 = vsel %vm214, %v4874, 0
        %v4946 = vsel %vm214, %v4876, 0
        %v4948 = vsel %vm214, %v4878, 0
        %v4950 = vsel %vm214, %v4880, 0
        %v4952 = vsel %vm214, %v4883, 0
        %v4954 = vsel %vm214, %v4885, 0
        %v4956 = vsel %vm214, %v4887, 0
        %v4958 = vsel %vm214, %v4889, 0
        %v4960 = vsel %vm214, %v4892, 0
        %v4962 = vsel %vm214, %v4894, 0
        %v4964 = vsel %vm214, %v4896, 0
        %v4966 = vsel %vm214, %v4898, 0
        %v4968 = vsel %vm214, %v4901, 0
        %v4970 = vsel %vm214, %v4903, 0
        %v4972 = vsel %vm214, %v4905, 0
        %v4974 = vsel %vm214, %v4907, 0
        %v4976 = vsel %vm214, %v4910, 0
        %v4978 = vsel %vm214, %v4912, 0
        %v4980 = vsel %vm214, %v4914, 0
        %v4982 = vsel %vm214, %v4916, 0
        %v4984 = vsel %vm214, %v4919, 0
        %v4986 = vsel %vm214, %v4921, 0
        %v4988 = vsel %vm214, %v4923, 0
        %v4990 = vsel %vm214, %v4925, 0
        %v4992 = vsel %vm214, %v4928, 0
        %v4994 = vsel %vm214, %v4930, 0
        %v4996 = vsel %vm214, %v4932, 0
        %v4998 = vsel %vm214, %v4934, 0
        %v5001 = vsel %vm311, %v4935, 0
        %5003 = vmatpush.msra.mxu0 0.0
        %5004 = vmatpush.msra.mxu0 0.0
        %5005 = vmatpush.msra.mxu0 0.0
        %5006 = vmatpush.msra.mxu0 0.0
        %5007 = vmatpush.msra.mxu0 0.0
        %5008 = vmatpush.msra.mxu0 0.0
        %5009 = vmatpush.msra.mxu0 0.0
        %5010 = vmatpush.msra.mxu0 0.0
        %5011 = vmatpush.msra.mxu0 0.0
        %5012 = vmatpush.msra.mxu0 0.0
        %5013 = vmatpush.msra.mxu0 0.0
        %5014 = vmatpush.msra.mxu0 0.0
        %5015 = vmatpush.msra.mxu0 0.0
        %5016 = vmatpush.msra.mxu0 0.0
        %5017 = vmatpush.msra.mxu0 0.0
        %5018 = vmatpush.msra.mxu0 %v5001
        %5019 = vmatmul.f32.gmra.mxu0 %v4936
        %v5020 = vpop.f32.mrf.mxu0
        %v5021 = vadd.f32 0.0, %v5020
        %5022 = vmatmul.f32.gmra.mxu0 %v4938
        %v5023 = vpop.f32.mrf.mxu0
        %v5024 = vadd.f32 0.0, %v5023
        %5025 = vmatmul.f32.gmra.mxu0 %v4940
        %v5026 = vpop.f32.mrf.mxu0
        %v5027 = vadd.f32 0.0, %v5026
        %5028 = vmatmul.f32.gmra.mxu0 %v4942
        %v5029 = vpop.f32.mrf.mxu0
        %v5030 = vadd.f32 0.0, %v5029
        %5031 = vmatmul.f32.gmra.mxu0 %v4944
        %v5032 = vpop.f32.mrf.mxu0
        %v5033 = vadd.f32 0.0, %v5032
        %5034 = vmatmul.f32.gmra.mxu0 %v4946
        %v5035 = vpop.f32.mrf.mxu0
        %v5036 = vadd.f32 0.0, %v5035
        %5037 = vmatmul.f32.gmra.mxu0 %v4948
        %v5038 = vpop.f32.mrf.mxu0
        %v5039 = vadd.f32 0.0, %v5038
        %5040 = vmatmul.f32.gmra.mxu0 %v4950
        %v5041 = vpop.f32.mrf.mxu0
        %v5042 = vadd.f32 0.0, %v5041
        %5043 = vmatmul.f32.gmra.mxu0 %v4952
        %v5044 = vpop.f32.mrf.mxu0
        %v5045 = vadd.f32 0.0, %v5044
        %5046 = vmatmul.f32.gmra.mxu0 %v4954
        %v5047 = vpop.f32.mrf.mxu0
        %v5048 = vadd.f32 0.0, %v5047
        %5049 = vmatmul.f32.gmra.mxu0 %v4956
        %v5050 = vpop.f32.mrf.mxu0
        %v5051 = vadd.f32 0.0, %v5050
        %5052 = vmatmul.f32.gmra.mxu0 %v4958
        %v5053 = vpop.f32.mrf.mxu0
        %v5054 = vadd.f32 0.0, %v5053
        %5055 = vmatmul.f32.gmra.mxu0 %v4960
        %v5056 = vpop.f32.mrf.mxu0
        %v5057 = vadd.f32 0.0, %v5056
        %5058 = vmatmul.f32.gmra.mxu0 %v4962
        %v5059 = vpop.f32.mrf.mxu0
        %v5060 = vadd.f32 0.0, %v5059
        %5061 = vmatmul.f32.gmra.mxu0 %v4964
        %v5062 = vpop.f32.mrf.mxu0
        %v5063 = vadd.f32 0.0, %v5062
        %5064 = vmatmul.f32.gmra.mxu0 %v4966
        %v5065 = vpop.f32.mrf.mxu0
        %v5066 = vadd.f32 0.0, %v5065
        %5067 = vmatmul.f32.gmra.mxu0 %v4968
        %v5068 = vpop.f32.mrf.mxu0
        %v5069 = vadd.f32 0.0, %v5068
        %5070 = vmatmul.f32.gmra.mxu0 %v4970
        %v5071 = vpop.f32.mrf.mxu0
        %v5072 = vadd.f32 0.0, %v5071
        %5073 = vmatmul.f32.gmra.mxu0 %v4972
        %v5074 = vpop.f32.mrf.mxu0
        %v5075 = vadd.f32 0.0, %v5074
        %5076 = vmatmul.f32.gmra.mxu0 %v4974
        %v5077 = vpop.f32.mrf.mxu0
        %v5078 = vadd.f32 0.0, %v5077
        %5079 = vmatmul.f32.gmra.mxu0 %v4976
        %v5080 = vpop.f32.mrf.mxu0
        %v5081 = vadd.f32 0.0, %v5080
        %5082 = vmatmul.f32.gmra.mxu0 %v4978
        %v5083 = vpop.f32.mrf.mxu0
        %v5084 = vadd.f32 0.0, %v5083
        %5085 = vmatmul.f32.gmra.mxu0 %v4980
        %v5086 = vpop.f32.mrf.mxu0
        %v5087 = vadd.f32 0.0, %v5086
        %5088 = vmatmul.f32.gmra.mxu0 %v4982
        %v5089 = vpop.f32.mrf.mxu0
        %v5090 = vadd.f32 0.0, %v5089
        %5091 = vmatmul.f32.gmra.mxu0 %v4984
        %v5092 = vpop.f32.mrf.mxu0
        %v5093 = vadd.f32 0.0, %v5092
        %5094 = vmatmul.f32.gmra.mxu0 %v4986
        %v5095 = vpop.f32.mrf.mxu0
        %v5096 = vadd.f32 0.0, %v5095
        %5097 = vmatmul.f32.gmra.mxu0 %v4988
        %v5098 = vpop.f32.mrf.mxu0
        %v5099 = vadd.f32 0.0, %v5098
        %5100 = vmatmul.f32.gmra.mxu0 %v4990
        %v5101 = vpop.f32.mrf.mxu0
        %v5102 = vadd.f32 0.0, %v5101
        %5103 = vmatmul.f32.gmra.mxu0 %v4992
        %v5104 = vpop.f32.mrf.mxu0
        %v5105 = vadd.f32 0.0, %v5104
        %5106 = vmatmul.f32.gmra.mxu0 %v4994
        %v5107 = vpop.f32.mrf.mxu0
        %v5108 = vadd.f32 0.0, %v5107
        %5109 = vmatmul.f32.gmra.mxu0 %v4996
        %v5110 = vpop.f32.mrf.mxu0
        %v5111 = vadd.f32 0.0, %v5110
        %5112 = vmatmul.f32.gmra.mxu0 %v4998
        %v5113 = vpop.f32.mrf.mxu0
        %v5114 = vadd.f32 0.0, %v5113
        %5115 = vdwg.mxu0
        %v5116 = vadd.f32 %v4823, %v5021
        %v5117 = vadd.f32 %v4824, %v5024
        %v5118 = vadd.f32 %v4825, %v5027
        %v5119 = vadd.f32 %v4826, %v5030
        %v5120 = vadd.f32 %v4827, %v5033
        %v5121 = vadd.f32 %v4828, %v5036
        %v5122 = vadd.f32 %v4829, %v5039
        %v5123 = vadd.f32 %v4830, %v5042
        %v5124 = vadd.f32 %v4831, %v5045
        %v5125 = vadd.f32 %v4832, %v5048
        %v5126 = vadd.f32 %v4833, %v5051
        %v5127 = vadd.f32 %v4834, %v5054
        %v5128 = vadd.f32 %v4835, %v5057
        %v5129 = vadd.f32 %v4836, %v5060
        %v5130 = vadd.f32 %v4837, %v5063
        %v5131 = vadd.f32 %v4838, %v5066
        %v5132 = vadd.f32 %v4839, %v5069
        %v5133 = vadd.f32 %v4840, %v5072
        %v5134 = vadd.f32 %v4841, %v5075
        %v5135 = vadd.f32 %v4842, %v5078
        %v5136 = vadd.f32 %v4843, %v5081
        %v5137 = vadd.f32 %v4844, %v5084
        %v5138 = vadd.f32 %v4845, %v5087
        %v5139 = vadd.f32 %v4846, %v5090
        %v5140 = vadd.f32 %v4847, %v5093
        %v5141 = vadd.f32 %v4848, %v5096
        %v5142 = vadd.f32 %v4849, %v5099
        %v5143 = vadd.f32 %v4850, %v5102
        %v5144 = vadd.f32 %v4851, %v5105
        %v5145 = vadd.f32 %v4852, %v5108
        %v5146 = vadd.f32 %v4853, %v5111
        %v5147 = vadd.f32 %v4854, %v5114
        %v5148 = vrot.slane %v4570, 2
        %v5149 = vrot.slane %v4571, 2
        %v5150 = vsel %vm755, %v5148, %v5149
        %v5151 = vrot.slane %v4572, 2
        %v5152 = vsel %vm755, %v5149, %v5151
        %v5153 = vrot.slane %v4573, 2
        %v5154 = vsel %vm755, %v5151, %v5153
        %v5155 = vrot.slane %v4574, 2
        %v5156 = vsel %vm755, %v5153, %v5155
        %v5157 = vrot.slane %v4575, 2
        %v5158 = vrot.slane %v4576, 2
        %v5159 = vsel %vm755, %v5157, %v5158
        %v5160 = vrot.slane %v4577, 2
        %v5161 = vsel %vm755, %v5158, %v5160
        %v5162 = vrot.slane %v4578, 2
        %v5163 = vsel %vm755, %v5160, %v5162
        %v5164 = vrot.slane %v4579, 2
        %v5165 = vsel %vm755, %v5162, %v5164
        %v5166 = vrot.slane %v4580, 2
        %v5167 = vrot.slane %v4581, 2
        %v5168 = vsel %vm755, %v5166, %v5167
        %v5169 = vrot.slane %v4582, 2
        %v5170 = vsel %vm755, %v5167, %v5169
        %v5171 = vrot.slane %v4583, 2
        %v5172 = vsel %vm755, %v5169, %v5171
        %v5173 = vrot.slane %v4584, 2
        %v5174 = vsel %vm755, %v5171, %v5173
        %v5175 = vrot.slane %v4585, 2
        %v5176 = vrot.slane %v4586, 2
        %v5177 = vsel %vm755, %v5175, %v5176
        %v5178 = vrot.slane %v4587, 2
        %v5179 = vsel %vm755, %v5176, %v5178
        %v5180 = vrot.slane %v4588, 2
        %v5181 = vsel %vm755, %v5178, %v5180
        %v5182 = vrot.slane %v4589, 2
        %v5183 = vsel %vm755, %v5180, %v5182
        %v5184 = vrot.slane %v4590, 2
        %v5185 = vrot.slane %v4591, 2
        %v5186 = vsel %vm755, %v5184, %v5185
        %v5187 = vrot.slane %v4592, 2
        %v5188 = vsel %vm755, %v5185, %v5187
        %v5189 = vrot.slane %v4593, 2
        %v5190 = vsel %vm755, %v5187, %v5189
        %v5191 = vrot.slane %v4594, 2
        %v5192 = vsel %vm755, %v5189, %v5191
        %v5193 = vrot.slane %v4595, 2
        %v5194 = vrot.slane %v4596, 2
        %v5195 = vsel %vm755, %v5193, %v5194
        %v5196 = vrot.slane %v4597, 2
        %v5197 = vsel %vm755, %v5194, %v5196
        %v5198 = vrot.slane %v4598, 2
        %v5199 = vsel %vm755, %v5196, %v5198
        %v5200 = vrot.slane %v4599, 2
        %v5201 = vsel %vm755, %v5198, %v5200
        %v5202 = vrot.slane %v4600, 2
        %v5203 = vrot.slane %v4601, 2
        %v5204 = vsel %vm755, %v5202, %v5203
        %v5205 = vrot.slane %v4602, 2
        %v5206 = vsel %vm755, %v5203, %v5205
        %v5207 = vrot.slane %v4603, 2
        %v5208 = vsel %vm755, %v5205, %v5207
        %v5209 = vrot.slane %v4604, 2
        %v5210 = vsel %vm755, %v5207, %v5209
        %v5211 = vrot.slane %v4605, 2
        %v5212 = vrot.slane %v4606, 2
        %v5213 = vsel %vm755, %v5211, %v5212
        %v5214 = vrot.slane %v4607, 2
        %v5215 = vsel %vm755, %v5212, %v5214
        %v5216 = vrot.slane %v4608, 2
        %v5217 = vsel %vm755, %v5214, %v5216
        %v5218 = vrot.slane %v4609, 2
        %v5219 = vsel %vm755, %v5216, %v5218
        %v5220 = vld [vmem:[%s2562] sm:$0x7]
        %v5221 = vsel %vm214, %v5150, 0
        %v5223 = vsel %vm214, %v5152, 0
        %v5225 = vsel %vm214, %v5154, 0
        %v5227 = vsel %vm214, %v5156, 0
        %v5229 = vsel %vm214, %v5159, 0
        %v5231 = vsel %vm214, %v5161, 0
        %v5233 = vsel %vm214, %v5163, 0
        %v5235 = vsel %vm214, %v5165, 0
        %v5237 = vsel %vm214, %v5168, 0
        %v5239 = vsel %vm214, %v5170, 0
        %v5241 = vsel %vm214, %v5172, 0
        %v5243 = vsel %vm214, %v5174, 0
        %v5245 = vsel %vm214, %v5177, 0
        %v5247 = vsel %vm214, %v5179, 0
        %v5249 = vsel %vm214, %v5181, 0
        %v5251 = vsel %vm214, %v5183, 0
        %v5253 = vsel %vm214, %v5186, 0
        %v5255 = vsel %vm214, %v5188, 0
        %v5257 = vsel %vm214, %v5190, 0
        %v5259 = vsel %vm214, %v5192, 0
        %v5261 = vsel %vm214, %v5195, 0
        %v5263 = vsel %vm214, %v5197, 0
        %v5265 = vsel %vm214, %v5199, 0
        %v5267 = vsel %vm214, %v5201, 0
        %v5269 = vsel %vm214, %v5204, 0
        %v5271 = vsel %vm214, %v5206, 0
        %v5273 = vsel %vm214, %v5208, 0
        %v5275 = vsel %vm214, %v5210, 0
        %v5277 = vsel %vm214, %v5213, 0
        %v5279 = vsel %vm214, %v5215, 0
        %v5281 = vsel %vm214, %v5217, 0
        %v5283 = vsel %vm214, %v5219, 0
        %v5286 = vsel %vm311, %v5220, 0
        %5288 = vmatpush.msra.mxu0 0.0
        %5289 = vmatpush.msra.mxu0 0.0
        %5290 = vmatpush.msra.mxu0 0.0
        %5291 = vmatpush.msra.mxu0 0.0
        %5292 = vmatpush.msra.mxu0 0.0
        %5293 = vmatpush.msra.mxu0 0.0
        %5294 = vmatpush.msra.mxu0 0.0
        %5295 = vmatpush.msra.mxu0 0.0
        %5296 = vmatpush.msra.mxu0 0.0
        %5297 = vmatpush.msra.mxu0 0.0
        %5298 = vmatpush.msra.mxu0 0.0
        %5299 = vmatpush.msra.mxu0 0.0
        %5300 = vmatpush.msra.mxu0 0.0
        %5301 = vmatpush.msra.mxu0 0.0
        %5302 = vmatpush.msra.mxu0 0.0
        %5303 = vmatpush.msra.mxu0 %v5286
        %5304 = vmatmul.f32.gmra.mxu0 %v5221
        %v5305 = vpop.f32.mrf.mxu0
        %v5306 = vadd.f32 0.0, %v5305
        %5307 = vmatmul.f32.gmra.mxu0 %v5223
        %v5308 = vpop.f32.mrf.mxu0
        %v5309 = vadd.f32 0.0, %v5308
        %5310 = vmatmul.f32.gmra.mxu0 %v5225
        %v5311 = vpop.f32.mrf.mxu0
        %v5312 = vadd.f32 0.0, %v5311
        %5313 = vmatmul.f32.gmra.mxu0 %v5227
        %v5314 = vpop.f32.mrf.mxu0
        %v5315 = vadd.f32 0.0, %v5314
        %5316 = vmatmul.f32.gmra.mxu0 %v5229
        %v5317 = vpop.f32.mrf.mxu0
        %v5318 = vadd.f32 0.0, %v5317
        %5319 = vmatmul.f32.gmra.mxu0 %v5231
        %v5320 = vpop.f32.mrf.mxu0
        %v5321 = vadd.f32 0.0, %v5320
        %5322 = vmatmul.f32.gmra.mxu0 %v5233
        %v5323 = vpop.f32.mrf.mxu0
        %v5324 = vadd.f32 0.0, %v5323
        %5325 = vmatmul.f32.gmra.mxu0 %v5235
        %v5326 = vpop.f32.mrf.mxu0
        %v5327 = vadd.f32 0.0, %v5326
        %5328 = vmatmul.f32.gmra.mxu0 %v5237
        %v5329 = vpop.f32.mrf.mxu0
        %v5330 = vadd.f32 0.0, %v5329
        %5331 = vmatmul.f32.gmra.mxu0 %v5239
        %v5332 = vpop.f32.mrf.mxu0
        %v5333 = vadd.f32 0.0, %v5332
        %5334 = vmatmul.f32.gmra.mxu0 %v5241
        %v5335 = vpop.f32.mrf.mxu0
        %v5336 = vadd.f32 0.0, %v5335
        %5337 = vmatmul.f32.gmra.mxu0 %v5243
        %v5338 = vpop.f32.mrf.mxu0
        %v5339 = vadd.f32 0.0, %v5338
        %5340 = vmatmul.f32.gmra.mxu0 %v5245
        %v5341 = vpop.f32.mrf.mxu0
        %v5342 = vadd.f32 0.0, %v5341
        %5343 = vmatmul.f32.gmra.mxu0 %v5247
        %v5344 = vpop.f32.mrf.mxu0
        %v5345 = vadd.f32 0.0, %v5344
        %5346 = vmatmul.f32.gmra.mxu0 %v5249
        %v5347 = vpop.f32.mrf.mxu0
        %v5348 = vadd.f32 0.0, %v5347
        %5349 = vmatmul.f32.gmra.mxu0 %v5251
        %v5350 = vpop.f32.mrf.mxu0
        %v5351 = vadd.f32 0.0, %v5350
        %5352 = vmatmul.f32.gmra.mxu0 %v5253
        %v5353 = vpop.f32.mrf.mxu0
        %v5354 = vadd.f32 0.0, %v5353
        %5355 = vmatmul.f32.gmra.mxu0 %v5255
        %v5356 = vpop.f32.mrf.mxu0
        %v5357 = vadd.f32 0.0, %v5356
        %5358 = vmatmul.f32.gmra.mxu0 %v5257
        %v5359 = vpop.f32.mrf.mxu0
        %v5360 = vadd.f32 0.0, %v5359
        %5361 = vmatmul.f32.gmra.mxu0 %v5259
        %v5362 = vpop.f32.mrf.mxu0
        %v5363 = vadd.f32 0.0, %v5362
        %5364 = vmatmul.f32.gmra.mxu0 %v5261
        %v5365 = vpop.f32.mrf.mxu0
        %v5366 = vadd.f32 0.0, %v5365
        %5367 = vmatmul.f32.gmra.mxu0 %v5263
        %v5368 = vpop.f32.mrf.mxu0
        %v5369 = vadd.f32 0.0, %v5368
        %5370 = vmatmul.f32.gmra.mxu0 %v5265
        %v5371 = vpop.f32.mrf.mxu0
        %v5372 = vadd.f32 0.0, %v5371
        %5373 = vmatmul.f32.gmra.mxu0 %v5267
        %v5374 = vpop.f32.mrf.mxu0
        %v5375 = vadd.f32 0.0, %v5374
        %5376 = vmatmul.f32.gmra.mxu0 %v5269
        %v5377 = vpop.f32.mrf.mxu0
        %v5378 = vadd.f32 0.0, %v5377
        %5379 = vmatmul.f32.gmra.mxu0 %v5271
        %v5380 = vpop.f32.mrf.mxu0
        %v5381 = vadd.f32 0.0, %v5380
        %5382 = vmatmul.f32.gmra.mxu0 %v5273
        %v5383 = vpop.f32.mrf.mxu0
        %v5384 = vadd.f32 0.0, %v5383
        %5385 = vmatmul.f32.gmra.mxu0 %v5275
        %v5386 = vpop.f32.mrf.mxu0
        %v5387 = vadd.f32 0.0, %v5386
        %5388 = vmatmul.f32.gmra.mxu0 %v5277
        %v5389 = vpop.f32.mrf.mxu0
        %v5390 = vadd.f32 0.0, %v5389
        %5391 = vmatmul.f32.gmra.mxu0 %v5279
        %v5392 = vpop.f32.mrf.mxu0
        %v5393 = vadd.f32 0.0, %v5392
        %5394 = vmatmul.f32.gmra.mxu0 %v5281
        %v5395 = vpop.f32.mrf.mxu0
        %v5396 = vadd.f32 0.0, %v5395
        %5397 = vmatmul.f32.gmra.mxu0 %v5283
        %v5398 = vpop.f32.mrf.mxu0
        %v5399 = vadd.f32 0.0, %v5398
        %5400 = vdwg.mxu0
        %v5401 = vadd.f32 %v5116, %v5306
        %v5402 = vadd.f32 %v5117, %v5309
        %v5403 = vadd.f32 %v5118, %v5312
        %v5404 = vadd.f32 %v5119, %v5315
        %v5405 = vadd.f32 %v5120, %v5318
        %v5406 = vadd.f32 %v5121, %v5321
        %v5407 = vadd.f32 %v5122, %v5324
        %v5408 = vadd.f32 %v5123, %v5327
        %v5409 = vadd.f32 %v5124, %v5330
        %v5410 = vadd.f32 %v5125, %v5333
        %v5411 = vadd.f32 %v5126, %v5336
        %v5412 = vadd.f32 %v5127, %v5339
        %v5413 = vadd.f32 %v5128, %v5342
        %v5414 = vadd.f32 %v5129, %v5345
        %v5415 = vadd.f32 %v5130, %v5348
        %v5416 = vadd.f32 %v5131, %v5351
        %v5417 = vadd.f32 %v5132, %v5354
        %v5418 = vadd.f32 %v5133, %v5357
        %v5419 = vadd.f32 %v5134, %v5360
        %v5420 = vadd.f32 %v5135, %v5363
        %v5421 = vadd.f32 %v5136, %v5366
        %v5422 = vadd.f32 %v5137, %v5369
        %v5423 = vadd.f32 %v5138, %v5372
        %v5424 = vadd.f32 %v5139, %v5375
        %v5425 = vadd.f32 %v5140, %v5378
        %v5426 = vadd.f32 %v5141, %v5381
        %v5427 = vadd.f32 %v5142, %v5384
        %v5428 = vadd.f32 %v5143, %v5387
        %v5429 = vadd.f32 %v5144, %v5390
        %v5430 = vadd.f32 %v5145, %v5393
        %v5431 = vadd.f32 %v5146, %v5396
        %v5432 = vadd.f32 %v5147, %v5399
        %v5433 = vmax.f32 %v5401, 0.0
        %v5434 = vmax.f32 %v5402, 0.0
        %v5435 = vmax.f32 %v5403, 0.0
        %v5436 = vmax.f32 %v5404, 0.0
        %v5437 = vmax.f32 %v5405, 0.0
        %v5438 = vmax.f32 %v5406, 0.0
        %v5439 = vmax.f32 %v5407, 0.0
        %v5440 = vmax.f32 %v5408, 0.0
        %v5441 = vmax.f32 %v5409, 0.0
        %v5442 = vmax.f32 %v5410, 0.0
        %v5443 = vmax.f32 %v5411, 0.0
        %v5444 = vmax.f32 %v5412, 0.0
        %v5445 = vmax.f32 %v5413, 0.0
        %v5446 = vmax.f32 %v5414, 0.0
        %v5447 = vmax.f32 %v5415, 0.0
        %v5448 = vmax.f32 %v5416, 0.0
        %v5449 = vmax.f32 %v5417, 0.0
        %v5450 = vmax.f32 %v5418, 0.0
        %v5451 = vmax.f32 %v5419, 0.0
        %v5452 = vmax.f32 %v5420, 0.0
        %v5453 = vmax.f32 %v5421, 0.0
        %v5454 = vmax.f32 %v5422, 0.0
        %v5455 = vmax.f32 %v5423, 0.0
        %v5456 = vmax.f32 %v5424, 0.0
        %v5457 = vmax.f32 %v5425, 0.0
        %v5458 = vmax.f32 %v5426, 0.0
        %v5459 = vmax.f32 %v5427, 0.0
        %v5460 = vmax.f32 %v5428, 0.0
        %v5461 = vmax.f32 %v5429, 0.0
        %v5462 = vmax.f32 %v5430, 0.0
        %v5463 = vmax.f32 %v5431, 0.0
        %v5464 = vmax.f32 %v5432, 0.0
        %s5465 = scalar_lea.vmem %s163, 256 [#allocation2]
        %5466 = vst.msk [vmem:[%s5465] sm:$0xff] %vm2808, %v5433
        %5467 = vst.msk [vmem:[%s5465 + $0x8] sm:$0xff] %vm2808, %v5434
        %5468 = vst.msk [vmem:[%s5465 + $0x10] sm:$0xff] %vm2808, %v5435
        %5469 = vst.msk [vmem:[%s5465 + $0x18] sm:$0xff] %vm2808, %v5436
        %5470 = vst.msk [vmem:[%s5465 + $0x20] sm:$0xff] %vm2808, %v5437
        %5471 = vst.msk [vmem:[%s5465 + $0x28] sm:$0xff] %vm2808, %v5438
        %5472 = vst.msk [vmem:[%s5465 + $0x30] sm:$0xff] %vm2808, %v5439
        %5473 = vst.msk [vmem:[%s5465 + $0x38] sm:$0xff] %vm2808, %v5440
        %5474 = vst.msk [vmem:[%s5465 + $0x40] sm:$0xff] %vm2808, %v5441
        %5475 = vst.msk [vmem:[%s5465 + $0x48] sm:$0xff] %vm2808, %v5442
        %5476 = vst.msk [vmem:[%s5465 + $0x50] sm:$0xff] %vm2808, %v5443
        %5477 = vst.msk [vmem:[%s5465 + $0x58] sm:$0xff] %vm2808, %v5444
        %5478 = vst.msk [vmem:[%s5465 + $0x60] sm:$0xff] %vm2808, %v5445
        %5479 = vst.msk [vmem:[%s5465 + $0x68] sm:$0xff] %vm2808, %v5446
        %5480 = vst.msk [vmem:[%s5465 + $0x70] sm:$0xff] %vm2808, %v5447
        %5481 = vst.msk [vmem:[%s5465 + $0x78] sm:$0xff] %vm2808, %v5448
        %5482 = vst.msk [vmem:[%s5465 + $0x80] sm:$0xff] %vm2808, %v5449
        %5483 = vst.msk [vmem:[%s5465 + $0x88] sm:$0xff] %vm2808, %v5450
        %5484 = vst.msk [vmem:[%s5465 + $0x90] sm:$0xff] %vm2808, %v5451
        %5485 = vst.msk [vmem:[%s5465 + $0x98] sm:$0xff] %vm2808, %v5452
        %5486 = vst.msk [vmem:[%s5465 + $0xa0] sm:$0xff] %vm2808, %v5453
        %5487 = vst.msk [vmem:[%s5465 + $0xa8] sm:$0xff] %vm2808, %v5454
        %5488 = vst.msk [vmem:[%s5465 + $0xb0] sm:$0xff] %vm2808, %v5455
        %5489 = vst.msk [vmem:[%s5465 + $0xb8] sm:$0xff] %vm2808, %v5456
        %5490 = vst.msk [vmem:[%s5465 + $0xc0] sm:$0xff] %vm2808, %v5457
        %5491 = vst.msk [vmem:[%s5465 + $0xc8] sm:$0xff] %vm2808, %v5458
        %5492 = vst.msk [vmem:[%s5465 + $0xd0] sm:$0xff] %vm2808, %v5459
        %5493 = vst.msk [vmem:[%s5465 + $0xd8] sm:$0xff] %vm2808, %v5460
        %5494 = vst.msk [vmem:[%s5465 + $0xe0] sm:$0xff] %vm2808, %v5461
        %5495 = vst.msk [vmem:[%s5465 + $0xe8] sm:$0xff] %vm2808, %v5462
        %5496 = vst.msk [vmem:[%s5465 + $0xf0] sm:$0xff] %vm2808, %v5463
        %5497 = vst.msk [vmem:[%s5465 + $0xf8] sm:$0xff] %vm2808, %v5464
        %s5498 = scalar_lea.vmem %s168, 640
        %v5499 = vld [vmem:[%s5498] sm:$0xff]
        %v5500 = vld [vmem:[%s5498 + $0x8] sm:$0xff]
        %v5501 = vld [vmem:[%s5498 + $0x10] sm:$0xff]
        %v5502 = vld [vmem:[%s5498 + $0x18] sm:$0xff]
        %v5503 = vld [vmem:[%s5498 + $0x20] sm:$0x3]
        %v5504 = vld [vmem:[%s5498 + $0x28] sm:$0xff]
        %v5505 = vld [vmem:[%s5498 + $0x30] sm:$0xff]
        %v5506 = vld [vmem:[%s5498 + $0x38] sm:$0xff]
        %v5507 = vld [vmem:[%s5498 + $0x40] sm:$0xff]
        %v5508 = vld [vmem:[%s5498 + $0x48] sm:$0x3]
        %v5509 = vld [vmem:[%s5498 + $0x50] sm:$0xff]
        %v5510 = vld [vmem:[%s5498 + $0x58] sm:$0xff]
        %v5511 = vld [vmem:[%s5498 + $0x60] sm:$0xff]
        %v5512 = vld [vmem:[%s5498 + $0x68] sm:$0xff]
        %v5513 = vld [vmem:[%s5498 + $0x70] sm:$0x3]
        %v5514 = vld [vmem:[%s5498 + $0x78] sm:$0xff]
        %v5515 = vld [vmem:[%s5498 + $0x80] sm:$0xff]
        %v5516 = vld [vmem:[%s5498 + $0x88] sm:$0xff]
        %v5517 = vld [vmem:[%s5498 + $0x90] sm:$0xff]
        %v5518 = vld [vmem:[%s5498 + $0x98] sm:$0x3]
        %v5519 = vld [vmem:[%s5498 + $0xa0] sm:$0xff]
        %v5520 = vld [vmem:[%s5498 + $0xa8] sm:$0xff]
        %v5521 = vld [vmem:[%s5498 + $0xb0] sm:$0xff]
        %v5522 = vld [vmem:[%s5498 + $0xb8] sm:$0xff]
        %v5523 = vld [vmem:[%s5498 + $0xc0] sm:$0x3]
        %v5524 = vld [vmem:[%s5498 + $0xc8] sm:$0xff]
        %v5525 = vld [vmem:[%s5498 + $0xd0] sm:$0xff]
        %v5526 = vld [vmem:[%s5498 + $0xd8] sm:$0xff]
        %v5527 = vld [vmem:[%s5498 + $0xe0] sm:$0xff]
        %v5528 = vld [vmem:[%s5498 + $0xe8] sm:$0x3]
        %v5529 = vld [vmem:[%s5498 + $0xf0] sm:$0xff]
        %v5530 = vld [vmem:[%s5498 + $0xf8] sm:$0xff]
        %v5531 = vld [vmem:[%s5498 + $0x100] sm:$0xff]
        %v5532 = vld [vmem:[%s5498 + $0x108] sm:$0xff]
        %v5533 = vld [vmem:[%s5498 + $0x110] sm:$0x3]
        %v5534 = vld [vmem:[%s5498 + $0x118] sm:$0xff]
        %v5535 = vld [vmem:[%s5498 + $0x120] sm:$0xff]
        %v5536 = vld [vmem:[%s5498 + $0x128] sm:$0xff]
        %v5537 = vld [vmem:[%s5498 + $0x130] sm:$0xff]
        %v5538 = vld [vmem:[%s5498 + $0x138] sm:$0x3]
        %v5539 = vld [vmem:[%s1] sm:$0x7]
        %v5541 = vsel %vm214, %v5499, 0
        %v5544 = vsel %vm214, %v5500, 0
        %v5547 = vsel %vm214, %v5501, 0
        %v5550 = vsel %vm214, %v5502, 0
        %v5553 = vsel %vm214, %v5504, 0
        %v5556 = vsel %vm214, %v5505, 0
        %v5559 = vsel %vm214, %v5506, 0
        %v5562 = vsel %vm214, %v5507, 0
        %v5565 = vsel %vm214, %v5509, 0
        %v5568 = vsel %vm214, %v5510, 0
        %v5571 = vsel %vm214, %v5511, 0
        %v5574 = vsel %vm214, %v5512, 0
        %v5577 = vsel %vm214, %v5514, 0
        %v5580 = vsel %vm214, %v5515, 0
        %v5583 = vsel %vm214, %v5516, 0
        %v5586 = vsel %vm214, %v5517, 0
        %v5589 = vsel %vm214, %v5519, 0
        %v5592 = vsel %vm214, %v5520, 0
        %v5595 = vsel %vm214, %v5521, 0
        %v5598 = vsel %vm214, %v5522, 0
        %v5601 = vsel %vm214, %v5524, 0
        %v5604 = vsel %vm214, %v5525, 0
        %v5607 = vsel %vm214, %v5526, 0
        %v5610 = vsel %vm214, %v5527, 0
        %v5613 = vsel %vm214, %v5529, 0
        %v5616 = vsel %vm214, %v5530, 0
        %v5619 = vsel %vm214, %v5531, 0
        %v5622 = vsel %vm214, %v5532, 0
        %v5625 = vsel %vm214, %v5534, 0
        %v5628 = vsel %vm214, %v5535, 0
        %v5631 = vsel %vm214, %v5536, 0
        %v5634 = vsel %vm214, %v5537, 0
        %v5637 = vsel %vm311, %v5539, 0
        %5639 = vmatpush.msra.mxu0 0.0
        %5640 = vmatpush.msra.mxu0 0.0
        %5641 = vmatpush.msra.mxu0 0.0
        %5642 = vmatpush.msra.mxu0 0.0
        %5643 = vmatpush.msra.mxu0 0.0
        %5644 = vmatpush.msra.mxu0 0.0
        %5645 = vmatpush.msra.mxu0 0.0
        %5646 = vmatpush.msra.mxu0 0.0
        %5647 = vmatpush.msra.mxu0 0.0
        %5648 = vmatpush.msra.mxu0 0.0
        %5649 = vmatpush.msra.mxu0 0.0
        %5650 = vmatpush.msra.mxu0 0.0
        %5651 = vmatpush.msra.mxu0 0.0
        %5652 = vmatpush.msra.mxu0 0.0
        %5653 = vmatpush.msra.mxu0 0.0
        %5654 = vmatpush.msra.mxu0 %v5637
        %5655 = vmatmul.f32.gmra.mxu0 %v5541
        %v5656 = vpop.f32.mrf.mxu0
        %v5657 = vadd.f32 0.0, %v5656
        %5658 = vmatmul.f32.gmra.mxu0 %v5544
        %v5659 = vpop.f32.mrf.mxu0
        %v5660 = vadd.f32 0.0, %v5659
        %5661 = vmatmul.f32.gmra.mxu0 %v5547
        %v5662 = vpop.f32.mrf.mxu0
        %v5663 = vadd.f32 0.0, %v5662
        %5664 = vmatmul.f32.gmra.mxu0 %v5550
        %v5665 = vpop.f32.mrf.mxu0
        %v5666 = vadd.f32 0.0, %v5665
        %5667 = vmatmul.f32.gmra.mxu0 %v5553
        %v5668 = vpop.f32.mrf.mxu0
        %v5669 = vadd.f32 0.0, %v5668
        %5670 = vmatmul.f32.gmra.mxu0 %v5556
        %v5671 = vpop.f32.mrf.mxu0
        %v5672 = vadd.f32 0.0, %v5671
        %5673 = vmatmul.f32.gmra.mxu0 %v5559
        %v5674 = vpop.f32.mrf.mxu0
        %v5675 = vadd.f32 0.0, %v5674
        %5676 = vmatmul.f32.gmra.mxu0 %v5562
        %v5677 = vpop.f32.mrf.mxu0
        %v5678 = vadd.f32 0.0, %v5677
        %5679 = vmatmul.f32.gmra.mxu0 %v5565
        %v5680 = vpop.f32.mrf.mxu0
        %v5681 = vadd.f32 0.0, %v5680
        %5682 = vmatmul.f32.gmra.mxu0 %v5568
        %v5683 = vpop.f32.mrf.mxu0
        %v5684 = vadd.f32 0.0, %v5683
        %5685 = vmatmul.f32.gmra.mxu0 %v5571
        %v5686 = vpop.f32.mrf.mxu0
        %v5687 = vadd.f32 0.0, %v5686
        %5688 = vmatmul.f32.gmra.mxu0 %v5574
        %v5689 = vpop.f32.mrf.mxu0
        %v5690 = vadd.f32 0.0, %v5689
        %5691 = vmatmul.f32.gmra.mxu0 %v5577
        %v5692 = vpop.f32.mrf.mxu0
        %v5693 = vadd.f32 0.0, %v5692
        %5694 = vmatmul.f32.gmra.mxu0 %v5580
        %v5695 = vpop.f32.mrf.mxu0
        %v5696 = vadd.f32 0.0, %v5695
        %5697 = vmatmul.f32.gmra.mxu0 %v5583
        %v5698 = vpop.f32.mrf.mxu0
        %v5699 = vadd.f32 0.0, %v5698
        %5700 = vmatmul.f32.gmra.mxu0 %v5586
        %v5701 = vpop.f32.mrf.mxu0
        %v5702 = vadd.f32 0.0, %v5701
        %5703 = vmatmul.f32.gmra.mxu0 %v5589
        %v5704 = vpop.f32.mrf.mxu0
        %v5705 = vadd.f32 0.0, %v5704
        %5706 = vmatmul.f32.gmra.mxu0 %v5592
        %v5707 = vpop.f32.mrf.mxu0
        %v5708 = vadd.f32 0.0, %v5707
        %5709 = vmatmul.f32.gmra.mxu0 %v5595
        %v5710 = vpop.f32.mrf.mxu0
        %v5711 = vadd.f32 0.0, %v5710
        %5712 = vmatmul.f32.gmra.mxu0 %v5598
        %v5713 = vpop.f32.mrf.mxu0
        %v5714 = vadd.f32 0.0, %v5713
        %5715 = vmatmul.f32.gmra.mxu0 %v5601
        %v5716 = vpop.f32.mrf.mxu0
        %v5717 = vadd.f32 0.0, %v5716
        %5718 = vmatmul.f32.gmra.mxu0 %v5604
        %v5719 = vpop.f32.mrf.mxu0
        %v5720 = vadd.f32 0.0, %v5719
        %5721 = vmatmul.f32.gmra.mxu0 %v5607
        %v5722 = vpop.f32.mrf.mxu0
        %v5723 = vadd.f32 0.0, %v5722
        %5724 = vmatmul.f32.gmra.mxu0 %v5610
        %v5725 = vpop.f32.mrf.mxu0
        %v5726 = vadd.f32 0.0, %v5725
        %5727 = vmatmul.f32.gmra.mxu0 %v5613
        %v5728 = vpop.f32.mrf.mxu0
        %v5729 = vadd.f32 0.0, %v5728
        %5730 = vmatmul.f32.gmra.mxu0 %v5616
        %v5731 = vpop.f32.mrf.mxu0
        %v5732 = vadd.f32 0.0, %v5731
        %5733 = vmatmul.f32.gmra.mxu0 %v5619
        %v5734 = vpop.f32.mrf.mxu0
        %v5735 = vadd.f32 0.0, %v5734
        %5736 = vmatmul.f32.gmra.mxu0 %v5622
        %v5737 = vpop.f32.mrf.mxu0
        %v5738 = vadd.f32 0.0, %v5737
        %5739 = vmatmul.f32.gmra.mxu0 %v5625
        %v5740 = vpop.f32.mrf.mxu0
        %v5741 = vadd.f32 0.0, %v5740
        %5742 = vmatmul.f32.gmra.mxu0 %v5628
        %v5743 = vpop.f32.mrf.mxu0
        %v5744 = vadd.f32 0.0, %v5743
        %5745 = vmatmul.f32.gmra.mxu0 %v5631
        %v5746 = vpop.f32.mrf.mxu0
        %v5747 = vadd.f32 0.0, %v5746
        %5748 = vmatmul.f32.gmra.mxu0 %v5634
        %v5749 = vpop.f32.mrf.mxu0
        %v5750 = vadd.f32 0.0, %v5749
        %5751 = vdwg.mxu0
        %v5752 = vadd.f32 %v171, %v5657
        %v5753 = vadd.f32 %v171, %v5660
        %v5754 = vadd.f32 %v171, %v5663
        %v5755 = vadd.f32 %v171, %v5666
        %v5756 = vadd.f32 %v171, %v5669
        %v5757 = vadd.f32 %v171, %v5672
        %v5758 = vadd.f32 %v171, %v5675
        %v5759 = vadd.f32 %v171, %v5678
        %v5760 = vadd.f32 %v171, %v5681
        %v5761 = vadd.f32 %v171, %v5684
        %v5762 = vadd.f32 %v171, %v5687
        %v5763 = vadd.f32 %v171, %v5690
        %v5764 = vadd.f32 %v171, %v5693
        %v5765 = vadd.f32 %v171, %v5696
        %v5766 = vadd.f32 %v171, %v5699
        %v5767 = vadd.f32 %v171, %v5702
        %v5768 = vadd.f32 %v171, %v5705
        %v5769 = vadd.f32 %v171, %v5708
        %v5770 = vadd.f32 %v171, %v5711
        %v5771 = vadd.f32 %v171, %v5714
        %v5772 = vadd.f32 %v171, %v5717
        %v5773 = vadd.f32 %v171, %v5720
        %v5774 = vadd.f32 %v171, %v5723
        %v5775 = vadd.f32 %v171, %v5726
        %v5776 = vadd.f32 %v171, %v5729
        %v5777 = vadd.f32 %v171, %v5732
        %v5778 = vadd.f32 %v171, %v5735
        %v5779 = vadd.f32 %v171, %v5738
        %v5780 = vadd.f32 %v171, %v5741
        %v5781 = vadd.f32 %v171, %v5744
        %v5782 = vadd.f32 %v171, %v5747
        %v5783 = vadd.f32 %v171, %v5750
        %v5792 = vrot.slane %v5499, 1
        %v5793 = vrot.slane %v5500, 1
        %v5794 = vsel %vm468, %v5792, %v5793
        %v5795 = vrot.slane %v5501, 1
        %v5796 = vsel %vm468, %v5793, %v5795
        %v5797 = vrot.slane %v5502, 1
        %v5798 = vsel %vm468, %v5795, %v5797
        %v5799 = vrot.slane %v5503, 1
        %v5800 = vsel %vm468, %v5797, %v5799
        %v5801 = vrot.slane %v5504, 1
        %v5802 = vrot.slane %v5505, 1
        %v5803 = vsel %vm468, %v5801, %v5802
        %v5804 = vrot.slane %v5506, 1
        %v5805 = vsel %vm468, %v5802, %v5804
        %v5806 = vrot.slane %v5507, 1
        %v5807 = vsel %vm468, %v5804, %v5806
        %v5808 = vrot.slane %v5508, 1
        %v5809 = vsel %vm468, %v5806, %v5808
        %v5810 = vrot.slane %v5509, 1
        %v5811 = vrot.slane %v5510, 1
        %v5812 = vsel %vm468, %v5810, %v5811
        %v5813 = vrot.slane %v5511, 1
        %v5814 = vsel %vm468, %v5811, %v5813
        %v5815 = vrot.slane %v5512, 1
        %v5816 = vsel %vm468, %v5813, %v5815
        %v5817 = vrot.slane %v5513, 1
        %v5818 = vsel %vm468, %v5815, %v5817
        %v5819 = vrot.slane %v5514, 1
        %v5820 = vrot.slane %v5515, 1
        %v5821 = vsel %vm468, %v5819, %v5820
        %v5822 = vrot.slane %v5516, 1
        %v5823 = vsel %vm468, %v5820, %v5822
        %v5824 = vrot.slane %v5517, 1
        %v5825 = vsel %vm468, %v5822, %v5824
        %v5826 = vrot.slane %v5518, 1
        %v5827 = vsel %vm468, %v5824, %v5826
        %v5828 = vrot.slane %v5519, 1
        %v5829 = vrot.slane %v5520, 1
        %v5830 = vsel %vm468, %v5828, %v5829
        %v5831 = vrot.slane %v5521, 1
        %v5832 = vsel %vm468, %v5829, %v5831
        %v5833 = vrot.slane %v5522, 1
        %v5834 = vsel %vm468, %v5831, %v5833
        %v5835 = vrot.slane %v5523, 1
        %v5836 = vsel %vm468, %v5833, %v5835
        %v5837 = vrot.slane %v5524, 1
        %v5838 = vrot.slane %v5525, 1
        %v5839 = vsel %vm468, %v5837, %v5838
        %v5840 = vrot.slane %v5526, 1
        %v5841 = vsel %vm468, %v5838, %v5840
        %v5842 = vrot.slane %v5527, 1
        %v5843 = vsel %vm468, %v5840, %v5842
        %v5844 = vrot.slane %v5528, 1
        %v5845 = vsel %vm468, %v5842, %v5844
        %v5846 = vrot.slane %v5529, 1
        %v5847 = vrot.slane %v5530, 1
        %v5848 = vsel %vm468, %v5846, %v5847
        %v5849 = vrot.slane %v5531, 1
        %v5850 = vsel %vm468, %v5847, %v5849
        %v5851 = vrot.slane %v5532, 1
        %v5852 = vsel %vm468, %v5849, %v5851
        %v5853 = vrot.slane %v5533, 1
        %v5854 = vsel %vm468, %v5851, %v5853
        %v5855 = vrot.slane %v5534, 1
        %v5856 = vrot.slane %v5535, 1
        %v5857 = vsel %vm468, %v5855, %v5856
        %v5858 = vrot.slane %v5536, 1
        %v5859 = vsel %vm468, %v5856, %v5858
        %v5860 = vrot.slane %v5537, 1
        %v5861 = vsel %vm468, %v5858, %v5860
        %v5862 = vrot.slane %v5538, 1
        %v5863 = vsel %vm468, %v5860, %v5862
        %v5864 = vld [vmem:[%s541] sm:$0x7]
        %v5865 = vsel %vm214, %v5794, 0
        %v5867 = vsel %vm214, %v5796, 0
        %v5869 = vsel %vm214, %v5798, 0
        %v5871 = vsel %vm214, %v5800, 0
        %v5873 = vsel %vm214, %v5803, 0
        %v5875 = vsel %vm214, %v5805, 0
        %v5877 = vsel %vm214, %v5807, 0
        %v5879 = vsel %vm214, %v5809, 0
        %v5881 = vsel %vm214, %v5812, 0
        %v5883 = vsel %vm214, %v5814, 0
        %v5885 = vsel %vm214, %v5816, 0
        %v5887 = vsel %vm214, %v5818, 0
        %v5889 = vsel %vm214, %v5821, 0
        %v5891 = vsel %vm214, %v5823, 0
        %v5893 = vsel %vm214, %v5825, 0
        %v5895 = vsel %vm214, %v5827, 0
        %v5897 = vsel %vm214, %v5830, 0
        %v5899 = vsel %vm214, %v5832, 0
        %v5901 = vsel %vm214, %v5834, 0
        %v5903 = vsel %vm214, %v5836, 0
        %v5905 = vsel %vm214, %v5839, 0
        %v5907 = vsel %vm214, %v5841, 0
        %v5909 = vsel %vm214, %v5843, 0
        %v5911 = vsel %vm214, %v5845, 0
        %v5913 = vsel %vm214, %v5848, 0
        %v5915 = vsel %vm214, %v5850, 0
        %v5917 = vsel %vm214, %v5852, 0
        %v5919 = vsel %vm214, %v5854, 0
        %v5921 = vsel %vm214, %v5857, 0
        %v5923 = vsel %vm214, %v5859, 0
        %v5925 = vsel %vm214, %v5861, 0
        %v5927 = vsel %vm214, %v5863, 0
        %v5930 = vsel %vm311, %v5864, 0
        %5932 = vmatpush.msra.mxu0 0.0
        %5933 = vmatpush.msra.mxu0 0.0
        %5934 = vmatpush.msra.mxu0 0.0
        %5935 = vmatpush.msra.mxu0 0.0
        %5936 = vmatpush.msra.mxu0 0.0
        %5937 = vmatpush.msra.mxu0 0.0
        %5938 = vmatpush.msra.mxu0 0.0
        %5939 = vmatpush.msra.mxu0 0.0
        %5940 = vmatpush.msra.mxu0 0.0
        %5941 = vmatpush.msra.mxu0 0.0
        %5942 = vmatpush.msra.mxu0 0.0
        %5943 = vmatpush.msra.mxu0 0.0
        %5944 = vmatpush.msra.mxu0 0.0
        %5945 = vmatpush.msra.mxu0 0.0
        %5946 = vmatpush.msra.mxu0 0.0
        %5947 = vmatpush.msra.mxu0 %v5930
        %5948 = vmatmul.f32.gmra.mxu0 %v5865
        %v5949 = vpop.f32.mrf.mxu0
        %v5950 = vadd.f32 0.0, %v5949
        %5951 = vmatmul.f32.gmra.mxu0 %v5867
        %v5952 = vpop.f32.mrf.mxu0
        %v5953 = vadd.f32 0.0, %v5952
        %5954 = vmatmul.f32.gmra.mxu0 %v5869
        %v5955 = vpop.f32.mrf.mxu0
        %v5956 = vadd.f32 0.0, %v5955
        %5957 = vmatmul.f32.gmra.mxu0 %v5871
        %v5958 = vpop.f32.mrf.mxu0
        %v5959 = vadd.f32 0.0, %v5958
        %5960 = vmatmul.f32.gmra.mxu0 %v5873
        %v5961 = vpop.f32.mrf.mxu0
        %v5962 = vadd.f32 0.0, %v5961
        %5963 = vmatmul.f32.gmra.mxu0 %v5875
        %v5964 = vpop.f32.mrf.mxu0
        %v5965 = vadd.f32 0.0, %v5964
        %5966 = vmatmul.f32.gmra.mxu0 %v5877
        %v5967 = vpop.f32.mrf.mxu0
        %v5968 = vadd.f32 0.0, %v5967
        %5969 = vmatmul.f32.gmra.mxu0 %v5879
        %v5970 = vpop.f32.mrf.mxu0
        %v5971 = vadd.f32 0.0, %v5970
        %5972 = vmatmul.f32.gmra.mxu0 %v5881
        %v5973 = vpop.f32.mrf.mxu0
        %v5974 = vadd.f32 0.0, %v5973
        %5975 = vmatmul.f32.gmra.mxu0 %v5883
        %v5976 = vpop.f32.mrf.mxu0
        %v5977 = vadd.f32 0.0, %v5976
        %5978 = vmatmul.f32.gmra.mxu0 %v5885
        %v5979 = vpop.f32.mrf.mxu0
        %v5980 = vadd.f32 0.0, %v5979
        %5981 = vmatmul.f32.gmra.mxu0 %v5887
        %v5982 = vpop.f32.mrf.mxu0
        %v5983 = vadd.f32 0.0, %v5982
        %5984 = vmatmul.f32.gmra.mxu0 %v5889
        %v5985 = vpop.f32.mrf.mxu0
        %v5986 = vadd.f32 0.0, %v5985
        %5987 = vmatmul.f32.gmra.mxu0 %v5891
        %v5988 = vpop.f32.mrf.mxu0
        %v5989 = vadd.f32 0.0, %v5988
        %5990 = vmatmul.f32.gmra.mxu0 %v5893
        %v5991 = vpop.f32.mrf.mxu0
        %v5992 = vadd.f32 0.0, %v5991
        %5993 = vmatmul.f32.gmra.mxu0 %v5895
        %v5994 = vpop.f32.mrf.mxu0
        %v5995 = vadd.f32 0.0, %v5994
        %5996 = vmatmul.f32.gmra.mxu0 %v5897
        %v5997 = vpop.f32.mrf.mxu0
        %v5998 = vadd.f32 0.0, %v5997
        %5999 = vmatmul.f32.gmra.mxu0 %v5899
        %v6000 = vpop.f32.mrf.mxu0
        %v6001 = vadd.f32 0.0, %v6000
        %6002 = vmatmul.f32.gmra.mxu0 %v5901
        %v6003 = vpop.f32.mrf.mxu0
        %v6004 = vadd.f32 0.0, %v6003
        %6005 = vmatmul.f32.gmra.mxu0 %v5903
        %v6006 = vpop.f32.mrf.mxu0
        %v6007 = vadd.f32 0.0, %v6006
        %6008 = vmatmul.f32.gmra.mxu0 %v5905
        %v6009 = vpop.f32.mrf.mxu0
        %v6010 = vadd.f32 0.0, %v6009
        %6011 = vmatmul.f32.gmra.mxu0 %v5907
        %v6012 = vpop.f32.mrf.mxu0
        %v6013 = vadd.f32 0.0, %v6012
        %6014 = vmatmul.f32.gmra.mxu0 %v5909
        %v6015 = vpop.f32.mrf.mxu0
        %v6016 = vadd.f32 0.0, %v6015
        %6017 = vmatmul.f32.gmra.mxu0 %v5911
        %v6018 = vpop.f32.mrf.mxu0
        %v6019 = vadd.f32 0.0, %v6018
        %6020 = vmatmul.f32.gmra.mxu0 %v5913
        %v6021 = vpop.f32.mrf.mxu0
        %v6022 = vadd.f32 0.0, %v6021
        %6023 = vmatmul.f32.gmra.mxu0 %v5915
        %v6024 = vpop.f32.mrf.mxu0
        %v6025 = vadd.f32 0.0, %v6024
        %6026 = vmatmul.f32.gmra.mxu0 %v5917
        %v6027 = vpop.f32.mrf.mxu0
        %v6028 = vadd.f32 0.0, %v6027
        %6029 = vmatmul.f32.gmra.mxu0 %v5919
        %v6030 = vpop.f32.mrf.mxu0
        %v6031 = vadd.f32 0.0, %v6030
        %6032 = vmatmul.f32.gmra.mxu0 %v5921
        %v6033 = vpop.f32.mrf.mxu0
        %v6034 = vadd.f32 0.0, %v6033
        %6035 = vmatmul.f32.gmra.mxu0 %v5923
        %v6036 = vpop.f32.mrf.mxu0
        %v6037 = vadd.f32 0.0, %v6036
        %6038 = vmatmul.f32.gmra.mxu0 %v5925
        %v6039 = vpop.f32.mrf.mxu0
        %v6040 = vadd.f32 0.0, %v6039
        %6041 = vmatmul.f32.gmra.mxu0 %v5927
        %v6042 = vpop.f32.mrf.mxu0
        %v6043 = vadd.f32 0.0, %v6042
        %6044 = vdwg.mxu0
        %v6045 = vadd.f32 %v5752, %v5950
        %v6046 = vadd.f32 %v5753, %v5953
        %v6047 = vadd.f32 %v5754, %v5956
        %v6048 = vadd.f32 %v5755, %v5959
        %v6049 = vadd.f32 %v5756, %v5962
        %v6050 = vadd.f32 %v5757, %v5965
        %v6051 = vadd.f32 %v5758, %v5968
        %v6052 = vadd.f32 %v5759, %v5971
        %v6053 = vadd.f32 %v5760, %v5974
        %v6054 = vadd.f32 %v5761, %v5977
        %v6055 = vadd.f32 %v5762, %v5980
        %v6056 = vadd.f32 %v5763, %v5983
        %v6057 = vadd.f32 %v5764, %v5986
        %v6058 = vadd.f32 %v5765, %v5989
        %v6059 = vadd.f32 %v5766, %v5992
        %v6060 = vadd.f32 %v5767, %v5995
        %v6061 = vadd.f32 %v5768, %v5998
        %v6062 = vadd.f32 %v5769, %v6001
        %v6063 = vadd.f32 %v5770, %v6004
        %v6064 = vadd.f32 %v5771, %v6007
        %v6065 = vadd.f32 %v5772, %v6010
        %v6066 = vadd.f32 %v5773, %v6013
        %v6067 = vadd.f32 %v5774, %v6016
        %v6068 = vadd.f32 %v5775, %v6019
        %v6069 = vadd.f32 %v5776, %v6022
        %v6070 = vadd.f32 %v5777, %v6025
        %v6071 = vadd.f32 %v5778, %v6028
        %v6072 = vadd.f32 %v5779, %v6031
        %v6073 = vadd.f32 %v5780, %v6034
        %v6074 = vadd.f32 %v5781, %v6037
        %v6075 = vadd.f32 %v5782, %v6040
        %v6076 = vadd.f32 %v5783, %v6043
        %v6077 = vrot.slane %v5499, 2
        %v6078 = vrot.slane %v5500, 2
        %v6079 = vsel %vm755, %v6077, %v6078
        %v6080 = vrot.slane %v5501, 2
        %v6081 = vsel %vm755, %v6078, %v6080
        %v6082 = vrot.slane %v5502, 2
        %v6083 = vsel %vm755, %v6080, %v6082
        %v6084 = vrot.slane %v5503, 2
        %v6085 = vsel %vm755, %v6082, %v6084
        %v6086 = vrot.slane %v5504, 2
        %v6087 = vrot.slane %v5505, 2
        %v6088 = vsel %vm755, %v6086, %v6087
        %v6089 = vrot.slane %v5506, 2
        %v6090 = vsel %vm755, %v6087, %v6089
        %v6091 = vrot.slane %v5507, 2
        %v6092 = vsel %vm755, %v6089, %v6091
        %v6093 = vrot.slane %v5508, 2
        %v6094 = vsel %vm755, %v6091, %v6093
        %v6095 = vrot.slane %v5509, 2
        %v6096 = vrot.slane %v5510, 2
        %v6097 = vsel %vm755, %v6095, %v6096
        %v6098 = vrot.slane %v5511, 2
        %v6099 = vsel %vm755, %v6096, %v6098
        %v6100 = vrot.slane %v5512, 2
        %v6101 = vsel %vm755, %v6098, %v6100
        %v6102 = vrot.slane %v5513, 2
        %v6103 = vsel %vm755, %v6100, %v6102
        %v6104 = vrot.slane %v5514, 2
        %v6105 = vrot.slane %v5515, 2
        %v6106 = vsel %vm755, %v6104, %v6105
        %v6107 = vrot.slane %v5516, 2
        %v6108 = vsel %vm755, %v6105, %v6107
        %v6109 = vrot.slane %v5517, 2
        %v6110 = vsel %vm755, %v6107, %v6109
        %v6111 = vrot.slane %v5518, 2
        %v6112 = vsel %vm755, %v6109, %v6111
        %v6113 = vrot.slane %v5519, 2
        %v6114 = vrot.slane %v5520, 2
        %v6115 = vsel %vm755, %v6113, %v6114
        %v6116 = vrot.slane %v5521, 2
        %v6117 = vsel %vm755, %v6114, %v6116
        %v6118 = vrot.slane %v5522, 2
        %v6119 = vsel %vm755, %v6116, %v6118
        %v6120 = vrot.slane %v5523, 2
        %v6121 = vsel %vm755, %v6118, %v6120
        %v6122 = vrot.slane %v5524, 2
        %v6123 = vrot.slane %v5525, 2
        %v6124 = vsel %vm755, %v6122, %v6123
        %v6125 = vrot.slane %v5526, 2
        %v6126 = vsel %vm755, %v6123, %v6125
        %v6127 = vrot.slane %v5527, 2
        %v6128 = vsel %vm755, %v6125, %v6127
        %v6129 = vrot.slane %v5528, 2
        %v6130 = vsel %vm755, %v6127, %v6129
        %v6131 = vrot.slane %v5529, 2
        %v6132 = vrot.slane %v5530, 2
        %v6133 = vsel %vm755, %v6131, %v6132
        %v6134 = vrot.slane %v5531, 2
        %v6135 = vsel %vm755, %v6132, %v6134
        %v6136 = vrot.slane %v5532, 2
        %v6137 = vsel %vm755, %v6134, %v6136
        %v6138 = vrot.slane %v5533, 2
        %v6139 = vsel %vm755, %v6136, %v6138
        %v6140 = vrot.slane %v5534, 2
        %v6141 = vrot.slane %v5535, 2
        %v6142 = vsel %vm755, %v6140, %v6141
        %v6143 = vrot.slane %v5536, 2
        %v6144 = vsel %vm755, %v6141, %v6143
        %v6145 = vrot.slane %v5537, 2
        %v6146 = vsel %vm755, %v6143, %v6145
        %v6147 = vrot.slane %v5538, 2
        %v6148 = vsel %vm755, %v6145, %v6147
        %v6149 = vld [vmem:[%s828] sm:$0x7]
        %v6150 = vsel %vm214, %v6079, 0
        %v6152 = vsel %vm214, %v6081, 0
        %v6154 = vsel %vm214, %v6083, 0
        %v6156 = vsel %vm214, %v6085, 0
        %v6158 = vsel %vm214, %v6088, 0
        %v6160 = vsel %vm214, %v6090, 0
        %v6162 = vsel %vm214, %v6092, 0
        %v6164 = vsel %vm214, %v6094, 0
        %v6166 = vsel %vm214, %v6097, 0
        %v6168 = vsel %vm214, %v6099, 0
        %v6170 = vsel %vm214, %v6101, 0
        %v6172 = vsel %vm214, %v6103, 0
        %v6174 = vsel %vm214, %v6106, 0
        %v6176 = vsel %vm214, %v6108, 0
        %v6178 = vsel %vm214, %v6110, 0
        %v6180 = vsel %vm214, %v6112, 0
        %v6182 = vsel %vm214, %v6115, 0
        %v6184 = vsel %vm214, %v6117, 0
        %v6186 = vsel %vm214, %v6119, 0
        %v6188 = vsel %vm214, %v6121, 0
        %v6190 = vsel %vm214, %v6124, 0
        %v6192 = vsel %vm214, %v6126, 0
        %v6194 = vsel %vm214, %v6128, 0
        %v6196 = vsel %vm214, %v6130, 0
        %v6198 = vsel %vm214, %v6133, 0
        %v6200 = vsel %vm214, %v6135, 0
        %v6202 = vsel %vm214, %v6137, 0
        %v6204 = vsel %vm214, %v6139, 0
        %v6206 = vsel %vm214, %v6142, 0
        %v6208 = vsel %vm214, %v6144, 0
        %v6210 = vsel %vm214, %v6146, 0
        %v6212 = vsel %vm214, %v6148, 0
        %v6215 = vsel %vm311, %v6149, 0
        %6217 = vmatpush.msra.mxu0 0.0
        %6218 = vmatpush.msra.mxu0 0.0
        %6219 = vmatpush.msra.mxu0 0.0
        %6220 = vmatpush.msra.mxu0 0.0
        %6221 = vmatpush.msra.mxu0 0.0
        %6222 = vmatpush.msra.mxu0 0.0
        %6223 = vmatpush.msra.mxu0 0.0
        %6224 = vmatpush.msra.mxu0 0.0
        %6225 = vmatpush.msra.mxu0 0.0
        %6226 = vmatpush.msra.mxu0 0.0
        %6227 = vmatpush.msra.mxu0 0.0
        %6228 = vmatpush.msra.mxu0 0.0
        %6229 = vmatpush.msra.mxu0 0.0
        %6230 = vmatpush.msra.mxu0 0.0
        %6231 = vmatpush.msra.mxu0 0.0
        %6232 = vmatpush.msra.mxu0 %v6215
        %6233 = vmatmul.f32.gmra.mxu0 %v6150
        %v6234 = vpop.f32.mrf.mxu0
        %v6235 = vadd.f32 0.0, %v6234
        %6236 = vmatmul.f32.gmra.mxu0 %v6152
        %v6237 = vpop.f32.mrf.mxu0
        %v6238 = vadd.f32 0.0, %v6237
        %6239 = vmatmul.f32.gmra.mxu0 %v6154
        %v6240 = vpop.f32.mrf.mxu0
        %v6241 = vadd.f32 0.0, %v6240
        %6242 = vmatmul.f32.gmra.mxu0 %v6156
        %v6243 = vpop.f32.mrf.mxu0
        %v6244 = vadd.f32 0.0, %v6243
        %6245 = vmatmul.f32.gmra.mxu0 %v6158
        %v6246 = vpop.f32.mrf.mxu0
        %v6247 = vadd.f32 0.0, %v6246
        %6248 = vmatmul.f32.gmra.mxu0 %v6160
        %v6249 = vpop.f32.mrf.mxu0
        %v6250 = vadd.f32 0.0, %v6249
        %6251 = vmatmul.f32.gmra.mxu0 %v6162
        %v6252 = vpop.f32.mrf.mxu0
        %v6253 = vadd.f32 0.0, %v6252
        %6254 = vmatmul.f32.gmra.mxu0 %v6164
        %v6255 = vpop.f32.mrf.mxu0
        %v6256 = vadd.f32 0.0, %v6255
        %6257 = vmatmul.f32.gmra.mxu0 %v6166
        %v6258 = vpop.f32.mrf.mxu0
        %v6259 = vadd.f32 0.0, %v6258
        %6260 = vmatmul.f32.gmra.mxu0 %v6168
        %v6261 = vpop.f32.mrf.mxu0
        %v6262 = vadd.f32 0.0, %v6261
        %6263 = vmatmul.f32.gmra.mxu0 %v6170
        %v6264 = vpop.f32.mrf.mxu0
        %v6265 = vadd.f32 0.0, %v6264
        %6266 = vmatmul.f32.gmra.mxu0 %v6172
        %v6267 = vpop.f32.mrf.mxu0
        %v6268 = vadd.f32 0.0, %v6267
        %6269 = vmatmul.f32.gmra.mxu0 %v6174
        %v6270 = vpop.f32.mrf.mxu0
        %v6271 = vadd.f32 0.0, %v6270
        %6272 = vmatmul.f32.gmra.mxu0 %v6176
        %v6273 = vpop.f32.mrf.mxu0
        %v6274 = vadd.f32 0.0, %v6273
        %6275 = vmatmul.f32.gmra.mxu0 %v6178
        %v6276 = vpop.f32.mrf.mxu0
        %v6277 = vadd.f32 0.0, %v6276
        %6278 = vmatmul.f32.gmra.mxu0 %v6180
        %v6279 = vpop.f32.mrf.mxu0
        %v6280 = vadd.f32 0.0, %v6279
        %6281 = vmatmul.f32.gmra.mxu0 %v6182
        %v6282 = vpop.f32.mrf.mxu0
        %v6283 = vadd.f32 0.0, %v6282
        %6284 = vmatmul.f32.gmra.mxu0 %v6184
        %v6285 = vpop.f32.mrf.mxu0
        %v6286 = vadd.f32 0.0, %v6285
        %6287 = vmatmul.f32.gmra.mxu0 %v6186
        %v6288 = vpop.f32.mrf.mxu0
        %v6289 = vadd.f32 0.0, %v6288
        %6290 = vmatmul.f32.gmra.mxu0 %v6188
        %v6291 = vpop.f32.mrf.mxu0
        %v6292 = vadd.f32 0.0, %v6291
        %6293 = vmatmul.f32.gmra.mxu0 %v6190
        %v6294 = vpop.f32.mrf.mxu0
        %v6295 = vadd.f32 0.0, %v6294
        %6296 = vmatmul.f32.gmra.mxu0 %v6192
        %v6297 = vpop.f32.mrf.mxu0
        %v6298 = vadd.f32 0.0, %v6297
        %6299 = vmatmul.f32.gmra.mxu0 %v6194
        %v6300 = vpop.f32.mrf.mxu0
        %v6301 = vadd.f32 0.0, %v6300
        %6302 = vmatmul.f32.gmra.mxu0 %v6196
        %v6303 = vpop.f32.mrf.mxu0
        %v6304 = vadd.f32 0.0, %v6303
        %6305 = vmatmul.f32.gmra.mxu0 %v6198
        %v6306 = vpop.f32.mrf.mxu0
        %v6307 = vadd.f32 0.0, %v6306
        %6308 = vmatmul.f32.gmra.mxu0 %v6200
        %v6309 = vpop.f32.mrf.mxu0
        %v6310 = vadd.f32 0.0, %v6309
        %6311 = vmatmul.f32.gmra.mxu0 %v6202
        %v6312 = vpop.f32.mrf.mxu0
        %v6313 = vadd.f32 0.0, %v6312
        %6314 = vmatmul.f32.gmra.mxu0 %v6204
        %v6315 = vpop.f32.mrf.mxu0
        %v6316 = vadd.f32 0.0, %v6315
        %6317 = vmatmul.f32.gmra.mxu0 %v6206
        %v6318 = vpop.f32.mrf.mxu0
        %v6319 = vadd.f32 0.0, %v6318
        %6320 = vmatmul.f32.gmra.mxu0 %v6208
        %v6321 = vpop.f32.mrf.mxu0
        %v6322 = vadd.f32 0.0, %v6321
        %6323 = vmatmul.f32.gmra.mxu0 %v6210
        %v6324 = vpop.f32.mrf.mxu0
        %v6325 = vadd.f32 0.0, %v6324
        %6326 = vmatmul.f32.gmra.mxu0 %v6212
        %v6327 = vpop.f32.mrf.mxu0
        %v6328 = vadd.f32 0.0, %v6327
        %6329 = vdwg.mxu0
        %v6330 = vadd.f32 %v6045, %v6235
        %v6331 = vadd.f32 %v6046, %v6238
        %v6332 = vadd.f32 %v6047, %v6241
        %v6333 = vadd.f32 %v6048, %v6244
        %v6334 = vadd.f32 %v6049, %v6247
        %v6335 = vadd.f32 %v6050, %v6250
        %v6336 = vadd.f32 %v6051, %v6253
        %v6337 = vadd.f32 %v6052, %v6256
        %v6338 = vadd.f32 %v6053, %v6259
        %v6339 = vadd.f32 %v6054, %v6262
        %v6340 = vadd.f32 %v6055, %v6265
        %v6341 = vadd.f32 %v6056, %v6268
        %v6342 = vadd.f32 %v6057, %v6271
        %v6343 = vadd.f32 %v6058, %v6274
        %v6344 = vadd.f32 %v6059, %v6277
        %v6345 = vadd.f32 %v6060, %v6280
        %v6346 = vadd.f32 %v6061, %v6283
        %v6347 = vadd.f32 %v6062, %v6286
        %v6348 = vadd.f32 %v6063, %v6289
        %v6349 = vadd.f32 %v6064, %v6292
        %v6350 = vadd.f32 %v6065, %v6295
        %v6351 = vadd.f32 %v6066, %v6298
        %v6352 = vadd.f32 %v6067, %v6301
        %v6353 = vadd.f32 %v6068, %v6304
        %v6354 = vadd.f32 %v6069, %v6307
        %v6355 = vadd.f32 %v6070, %v6310
        %v6356 = vadd.f32 %v6071, %v6313
        %v6357 = vadd.f32 %v6072, %v6316
        %v6358 = vadd.f32 %v6073, %v6319
        %v6359 = vadd.f32 %v6074, %v6322
        %v6360 = vadd.f32 %v6075, %v6325
        %v6361 = vadd.f32 %v6076, %v6328
        %s6362 = scalar_lea.vmem %s168, 680
        %v6363 = vld [vmem:[%s6362] sm:$0xff]
        %v6364 = vld [vmem:[%s6362 + $0x8] sm:$0xff]
        %v6365 = vld [vmem:[%s6362 + $0x10] sm:$0xff]
        %v6366 = vld [vmem:[%s6362 + $0x18] sm:$0xff]
        %v6367 = vld [vmem:[%s6362 + $0x20] sm:$0x3]
        %v6368 = vld [vmem:[%s6362 + $0x28] sm:$0xff]
        %v6369 = vld [vmem:[%s6362 + $0x30] sm:$0xff]
        %v6370 = vld [vmem:[%s6362 + $0x38] sm:$0xff]
        %v6371 = vld [vmem:[%s6362 + $0x40] sm:$0xff]
        %v6372 = vld [vmem:[%s6362 + $0x48] sm:$0x3]
        %v6373 = vld [vmem:[%s6362 + $0x50] sm:$0xff]
        %v6374 = vld [vmem:[%s6362 + $0x58] sm:$0xff]
        %v6375 = vld [vmem:[%s6362 + $0x60] sm:$0xff]
        %v6376 = vld [vmem:[%s6362 + $0x68] sm:$0xff]
        %v6377 = vld [vmem:[%s6362 + $0x70] sm:$0x3]
        %v6378 = vld [vmem:[%s6362 + $0x78] sm:$0xff]
        %v6379 = vld [vmem:[%s6362 + $0x80] sm:$0xff]
        %v6380 = vld [vmem:[%s6362 + $0x88] sm:$0xff]
        %v6381 = vld [vmem:[%s6362 + $0x90] sm:$0xff]
        %v6382 = vld [vmem:[%s6362 + $0x98] sm:$0x3]
        %v6383 = vld [vmem:[%s6362 + $0xa0] sm:$0xff]
        %v6384 = vld [vmem:[%s6362 + $0xa8] sm:$0xff]
        %v6385 = vld [vmem:[%s6362 + $0xb0] sm:$0xff]
        %v6386 = vld [vmem:[%s6362 + $0xb8] sm:$0xff]
        %v6387 = vld [vmem:[%s6362 + $0xc0] sm:$0x3]
        %v6388 = vld [vmem:[%s6362 + $0xc8] sm:$0xff]
        %v6389 = vld [vmem:[%s6362 + $0xd0] sm:$0xff]
        %v6390 = vld [vmem:[%s6362 + $0xd8] sm:$0xff]
        %v6391 = vld [vmem:[%s6362 + $0xe0] sm:$0xff]
        %v6392 = vld [vmem:[%s6362 + $0xe8] sm:$0x3]
        %v6393 = vld [vmem:[%s6362 + $0xf0] sm:$0xff]
        %v6394 = vld [vmem:[%s6362 + $0xf8] sm:$0xff]
        %v6395 = vld [vmem:[%s6362 + $0x100] sm:$0xff]
        %v6396 = vld [vmem:[%s6362 + $0x108] sm:$0xff]
        %v6397 = vld [vmem:[%s6362 + $0x110] sm:$0x3]
        %v6398 = vld [vmem:[%s6362 + $0x118] sm:$0xff]
        %v6399 = vld [vmem:[%s6362 + $0x120] sm:$0xff]
        %v6400 = vld [vmem:[%s6362 + $0x128] sm:$0xff]
        %v6401 = vld [vmem:[%s6362 + $0x130] sm:$0xff]
        %v6402 = vld [vmem:[%s6362 + $0x138] sm:$0x3]
        %v6403 = vld [vmem:[%s1083] sm:$0x7]
        %v6405 = vsel %vm214, %v6363, 0
        %v6408 = vsel %vm214, %v6364, 0
        %v6411 = vsel %vm214, %v6365, 0
        %v6414 = vsel %vm214, %v6366, 0
        %v6417 = vsel %vm214, %v6368, 0
        %v6420 = vsel %vm214, %v6369, 0
        %v6423 = vsel %vm214, %v6370, 0
        %v6426 = vsel %vm214, %v6371, 0
        %v6429 = vsel %vm214, %v6373, 0
        %v6432 = vsel %vm214, %v6374, 0
        %v6435 = vsel %vm214, %v6375, 0
        %v6438 = vsel %vm214, %v6376, 0
        %v6441 = vsel %vm214, %v6378, 0
        %v6444 = vsel %vm214, %v6379, 0
        %v6447 = vsel %vm214, %v6380, 0
        %v6450 = vsel %vm214, %v6381, 0
        %v6453 = vsel %vm214, %v6383, 0
        %v6456 = vsel %vm214, %v6384, 0
        %v6459 = vsel %vm214, %v6385, 0
        %v6462 = vsel %vm214, %v6386, 0
        %v6465 = vsel %vm214, %v6388, 0
        %v6468 = vsel %vm214, %v6389, 0
        %v6471 = vsel %vm214, %v6390, 0
        %v6474 = vsel %vm214, %v6391, 0
        %v6477 = vsel %vm214, %v6393, 0
        %v6480 = vsel %vm214, %v6394, 0
        %v6483 = vsel %vm214, %v6395, 0
        %v6486 = vsel %vm214, %v6396, 0
        %v6489 = vsel %vm214, %v6398, 0
        %v6492 = vsel %vm214, %v6399, 0
        %v6495 = vsel %vm214, %v6400, 0
        %v6498 = vsel %vm214, %v6401, 0
        %v6501 = vsel %vm311, %v6403, 0
        %6503 = vmatpush.msra.mxu0 0.0
        %6504 = vmatpush.msra.mxu0 0.0
        %6505 = vmatpush.msra.mxu0 0.0
        %6506 = vmatpush.msra.mxu0 0.0
        %6507 = vmatpush.msra.mxu0 0.0
        %6508 = vmatpush.msra.mxu0 0.0
        %6509 = vmatpush.msra.mxu0 0.0
        %6510 = vmatpush.msra.mxu0 0.0
        %6511 = vmatpush.msra.mxu0 0.0
        %6512 = vmatpush.msra.mxu0 0.0
        %6513 = vmatpush.msra.mxu0 0.0
        %6514 = vmatpush.msra.mxu0 0.0
        %6515 = vmatpush.msra.mxu0 0.0
        %6516 = vmatpush.msra.mxu0 0.0
        %6517 = vmatpush.msra.mxu0 0.0
        %6518 = vmatpush.msra.mxu0 %v6501
        %6519 = vmatmul.f32.gmra.mxu0 %v6405
        %v6520 = vpop.f32.mrf.mxu0
        %v6521 = vadd.f32 0.0, %v6520
        %6522 = vmatmul.f32.gmra.mxu0 %v6408
        %v6523 = vpop.f32.mrf.mxu0
        %v6524 = vadd.f32 0.0, %v6523
        %6525 = vmatmul.f32.gmra.mxu0 %v6411
        %v6526 = vpop.f32.mrf.mxu0
        %v6527 = vadd.f32 0.0, %v6526
        %6528 = vmatmul.f32.gmra.mxu0 %v6414
        %v6529 = vpop.f32.mrf.mxu0
        %v6530 = vadd.f32 0.0, %v6529
        %6531 = vmatmul.f32.gmra.mxu0 %v6417
        %v6532 = vpop.f32.mrf.mxu0
        %v6533 = vadd.f32 0.0, %v6532
        %6534 = vmatmul.f32.gmra.mxu0 %v6420
        %v6535 = vpop.f32.mrf.mxu0
        %v6536 = vadd.f32 0.0, %v6535
        %6537 = vmatmul.f32.gmra.mxu0 %v6423
        %v6538 = vpop.f32.mrf.mxu0
        %v6539 = vadd.f32 0.0, %v6538
        %6540 = vmatmul.f32.gmra.mxu0 %v6426
        %v6541 = vpop.f32.mrf.mxu0
        %v6542 = vadd.f32 0.0, %v6541
        %6543 = vmatmul.f32.gmra.mxu0 %v6429
        %v6544 = vpop.f32.mrf.mxu0
        %v6545 = vadd.f32 0.0, %v6544
        %6546 = vmatmul.f32.gmra.mxu0 %v6432
        %v6547 = vpop.f32.mrf.mxu0
        %v6548 = vadd.f32 0.0, %v6547
        %6549 = vmatmul.f32.gmra.mxu0 %v6435
        %v6550 = vpop.f32.mrf.mxu0
        %v6551 = vadd.f32 0.0, %v6550
        %6552 = vmatmul.f32.gmra.mxu0 %v6438
        %v6553 = vpop.f32.mrf.mxu0
        %v6554 = vadd.f32 0.0, %v6553
        %6555 = vmatmul.f32.gmra.mxu0 %v6441
        %v6556 = vpop.f32.mrf.mxu0
        %v6557 = vadd.f32 0.0, %v6556
        %6558 = vmatmul.f32.gmra.mxu0 %v6444
        %v6559 = vpop.f32.mrf.mxu0
        %v6560 = vadd.f32 0.0, %v6559
        %6561 = vmatmul.f32.gmra.mxu0 %v6447
        %v6562 = vpop.f32.mrf.mxu0
        %v6563 = vadd.f32 0.0, %v6562
        %6564 = vmatmul.f32.gmra.mxu0 %v6450
        %v6565 = vpop.f32.mrf.mxu0
        %v6566 = vadd.f32 0.0, %v6565
        %6567 = vmatmul.f32.gmra.mxu0 %v6453
        %v6568 = vpop.f32.mrf.mxu0
        %v6569 = vadd.f32 0.0, %v6568
        %6570 = vmatmul.f32.gmra.mxu0 %v6456
        %v6571 = vpop.f32.mrf.mxu0
        %v6572 = vadd.f32 0.0, %v6571
        %6573 = vmatmul.f32.gmra.mxu0 %v6459
        %v6574 = vpop.f32.mrf.mxu0
        %v6575 = vadd.f32 0.0, %v6574
        %6576 = vmatmul.f32.gmra.mxu0 %v6462
        %v6577 = vpop.f32.mrf.mxu0
        %v6578 = vadd.f32 0.0, %v6577
        %6579 = vmatmul.f32.gmra.mxu0 %v6465
        %v6580 = vpop.f32.mrf.mxu0
        %v6581 = vadd.f32 0.0, %v6580
        %6582 = vmatmul.f32.gmra.mxu0 %v6468
        %v6583 = vpop.f32.mrf.mxu0
        %v6584 = vadd.f32 0.0, %v6583
        %6585 = vmatmul.f32.gmra.mxu0 %v6471
        %v6586 = vpop.f32.mrf.mxu0
        %v6587 = vadd.f32 0.0, %v6586
        %6588 = vmatmul.f32.gmra.mxu0 %v6474
        %v6589 = vpop.f32.mrf.mxu0
        %v6590 = vadd.f32 0.0, %v6589
        %6591 = vmatmul.f32.gmra.mxu0 %v6477
        %v6592 = vpop.f32.mrf.mxu0
        %v6593 = vadd.f32 0.0, %v6592
        %6594 = vmatmul.f32.gmra.mxu0 %v6480
        %v6595 = vpop.f32.mrf.mxu0
        %v6596 = vadd.f32 0.0, %v6595
        %6597 = vmatmul.f32.gmra.mxu0 %v6483
        %v6598 = vpop.f32.mrf.mxu0
        %v6599 = vadd.f32 0.0, %v6598
        %6600 = vmatmul.f32.gmra.mxu0 %v6486
        %v6601 = vpop.f32.mrf.mxu0
        %v6602 = vadd.f32 0.0, %v6601
        %6603 = vmatmul.f32.gmra.mxu0 %v6489
        %v6604 = vpop.f32.mrf.mxu0
        %v6605 = vadd.f32 0.0, %v6604
        %6606 = vmatmul.f32.gmra.mxu0 %v6492
        %v6607 = vpop.f32.mrf.mxu0
        %v6608 = vadd.f32 0.0, %v6607
        %6609 = vmatmul.f32.gmra.mxu0 %v6495
        %v6610 = vpop.f32.mrf.mxu0
        %v6611 = vadd.f32 0.0, %v6610
        %6612 = vmatmul.f32.gmra.mxu0 %v6498
        %v6613 = vpop.f32.mrf.mxu0
        %v6614 = vadd.f32 0.0, %v6613
        %6615 = vdwg.mxu0
        %v6616 = vadd.f32 %v6330, %v6521
        %v6617 = vadd.f32 %v6331, %v6524
        %v6618 = vadd.f32 %v6332, %v6527
        %v6619 = vadd.f32 %v6333, %v6530
        %v6620 = vadd.f32 %v6334, %v6533
        %v6621 = vadd.f32 %v6335, %v6536
        %v6622 = vadd.f32 %v6336, %v6539
        %v6623 = vadd.f32 %v6337, %v6542
        %v6624 = vadd.f32 %v6338, %v6545
        %v6625 = vadd.f32 %v6339, %v6548
        %v6626 = vadd.f32 %v6340, %v6551
        %v6627 = vadd.f32 %v6341, %v6554
        %v6628 = vadd.f32 %v6342, %v6557
        %v6629 = vadd.f32 %v6343, %v6560
        %v6630 = vadd.f32 %v6344, %v6563
        %v6631 = vadd.f32 %v6345, %v6566
        %v6632 = vadd.f32 %v6346, %v6569
        %v6633 = vadd.f32 %v6347, %v6572
        %v6634 = vadd.f32 %v6348, %v6575
        %v6635 = vadd.f32 %v6349, %v6578
        %v6636 = vadd.f32 %v6350, %v6581
        %v6637 = vadd.f32 %v6351, %v6584
        %v6638 = vadd.f32 %v6352, %v6587
        %v6639 = vadd.f32 %v6353, %v6590
        %v6640 = vadd.f32 %v6354, %v6593
        %v6641 = vadd.f32 %v6355, %v6596
        %v6642 = vadd.f32 %v6356, %v6599
        %v6643 = vadd.f32 %v6357, %v6602
        %v6644 = vadd.f32 %v6358, %v6605
        %v6645 = vadd.f32 %v6359, %v6608
        %v6646 = vadd.f32 %v6360, %v6611
        %v6647 = vadd.f32 %v6361, %v6614
        %v6656 = vrot.slane %v6363, 1
        %v6657 = vrot.slane %v6364, 1
        %v6658 = vsel %vm468, %v6656, %v6657
        %v6659 = vrot.slane %v6365, 1
        %v6660 = vsel %vm468, %v6657, %v6659
        %v6661 = vrot.slane %v6366, 1
        %v6662 = vsel %vm468, %v6659, %v6661
        %v6663 = vrot.slane %v6367, 1
        %v6664 = vsel %vm468, %v6661, %v6663
        %v6665 = vrot.slane %v6368, 1
        %v6666 = vrot.slane %v6369, 1
        %v6667 = vsel %vm468, %v6665, %v6666
        %v6668 = vrot.slane %v6370, 1
        %v6669 = vsel %vm468, %v6666, %v6668
        %v6670 = vrot.slane %v6371, 1
        %v6671 = vsel %vm468, %v6668, %v6670
        %v6672 = vrot.slane %v6372, 1
        %v6673 = vsel %vm468, %v6670, %v6672
        %v6674 = vrot.slane %v6373, 1
        %v6675 = vrot.slane %v6374, 1
        %v6676 = vsel %vm468, %v6674, %v6675
        %v6677 = vrot.slane %v6375, 1
        %v6678 = vsel %vm468, %v6675, %v6677
        %v6679 = vrot.slane %v6376, 1
        %v6680 = vsel %vm468, %v6677, %v6679
        %v6681 = vrot.slane %v6377, 1
        %v6682 = vsel %vm468, %v6679, %v6681
        %v6683 = vrot.slane %v6378, 1
        %v6684 = vrot.slane %v6379, 1
        %v6685 = vsel %vm468, %v6683, %v6684
        %v6686 = vrot.slane %v6380, 1
        %v6687 = vsel %vm468, %v6684, %v6686
        %v6688 = vrot.slane %v6381, 1
        %v6689 = vsel %vm468, %v6686, %v6688
        %v6690 = vrot.slane %v6382, 1
        %v6691 = vsel %vm468, %v6688, %v6690
        %v6692 = vrot.slane %v6383, 1
        %v6693 = vrot.slane %v6384, 1
        %v6694 = vsel %vm468, %v6692, %v6693
        %v6695 = vrot.slane %v6385, 1
        %v6696 = vsel %vm468, %v6693, %v6695
        %v6697 = vrot.slane %v6386, 1
        %v6698 = vsel %vm468, %v6695, %v6697
        %v6699 = vrot.slane %v6387, 1
        %v6700 = vsel %vm468, %v6697, %v6699
        %v6701 = vrot.slane %v6388, 1
        %v6702 = vrot.slane %v6389, 1
        %v6703 = vsel %vm468, %v6701, %v6702
        %v6704 = vrot.slane %v6390, 1
        %v6705 = vsel %vm468, %v6702, %v6704
        %v6706 = vrot.slane %v6391, 1
        %v6707 = vsel %vm468, %v6704, %v6706
        %v6708 = vrot.slane %v6392, 1
        %v6709 = vsel %vm468, %v6706, %v6708
        %v6710 = vrot.slane %v6393, 1
        %v6711 = vrot.slane %v6394, 1
        %v6712 = vsel %vm468, %v6710, %v6711
        %v6713 = vrot.slane %v6395, 1
        %v6714 = vsel %vm468, %v6711, %v6713
        %v6715 = vrot.slane %v6396, 1
        %v6716 = vsel %vm468, %v6713, %v6715
        %v6717 = vrot.slane %v6397, 1
        %v6718 = vsel %vm468, %v6715, %v6717
        %v6719 = vrot.slane %v6398, 1
        %v6720 = vrot.slane %v6399, 1
        %v6721 = vsel %vm468, %v6719, %v6720
        %v6722 = vrot.slane %v6400, 1
        %v6723 = vsel %vm468, %v6720, %v6722
        %v6724 = vrot.slane %v6401, 1
        %v6725 = vsel %vm468, %v6722, %v6724
        %v6726 = vrot.slane %v6402, 1
        %v6727 = vsel %vm468, %v6724, %v6726
        %v6728 = vld [vmem:[%s1409] sm:$0x7]
        %v6729 = vsel %vm214, %v6658, 0
        %v6731 = vsel %vm214, %v6660, 0
        %v6733 = vsel %vm214, %v6662, 0
        %v6735 = vsel %vm214, %v6664, 0
        %v6737 = vsel %vm214, %v6667, 0
        %v6739 = vsel %vm214, %v6669, 0
        %v6741 = vsel %vm214, %v6671, 0
        %v6743 = vsel %vm214, %v6673, 0
        %v6745 = vsel %vm214, %v6676, 0
        %v6747 = vsel %vm214, %v6678, 0
        %v6749 = vsel %vm214, %v6680, 0
        %v6751 = vsel %vm214, %v6682, 0
        %v6753 = vsel %vm214, %v6685, 0
        %v6755 = vsel %vm214, %v6687, 0
        %v6757 = vsel %vm214, %v6689, 0
        %v6759 = vsel %vm214, %v6691, 0
        %v6761 = vsel %vm214, %v6694, 0
        %v6763 = vsel %vm214, %v6696, 0
        %v6765 = vsel %vm214, %v6698, 0
        %v6767 = vsel %vm214, %v6700, 0
        %v6769 = vsel %vm214, %v6703, 0
        %v6771 = vsel %vm214, %v6705, 0
        %v6773 = vsel %vm214, %v6707, 0
        %v6775 = vsel %vm214, %v6709, 0
        %v6777 = vsel %vm214, %v6712, 0
        %v6779 = vsel %vm214, %v6714, 0
        %v6781 = vsel %vm214, %v6716, 0
        %v6783 = vsel %vm214, %v6718, 0
        %v6785 = vsel %vm214, %v6721, 0
        %v6787 = vsel %vm214, %v6723, 0
        %v6789 = vsel %vm214, %v6725, 0
        %v6791 = vsel %vm214, %v6727, 0
        %v6794 = vsel %vm311, %v6728, 0
        %6796 = vmatpush.msra.mxu0 0.0
        %6797 = vmatpush.msra.mxu0 0.0
        %6798 = vmatpush.msra.mxu0 0.0
        %6799 = vmatpush.msra.mxu0 0.0
        %6800 = vmatpush.msra.mxu0 0.0
        %6801 = vmatpush.msra.mxu0 0.0
        %6802 = vmatpush.msra.mxu0 0.0
        %6803 = vmatpush.msra.mxu0 0.0
        %6804 = vmatpush.msra.mxu0 0.0
        %6805 = vmatpush.msra.mxu0 0.0
        %6806 = vmatpush.msra.mxu0 0.0
        %6807 = vmatpush.msra.mxu0 0.0
        %6808 = vmatpush.msra.mxu0 0.0
        %6809 = vmatpush.msra.mxu0 0.0
        %6810 = vmatpush.msra.mxu0 0.0
        %6811 = vmatpush.msra.mxu0 %v6794
        %6812 = vmatmul.f32.gmra.mxu0 %v6729
        %v6813 = vpop.f32.mrf.mxu0
        %v6814 = vadd.f32 0.0, %v6813
        %6815 = vmatmul.f32.gmra.mxu0 %v6731
        %v6816 = vpop.f32.mrf.mxu0
        %v6817 = vadd.f32 0.0, %v6816
        %6818 = vmatmul.f32.gmra.mxu0 %v6733
        %v6819 = vpop.f32.mrf.mxu0
        %v6820 = vadd.f32 0.0, %v6819
        %6821 = vmatmul.f32.gmra.mxu0 %v6735
        %v6822 = vpop.f32.mrf.mxu0
        %v6823 = vadd.f32 0.0, %v6822
        %6824 = vmatmul.f32.gmra.mxu0 %v6737
        %v6825 = vpop.f32.mrf.mxu0
        %v6826 = vadd.f32 0.0, %v6825
        %6827 = vmatmul.f32.gmra.mxu0 %v6739
        %v6828 = vpop.f32.mrf.mxu0
        %v6829 = vadd.f32 0.0, %v6828
        %6830 = vmatmul.f32.gmra.mxu0 %v6741
        %v6831 = vpop.f32.mrf.mxu0
        %v6832 = vadd.f32 0.0, %v6831
        %6833 = vmatmul.f32.gmra.mxu0 %v6743
        %v6834 = vpop.f32.mrf.mxu0
        %v6835 = vadd.f32 0.0, %v6834
        %6836 = vmatmul.f32.gmra.mxu0 %v6745
        %v6837 = vpop.f32.mrf.mxu0
        %v6838 = vadd.f32 0.0, %v6837
        %6839 = vmatmul.f32.gmra.mxu0 %v6747
        %v6840 = vpop.f32.mrf.mxu0
        %v6841 = vadd.f32 0.0, %v6840
        %6842 = vmatmul.f32.gmra.mxu0 %v6749
        %v6843 = vpop.f32.mrf.mxu0
        %v6844 = vadd.f32 0.0, %v6843
        %6845 = vmatmul.f32.gmra.mxu0 %v6751
        %v6846 = vpop.f32.mrf.mxu0
        %v6847 = vadd.f32 0.0, %v6846
        %6848 = vmatmul.f32.gmra.mxu0 %v6753
        %v6849 = vpop.f32.mrf.mxu0
        %v6850 = vadd.f32 0.0, %v6849
        %6851 = vmatmul.f32.gmra.mxu0 %v6755
        %v6852 = vpop.f32.mrf.mxu0
        %v6853 = vadd.f32 0.0, %v6852
        %6854 = vmatmul.f32.gmra.mxu0 %v6757
        %v6855 = vpop.f32.mrf.mxu0
        %v6856 = vadd.f32 0.0, %v6855
        %6857 = vmatmul.f32.gmra.mxu0 %v6759
        %v6858 = vpop.f32.mrf.mxu0
        %v6859 = vadd.f32 0.0, %v6858
        %6860 = vmatmul.f32.gmra.mxu0 %v6761
        %v6861 = vpop.f32.mrf.mxu0
        %v6862 = vadd.f32 0.0, %v6861
        %6863 = vmatmul.f32.gmra.mxu0 %v6763
        %v6864 = vpop.f32.mrf.mxu0
        %v6865 = vadd.f32 0.0, %v6864
        %6866 = vmatmul.f32.gmra.mxu0 %v6765
        %v6867 = vpop.f32.mrf.mxu0
        %v6868 = vadd.f32 0.0, %v6867
        %6869 = vmatmul.f32.gmra.mxu0 %v6767
        %v6870 = vpop.f32.mrf.mxu0
        %v6871 = vadd.f32 0.0, %v6870
        %6872 = vmatmul.f32.gmra.mxu0 %v6769
        %v6873 = vpop.f32.mrf.mxu0
        %v6874 = vadd.f32 0.0, %v6873
        %6875 = vmatmul.f32.gmra.mxu0 %v6771
        %v6876 = vpop.f32.mrf.mxu0
        %v6877 = vadd.f32 0.0, %v6876
        %6878 = vmatmul.f32.gmra.mxu0 %v6773
        %v6879 = vpop.f32.mrf.mxu0
        %v6880 = vadd.f32 0.0, %v6879
        %6881 = vmatmul.f32.gmra.mxu0 %v6775
        %v6882 = vpop.f32.mrf.mxu0
        %v6883 = vadd.f32 0.0, %v6882
        %6884 = vmatmul.f32.gmra.mxu0 %v6777
        %v6885 = vpop.f32.mrf.mxu0
        %v6886 = vadd.f32 0.0, %v6885
        %6887 = vmatmul.f32.gmra.mxu0 %v6779
        %v6888 = vpop.f32.mrf.mxu0
        %v6889 = vadd.f32 0.0, %v6888
        %6890 = vmatmul.f32.gmra.mxu0 %v6781
        %v6891 = vpop.f32.mrf.mxu0
        %v6892 = vadd.f32 0.0, %v6891
        %6893 = vmatmul.f32.gmra.mxu0 %v6783
        %v6894 = vpop.f32.mrf.mxu0
        %v6895 = vadd.f32 0.0, %v6894
        %6896 = vmatmul.f32.gmra.mxu0 %v6785
        %v6897 = vpop.f32.mrf.mxu0
        %v6898 = vadd.f32 0.0, %v6897
        %6899 = vmatmul.f32.gmra.mxu0 %v6787
        %v6900 = vpop.f32.mrf.mxu0
        %v6901 = vadd.f32 0.0, %v6900
        %6902 = vmatmul.f32.gmra.mxu0 %v6789
        %v6903 = vpop.f32.mrf.mxu0
        %v6904 = vadd.f32 0.0, %v6903
        %6905 = vmatmul.f32.gmra.mxu0 %v6791
        %v6906 = vpop.f32.mrf.mxu0
        %v6907 = vadd.f32 0.0, %v6906
        %6908 = vdwg.mxu0
        %v6909 = vadd.f32 %v6616, %v6814
        %v6910 = vadd.f32 %v6617, %v6817
        %v6911 = vadd.f32 %v6618, %v6820
        %v6912 = vadd.f32 %v6619, %v6823
        %v6913 = vadd.f32 %v6620, %v6826
        %v6914 = vadd.f32 %v6621, %v6829
        %v6915 = vadd.f32 %v6622, %v6832
        %v6916 = vadd.f32 %v6623, %v6835
        %v6917 = vadd.f32 %v6624, %v6838
        %v6918 = vadd.f32 %v6625, %v6841
        %v6919 = vadd.f32 %v6626, %v6844
        %v6920 = vadd.f32 %v6627, %v6847
        %v6921 = vadd.f32 %v6628, %v6850
        %v6922 = vadd.f32 %v6629, %v6853
        %v6923 = vadd.f32 %v6630, %v6856
        %v6924 = vadd.f32 %v6631, %v6859
        %v6925 = vadd.f32 %v6632, %v6862
        %v6926 = vadd.f32 %v6633, %v6865
        %v6927 = vadd.f32 %v6634, %v6868
        %v6928 = vadd.f32 %v6635, %v6871
        %v6929 = vadd.f32 %v6636, %v6874
        %v6930 = vadd.f32 %v6637, %v6877
        %v6931 = vadd.f32 %v6638, %v6880
        %v6932 = vadd.f32 %v6639, %v6883
        %v6933 = vadd.f32 %v6640, %v6886
        %v6934 = vadd.f32 %v6641, %v6889
        %v6935 = vadd.f32 %v6642, %v6892
        %v6936 = vadd.f32 %v6643, %v6895
        %v6937 = vadd.f32 %v6644, %v6898
        %v6938 = vadd.f32 %v6645, %v6901
        %v6939 = vadd.f32 %v6646, %v6904
        %v6940 = vadd.f32 %v6647, %v6907
        %v6941 = vrot.slane %v6363, 2
        %v6942 = vrot.slane %v6364, 2
        %v6943 = vsel %vm755, %v6941, %v6942
        %v6944 = vrot.slane %v6365, 2
        %v6945 = vsel %vm755, %v6942, %v6944
        %v6946 = vrot.slane %v6366, 2
        %v6947 = vsel %vm755, %v6944, %v6946
        %v6948 = vrot.slane %v6367, 2
        %v6949 = vsel %vm755, %v6946, %v6948
        %v6950 = vrot.slane %v6368, 2
        %v6951 = vrot.slane %v6369, 2
        %v6952 = vsel %vm755, %v6950, %v6951
        %v6953 = vrot.slane %v6370, 2
        %v6954 = vsel %vm755, %v6951, %v6953
        %v6955 = vrot.slane %v6371, 2
        %v6956 = vsel %vm755, %v6953, %v6955
        %v6957 = vrot.slane %v6372, 2
        %v6958 = vsel %vm755, %v6955, %v6957
        %v6959 = vrot.slane %v6373, 2
        %v6960 = vrot.slane %v6374, 2
        %v6961 = vsel %vm755, %v6959, %v6960
        %v6962 = vrot.slane %v6375, 2
        %v6963 = vsel %vm755, %v6960, %v6962
        %v6964 = vrot.slane %v6376, 2
        %v6965 = vsel %vm755, %v6962, %v6964
        %v6966 = vrot.slane %v6377, 2
        %v6967 = vsel %vm755, %v6964, %v6966
        %v6968 = vrot.slane %v6378, 2
        %v6969 = vrot.slane %v6379, 2
        %v6970 = vsel %vm755, %v6968, %v6969
        %v6971 = vrot.slane %v6380, 2
        %v6972 = vsel %vm755, %v6969, %v6971
        %v6973 = vrot.slane %v6381, 2
        %v6974 = vsel %vm755, %v6971, %v6973
        %v6975 = vrot.slane %v6382, 2
        %v6976 = vsel %vm755, %v6973, %v6975
        %v6977 = vrot.slane %v6383, 2
        %v6978 = vrot.slane %v6384, 2
        %v6979 = vsel %vm755, %v6977, %v6978
        %v6980 = vrot.slane %v6385, 2
        %v6981 = vsel %vm755, %v6978, %v6980
        %v6982 = vrot.slane %v6386, 2
        %v6983 = vsel %vm755, %v6980, %v6982
        %v6984 = vrot.slane %v6387, 2
        %v6985 = vsel %vm755, %v6982, %v6984
        %v6986 = vrot.slane %v6388, 2
        %v6987 = vrot.slane %v6389, 2
        %v6988 = vsel %vm755, %v6986, %v6987
        %v6989 = vrot.slane %v6390, 2
        %v6990 = vsel %vm755, %v6987, %v6989
        %v6991 = vrot.slane %v6391, 2
        %v6992 = vsel %vm755, %v6989, %v6991
        %v6993 = vrot.slane %v6392, 2
        %v6994 = vsel %vm755, %v6991, %v6993
        %v6995 = vrot.slane %v6393, 2
        %v6996 = vrot.slane %v6394, 2
        %v6997 = vsel %vm755, %v6995, %v6996
        %v6998 = vrot.slane %v6395, 2
        %v6999 = vsel %vm755, %v6996, %v6998
        %v7000 = vrot.slane %v6396, 2
        %v7001 = vsel %vm755, %v6998, %v7000
        %v7002 = vrot.slane %v6397, 2
        %v7003 = vsel %vm755, %v7000, %v7002
        %v7004 = vrot.slane %v6398, 2
        %v7005 = vrot.slane %v6399, 2
        %v7006 = vsel %vm755, %v7004, %v7005
        %v7007 = vrot.slane %v6400, 2
        %v7008 = vsel %vm755, %v7005, %v7007
        %v7009 = vrot.slane %v6401, 2
        %v7010 = vsel %vm755, %v7007, %v7009
        %v7011 = vrot.slane %v6402, 2
        %v7012 = vsel %vm755, %v7009, %v7011
        %v7013 = vld [vmem:[%s1695] sm:$0x7]
        %v7014 = vsel %vm214, %v6943, 0
        %v7016 = vsel %vm214, %v6945, 0
        %v7018 = vsel %vm214, %v6947, 0
        %v7020 = vsel %vm214, %v6949, 0
        %v7022 = vsel %vm214, %v6952, 0
        %v7024 = vsel %vm214, %v6954, 0
        %v7026 = vsel %vm214, %v6956, 0
        %v7028 = vsel %vm214, %v6958, 0
        %v7030 = vsel %vm214, %v6961, 0
        %v7032 = vsel %vm214, %v6963, 0
        %v7034 = vsel %vm214, %v6965, 0
        %v7036 = vsel %vm214, %v6967, 0
        %v7038 = vsel %vm214, %v6970, 0
        %v7040 = vsel %vm214, %v6972, 0
        %v7042 = vsel %vm214, %v6974, 0
        %v7044 = vsel %vm214, %v6976, 0
        %v7046 = vsel %vm214, %v6979, 0
        %v7048 = vsel %vm214, %v6981, 0
        %v7050 = vsel %vm214, %v6983, 0
        %v7052 = vsel %vm214, %v6985, 0
        %v7054 = vsel %vm214, %v6988, 0
        %v7056 = vsel %vm214, %v6990, 0
        %v7058 = vsel %vm214, %v6992, 0
        %v7060 = vsel %vm214, %v6994, 0
        %v7062 = vsel %vm214, %v6997, 0
        %v7064 = vsel %vm214, %v6999, 0
        %v7066 = vsel %vm214, %v7001, 0
        %v7068 = vsel %vm214, %v7003, 0
        %v7070 = vsel %vm214, %v7006, 0
        %v7072 = vsel %vm214, %v7008, 0
        %v7074 = vsel %vm214, %v7010, 0
        %v7076 = vsel %vm214, %v7012, 0
        %v7079 = vsel %vm311, %v7013, 0
        %7081 = vmatpush.msra.mxu0 0.0
        %7082 = vmatpush.msra.mxu0 0.0
        %7083 = vmatpush.msra.mxu0 0.0
        %7084 = vmatpush.msra.mxu0 0.0
        %7085 = vmatpush.msra.mxu0 0.0
        %7086 = vmatpush.msra.mxu0 0.0
        %7087 = vmatpush.msra.mxu0 0.0
        %7088 = vmatpush.msra.mxu0 0.0
        %7089 = vmatpush.msra.mxu0 0.0
        %7090 = vmatpush.msra.mxu0 0.0
        %7091 = vmatpush.msra.mxu0 0.0
        %7092 = vmatpush.msra.mxu0 0.0
        %7093 = vmatpush.msra.mxu0 0.0
        %7094 = vmatpush.msra.mxu0 0.0
        %7095 = vmatpush.msra.mxu0 0.0
        %7096 = vmatpush.msra.mxu0 %v7079
        %7097 = vmatmul.f32.gmra.mxu0 %v7014
        %v7098 = vpop.f32.mrf.mxu0
        %v7099 = vadd.f32 0.0, %v7098
        %7100 = vmatmul.f32.gmra.mxu0 %v7016
        %v7101 = vpop.f32.mrf.mxu0
        %v7102 = vadd.f32 0.0, %v7101
        %7103 = vmatmul.f32.gmra.mxu0 %v7018
        %v7104 = vpop.f32.mrf.mxu0
        %v7105 = vadd.f32 0.0, %v7104
        %7106 = vmatmul.f32.gmra.mxu0 %v7020
        %v7107 = vpop.f32.mrf.mxu0
        %v7108 = vadd.f32 0.0, %v7107
        %7109 = vmatmul.f32.gmra.mxu0 %v7022
        %v7110 = vpop.f32.mrf.mxu0
        %v7111 = vadd.f32 0.0, %v7110
        %7112 = vmatmul.f32.gmra.mxu0 %v7024
        %v7113 = vpop.f32.mrf.mxu0
        %v7114 = vadd.f32 0.0, %v7113
        %7115 = vmatmul.f32.gmra.mxu0 %v7026
        %v7116 = vpop.f32.mrf.mxu0
        %v7117 = vadd.f32 0.0, %v7116
        %7118 = vmatmul.f32.gmra.mxu0 %v7028
        %v7119 = vpop.f32.mrf.mxu0
        %v7120 = vadd.f32 0.0, %v7119
        %7121 = vmatmul.f32.gmra.mxu0 %v7030
        %v7122 = vpop.f32.mrf.mxu0
        %v7123 = vadd.f32 0.0, %v7122
        %7124 = vmatmul.f32.gmra.mxu0 %v7032
        %v7125 = vpop.f32.mrf.mxu0
        %v7126 = vadd.f32 0.0, %v7125
        %7127 = vmatmul.f32.gmra.mxu0 %v7034
        %v7128 = vpop.f32.mrf.mxu0
        %v7129 = vadd.f32 0.0, %v7128
        %7130 = vmatmul.f32.gmra.mxu0 %v7036
        %v7131 = vpop.f32.mrf.mxu0
        %v7132 = vadd.f32 0.0, %v7131
        %7133 = vmatmul.f32.gmra.mxu0 %v7038
        %v7134 = vpop.f32.mrf.mxu0
        %v7135 = vadd.f32 0.0, %v7134
        %7136 = vmatmul.f32.gmra.mxu0 %v7040
        %v7137 = vpop.f32.mrf.mxu0
        %v7138 = vadd.f32 0.0, %v7137
        %7139 = vmatmul.f32.gmra.mxu0 %v7042
        %v7140 = vpop.f32.mrf.mxu0
        %v7141 = vadd.f32 0.0, %v7140
        %7142 = vmatmul.f32.gmra.mxu0 %v7044
        %v7143 = vpop.f32.mrf.mxu0
        %v7144 = vadd.f32 0.0, %v7143
        %7145 = vmatmul.f32.gmra.mxu0 %v7046
        %v7146 = vpop.f32.mrf.mxu0
        %v7147 = vadd.f32 0.0, %v7146
        %7148 = vmatmul.f32.gmra.mxu0 %v7048
        %v7149 = vpop.f32.mrf.mxu0
        %v7150 = vadd.f32 0.0, %v7149
        %7151 = vmatmul.f32.gmra.mxu0 %v7050
        %v7152 = vpop.f32.mrf.mxu0
        %v7153 = vadd.f32 0.0, %v7152
        %7154 = vmatmul.f32.gmra.mxu0 %v7052
        %v7155 = vpop.f32.mrf.mxu0
        %v7156 = vadd.f32 0.0, %v7155
        %7157 = vmatmul.f32.gmra.mxu0 %v7054
        %v7158 = vpop.f32.mrf.mxu0
        %v7159 = vadd.f32 0.0, %v7158
        %7160 = vmatmul.f32.gmra.mxu0 %v7056
        %v7161 = vpop.f32.mrf.mxu0
        %v7162 = vadd.f32 0.0, %v7161
        %7163 = vmatmul.f32.gmra.mxu0 %v7058
        %v7164 = vpop.f32.mrf.mxu0
        %v7165 = vadd.f32 0.0, %v7164
        %7166 = vmatmul.f32.gmra.mxu0 %v7060
        %v7167 = vpop.f32.mrf.mxu0
        %v7168 = vadd.f32 0.0, %v7167
        %7169 = vmatmul.f32.gmra.mxu0 %v7062
        %v7170 = vpop.f32.mrf.mxu0
        %v7171 = vadd.f32 0.0, %v7170
        %7172 = vmatmul.f32.gmra.mxu0 %v7064
        %v7173 = vpop.f32.mrf.mxu0
        %v7174 = vadd.f32 0.0, %v7173
        %7175 = vmatmul.f32.gmra.mxu0 %v7066
        %v7176 = vpop.f32.mrf.mxu0
        %v7177 = vadd.f32 0.0, %v7176
        %7178 = vmatmul.f32.gmra.mxu0 %v7068
        %v7179 = vpop.f32.mrf.mxu0
        %v7180 = vadd.f32 0.0, %v7179
        %7181 = vmatmul.f32.gmra.mxu0 %v7070
        %v7182 = vpop.f32.mrf.mxu0
        %v7183 = vadd.f32 0.0, %v7182
        %7184 = vmatmul.f32.gmra.mxu0 %v7072
        %v7185 = vpop.f32.mrf.mxu0
        %v7186 = vadd.f32 0.0, %v7185
        %7187 = vmatmul.f32.gmra.mxu0 %v7074
        %v7188 = vpop.f32.mrf.mxu0
        %v7189 = vadd.f32 0.0, %v7188
        %7190 = vmatmul.f32.gmra.mxu0 %v7076
        %v7191 = vpop.f32.mrf.mxu0
        %v7192 = vadd.f32 0.0, %v7191
        %7193 = vdwg.mxu0
        %v7194 = vadd.f32 %v6909, %v7099
        %v7195 = vadd.f32 %v6910, %v7102
        %v7196 = vadd.f32 %v6911, %v7105
        %v7197 = vadd.f32 %v6912, %v7108
        %v7198 = vadd.f32 %v6913, %v7111
        %v7199 = vadd.f32 %v6914, %v7114
        %v7200 = vadd.f32 %v6915, %v7117
        %v7201 = vadd.f32 %v6916, %v7120
        %v7202 = vadd.f32 %v6917, %v7123
        %v7203 = vadd.f32 %v6918, %v7126
        %v7204 = vadd.f32 %v6919, %v7129
        %v7205 = vadd.f32 %v6920, %v7132
        %v7206 = vadd.f32 %v6921, %v7135
        %v7207 = vadd.f32 %v6922, %v7138
        %v7208 = vadd.f32 %v6923, %v7141
        %v7209 = vadd.f32 %v6924, %v7144
        %v7210 = vadd.f32 %v6925, %v7147
        %v7211 = vadd.f32 %v6926, %v7150
        %v7212 = vadd.f32 %v6927, %v7153
        %v7213 = vadd.f32 %v6928, %v7156
        %v7214 = vadd.f32 %v6929, %v7159
        %v7215 = vadd.f32 %v6930, %v7162
        %v7216 = vadd.f32 %v6931, %v7165
        %v7217 = vadd.f32 %v6932, %v7168
        %v7218 = vadd.f32 %v6933, %v7171
        %v7219 = vadd.f32 %v6934, %v7174
        %v7220 = vadd.f32 %v6935, %v7177
        %v7221 = vadd.f32 %v6936, %v7180
        %v7222 = vadd.f32 %v6937, %v7183
        %v7223 = vadd.f32 %v6938, %v7186
        %v7224 = vadd.f32 %v6939, %v7189
        %v7225 = vadd.f32 %v6940, %v7192
        %s7226 = scalar_lea.vmem %s168, 720
        %v7227 = vld [vmem:[%s7226] sm:$0xff]
        %v7228 = vld [vmem:[%s7226 + $0x8] sm:$0xff]
        %v7229 = vld [vmem:[%s7226 + $0x10] sm:$0xff]
        %v7230 = vld [vmem:[%s7226 + $0x18] sm:$0xff]
        %v7231 = vld [vmem:[%s7226 + $0x20] sm:$0x3]
        %v7232 = vld [vmem:[%s7226 + $0x28] sm:$0xff]
        %v7233 = vld [vmem:[%s7226 + $0x30] sm:$0xff]
        %v7234 = vld [vmem:[%s7226 + $0x38] sm:$0xff]
        %v7235 = vld [vmem:[%s7226 + $0x40] sm:$0xff]
        %v7236 = vld [vmem:[%s7226 + $0x48] sm:$0x3]
        %v7237 = vld [vmem:[%s7226 + $0x50] sm:$0xff]
        %v7238 = vld [vmem:[%s7226 + $0x58] sm:$0xff]
        %v7239 = vld [vmem:[%s7226 + $0x60] sm:$0xff]
        %v7240 = vld [vmem:[%s7226 + $0x68] sm:$0xff]
        %v7241 = vld [vmem:[%s7226 + $0x70] sm:$0x3]
        %v7242 = vld [vmem:[%s7226 + $0x78] sm:$0xff]
        %v7243 = vld [vmem:[%s7226 + $0x80] sm:$0xff]
        %v7244 = vld [vmem:[%s7226 + $0x88] sm:$0xff]
        %v7245 = vld [vmem:[%s7226 + $0x90] sm:$0xff]
        %v7246 = vld [vmem:[%s7226 + $0x98] sm:$0x3]
        %v7247 = vld [vmem:[%s7226 + $0xa0] sm:$0xff]
        %v7248 = vld [vmem:[%s7226 + $0xa8] sm:$0xff]
        %v7249 = vld [vmem:[%s7226 + $0xb0] sm:$0xff]
        %v7250 = vld [vmem:[%s7226 + $0xb8] sm:$0xff]
        %v7251 = vld [vmem:[%s7226 + $0xc0] sm:$0x3]
        %v7252 = vld [vmem:[%s7226 + $0xc8] sm:$0xff]
        %v7253 = vld [vmem:[%s7226 + $0xd0] sm:$0xff]
        %v7254 = vld [vmem:[%s7226 + $0xd8] sm:$0xff]
        %v7255 = vld [vmem:[%s7226 + $0xe0] sm:$0xff]
        %v7256 = vld [vmem:[%s7226 + $0xe8] sm:$0x3]
        %v7257 = vld [vmem:[%s7226 + $0xf0] sm:$0xff]
        %v7258 = vld [vmem:[%s7226 + $0xf8] sm:$0xff]
        %v7259 = vld [vmem:[%s7226 + $0x100] sm:$0xff]
        %v7260 = vld [vmem:[%s7226 + $0x108] sm:$0xff]
        %v7261 = vld [vmem:[%s7226 + $0x110] sm:$0x3]
        %v7262 = vld [vmem:[%s7226 + $0x118] sm:$0xff]
        %v7263 = vld [vmem:[%s7226 + $0x120] sm:$0xff]
        %v7264 = vld [vmem:[%s7226 + $0x128] sm:$0xff]
        %v7265 = vld [vmem:[%s7226 + $0x130] sm:$0xff]
        %v7266 = vld [vmem:[%s7226 + $0x138] sm:$0x3]
        %v7267 = vld [vmem:[%s1950] sm:$0x7]
        %v7269 = vsel %vm214, %v7227, 0
        %v7272 = vsel %vm214, %v7228, 0
        %v7275 = vsel %vm214, %v7229, 0
        %v7278 = vsel %vm214, %v7230, 0
        %v7281 = vsel %vm214, %v7232, 0
        %v7284 = vsel %vm214, %v7233, 0
        %v7287 = vsel %vm214, %v7234, 0
        %v7290 = vsel %vm214, %v7235, 0
        %v7293 = vsel %vm214, %v7237, 0
        %v7296 = vsel %vm214, %v7238, 0
        %v7299 = vsel %vm214, %v7239, 0
        %v7302 = vsel %vm214, %v7240, 0
        %v7305 = vsel %vm214, %v7242, 0
        %v7308 = vsel %vm214, %v7243, 0
        %v7311 = vsel %vm214, %v7244, 0
        %v7314 = vsel %vm214, %v7245, 0
        %v7317 = vsel %vm214, %v7247, 0
        %v7320 = vsel %vm214, %v7248, 0
        %v7323 = vsel %vm214, %v7249, 0
        %v7326 = vsel %vm214, %v7250, 0
        %v7329 = vsel %vm214, %v7252, 0
        %v7332 = vsel %vm214, %v7253, 0
        %v7335 = vsel %vm214, %v7254, 0
        %v7338 = vsel %vm214, %v7255, 0
        %v7341 = vsel %vm214, %v7257, 0
        %v7344 = vsel %vm214, %v7258, 0
        %v7347 = vsel %vm214, %v7259, 0
        %v7350 = vsel %vm214, %v7260, 0
        %v7353 = vsel %vm214, %v7262, 0
        %v7356 = vsel %vm214, %v7263, 0
        %v7359 = vsel %vm214, %v7264, 0
        %v7362 = vsel %vm214, %v7265, 0
        %v7365 = vsel %vm311, %v7267, 0
        %7367 = vmatpush.msra.mxu0 0.0
        %7368 = vmatpush.msra.mxu0 0.0
        %7369 = vmatpush.msra.mxu0 0.0
        %7370 = vmatpush.msra.mxu0 0.0
        %7371 = vmatpush.msra.mxu0 0.0
        %7372 = vmatpush.msra.mxu0 0.0
        %7373 = vmatpush.msra.mxu0 0.0
        %7374 = vmatpush.msra.mxu0 0.0
        %7375 = vmatpush.msra.mxu0 0.0
        %7376 = vmatpush.msra.mxu0 0.0
        %7377 = vmatpush.msra.mxu0 0.0
        %7378 = vmatpush.msra.mxu0 0.0
        %7379 = vmatpush.msra.mxu0 0.0
        %7380 = vmatpush.msra.mxu0 0.0
        %7381 = vmatpush.msra.mxu0 0.0
        %7382 = vmatpush.msra.mxu0 %v7365
        %7383 = vmatmul.f32.gmra.mxu0 %v7269
        %v7384 = vpop.f32.mrf.mxu0
        %v7385 = vadd.f32 0.0, %v7384
        %7386 = vmatmul.f32.gmra.mxu0 %v7272
        %v7387 = vpop.f32.mrf.mxu0
        %v7388 = vadd.f32 0.0, %v7387
        %7389 = vmatmul.f32.gmra.mxu0 %v7275
        %v7390 = vpop.f32.mrf.mxu0
        %v7391 = vadd.f32 0.0, %v7390
        %7392 = vmatmul.f32.gmra.mxu0 %v7278
        %v7393 = vpop.f32.mrf.mxu0
        %v7394 = vadd.f32 0.0, %v7393
        %7395 = vmatmul.f32.gmra.mxu0 %v7281
        %v7396 = vpop.f32.mrf.mxu0
        %v7397 = vadd.f32 0.0, %v7396
        %7398 = vmatmul.f32.gmra.mxu0 %v7284
        %v7399 = vpop.f32.mrf.mxu0
        %v7400 = vadd.f32 0.0, %v7399
        %7401 = vmatmul.f32.gmra.mxu0 %v7287
        %v7402 = vpop.f32.mrf.mxu0
        %v7403 = vadd.f32 0.0, %v7402
        %7404 = vmatmul.f32.gmra.mxu0 %v7290
        %v7405 = vpop.f32.mrf.mxu0
        %v7406 = vadd.f32 0.0, %v7405
        %7407 = vmatmul.f32.gmra.mxu0 %v7293
        %v7408 = vpop.f32.mrf.mxu0
        %v7409 = vadd.f32 0.0, %v7408
        %7410 = vmatmul.f32.gmra.mxu0 %v7296
        %v7411 = vpop.f32.mrf.mxu0
        %v7412 = vadd.f32 0.0, %v7411
        %7413 = vmatmul.f32.gmra.mxu0 %v7299
        %v7414 = vpop.f32.mrf.mxu0
        %v7415 = vadd.f32 0.0, %v7414
        %7416 = vmatmul.f32.gmra.mxu0 %v7302
        %v7417 = vpop.f32.mrf.mxu0
        %v7418 = vadd.f32 0.0, %v7417
        %7419 = vmatmul.f32.gmra.mxu0 %v7305
        %v7420 = vpop.f32.mrf.mxu0
        %v7421 = vadd.f32 0.0, %v7420
        %7422 = vmatmul.f32.gmra.mxu0 %v7308
        %v7423 = vpop.f32.mrf.mxu0
        %v7424 = vadd.f32 0.0, %v7423
        %7425 = vmatmul.f32.gmra.mxu0 %v7311
        %v7426 = vpop.f32.mrf.mxu0
        %v7427 = vadd.f32 0.0, %v7426
        %7428 = vmatmul.f32.gmra.mxu0 %v7314
        %v7429 = vpop.f32.mrf.mxu0
        %v7430 = vadd.f32 0.0, %v7429
        %7431 = vmatmul.f32.gmra.mxu0 %v7317
        %v7432 = vpop.f32.mrf.mxu0
        %v7433 = vadd.f32 0.0, %v7432
        %7434 = vmatmul.f32.gmra.mxu0 %v7320
        %v7435 = vpop.f32.mrf.mxu0
        %v7436 = vadd.f32 0.0, %v7435
        %7437 = vmatmul.f32.gmra.mxu0 %v7323
        %v7438 = vpop.f32.mrf.mxu0
        %v7439 = vadd.f32 0.0, %v7438
        %7440 = vmatmul.f32.gmra.mxu0 %v7326
        %v7441 = vpop.f32.mrf.mxu0
        %v7442 = vadd.f32 0.0, %v7441
        %7443 = vmatmul.f32.gmra.mxu0 %v7329
        %v7444 = vpop.f32.mrf.mxu0
        %v7445 = vadd.f32 0.0, %v7444
        %7446 = vmatmul.f32.gmra.mxu0 %v7332
        %v7447 = vpop.f32.mrf.mxu0
        %v7448 = vadd.f32 0.0, %v7447
        %7449 = vmatmul.f32.gmra.mxu0 %v7335
        %v7450 = vpop.f32.mrf.mxu0
        %v7451 = vadd.f32 0.0, %v7450
        %7452 = vmatmul.f32.gmra.mxu0 %v7338
        %v7453 = vpop.f32.mrf.mxu0
        %v7454 = vadd.f32 0.0, %v7453
        %7455 = vmatmul.f32.gmra.mxu0 %v7341
        %v7456 = vpop.f32.mrf.mxu0
        %v7457 = vadd.f32 0.0, %v7456
        %7458 = vmatmul.f32.gmra.mxu0 %v7344
        %v7459 = vpop.f32.mrf.mxu0
        %v7460 = vadd.f32 0.0, %v7459
        %7461 = vmatmul.f32.gmra.mxu0 %v7347
        %v7462 = vpop.f32.mrf.mxu0
        %v7463 = vadd.f32 0.0, %v7462
        %7464 = vmatmul.f32.gmra.mxu0 %v7350
        %v7465 = vpop.f32.mrf.mxu0
        %v7466 = vadd.f32 0.0, %v7465
        %7467 = vmatmul.f32.gmra.mxu0 %v7353
        %v7468 = vpop.f32.mrf.mxu0
        %v7469 = vadd.f32 0.0, %v7468
        %7470 = vmatmul.f32.gmra.mxu0 %v7356
        %v7471 = vpop.f32.mrf.mxu0
        %v7472 = vadd.f32 0.0, %v7471
        %7473 = vmatmul.f32.gmra.mxu0 %v7359
        %v7474 = vpop.f32.mrf.mxu0
        %v7475 = vadd.f32 0.0, %v7474
        %7476 = vmatmul.f32.gmra.mxu0 %v7362
        %v7477 = vpop.f32.mrf.mxu0
        %v7478 = vadd.f32 0.0, %v7477
        %7479 = vdwg.mxu0
        %v7480 = vadd.f32 %v7194, %v7385
        %v7481 = vadd.f32 %v7195, %v7388
        %v7482 = vadd.f32 %v7196, %v7391
        %v7483 = vadd.f32 %v7197, %v7394
        %v7484 = vadd.f32 %v7198, %v7397
        %v7485 = vadd.f32 %v7199, %v7400
        %v7486 = vadd.f32 %v7200, %v7403
        %v7487 = vadd.f32 %v7201, %v7406
        %v7488 = vadd.f32 %v7202, %v7409
        %v7489 = vadd.f32 %v7203, %v7412
        %v7490 = vadd.f32 %v7204, %v7415
        %v7491 = vadd.f32 %v7205, %v7418
        %v7492 = vadd.f32 %v7206, %v7421
        %v7493 = vadd.f32 %v7207, %v7424
        %v7494 = vadd.f32 %v7208, %v7427
        %v7495 = vadd.f32 %v7209, %v7430
        %v7496 = vadd.f32 %v7210, %v7433
        %v7497 = vadd.f32 %v7211, %v7436
        %v7498 = vadd.f32 %v7212, %v7439
        %v7499 = vadd.f32 %v7213, %v7442
        %v7500 = vadd.f32 %v7214, %v7445
        %v7501 = vadd.f32 %v7215, %v7448
        %v7502 = vadd.f32 %v7216, %v7451
        %v7503 = vadd.f32 %v7217, %v7454
        %v7504 = vadd.f32 %v7218, %v7457
        %v7505 = vadd.f32 %v7219, %v7460
        %v7506 = vadd.f32 %v7220, %v7463
        %v7507 = vadd.f32 %v7221, %v7466
        %v7508 = vadd.f32 %v7222, %v7469
        %v7509 = vadd.f32 %v7223, %v7472
        %v7510 = vadd.f32 %v7224, %v7475
        %v7511 = vadd.f32 %v7225, %v7478
        %v7520 = vrot.slane %v7227, 1
        %v7521 = vrot.slane %v7228, 1
        %v7522 = vsel %vm468, %v7520, %v7521
        %v7523 = vrot.slane %v7229, 1
        %v7524 = vsel %vm468, %v7521, %v7523
        %v7525 = vrot.slane %v7230, 1
        %v7526 = vsel %vm468, %v7523, %v7525
        %v7527 = vrot.slane %v7231, 1
        %v7528 = vsel %vm468, %v7525, %v7527
        %v7529 = vrot.slane %v7232, 1
        %v7530 = vrot.slane %v7233, 1
        %v7531 = vsel %vm468, %v7529, %v7530
        %v7532 = vrot.slane %v7234, 1
        %v7533 = vsel %vm468, %v7530, %v7532
        %v7534 = vrot.slane %v7235, 1
        %v7535 = vsel %vm468, %v7532, %v7534
        %v7536 = vrot.slane %v7236, 1
        %v7537 = vsel %vm468, %v7534, %v7536
        %v7538 = vrot.slane %v7237, 1
        %v7539 = vrot.slane %v7238, 1
        %v7540 = vsel %vm468, %v7538, %v7539
        %v7541 = vrot.slane %v7239, 1
        %v7542 = vsel %vm468, %v7539, %v7541
        %v7543 = vrot.slane %v7240, 1
        %v7544 = vsel %vm468, %v7541, %v7543
        %v7545 = vrot.slane %v7241, 1
        %v7546 = vsel %vm468, %v7543, %v7545
        %v7547 = vrot.slane %v7242, 1
        %v7548 = vrot.slane %v7243, 1
        %v7549 = vsel %vm468, %v7547, %v7548
        %v7550 = vrot.slane %v7244, 1
        %v7551 = vsel %vm468, %v7548, %v7550
        %v7552 = vrot.slane %v7245, 1
        %v7553 = vsel %vm468, %v7550, %v7552
        %v7554 = vrot.slane %v7246, 1
        %v7555 = vsel %vm468, %v7552, %v7554
        %v7556 = vrot.slane %v7247, 1
        %v7557 = vrot.slane %v7248, 1
        %v7558 = vsel %vm468, %v7556, %v7557
        %v7559 = vrot.slane %v7249, 1
        %v7560 = vsel %vm468, %v7557, %v7559
        %v7561 = vrot.slane %v7250, 1
        %v7562 = vsel %vm468, %v7559, %v7561
        %v7563 = vrot.slane %v7251, 1
        %v7564 = vsel %vm468, %v7561, %v7563
        %v7565 = vrot.slane %v7252, 1
        %v7566 = vrot.slane %v7253, 1
        %v7567 = vsel %vm468, %v7565, %v7566
        %v7568 = vrot.slane %v7254, 1
        %v7569 = vsel %vm468, %v7566, %v7568
        %v7570 = vrot.slane %v7255, 1
        %v7571 = vsel %vm468, %v7568, %v7570
        %v7572 = vrot.slane %v7256, 1
        %v7573 = vsel %vm468, %v7570, %v7572
        %v7574 = vrot.slane %v7257, 1
        %v7575 = vrot.slane %v7258, 1
        %v7576 = vsel %vm468, %v7574, %v7575
        %v7577 = vrot.slane %v7259, 1
        %v7578 = vsel %vm468, %v7575, %v7577
        %v7579 = vrot.slane %v7260, 1
        %v7580 = vsel %vm468, %v7577, %v7579
        %v7581 = vrot.slane %v7261, 1
        %v7582 = vsel %vm468, %v7579, %v7581
        %v7583 = vrot.slane %v7262, 1
        %v7584 = vrot.slane %v7263, 1
        %v7585 = vsel %vm468, %v7583, %v7584
        %v7586 = vrot.slane %v7264, 1
        %v7587 = vsel %vm468, %v7584, %v7586
        %v7588 = vrot.slane %v7265, 1
        %v7589 = vsel %vm468, %v7586, %v7588
        %v7590 = vrot.slane %v7266, 1
        %v7591 = vsel %vm468, %v7588, %v7590
        %v7592 = vld [vmem:[%s2276] sm:$0x7]
        %v7593 = vsel %vm214, %v7522, 0
        %v7595 = vsel %vm214, %v7524, 0
        %v7597 = vsel %vm214, %v7526, 0
        %v7599 = vsel %vm214, %v7528, 0
        %v7601 = vsel %vm214, %v7531, 0
        %v7603 = vsel %vm214, %v7533, 0
        %v7605 = vsel %vm214, %v7535, 0
        %v7607 = vsel %vm214, %v7537, 0
        %v7609 = vsel %vm214, %v7540, 0
        %v7611 = vsel %vm214, %v7542, 0
        %v7613 = vsel %vm214, %v7544, 0
        %v7615 = vsel %vm214, %v7546, 0
        %v7617 = vsel %vm214, %v7549, 0
        %v7619 = vsel %vm214, %v7551, 0
        %v7621 = vsel %vm214, %v7553, 0
        %v7623 = vsel %vm214, %v7555, 0
        %v7625 = vsel %vm214, %v7558, 0
        %v7627 = vsel %vm214, %v7560, 0
        %v7629 = vsel %vm214, %v7562, 0
        %v7631 = vsel %vm214, %v7564, 0
        %v7633 = vsel %vm214, %v7567, 0
        %v7635 = vsel %vm214, %v7569, 0
        %v7637 = vsel %vm214, %v7571, 0
        %v7639 = vsel %vm214, %v7573, 0
        %v7641 = vsel %vm214, %v7576, 0
        %v7643 = vsel %vm214, %v7578, 0
        %v7645 = vsel %vm214, %v7580, 0
        %v7647 = vsel %vm214, %v7582, 0
        %v7649 = vsel %vm214, %v7585, 0
        %v7651 = vsel %vm214, %v7587, 0
        %v7653 = vsel %vm214, %v7589, 0
        %v7655 = vsel %vm214, %v7591, 0
        %v7658 = vsel %vm311, %v7592, 0
        %7660 = vmatpush.msra.mxu0 0.0
        %7661 = vmatpush.msra.mxu0 0.0
        %7662 = vmatpush.msra.mxu0 0.0
        %7663 = vmatpush.msra.mxu0 0.0
        %7664 = vmatpush.msra.mxu0 0.0
        %7665 = vmatpush.msra.mxu0 0.0
        %7666 = vmatpush.msra.mxu0 0.0
        %7667 = vmatpush.msra.mxu0 0.0
        %7668 = vmatpush.msra.mxu0 0.0
        %7669 = vmatpush.msra.mxu0 0.0
        %7670 = vmatpush.msra.mxu0 0.0
        %7671 = vmatpush.msra.mxu0 0.0
        %7672 = vmatpush.msra.mxu0 0.0
        %7673 = vmatpush.msra.mxu0 0.0
        %7674 = vmatpush.msra.mxu0 0.0
        %7675 = vmatpush.msra.mxu0 %v7658
        %7676 = vmatmul.f32.gmra.mxu0 %v7593
        %v7677 = vpop.f32.mrf.mxu0
        %v7678 = vadd.f32 0.0, %v7677
        %7679 = vmatmul.f32.gmra.mxu0 %v7595
        %v7680 = vpop.f32.mrf.mxu0
        %v7681 = vadd.f32 0.0, %v7680
        %7682 = vmatmul.f32.gmra.mxu0 %v7597
        %v7683 = vpop.f32.mrf.mxu0
        %v7684 = vadd.f32 0.0, %v7683
        %7685 = vmatmul.f32.gmra.mxu0 %v7599
        %v7686 = vpop.f32.mrf.mxu0
        %v7687 = vadd.f32 0.0, %v7686
        %7688 = vmatmul.f32.gmra.mxu0 %v7601
        %v7689 = vpop.f32.mrf.mxu0
        %v7690 = vadd.f32 0.0, %v7689
        %7691 = vmatmul.f32.gmra.mxu0 %v7603
        %v7692 = vpop.f32.mrf.mxu0
        %v7693 = vadd.f32 0.0, %v7692
        %7694 = vmatmul.f32.gmra.mxu0 %v7605
        %v7695 = vpop.f32.mrf.mxu0
        %v7696 = vadd.f32 0.0, %v7695
        %7697 = vmatmul.f32.gmra.mxu0 %v7607
        %v7698 = vpop.f32.mrf.mxu0
        %v7699 = vadd.f32 0.0, %v7698
        %7700 = vmatmul.f32.gmra.mxu0 %v7609
        %v7701 = vpop.f32.mrf.mxu0
        %v7702 = vadd.f32 0.0, %v7701
        %7703 = vmatmul.f32.gmra.mxu0 %v7611
        %v7704 = vpop.f32.mrf.mxu0
        %v7705 = vadd.f32 0.0, %v7704
        %7706 = vmatmul.f32.gmra.mxu0 %v7613
        %v7707 = vpop.f32.mrf.mxu0
        %v7708 = vadd.f32 0.0, %v7707
        %7709 = vmatmul.f32.gmra.mxu0 %v7615
        %v7710 = vpop.f32.mrf.mxu0
        %v7711 = vadd.f32 0.0, %v7710
        %7712 = vmatmul.f32.gmra.mxu0 %v7617
        %v7713 = vpop.f32.mrf.mxu0
        %v7714 = vadd.f32 0.0, %v7713
        %7715 = vmatmul.f32.gmra.mxu0 %v7619
        %v7716 = vpop.f32.mrf.mxu0
        %v7717 = vadd.f32 0.0, %v7716
        %7718 = vmatmul.f32.gmra.mxu0 %v7621
        %v7719 = vpop.f32.mrf.mxu0
        %v7720 = vadd.f32 0.0, %v7719
        %7721 = vmatmul.f32.gmra.mxu0 %v7623
        %v7722 = vpop.f32.mrf.mxu0
        %v7723 = vadd.f32 0.0, %v7722
        %7724 = vmatmul.f32.gmra.mxu0 %v7625
        %v7725 = vpop.f32.mrf.mxu0
        %v7726 = vadd.f32 0.0, %v7725
        %7727 = vmatmul.f32.gmra.mxu0 %v7627
        %v7728 = vpop.f32.mrf.mxu0
        %v7729 = vadd.f32 0.0, %v7728
        %7730 = vmatmul.f32.gmra.mxu0 %v7629
        %v7731 = vpop.f32.mrf.mxu0
        %v7732 = vadd.f32 0.0, %v7731
        %7733 = vmatmul.f32.gmra.mxu0 %v7631
        %v7734 = vpop.f32.mrf.mxu0
        %v7735 = vadd.f32 0.0, %v7734
        %7736 = vmatmul.f32.gmra.mxu0 %v7633
        %v7737 = vpop.f32.mrf.mxu0
        %v7738 = vadd.f32 0.0, %v7737
        %7739 = vmatmul.f32.gmra.mxu0 %v7635
        %v7740 = vpop.f32.mrf.mxu0
        %v7741 = vadd.f32 0.0, %v7740
        %7742 = vmatmul.f32.gmra.mxu0 %v7637
        %v7743 = vpop.f32.mrf.mxu0
        %v7744 = vadd.f32 0.0, %v7743
        %7745 = vmatmul.f32.gmra.mxu0 %v7639
        %v7746 = vpop.f32.mrf.mxu0
        %v7747 = vadd.f32 0.0, %v7746
        %7748 = vmatmul.f32.gmra.mxu0 %v7641
        %v7749 = vpop.f32.mrf.mxu0
        %v7750 = vadd.f32 0.0, %v7749
        %7751 = vmatmul.f32.gmra.mxu0 %v7643
        %v7752 = vpop.f32.mrf.mxu0
        %v7753 = vadd.f32 0.0, %v7752
        %7754 = vmatmul.f32.gmra.mxu0 %v7645
        %v7755 = vpop.f32.mrf.mxu0
        %v7756 = vadd.f32 0.0, %v7755
        %7757 = vmatmul.f32.gmra.mxu0 %v7647
        %v7758 = vpop.f32.mrf.mxu0
        %v7759 = vadd.f32 0.0, %v7758
        %7760 = vmatmul.f32.gmra.mxu0 %v7649
        %v7761 = vpop.f32.mrf.mxu0
        %v7762 = vadd.f32 0.0, %v7761
        %7763 = vmatmul.f32.gmra.mxu0 %v7651
        %v7764 = vpop.f32.mrf.mxu0
        %v7765 = vadd.f32 0.0, %v7764
        %7766 = vmatmul.f32.gmra.mxu0 %v7653
        %v7767 = vpop.f32.mrf.mxu0
        %v7768 = vadd.f32 0.0, %v7767
        %7769 = vmatmul.f32.gmra.mxu0 %v7655
        %v7770 = vpop.f32.mrf.mxu0
        %v7771 = vadd.f32 0.0, %v7770
        %7772 = vdwg.mxu0
        %v7773 = vadd.f32 %v7480, %v7678
        %v7774 = vadd.f32 %v7481, %v7681
        %v7775 = vadd.f32 %v7482, %v7684
        %v7776 = vadd.f32 %v7483, %v7687
        %v7777 = vadd.f32 %v7484, %v7690
        %v7778 = vadd.f32 %v7485, %v7693
        %v7779 = vadd.f32 %v7486, %v7696
        %v7780 = vadd.f32 %v7487, %v7699
        %v7781 = vadd.f32 %v7488, %v7702
        %v7782 = vadd.f32 %v7489, %v7705
        %v7783 = vadd.f32 %v7490, %v7708
        %v7784 = vadd.f32 %v7491, %v7711
        %v7785 = vadd.f32 %v7492, %v7714
        %v7786 = vadd.f32 %v7493, %v7717
        %v7787 = vadd.f32 %v7494, %v7720
        %v7788 = vadd.f32 %v7495, %v7723
        %v7789 = vadd.f32 %v7496, %v7726
        %v7790 = vadd.f32 %v7497, %v7729
        %v7791 = vadd.f32 %v7498, %v7732
        %v7792 = vadd.f32 %v7499, %v7735
        %v7793 = vadd.f32 %v7500, %v7738
        %v7794 = vadd.f32 %v7501, %v7741
        %v7795 = vadd.f32 %v7502, %v7744
        %v7796 = vadd.f32 %v7503, %v7747
        %v7797 = vadd.f32 %v7504, %v7750
        %v7798 = vadd.f32 %v7505, %v7753
        %v7799 = vadd.f32 %v7506, %v7756
        %v7800 = vadd.f32 %v7507, %v7759
        %v7801 = vadd.f32 %v7508, %v7762
        %v7802 = vadd.f32 %v7509, %v7765
        %v7803 = vadd.f32 %v7510, %v7768
        %v7804 = vadd.f32 %v7511, %v7771
        %v7805 = vrot.slane %v7227, 2
        %v7806 = vrot.slane %v7228, 2
        %v7807 = vsel %vm755, %v7805, %v7806
        %v7808 = vrot.slane %v7229, 2
        %v7809 = vsel %vm755, %v7806, %v7808
        %v7810 = vrot.slane %v7230, 2
        %v7811 = vsel %vm755, %v7808, %v7810
        %v7812 = vrot.slane %v7231, 2
        %v7813 = vsel %vm755, %v7810, %v7812
        %v7814 = vrot.slane %v7232, 2
        %v7815 = vrot.slane %v7233, 2
        %v7816 = vsel %vm755, %v7814, %v7815
        %v7817 = vrot.slane %v7234, 2
        %v7818 = vsel %vm755, %v7815, %v7817
        %v7819 = vrot.slane %v7235, 2
        %v7820 = vsel %vm755, %v7817, %v7819
        %v7821 = vrot.slane %v7236, 2
        %v7822 = vsel %vm755, %v7819, %v7821
        %v7823 = vrot.slane %v7237, 2
        %v7824 = vrot.slane %v7238, 2
        %v7825 = vsel %vm755, %v7823, %v7824
        %v7826 = vrot.slane %v7239, 2
        %v7827 = vsel %vm755, %v7824, %v7826
        %v7828 = vrot.slane %v7240, 2
        %v7829 = vsel %vm755, %v7826, %v7828
        %v7830 = vrot.slane %v7241, 2
        %v7831 = vsel %vm755, %v7828, %v7830
        %v7832 = vrot.slane %v7242, 2
        %v7833 = vrot.slane %v7243, 2
        %v7834 = vsel %vm755, %v7832, %v7833
        %v7835 = vrot.slane %v7244, 2
        %v7836 = vsel %vm755, %v7833, %v7835
        %v7837 = vrot.slane %v7245, 2
        %v7838 = vsel %vm755, %v7835, %v7837
        %v7839 = vrot.slane %v7246, 2
        %v7840 = vsel %vm755, %v7837, %v7839
        %v7841 = vrot.slane %v7247, 2
        %v7842 = vrot.slane %v7248, 2
        %v7843 = vsel %vm755, %v7841, %v7842
        %v7844 = vrot.slane %v7249, 2
        %v7845 = vsel %vm755, %v7842, %v7844
        %v7846 = vrot.slane %v7250, 2
        %v7847 = vsel %vm755, %v7844, %v7846
        %v7848 = vrot.slane %v7251, 2
        %v7849 = vsel %vm755, %v7846, %v7848
        %v7850 = vrot.slane %v7252, 2
        %v7851 = vrot.slane %v7253, 2
        %v7852 = vsel %vm755, %v7850, %v7851
        %v7853 = vrot.slane %v7254, 2
        %v7854 = vsel %vm755, %v7851, %v7853
        %v7855 = vrot.slane %v7255, 2
        %v7856 = vsel %vm755, %v7853, %v7855
        %v7857 = vrot.slane %v7256, 2
        %v7858 = vsel %vm755, %v7855, %v7857
        %v7859 = vrot.slane %v7257, 2
        %v7860 = vrot.slane %v7258, 2
        %v7861 = vsel %vm755, %v7859, %v7860
        %v7862 = vrot.slane %v7259, 2
        %v7863 = vsel %vm755, %v7860, %v7862
        %v7864 = vrot.slane %v7260, 2
        %v7865 = vsel %vm755, %v7862, %v7864
        %v7866 = vrot.slane %v7261, 2
        %v7867 = vsel %vm755, %v7864, %v7866
        %v7868 = vrot.slane %v7262, 2
        %v7869 = vrot.slane %v7263, 2
        %v7870 = vsel %vm755, %v7868, %v7869
        %v7871 = vrot.slane %v7264, 2
        %v7872 = vsel %vm755, %v7869, %v7871
        %v7873 = vrot.slane %v7265, 2
        %v7874 = vsel %vm755, %v7871, %v7873
        %v7875 = vrot.slane %v7266, 2
        %v7876 = vsel %vm755, %v7873, %v7875
        %v7877 = vld [vmem:[%s2562] sm:$0x7]
        %v7878 = vsel %vm214, %v7807, 0
        %v7880 = vsel %vm214, %v7809, 0
        %v7882 = vsel %vm214, %v7811, 0
        %v7884 = vsel %vm214, %v7813, 0
        %v7886 = vsel %vm214, %v7816, 0
        %v7888 = vsel %vm214, %v7818, 0
        %v7890 = vsel %vm214, %v7820, 0
        %v7892 = vsel %vm214, %v7822, 0
        %v7894 = vsel %vm214, %v7825, 0
        %v7896 = vsel %vm214, %v7827, 0
        %v7898 = vsel %vm214, %v7829, 0
        %v7900 = vsel %vm214, %v7831, 0
        %v7902 = vsel %vm214, %v7834, 0
        %v7904 = vsel %vm214, %v7836, 0
        %v7906 = vsel %vm214, %v7838, 0
        %v7908 = vsel %vm214, %v7840, 0
        %v7910 = vsel %vm214, %v7843, 0
        %v7912 = vsel %vm214, %v7845, 0
        %v7914 = vsel %vm214, %v7847, 0
        %v7916 = vsel %vm214, %v7849, 0
        %v7918 = vsel %vm214, %v7852, 0
        %v7920 = vsel %vm214, %v7854, 0
        %v7922 = vsel %vm214, %v7856, 0
        %v7924 = vsel %vm214, %v7858, 0
        %v7926 = vsel %vm214, %v7861, 0
        %v7928 = vsel %vm214, %v7863, 0
        %v7930 = vsel %vm214, %v7865, 0
        %v7932 = vsel %vm214, %v7867, 0
        %v7934 = vsel %vm214, %v7870, 0
        %v7936 = vsel %vm214, %v7872, 0
        %v7938 = vsel %vm214, %v7874, 0
        %v7940 = vsel %vm214, %v7876, 0
        %v7943 = vsel %vm311, %v7877, 0
        %7945 = vmatpush.msra.mxu0 0.0
        %7946 = vmatpush.msra.mxu0 0.0
        %7947 = vmatpush.msra.mxu0 0.0
        %7948 = vmatpush.msra.mxu0 0.0
        %7949 = vmatpush.msra.mxu0 0.0
        %7950 = vmatpush.msra.mxu0 0.0
        %7951 = vmatpush.msra.mxu0 0.0
        %7952 = vmatpush.msra.mxu0 0.0
        %7953 = vmatpush.msra.mxu0 0.0
        %7954 = vmatpush.msra.mxu0 0.0
        %7955 = vmatpush.msra.mxu0 0.0
        %7956 = vmatpush.msra.mxu0 0.0
        %7957 = vmatpush.msra.mxu0 0.0
        %7958 = vmatpush.msra.mxu0 0.0
        %7959 = vmatpush.msra.mxu0 0.0
        %7960 = vmatpush.msra.mxu0 %v7943
        %7961 = vmatmul.f32.gmra.mxu0 %v7878
        %v7962 = vpop.f32.mrf.mxu0
        %v7963 = vadd.f32 0.0, %v7962
        %7964 = vmatmul.f32.gmra.mxu0 %v7880
        %v7965 = vpop.f32.mrf.mxu0
        %v7966 = vadd.f32 0.0, %v7965
        %7967 = vmatmul.f32.gmra.mxu0 %v7882
        %v7968 = vpop.f32.mrf.mxu0
        %v7969 = vadd.f32 0.0, %v7968
        %7970 = vmatmul.f32.gmra.mxu0 %v7884
        %v7971 = vpop.f32.mrf.mxu0
        %v7972 = vadd.f32 0.0, %v7971
        %7973 = vmatmul.f32.gmra.mxu0 %v7886
        %v7974 = vpop.f32.mrf.mxu0
        %v7975 = vadd.f32 0.0, %v7974
        %7976 = vmatmul.f32.gmra.mxu0 %v7888
        %v7977 = vpop.f32.mrf.mxu0
        %v7978 = vadd.f32 0.0, %v7977
        %7979 = vmatmul.f32.gmra.mxu0 %v7890
        %v7980 = vpop.f32.mrf.mxu0
        %v7981 = vadd.f32 0.0, %v7980
        %7982 = vmatmul.f32.gmra.mxu0 %v7892
        %v7983 = vpop.f32.mrf.mxu0
        %v7984 = vadd.f32 0.0, %v7983
        %7985 = vmatmul.f32.gmra.mxu0 %v7894
        %v7986 = vpop.f32.mrf.mxu0
        %v7987 = vadd.f32 0.0, %v7986
        %7988 = vmatmul.f32.gmra.mxu0 %v7896
        %v7989 = vpop.f32.mrf.mxu0
        %v7990 = vadd.f32 0.0, %v7989
        %7991 = vmatmul.f32.gmra.mxu0 %v7898
        %v7992 = vpop.f32.mrf.mxu0
        %v7993 = vadd.f32 0.0, %v7992
        %7994 = vmatmul.f32.gmra.mxu0 %v7900
        %v7995 = vpop.f32.mrf.mxu0
        %v7996 = vadd.f32 0.0, %v7995
        %7997 = vmatmul.f32.gmra.mxu0 %v7902
        %v7998 = vpop.f32.mrf.mxu0
        %v7999 = vadd.f32 0.0, %v7998
        %8000 = vmatmul.f32.gmra.mxu0 %v7904
        %v8001 = vpop.f32.mrf.mxu0
        %v8002 = vadd.f32 0.0, %v8001
        %8003 = vmatmul.f32.gmra.mxu0 %v7906
        %v8004 = vpop.f32.mrf.mxu0
        %v8005 = vadd.f32 0.0, %v8004
        %8006 = vmatmul.f32.gmra.mxu0 %v7908
        %v8007 = vpop.f32.mrf.mxu0
        %v8008 = vadd.f32 0.0, %v8007
        %8009 = vmatmul.f32.gmra.mxu0 %v7910
        %v8010 = vpop.f32.mrf.mxu0
        %v8011 = vadd.f32 0.0, %v8010
        %8012 = vmatmul.f32.gmra.mxu0 %v7912
        %v8013 = vpop.f32.mrf.mxu0
        %v8014 = vadd.f32 0.0, %v8013
        %8015 = vmatmul.f32.gmra.mxu0 %v7914
        %v8016 = vpop.f32.mrf.mxu0
        %v8017 = vadd.f32 0.0, %v8016
        %8018 = vmatmul.f32.gmra.mxu0 %v7916
        %v8019 = vpop.f32.mrf.mxu0
        %v8020 = vadd.f32 0.0, %v8019
        %8021 = vmatmul.f32.gmra.mxu0 %v7918
        %v8022 = vpop.f32.mrf.mxu0
        %v8023 = vadd.f32 0.0, %v8022
        %8024 = vmatmul.f32.gmra.mxu0 %v7920
        %v8025 = vpop.f32.mrf.mxu0
        %v8026 = vadd.f32 0.0, %v8025
        %8027 = vmatmul.f32.gmra.mxu0 %v7922
        %v8028 = vpop.f32.mrf.mxu0
        %v8029 = vadd.f32 0.0, %v8028
        %8030 = vmatmul.f32.gmra.mxu0 %v7924
        %v8031 = vpop.f32.mrf.mxu0
        %v8032 = vadd.f32 0.0, %v8031
        %8033 = vmatmul.f32.gmra.mxu0 %v7926
        %v8034 = vpop.f32.mrf.mxu0
        %v8035 = vadd.f32 0.0, %v8034
        %8036 = vmatmul.f32.gmra.mxu0 %v7928
        %v8037 = vpop.f32.mrf.mxu0
        %v8038 = vadd.f32 0.0, %v8037
        %8039 = vmatmul.f32.gmra.mxu0 %v7930
        %v8040 = vpop.f32.mrf.mxu0
        %v8041 = vadd.f32 0.0, %v8040
        %8042 = vmatmul.f32.gmra.mxu0 %v7932
        %v8043 = vpop.f32.mrf.mxu0
        %v8044 = vadd.f32 0.0, %v8043
        %8045 = vmatmul.f32.gmra.mxu0 %v7934
        %v8046 = vpop.f32.mrf.mxu0
        %v8047 = vadd.f32 0.0, %v8046
        %8048 = vmatmul.f32.gmra.mxu0 %v7936
        %v8049 = vpop.f32.mrf.mxu0
        %v8050 = vadd.f32 0.0, %v8049
        %8051 = vmatmul.f32.gmra.mxu0 %v7938
        %v8052 = vpop.f32.mrf.mxu0
        %v8053 = vadd.f32 0.0, %v8052
        %8054 = vmatmul.f32.gmra.mxu0 %v7940
        %v8055 = vpop.f32.mrf.mxu0
        %v8056 = vadd.f32 0.0, %v8055
        %8057 = vdwg.mxu0
        %v8058 = vadd.f32 %v7773, %v7963
        %v8059 = vadd.f32 %v7774, %v7966
        %v8060 = vadd.f32 %v7775, %v7969
        %v8061 = vadd.f32 %v7776, %v7972
        %v8062 = vadd.f32 %v7777, %v7975
        %v8063 = vadd.f32 %v7778, %v7978
        %v8064 = vadd.f32 %v7779, %v7981
        %v8065 = vadd.f32 %v7780, %v7984
        %v8066 = vadd.f32 %v7781, %v7987
        %v8067 = vadd.f32 %v7782, %v7990
        %v8068 = vadd.f32 %v7783, %v7993
        %v8069 = vadd.f32 %v7784, %v7996
        %v8070 = vadd.f32 %v7785, %v7999
        %v8071 = vadd.f32 %v7786, %v8002
        %v8072 = vadd.f32 %v7787, %v8005
        %v8073 = vadd.f32 %v7788, %v8008
        %v8074 = vadd.f32 %v7789, %v8011
        %v8075 = vadd.f32 %v7790, %v8014
        %v8076 = vadd.f32 %v7791, %v8017
        %v8077 = vadd.f32 %v7792, %v8020
        %v8078 = vadd.f32 %v7793, %v8023
        %v8079 = vadd.f32 %v7794, %v8026
        %v8080 = vadd.f32 %v7795, %v8029
        %v8081 = vadd.f32 %v7796, %v8032
        %v8082 = vadd.f32 %v7797, %v8035
        %v8083 = vadd.f32 %v7798, %v8038
        %v8084 = vadd.f32 %v7799, %v8041
        %v8085 = vadd.f32 %v7800, %v8044
        %v8086 = vadd.f32 %v7801, %v8047
        %v8087 = vadd.f32 %v7802, %v8050
        %v8088 = vadd.f32 %v7803, %v8053
        %v8089 = vadd.f32 %v7804, %v8056
        %v8090 = vmax.f32 %v8058, 0.0
        %v8091 = vmax.f32 %v8059, 0.0
        %v8092 = vmax.f32 %v8060, 0.0
        %v8093 = vmax.f32 %v8061, 0.0
        %v8094 = vmax.f32 %v8062, 0.0
        %v8095 = vmax.f32 %v8063, 0.0
        %v8096 = vmax.f32 %v8064, 0.0
        %v8097 = vmax.f32 %v8065, 0.0
        %v8098 = vmax.f32 %v8066, 0.0
        %v8099 = vmax.f32 %v8067, 0.0
        %v8100 = vmax.f32 %v8068, 0.0
        %v8101 = vmax.f32 %v8069, 0.0
        %v8102 = vmax.f32 %v8070, 0.0
        %v8103 = vmax.f32 %v8071, 0.0
        %v8104 = vmax.f32 %v8072, 0.0
        %v8105 = vmax.f32 %v8073, 0.0
        %v8106 = vmax.f32 %v8074, 0.0
        %v8107 = vmax.f32 %v8075, 0.0
        %v8108 = vmax.f32 %v8076, 0.0
        %v8109 = vmax.f32 %v8077, 0.0
        %v8110 = vmax.f32 %v8078, 0.0
        %v8111 = vmax.f32 %v8079, 0.0
        %v8112 = vmax.f32 %v8080, 0.0
        %v8113 = vmax.f32 %v8081, 0.0
        %v8114 = vmax.f32 %v8082, 0.0
        %v8115 = vmax.f32 %v8083, 0.0
        %v8116 = vmax.f32 %v8084, 0.0
        %v8117 = vmax.f32 %v8085, 0.0
        %v8118 = vmax.f32 %v8086, 0.0
        %v8119 = vmax.f32 %v8087, 0.0
        %v8120 = vmax.f32 %v8088, 0.0
        %v8121 = vmax.f32 %v8089, 0.0
        %s8122 = scalar_lea.vmem %s163, 512 [#allocation2]
        %8123 = vst.msk [vmem:[%s8122] sm:$0xff] %vm2808, %v8090
        %8124 = vst.msk [vmem:[%s8122 + $0x8] sm:$0xff] %vm2808, %v8091
        %8125 = vst.msk [vmem:[%s8122 + $0x10] sm:$0xff] %vm2808, %v8092
        %8126 = vst.msk [vmem:[%s8122 + $0x18] sm:$0xff] %vm2808, %v8093
        %8127 = vst.msk [vmem:[%s8122 + $0x20] sm:$0xff] %vm2808, %v8094
        %8128 = vst.msk [vmem:[%s8122 + $0x28] sm:$0xff] %vm2808, %v8095
        %8129 = vst.msk [vmem:[%s8122 + $0x30] sm:$0xff] %vm2808, %v8096
        %8130 = vst.msk [vmem:[%s8122 + $0x38] sm:$0xff] %vm2808, %v8097
        %8131 = vst.msk [vmem:[%s8122 + $0x40] sm:$0xff] %vm2808, %v8098
        %8132 = vst.msk [vmem:[%s8122 + $0x48] sm:$0xff] %vm2808, %v8099
        %8133 = vst.msk [vmem:[%s8122 + $0x50] sm:$0xff] %vm2808, %v8100
        %8134 = vst.msk [vmem:[%s8122 + $0x58] sm:$0xff] %vm2808, %v8101
        %8135 = vst.msk [vmem:[%s8122 + $0x60] sm:$0xff] %vm2808, %v8102
        %8136 = vst.msk [vmem:[%s8122 + $0x68] sm:$0xff] %vm2808, %v8103
        %8137 = vst.msk [vmem:[%s8122 + $0x70] sm:$0xff] %vm2808, %v8104
        %8138 = vst.msk [vmem:[%s8122 + $0x78] sm:$0xff] %vm2808, %v8105
        %8139 = vst.msk [vmem:[%s8122 + $0x80] sm:$0xff] %vm2808, %v8106
        %8140 = vst.msk [vmem:[%s8122 + $0x88] sm:$0xff] %vm2808, %v8107
        %8141 = vst.msk [vmem:[%s8122 + $0x90] sm:$0xff] %vm2808, %v8108
        %8142 = vst.msk [vmem:[%s8122 + $0x98] sm:$0xff] %vm2808, %v8109
        %8143 = vst.msk [vmem:[%s8122 + $0xa0] sm:$0xff] %vm2808, %v8110
        %8144 = vst.msk [vmem:[%s8122 + $0xa8] sm:$0xff] %vm2808, %v8111
        %8145 = vst.msk [vmem:[%s8122 + $0xb0] sm:$0xff] %vm2808, %v8112
        %8146 = vst.msk [vmem:[%s8122 + $0xb8] sm:$0xff] %vm2808, %v8113
        %8147 = vst.msk [vmem:[%s8122 + $0xc0] sm:$0xff] %vm2808, %v8114
        %8148 = vst.msk [vmem:[%s8122 + $0xc8] sm:$0xff] %vm2808, %v8115
        %8149 = vst.msk [vmem:[%s8122 + $0xd0] sm:$0xff] %vm2808, %v8116
        %8150 = vst.msk [vmem:[%s8122 + $0xd8] sm:$0xff] %vm2808, %v8117
        %8151 = vst.msk [vmem:[%s8122 + $0xe0] sm:$0xff] %vm2808, %v8118
        %8152 = vst.msk [vmem:[%s8122 + $0xe8] sm:$0xff] %vm2808, %v8119
        %8153 = vst.msk [vmem:[%s8122 + $0xf0] sm:$0xff] %vm2808, %v8120
        %8154 = vst.msk [vmem:[%s8122 + $0xf8] sm:$0xff] %vm2808, %v8121
        %s8155 = scalar_lea.vmem %s168, 960
        %v8156 = vld [vmem:[%s8155] sm:$0xff]
        %v8157 = vld [vmem:[%s8155 + $0x8] sm:$0xff]
        %v8158 = vld [vmem:[%s8155 + $0x10] sm:$0xff]
        %v8159 = vld [vmem:[%s8155 + $0x18] sm:$0xff]
        %v8160 = vld [vmem:[%s8155 + $0x20] sm:$0x3]
        %v8161 = vld [vmem:[%s8155 + $0x28] sm:$0xff]
        %v8162 = vld [vmem:[%s8155 + $0x30] sm:$0xff]
        %v8163 = vld [vmem:[%s8155 + $0x38] sm:$0xff]
        %v8164 = vld [vmem:[%s8155 + $0x40] sm:$0xff]
        %v8165 = vld [vmem:[%s8155 + $0x48] sm:$0x3]
        %v8166 = vld [vmem:[%s8155 + $0x50] sm:$0xff]
        %v8167 = vld [vmem:[%s8155 + $0x58] sm:$0xff]
        %v8168 = vld [vmem:[%s8155 + $0x60] sm:$0xff]
        %v8169 = vld [vmem:[%s8155 + $0x68] sm:$0xff]
        %v8170 = vld [vmem:[%s8155 + $0x70] sm:$0x3]
        %v8171 = vld [vmem:[%s8155 + $0x78] sm:$0xff]
        %v8172 = vld [vmem:[%s8155 + $0x80] sm:$0xff]
        %v8173 = vld [vmem:[%s8155 + $0x88] sm:$0xff]
        %v8174 = vld [vmem:[%s8155 + $0x90] sm:$0xff]
        %v8175 = vld [vmem:[%s8155 + $0x98] sm:$0x3]
        %v8176 = vld [vmem:[%s8155 + $0xa0] sm:$0xff]
        %v8177 = vld [vmem:[%s8155 + $0xa8] sm:$0xff]
        %v8178 = vld [vmem:[%s8155 + $0xb0] sm:$0xff]
        %v8179 = vld [vmem:[%s8155 + $0xb8] sm:$0xff]
        %v8180 = vld [vmem:[%s8155 + $0xc0] sm:$0x3]
        %v8181 = vld [vmem:[%s8155 + $0xc8] sm:$0xff]
        %v8182 = vld [vmem:[%s8155 + $0xd0] sm:$0xff]
        %v8183 = vld [vmem:[%s8155 + $0xd8] sm:$0xff]
        %v8184 = vld [vmem:[%s8155 + $0xe0] sm:$0xff]
        %v8185 = vld [vmem:[%s8155 + $0xe8] sm:$0x3]
        %v8186 = vld [vmem:[%s8155 + $0xf0] sm:$0xff]
        %v8187 = vld [vmem:[%s8155 + $0xf8] sm:$0xff]
        %v8188 = vld [vmem:[%s8155 + $0x100] sm:$0xff]
        %v8189 = vld [vmem:[%s8155 + $0x108] sm:$0xff]
        %v8190 = vld [vmem:[%s8155 + $0x110] sm:$0x3]
        %v8191 = vld [vmem:[%s8155 + $0x118] sm:$0xff]
        %v8192 = vld [vmem:[%s8155 + $0x120] sm:$0xff]
        %v8193 = vld [vmem:[%s8155 + $0x128] sm:$0xff]
        %v8194 = vld [vmem:[%s8155 + $0x130] sm:$0xff]
        %v8195 = vld [vmem:[%s8155 + $0x138] sm:$0x3]
        %v8196 = vld [vmem:[%s1] sm:$0x7]
        %v8198 = vsel %vm214, %v8156, 0
        %v8201 = vsel %vm214, %v8157, 0
        %v8204 = vsel %vm214, %v8158, 0
        %v8207 = vsel %vm214, %v8159, 0
        %v8210 = vsel %vm214, %v8161, 0
        %v8213 = vsel %vm214, %v8162, 0
        %v8216 = vsel %vm214, %v8163, 0
        %v8219 = vsel %vm214, %v8164, 0
        %v8222 = vsel %vm214, %v8166, 0
        %v8225 = vsel %vm214, %v8167, 0
        %v8228 = vsel %vm214, %v8168, 0
        %v8231 = vsel %vm214, %v8169, 0
        %v8234 = vsel %vm214, %v8171, 0
        %v8237 = vsel %vm214, %v8172, 0
        %v8240 = vsel %vm214, %v8173, 0
        %v8243 = vsel %vm214, %v8174, 0
        %v8246 = vsel %vm214, %v8176, 0
        %v8249 = vsel %vm214, %v8177, 0
        %v8252 = vsel %vm214, %v8178, 0
        %v8255 = vsel %vm214, %v8179, 0
        %v8258 = vsel %vm214, %v8181, 0
        %v8261 = vsel %vm214, %v8182, 0
        %v8264 = vsel %vm214, %v8183, 0
        %v8267 = vsel %vm214, %v8184, 0
        %v8270 = vsel %vm214, %v8186, 0
        %v8273 = vsel %vm214, %v8187, 0
        %v8276 = vsel %vm214, %v8188, 0
        %v8279 = vsel %vm214, %v8189, 0
        %v8282 = vsel %vm214, %v8191, 0
        %v8285 = vsel %vm214, %v8192, 0
        %v8288 = vsel %vm214, %v8193, 0
        %v8291 = vsel %vm214, %v8194, 0
        %v8294 = vsel %vm311, %v8196, 0
        %8296 = vmatpush.msra.mxu0 0.0
        %8297 = vmatpush.msra.mxu0 0.0
        %8298 = vmatpush.msra.mxu0 0.0
        %8299 = vmatpush.msra.mxu0 0.0
        %8300 = vmatpush.msra.mxu0 0.0
        %8301 = vmatpush.msra.mxu0 0.0
        %8302 = vmatpush.msra.mxu0 0.0
        %8303 = vmatpush.msra.mxu0 0.0
        %8304 = vmatpush.msra.mxu0 0.0
        %8305 = vmatpush.msra.mxu0 0.0
        %8306 = vmatpush.msra.mxu0 0.0
        %8307 = vmatpush.msra.mxu0 0.0
        %8308 = vmatpush.msra.mxu0 0.0
        %8309 = vmatpush.msra.mxu0 0.0
        %8310 = vmatpush.msra.mxu0 0.0
        %8311 = vmatpush.msra.mxu0 %v8294
        %8312 = vmatmul.f32.gmra.mxu0 %v8198
        %v8313 = vpop.f32.mrf.mxu0
        %v8314 = vadd.f32 0.0, %v8313
        %8315 = vmatmul.f32.gmra.mxu0 %v8201
        %v8316 = vpop.f32.mrf.mxu0
        %v8317 = vadd.f32 0.0, %v8316
        %8318 = vmatmul.f32.gmra.mxu0 %v8204
        %v8319 = vpop.f32.mrf.mxu0
        %v8320 = vadd.f32 0.0, %v8319
        %8321 = vmatmul.f32.gmra.mxu0 %v8207
        %v8322 = vpop.f32.mrf.mxu0
        %v8323 = vadd.f32 0.0, %v8322
        %8324 = vmatmul.f32.gmra.mxu0 %v8210
        %v8325 = vpop.f32.mrf.mxu0
        %v8326 = vadd.f32 0.0, %v8325
        %8327 = vmatmul.f32.gmra.mxu0 %v8213
        %v8328 = vpop.f32.mrf.mxu0
        %v8329 = vadd.f32 0.0, %v8328
        %8330 = vmatmul.f32.gmra.mxu0 %v8216
        %v8331 = vpop.f32.mrf.mxu0
        %v8332 = vadd.f32 0.0, %v8331
        %8333 = vmatmul.f32.gmra.mxu0 %v8219
        %v8334 = vpop.f32.mrf.mxu0
        %v8335 = vadd.f32 0.0, %v8334
        %8336 = vmatmul.f32.gmra.mxu0 %v8222
        %v8337 = vpop.f32.mrf.mxu0
        %v8338 = vadd.f32 0.0, %v8337
        %8339 = vmatmul.f32.gmra.mxu0 %v8225
        %v8340 = vpop.f32.mrf.mxu0
        %v8341 = vadd.f32 0.0, %v8340
        %8342 = vmatmul.f32.gmra.mxu0 %v8228
        %v8343 = vpop.f32.mrf.mxu0
        %v8344 = vadd.f32 0.0, %v8343
        %8345 = vmatmul.f32.gmra.mxu0 %v8231
        %v8346 = vpop.f32.mrf.mxu0
        %v8347 = vadd.f32 0.0, %v8346
        %8348 = vmatmul.f32.gmra.mxu0 %v8234
        %v8349 = vpop.f32.mrf.mxu0
        %v8350 = vadd.f32 0.0, %v8349
        %8351 = vmatmul.f32.gmra.mxu0 %v8237
        %v8352 = vpop.f32.mrf.mxu0
        %v8353 = vadd.f32 0.0, %v8352
        %8354 = vmatmul.f32.gmra.mxu0 %v8240
        %v8355 = vpop.f32.mrf.mxu0
        %v8356 = vadd.f32 0.0, %v8355
        %8357 = vmatmul.f32.gmra.mxu0 %v8243
        %v8358 = vpop.f32.mrf.mxu0
        %v8359 = vadd.f32 0.0, %v8358
        %8360 = vmatmul.f32.gmra.mxu0 %v8246
        %v8361 = vpop.f32.mrf.mxu0
        %v8362 = vadd.f32 0.0, %v8361
        %8363 = vmatmul.f32.gmra.mxu0 %v8249
        %v8364 = vpop.f32.mrf.mxu0
        %v8365 = vadd.f32 0.0, %v8364
        %8366 = vmatmul.f32.gmra.mxu0 %v8252
        %v8367 = vpop.f32.mrf.mxu0
        %v8368 = vadd.f32 0.0, %v8367
        %8369 = vmatmul.f32.gmra.mxu0 %v8255
        %v8370 = vpop.f32.mrf.mxu0
        %v8371 = vadd.f32 0.0, %v8370
        %8372 = vmatmul.f32.gmra.mxu0 %v8258
        %v8373 = vpop.f32.mrf.mxu0
        %v8374 = vadd.f32 0.0, %v8373
        %8375 = vmatmul.f32.gmra.mxu0 %v8261
        %v8376 = vpop.f32.mrf.mxu0
        %v8377 = vadd.f32 0.0, %v8376
        %8378 = vmatmul.f32.gmra.mxu0 %v8264
        %v8379 = vpop.f32.mrf.mxu0
        %v8380 = vadd.f32 0.0, %v8379
        %8381 = vmatmul.f32.gmra.mxu0 %v8267
        %v8382 = vpop.f32.mrf.mxu0
        %v8383 = vadd.f32 0.0, %v8382
        %8384 = vmatmul.f32.gmra.mxu0 %v8270
        %v8385 = vpop.f32.mrf.mxu0
        %v8386 = vadd.f32 0.0, %v8385
        %8387 = vmatmul.f32.gmra.mxu0 %v8273
        %v8388 = vpop.f32.mrf.mxu0
        %v8389 = vadd.f32 0.0, %v8388
        %8390 = vmatmul.f32.gmra.mxu0 %v8276
        %v8391 = vpop.f32.mrf.mxu0
        %v8392 = vadd.f32 0.0, %v8391
        %8393 = vmatmul.f32.gmra.mxu0 %v8279
        %v8394 = vpop.f32.mrf.mxu0
        %v8395 = vadd.f32 0.0, %v8394
        %8396 = vmatmul.f32.gmra.mxu0 %v8282
        %v8397 = vpop.f32.mrf.mxu0
        %v8398 = vadd.f32 0.0, %v8397
        %8399 = vmatmul.f32.gmra.mxu0 %v8285
        %v8400 = vpop.f32.mrf.mxu0
        %v8401 = vadd.f32 0.0, %v8400
        %8402 = vmatmul.f32.gmra.mxu0 %v8288
        %v8403 = vpop.f32.mrf.mxu0
        %v8404 = vadd.f32 0.0, %v8403
        %8405 = vmatmul.f32.gmra.mxu0 %v8291
        %v8406 = vpop.f32.mrf.mxu0
        %v8407 = vadd.f32 0.0, %v8406
        %8408 = vdwg.mxu0
        %v8409 = vadd.f32 %v171, %v8314
        %v8410 = vadd.f32 %v171, %v8317
        %v8411 = vadd.f32 %v171, %v8320
        %v8412 = vadd.f32 %v171, %v8323
        %v8413 = vadd.f32 %v171, %v8326
        %v8414 = vadd.f32 %v171, %v8329
        %v8415 = vadd.f32 %v171, %v8332
        %v8416 = vadd.f32 %v171, %v8335
        %v8417 = vadd.f32 %v171, %v8338
        %v8418 = vadd.f32 %v171, %v8341
        %v8419 = vadd.f32 %v171, %v8344
        %v8420 = vadd.f32 %v171, %v8347
        %v8421 = vadd.f32 %v171, %v8350
        %v8422 = vadd.f32 %v171, %v8353
        %v8423 = vadd.f32 %v171, %v8356
        %v8424 = vadd.f32 %v171, %v8359
        %v8425 = vadd.f32 %v171, %v8362
        %v8426 = vadd.f32 %v171, %v8365
        %v8427 = vadd.f32 %v171, %v8368
        %v8428 = vadd.f32 %v171, %v8371
        %v8429 = vadd.f32 %v171, %v8374
        %v8430 = vadd.f32 %v171, %v8377
        %v8431 = vadd.f32 %v171, %v8380
        %v8432 = vadd.f32 %v171, %v8383
        %v8433 = vadd.f32 %v171, %v8386
        %v8434 = vadd.f32 %v171, %v8389
        %v8435 = vadd.f32 %v171, %v8392
        %v8436 = vadd.f32 %v171, %v8395
        %v8437 = vadd.f32 %v171, %v8398
        %v8438 = vadd.f32 %v171, %v8401
        %v8439 = vadd.f32 %v171, %v8404
        %v8440 = vadd.f32 %v171, %v8407
        %v8449 = vrot.slane %v8156, 1
        %v8450 = vrot.slane %v8157, 1
        %v8451 = vsel %vm468, %v8449, %v8450
        %v8452 = vrot.slane %v8158, 1
        %v8453 = vsel %vm468, %v8450, %v8452
        %v8454 = vrot.slane %v8159, 1
        %v8455 = vsel %vm468, %v8452, %v8454
        %v8456 = vrot.slane %v8160, 1
        %v8457 = vsel %vm468, %v8454, %v8456
        %v8458 = vrot.slane %v8161, 1
        %v8459 = vrot.slane %v8162, 1
        %v8460 = vsel %vm468, %v8458, %v8459
        %v8461 = vrot.slane %v8163, 1
        %v8462 = vsel %vm468, %v8459, %v8461
        %v8463 = vrot.slane %v8164, 1
        %v8464 = vsel %vm468, %v8461, %v8463
        %v8465 = vrot.slane %v8165, 1
        %v8466 = vsel %vm468, %v8463, %v8465
        %v8467 = vrot.slane %v8166, 1
        %v8468 = vrot.slane %v8167, 1
        %v8469 = vsel %vm468, %v8467, %v8468
        %v8470 = vrot.slane %v8168, 1
        %v8471 = vsel %vm468, %v8468, %v8470
        %v8472 = vrot.slane %v8169, 1
        %v8473 = vsel %vm468, %v8470, %v8472
        %v8474 = vrot.slane %v8170, 1
        %v8475 = vsel %vm468, %v8472, %v8474
        %v8476 = vrot.slane %v8171, 1
        %v8477 = vrot.slane %v8172, 1
        %v8478 = vsel %vm468, %v8476, %v8477
        %v8479 = vrot.slane %v8173, 1
        %v8480 = vsel %vm468, %v8477, %v8479
        %v8481 = vrot.slane %v8174, 1
        %v8482 = vsel %vm468, %v8479, %v8481
        %v8483 = vrot.slane %v8175, 1
        %v8484 = vsel %vm468, %v8481, %v8483
        %v8485 = vrot.slane %v8176, 1
        %v8486 = vrot.slane %v8177, 1
        %v8487 = vsel %vm468, %v8485, %v8486
        %v8488 = vrot.slane %v8178, 1
        %v8489 = vsel %vm468, %v8486, %v8488
        %v8490 = vrot.slane %v8179, 1
        %v8491 = vsel %vm468, %v8488, %v8490
        %v8492 = vrot.slane %v8180, 1
        %v8493 = vsel %vm468, %v8490, %v8492
        %v8494 = vrot.slane %v8181, 1
        %v8495 = vrot.slane %v8182, 1
        %v8496 = vsel %vm468, %v8494, %v8495
        %v8497 = vrot.slane %v8183, 1
        %v8498 = vsel %vm468, %v8495, %v8497
        %v8499 = vrot.slane %v8184, 1
        %v8500 = vsel %vm468, %v8497, %v8499
        %v8501 = vrot.slane %v8185, 1
        %v8502 = vsel %vm468, %v8499, %v8501
        %v8503 = vrot.slane %v8186, 1
        %v8504 = vrot.slane %v8187, 1
        %v8505 = vsel %vm468, %v8503, %v8504
        %v8506 = vrot.slane %v8188, 1
        %v8507 = vsel %vm468, %v8504, %v8506
        %v8508 = vrot.slane %v8189, 1
        %v8509 = vsel %vm468, %v8506, %v8508
        %v8510 = vrot.slane %v8190, 1
        %v8511 = vsel %vm468, %v8508, %v8510
        %v8512 = vrot.slane %v8191, 1
        %v8513 = vrot.slane %v8192, 1
        %v8514 = vsel %vm468, %v8512, %v8513
        %v8515 = vrot.slane %v8193, 1
        %v8516 = vsel %vm468, %v8513, %v8515
        %v8517 = vrot.slane %v8194, 1
        %v8518 = vsel %vm468, %v8515, %v8517
        %v8519 = vrot.slane %v8195, 1
        %v8520 = vsel %vm468, %v8517, %v8519
        %v8521 = vld [vmem:[%s541] sm:$0x7]
        %v8522 = vsel %vm214, %v8451, 0
        %v8524 = vsel %vm214, %v8453, 0
        %v8526 = vsel %vm214, %v8455, 0
        %v8528 = vsel %vm214, %v8457, 0
        %v8530 = vsel %vm214, %v8460, 0
        %v8532 = vsel %vm214, %v8462, 0
        %v8534 = vsel %vm214, %v8464, 0
        %v8536 = vsel %vm214, %v8466, 0
        %v8538 = vsel %vm214, %v8469, 0
        %v8540 = vsel %vm214, %v8471, 0
        %v8542 = vsel %vm214, %v8473, 0
        %v8544 = vsel %vm214, %v8475, 0
        %v8546 = vsel %vm214, %v8478, 0
        %v8548 = vsel %vm214, %v8480, 0
        %v8550 = vsel %vm214, %v8482, 0
        %v8552 = vsel %vm214, %v8484, 0
        %v8554 = vsel %vm214, %v8487, 0
        %v8556 = vsel %vm214, %v8489, 0
        %v8558 = vsel %vm214, %v8491, 0
        %v8560 = vsel %vm214, %v8493, 0
        %v8562 = vsel %vm214, %v8496, 0
        %v8564 = vsel %vm214, %v8498, 0
        %v8566 = vsel %vm214, %v8500, 0
        %v8568 = vsel %vm214, %v8502, 0
        %v8570 = vsel %vm214, %v8505, 0
        %v8572 = vsel %vm214, %v8507, 0
        %v8574 = vsel %vm214, %v8509, 0
        %v8576 = vsel %vm214, %v8511, 0
        %v8578 = vsel %vm214, %v8514, 0
        %v8580 = vsel %vm214, %v8516, 0
        %v8582 = vsel %vm214, %v8518, 0
        %v8584 = vsel %vm214, %v8520, 0
        %v8587 = vsel %vm311, %v8521, 0
        %8589 = vmatpush.msra.mxu0 0.0
        %8590 = vmatpush.msra.mxu0 0.0
        %8591 = vmatpush.msra.mxu0 0.0
        %8592 = vmatpush.msra.mxu0 0.0
        %8593 = vmatpush.msra.mxu0 0.0
        %8594 = vmatpush.msra.mxu0 0.0
        %8595 = vmatpush.msra.mxu0 0.0
        %8596 = vmatpush.msra.mxu0 0.0
        %8597 = vmatpush.msra.mxu0 0.0
        %8598 = vmatpush.msra.mxu0 0.0
        %8599 = vmatpush.msra.mxu0 0.0
        %8600 = vmatpush.msra.mxu0 0.0
        %8601 = vmatpush.msra.mxu0 0.0
        %8602 = vmatpush.msra.mxu0 0.0
        %8603 = vmatpush.msra.mxu0 0.0
        %8604 = vmatpush.msra.mxu0 %v8587
        %8605 = vmatmul.f32.gmra.mxu0 %v8522
        %v8606 = vpop.f32.mrf.mxu0
        %v8607 = vadd.f32 0.0, %v8606
        %8608 = vmatmul.f32.gmra.mxu0 %v8524
        %v8609 = vpop.f32.mrf.mxu0
        %v8610 = vadd.f32 0.0, %v8609
        %8611 = vmatmul.f32.gmra.mxu0 %v8526
        %v8612 = vpop.f32.mrf.mxu0
        %v8613 = vadd.f32 0.0, %v8612
        %8614 = vmatmul.f32.gmra.mxu0 %v8528
        %v8615 = vpop.f32.mrf.mxu0
        %v8616 = vadd.f32 0.0, %v8615
        %8617 = vmatmul.f32.gmra.mxu0 %v8530
        %v8618 = vpop.f32.mrf.mxu0
        %v8619 = vadd.f32 0.0, %v8618
        %8620 = vmatmul.f32.gmra.mxu0 %v8532
        %v8621 = vpop.f32.mrf.mxu0
        %v8622 = vadd.f32 0.0, %v8621
        %8623 = vmatmul.f32.gmra.mxu0 %v8534
        %v8624 = vpop.f32.mrf.mxu0
        %v8625 = vadd.f32 0.0, %v8624
        %8626 = vmatmul.f32.gmra.mxu0 %v8536
        %v8627 = vpop.f32.mrf.mxu0
        %v8628 = vadd.f32 0.0, %v8627
        %8629 = vmatmul.f32.gmra.mxu0 %v8538
        %v8630 = vpop.f32.mrf.mxu0
        %v8631 = vadd.f32 0.0, %v8630
        %8632 = vmatmul.f32.gmra.mxu0 %v8540
        %v8633 = vpop.f32.mrf.mxu0
        %v8634 = vadd.f32 0.0, %v8633
        %8635 = vmatmul.f32.gmra.mxu0 %v8542
        %v8636 = vpop.f32.mrf.mxu0
        %v8637 = vadd.f32 0.0, %v8636
        %8638 = vmatmul.f32.gmra.mxu0 %v8544
        %v8639 = vpop.f32.mrf.mxu0
        %v8640 = vadd.f32 0.0, %v8639
        %8641 = vmatmul.f32.gmra.mxu0 %v8546
        %v8642 = vpop.f32.mrf.mxu0
        %v8643 = vadd.f32 0.0, %v8642
        %8644 = vmatmul.f32.gmra.mxu0 %v8548
        %v8645 = vpop.f32.mrf.mxu0
        %v8646 = vadd.f32 0.0, %v8645
        %8647 = vmatmul.f32.gmra.mxu0 %v8550
        %v8648 = vpop.f32.mrf.mxu0
        %v8649 = vadd.f32 0.0, %v8648
        %8650 = vmatmul.f32.gmra.mxu0 %v8552
        %v8651 = vpop.f32.mrf.mxu0
        %v8652 = vadd.f32 0.0, %v8651
        %8653 = vmatmul.f32.gmra.mxu0 %v8554
        %v8654 = vpop.f32.mrf.mxu0
        %v8655 = vadd.f32 0.0, %v8654
        %8656 = vmatmul.f32.gmra.mxu0 %v8556
        %v8657 = vpop.f32.mrf.mxu0
        %v8658 = vadd.f32 0.0, %v8657
        %8659 = vmatmul.f32.gmra.mxu0 %v8558
        %v8660 = vpop.f32.mrf.mxu0
        %v8661 = vadd.f32 0.0, %v8660
        %8662 = vmatmul.f32.gmra.mxu0 %v8560
        %v8663 = vpop.f32.mrf.mxu0
        %v8664 = vadd.f32 0.0, %v8663
        %8665 = vmatmul.f32.gmra.mxu0 %v8562
        %v8666 = vpop.f32.mrf.mxu0
        %v8667 = vadd.f32 0.0, %v8666
        %8668 = vmatmul.f32.gmra.mxu0 %v8564
        %v8669 = vpop.f32.mrf.mxu0
        %v8670 = vadd.f32 0.0, %v8669
        %8671 = vmatmul.f32.gmra.mxu0 %v8566
        %v8672 = vpop.f32.mrf.mxu0
        %v8673 = vadd.f32 0.0, %v8672
        %8674 = vmatmul.f32.gmra.mxu0 %v8568
        %v8675 = vpop.f32.mrf.mxu0
        %v8676 = vadd.f32 0.0, %v8675
        %8677 = vmatmul.f32.gmra.mxu0 %v8570
        %v8678 = vpop.f32.mrf.mxu0
        %v8679 = vadd.f32 0.0, %v8678
        %8680 = vmatmul.f32.gmra.mxu0 %v8572
        %v8681 = vpop.f32.mrf.mxu0
        %v8682 = vadd.f32 0.0, %v8681
        %8683 = vmatmul.f32.gmra.mxu0 %v8574
        %v8684 = vpop.f32.mrf.mxu0
        %v8685 = vadd.f32 0.0, %v8684
        %8686 = vmatmul.f32.gmra.mxu0 %v8576
        %v8687 = vpop.f32.mrf.mxu0
        %v8688 = vadd.f32 0.0, %v8687
        %8689 = vmatmul.f32.gmra.mxu0 %v8578
        %v8690 = vpop.f32.mrf.mxu0
        %v8691 = vadd.f32 0.0, %v8690
        %8692 = vmatmul.f32.gmra.mxu0 %v8580
        %v8693 = vpop.f32.mrf.mxu0
        %v8694 = vadd.f32 0.0, %v8693
        %8695 = vmatmul.f32.gmra.mxu0 %v8582
        %v8696 = vpop.f32.mrf.mxu0
        %v8697 = vadd.f32 0.0, %v8696
        %8698 = vmatmul.f32.gmra.mxu0 %v8584
        %v8699 = vpop.f32.mrf.mxu0
        %v8700 = vadd.f32 0.0, %v8699
        %8701 = vdwg.mxu0
        %v8702 = vadd.f32 %v8409, %v8607
        %v8703 = vadd.f32 %v8410, %v8610
        %v8704 = vadd.f32 %v8411, %v8613
        %v8705 = vadd.f32 %v8412, %v8616
        %v8706 = vadd.f32 %v8413, %v8619
        %v8707 = vadd.f32 %v8414, %v8622
        %v8708 = vadd.f32 %v8415, %v8625
        %v8709 = vadd.f32 %v8416, %v8628
        %v8710 = vadd.f32 %v8417, %v8631
        %v8711 = vadd.f32 %v8418, %v8634
        %v8712 = vadd.f32 %v8419, %v8637
        %v8713 = vadd.f32 %v8420, %v8640
        %v8714 = vadd.f32 %v8421, %v8643
        %v8715 = vadd.f32 %v8422, %v8646
        %v8716 = vadd.f32 %v8423, %v8649
        %v8717 = vadd.f32 %v8424, %v8652
        %v8718 = vadd.f32 %v8425, %v8655
        %v8719 = vadd.f32 %v8426, %v8658
        %v8720 = vadd.f32 %v8427, %v8661
        %v8721 = vadd.f32 %v8428, %v8664
        %v8722 = vadd.f32 %v8429, %v8667
        %v8723 = vadd.f32 %v8430, %v8670
        %v8724 = vadd.f32 %v8431, %v8673
        %v8725 = vadd.f32 %v8432, %v8676
        %v8726 = vadd.f32 %v8433, %v8679
        %v8727 = vadd.f32 %v8434, %v8682
        %v8728 = vadd.f32 %v8435, %v8685
        %v8729 = vadd.f32 %v8436, %v8688
        %v8730 = vadd.f32 %v8437, %v8691
        %v8731 = vadd.f32 %v8438, %v8694
        %v8732 = vadd.f32 %v8439, %v8697
        %v8733 = vadd.f32 %v8440, %v8700
        %v8734 = vrot.slane %v8156, 2
        %v8735 = vrot.slane %v8157, 2
        %v8736 = vsel %vm755, %v8734, %v8735
        %v8737 = vrot.slane %v8158, 2
        %v8738 = vsel %vm755, %v8735, %v8737
        %v8739 = vrot.slane %v8159, 2
        %v8740 = vsel %vm755, %v8737, %v8739
        %v8741 = vrot.slane %v8160, 2
        %v8742 = vsel %vm755, %v8739, %v8741
        %v8743 = vrot.slane %v8161, 2
        %v8744 = vrot.slane %v8162, 2
        %v8745 = vsel %vm755, %v8743, %v8744
        %v8746 = vrot.slane %v8163, 2
        %v8747 = vsel %vm755, %v8744, %v8746
        %v8748 = vrot.slane %v8164, 2
        %v8749 = vsel %vm755, %v8746, %v8748
        %v8750 = vrot.slane %v8165, 2
        %v8751 = vsel %vm755, %v8748, %v8750
        %v8752 = vrot.slane %v8166, 2
        %v8753 = vrot.slane %v8167, 2
        %v8754 = vsel %vm755, %v8752, %v8753
        %v8755 = vrot.slane %v8168, 2
        %v8756 = vsel %vm755, %v8753, %v8755
        %v8757 = vrot.slane %v8169, 2
        %v8758 = vsel %vm755, %v8755, %v8757
        %v8759 = vrot.slane %v8170, 2
        %v8760 = vsel %vm755, %v8757, %v8759
        %v8761 = vrot.slane %v8171, 2
        %v8762 = vrot.slane %v8172, 2
        %v8763 = vsel %vm755, %v8761, %v8762
        %v8764 = vrot.slane %v8173, 2
        %v8765 = vsel %vm755, %v8762, %v8764
        %v8766 = vrot.slane %v8174, 2
        %v8767 = vsel %vm755, %v8764, %v8766
        %v8768 = vrot.slane %v8175, 2
        %v8769 = vsel %vm755, %v8766, %v8768
        %v8770 = vrot.slane %v8176, 2
        %v8771 = vrot.slane %v8177, 2
        %v8772 = vsel %vm755, %v8770, %v8771
        %v8773 = vrot.slane %v8178, 2
        %v8774 = vsel %vm755, %v8771, %v8773
        %v8775 = vrot.slane %v8179, 2
        %v8776 = vsel %vm755, %v8773, %v8775
        %v8777 = vrot.slane %v8180, 2
        %v8778 = vsel %vm755, %v8775, %v8777
        %v8779 = vrot.slane %v8181, 2
        %v8780 = vrot.slane %v8182, 2
        %v8781 = vsel %vm755, %v8779, %v8780
        %v8782 = vrot.slane %v8183, 2
        %v8783 = vsel %vm755, %v8780, %v8782
        %v8784 = vrot.slane %v8184, 2
        %v8785 = vsel %vm755, %v8782, %v8784
        %v8786 = vrot.slane %v8185, 2
        %v8787 = vsel %vm755, %v8784, %v8786
        %v8788 = vrot.slane %v8186, 2
        %v8789 = vrot.slane %v8187, 2
        %v8790 = vsel %vm755, %v8788, %v8789
        %v8791 = vrot.slane %v8188, 2
        %v8792 = vsel %vm755, %v8789, %v8791
        %v8793 = vrot.slane %v8189, 2
        %v8794 = vsel %vm755, %v8791, %v8793
        %v8795 = vrot.slane %v8190, 2
        %v8796 = vsel %vm755, %v8793, %v8795
        %v8797 = vrot.slane %v8191, 2
        %v8798 = vrot.slane %v8192, 2
        %v8799 = vsel %vm755, %v8797, %v8798
        %v8800 = vrot.slane %v8193, 2
        %v8801 = vsel %vm755, %v8798, %v8800
        %v8802 = vrot.slane %v8194, 2
        %v8803 = vsel %vm755, %v8800, %v8802
        %v8804 = vrot.slane %v8195, 2
        %v8805 = vsel %vm755, %v8802, %v8804
        %v8806 = vld [vmem:[%s828] sm:$0x7]
        %v8807 = vsel %vm214, %v8736, 0
        %v8809 = vsel %vm214, %v8738, 0
        %v8811 = vsel %vm214, %v8740, 0
        %v8813 = vsel %vm214, %v8742, 0
        %v8815 = vsel %vm214, %v8745, 0
        %v8817 = vsel %vm214, %v8747, 0
        %v8819 = vsel %vm214, %v8749, 0
        %v8821 = vsel %vm214, %v8751, 0
        %v8823 = vsel %vm214, %v8754, 0
        %v8825 = vsel %vm214, %v8756, 0
        %v8827 = vsel %vm214, %v8758, 0
        %v8829 = vsel %vm214, %v8760, 0
        %v8831 = vsel %vm214, %v8763, 0
        %v8833 = vsel %vm214, %v8765, 0
        %v8835 = vsel %vm214, %v8767, 0
        %v8837 = vsel %vm214, %v8769, 0
        %v8839 = vsel %vm214, %v8772, 0
        %v8841 = vsel %vm214, %v8774, 0
        %v8843 = vsel %vm214, %v8776, 0
        %v8845 = vsel %vm214, %v8778, 0
        %v8847 = vsel %vm214, %v8781, 0
        %v8849 = vsel %vm214, %v8783, 0
        %v8851 = vsel %vm214, %v8785, 0
        %v8853 = vsel %vm214, %v8787, 0
        %v8855 = vsel %vm214, %v8790, 0
        %v8857 = vsel %vm214, %v8792, 0
        %v8859 = vsel %vm214, %v8794, 0
        %v8861 = vsel %vm214, %v8796, 0
        %v8863 = vsel %vm214, %v8799, 0
        %v8865 = vsel %vm214, %v8801, 0
        %v8867 = vsel %vm214, %v8803, 0
        %v8869 = vsel %vm214, %v8805, 0
        %v8872 = vsel %vm311, %v8806, 0
        %8874 = vmatpush.msra.mxu0 0.0
        %8875 = vmatpush.msra.mxu0 0.0
        %8876 = vmatpush.msra.mxu0 0.0
        %8877 = vmatpush.msra.mxu0 0.0
        %8878 = vmatpush.msra.mxu0 0.0
        %8879 = vmatpush.msra.mxu0 0.0
        %8880 = vmatpush.msra.mxu0 0.0
        %8881 = vmatpush.msra.mxu0 0.0
        %8882 = vmatpush.msra.mxu0 0.0
        %8883 = vmatpush.msra.mxu0 0.0
        %8884 = vmatpush.msra.mxu0 0.0
        %8885 = vmatpush.msra.mxu0 0.0
        %8886 = vmatpush.msra.mxu0 0.0
        %8887 = vmatpush.msra.mxu0 0.0
        %8888 = vmatpush.msra.mxu0 0.0
        %8889 = vmatpush.msra.mxu0 %v8872
        %8890 = vmatmul.f32.gmra.mxu0 %v8807
        %v8891 = vpop.f32.mrf.mxu0
        %v8892 = vadd.f32 0.0, %v8891
        %8893 = vmatmul.f32.gmra.mxu0 %v8809
        %v8894 = vpop.f32.mrf.mxu0
        %v8895 = vadd.f32 0.0, %v8894
        %8896 = vmatmul.f32.gmra.mxu0 %v8811
        %v8897 = vpop.f32.mrf.mxu0
        %v8898 = vadd.f32 0.0, %v8897
        %8899 = vmatmul.f32.gmra.mxu0 %v8813
        %v8900 = vpop.f32.mrf.mxu0
        %v8901 = vadd.f32 0.0, %v8900
        %8902 = vmatmul.f32.gmra.mxu0 %v8815
        %v8903 = vpop.f32.mrf.mxu0
        %v8904 = vadd.f32 0.0, %v8903
        %8905 = vmatmul.f32.gmra.mxu0 %v8817
        %v8906 = vpop.f32.mrf.mxu0
        %v8907 = vadd.f32 0.0, %v8906
        %8908 = vmatmul.f32.gmra.mxu0 %v8819
        %v8909 = vpop.f32.mrf.mxu0
        %v8910 = vadd.f32 0.0, %v8909
        %8911 = vmatmul.f32.gmra.mxu0 %v8821
        %v8912 = vpop.f32.mrf.mxu0
        %v8913 = vadd.f32 0.0, %v8912
        %8914 = vmatmul.f32.gmra.mxu0 %v8823
        %v8915 = vpop.f32.mrf.mxu0
        %v8916 = vadd.f32 0.0, %v8915
        %8917 = vmatmul.f32.gmra.mxu0 %v8825
        %v8918 = vpop.f32.mrf.mxu0
        %v8919 = vadd.f32 0.0, %v8918
        %8920 = vmatmul.f32.gmra.mxu0 %v8827
        %v8921 = vpop.f32.mrf.mxu0
        %v8922 = vadd.f32 0.0, %v8921
        %8923 = vmatmul.f32.gmra.mxu0 %v8829
        %v8924 = vpop.f32.mrf.mxu0
        %v8925 = vadd.f32 0.0, %v8924
        %8926 = vmatmul.f32.gmra.mxu0 %v8831
        %v8927 = vpop.f32.mrf.mxu0
        %v8928 = vadd.f32 0.0, %v8927
        %8929 = vmatmul.f32.gmra.mxu0 %v8833
        %v8930 = vpop.f32.mrf.mxu0
        %v8931 = vadd.f32 0.0, %v8930
        %8932 = vmatmul.f32.gmra.mxu0 %v8835
        %v8933 = vpop.f32.mrf.mxu0
        %v8934 = vadd.f32 0.0, %v8933
        %8935 = vmatmul.f32.gmra.mxu0 %v8837
        %v8936 = vpop.f32.mrf.mxu0
        %v8937 = vadd.f32 0.0, %v8936
        %8938 = vmatmul.f32.gmra.mxu0 %v8839
        %v8939 = vpop.f32.mrf.mxu0
        %v8940 = vadd.f32 0.0, %v8939
        %8941 = vmatmul.f32.gmra.mxu0 %v8841
        %v8942 = vpop.f32.mrf.mxu0
        %v8943 = vadd.f32 0.0, %v8942
        %8944 = vmatmul.f32.gmra.mxu0 %v8843
        %v8945 = vpop.f32.mrf.mxu0
        %v8946 = vadd.f32 0.0, %v8945
        %8947 = vmatmul.f32.gmra.mxu0 %v8845
        %v8948 = vpop.f32.mrf.mxu0
        %v8949 = vadd.f32 0.0, %v8948
        %8950 = vmatmul.f32.gmra.mxu0 %v8847
        %v8951 = vpop.f32.mrf.mxu0
        %v8952 = vadd.f32 0.0, %v8951
        %8953 = vmatmul.f32.gmra.mxu0 %v8849
        %v8954 = vpop.f32.mrf.mxu0
        %v8955 = vadd.f32 0.0, %v8954
        %8956 = vmatmul.f32.gmra.mxu0 %v8851
        %v8957 = vpop.f32.mrf.mxu0
        %v8958 = vadd.f32 0.0, %v8957
        %8959 = vmatmul.f32.gmra.mxu0 %v8853
        %v8960 = vpop.f32.mrf.mxu0
        %v8961 = vadd.f32 0.0, %v8960
        %8962 = vmatmul.f32.gmra.mxu0 %v8855
        %v8963 = vpop.f32.mrf.mxu0
        %v8964 = vadd.f32 0.0, %v8963
        %8965 = vmatmul.f32.gmra.mxu0 %v8857
        %v8966 = vpop.f32.mrf.mxu0
        %v8967 = vadd.f32 0.0, %v8966
        %8968 = vmatmul.f32.gmra.mxu0 %v8859
        %v8969 = vpop.f32.mrf.mxu0
        %v8970 = vadd.f32 0.0, %v8969
        %8971 = vmatmul.f32.gmra.mxu0 %v8861
        %v8972 = vpop.f32.mrf.mxu0
        %v8973 = vadd.f32 0.0, %v8972
        %8974 = vmatmul.f32.gmra.mxu0 %v8863
        %v8975 = vpop.f32.mrf.mxu0
        %v8976 = vadd.f32 0.0, %v8975
        %8977 = vmatmul.f32.gmra.mxu0 %v8865
        %v8978 = vpop.f32.mrf.mxu0
        %v8979 = vadd.f32 0.0, %v8978
        %8980 = vmatmul.f32.gmra.mxu0 %v8867
        %v8981 = vpop.f32.mrf.mxu0
        %v8982 = vadd.f32 0.0, %v8981
        %8983 = vmatmul.f32.gmra.mxu0 %v8869
        %v8984 = vpop.f32.mrf.mxu0
        %v8985 = vadd.f32 0.0, %v8984
        %8986 = vdwg.mxu0
        %v8987 = vadd.f32 %v8702, %v8892
        %v8988 = vadd.f32 %v8703, %v8895
        %v8989 = vadd.f32 %v8704, %v8898
        %v8990 = vadd.f32 %v8705, %v8901
        %v8991 = vadd.f32 %v8706, %v8904
        %v8992 = vadd.f32 %v8707, %v8907
        %v8993 = vadd.f32 %v8708, %v8910
        %v8994 = vadd.f32 %v8709, %v8913
        %v8995 = vadd.f32 %v8710, %v8916
        %v8996 = vadd.f32 %v8711, %v8919
        %v8997 = vadd.f32 %v8712, %v8922
        %v8998 = vadd.f32 %v8713, %v8925
        %v8999 = vadd.f32 %v8714, %v8928
        %v9000 = vadd.f32 %v8715, %v8931
        %v9001 = vadd.f32 %v8716, %v8934
        %v9002 = vadd.f32 %v8717, %v8937
        %v9003 = vadd.f32 %v8718, %v8940
        %v9004 = vadd.f32 %v8719, %v8943
        %v9005 = vadd.f32 %v8720, %v8946
        %v9006 = vadd.f32 %v8721, %v8949
        %v9007 = vadd.f32 %v8722, %v8952
        %v9008 = vadd.f32 %v8723, %v8955
        %v9009 = vadd.f32 %v8724, %v8958
        %v9010 = vadd.f32 %v8725, %v8961
        %v9011 = vadd.f32 %v8726, %v8964
        %v9012 = vadd.f32 %v8727, %v8967
        %v9013 = vadd.f32 %v8728, %v8970
        %v9014 = vadd.f32 %v8729, %v8973
        %v9015 = vadd.f32 %v8730, %v8976
        %v9016 = vadd.f32 %v8731, %v8979
        %v9017 = vadd.f32 %v8732, %v8982
        %v9018 = vadd.f32 %v8733, %v8985
        %s9019 = scalar_lea.vmem %s168, 1000
        %v9020 = vld [vmem:[%s9019] sm:$0xff]
        %v9021 = vld [vmem:[%s9019 + $0x8] sm:$0xff]
        %v9022 = vld [vmem:[%s9019 + $0x10] sm:$0xff]
        %v9023 = vld [vmem:[%s9019 + $0x18] sm:$0xff]
        %v9024 = vld [vmem:[%s9019 + $0x20] sm:$0x3]
        %v9025 = vld [vmem:[%s9019 + $0x28] sm:$0xff]
        %v9026 = vld [vmem:[%s9019 + $0x30] sm:$0xff]
        %v9027 = vld [vmem:[%s9019 + $0x38] sm:$0xff]
        %v9028 = vld [vmem:[%s9019 + $0x40] sm:$0xff]
        %v9029 = vld [vmem:[%s9019 + $0x48] sm:$0x3]
        %v9030 = vld [vmem:[%s9019 + $0x50] sm:$0xff]
        %v9031 = vld [vmem:[%s9019 + $0x58] sm:$0xff]
        %v9032 = vld [vmem:[%s9019 + $0x60] sm:$0xff]
        %v9033 = vld [vmem:[%s9019 + $0x68] sm:$0xff]
        %v9034 = vld [vmem:[%s9019 + $0x70] sm:$0x3]
        %v9035 = vld [vmem:[%s9019 + $0x78] sm:$0xff]
        %v9036 = vld [vmem:[%s9019 + $0x80] sm:$0xff]
        %v9037 = vld [vmem:[%s9019 + $0x88] sm:$0xff]
        %v9038 = vld [vmem:[%s9019 + $0x90] sm:$0xff]
        %v9039 = vld [vmem:[%s9019 + $0x98] sm:$0x3]
        %v9040 = vld [vmem:[%s9019 + $0xa0] sm:$0xff]
        %v9041 = vld [vmem:[%s9019 + $0xa8] sm:$0xff]
        %v9042 = vld [vmem:[%s9019 + $0xb0] sm:$0xff]
        %v9043 = vld [vmem:[%s9019 + $0xb8] sm:$0xff]
        %v9044 = vld [vmem:[%s9019 + $0xc0] sm:$0x3]
        %v9045 = vld [vmem:[%s9019 + $0xc8] sm:$0xff]
        %v9046 = vld [vmem:[%s9019 + $0xd0] sm:$0xff]
        %v9047 = vld [vmem:[%s9019 + $0xd8] sm:$0xff]
        %v9048 = vld [vmem:[%s9019 + $0xe0] sm:$0xff]
        %v9049 = vld [vmem:[%s9019 + $0xe8] sm:$0x3]
        %v9050 = vld [vmem:[%s9019 + $0xf0] sm:$0xff]
        %v9051 = vld [vmem:[%s9019 + $0xf8] sm:$0xff]
        %v9052 = vld [vmem:[%s9019 + $0x100] sm:$0xff]
        %v9053 = vld [vmem:[%s9019 + $0x108] sm:$0xff]
        %v9054 = vld [vmem:[%s9019 + $0x110] sm:$0x3]
        %v9055 = vld [vmem:[%s9019 + $0x118] sm:$0xff]
        %v9056 = vld [vmem:[%s9019 + $0x120] sm:$0xff]
        %v9057 = vld [vmem:[%s9019 + $0x128] sm:$0xff]
        %v9058 = vld [vmem:[%s9019 + $0x130] sm:$0xff]
        %v9059 = vld [vmem:[%s9019 + $0x138] sm:$0x3]
        %v9060 = vld [vmem:[%s1083] sm:$0x7]
        %v9062 = vsel %vm214, %v9020, 0
        %v9065 = vsel %vm214, %v9021, 0
        %v9068 = vsel %vm214, %v9022, 0
        %v9071 = vsel %vm214, %v9023, 0
        %v9074 = vsel %vm214, %v9025, 0
        %v9077 = vsel %vm214, %v9026, 0
        %v9080 = vsel %vm214, %v9027, 0
        %v9083 = vsel %vm214, %v9028, 0
        %v9086 = vsel %vm214, %v9030, 0
        %v9089 = vsel %vm214, %v9031, 0
        %v9092 = vsel %vm214, %v9032, 0
        %v9095 = vsel %vm214, %v9033, 0
        %v9098 = vsel %vm214, %v9035, 0
        %v9101 = vsel %vm214, %v9036, 0
        %v9104 = vsel %vm214, %v9037, 0
        %v9107 = vsel %vm214, %v9038, 0
        %v9110 = vsel %vm214, %v9040, 0
        %v9113 = vsel %vm214, %v9041, 0
        %v9116 = vsel %vm214, %v9042, 0
        %v9119 = vsel %vm214, %v9043, 0
        %v9122 = vsel %vm214, %v9045, 0
        %v9125 = vsel %vm214, %v9046, 0
        %v9128 = vsel %vm214, %v9047, 0
        %v9131 = vsel %vm214, %v9048, 0
        %v9134 = vsel %vm214, %v9050, 0
        %v9137 = vsel %vm214, %v9051, 0
        %v9140 = vsel %vm214, %v9052, 0
        %v9143 = vsel %vm214, %v9053, 0
        %v9146 = vsel %vm214, %v9055, 0
        %v9149 = vsel %vm214, %v9056, 0
        %v9152 = vsel %vm214, %v9057, 0
        %v9155 = vsel %vm214, %v9058, 0
        %v9158 = vsel %vm311, %v9060, 0
        %9160 = vmatpush.msra.mxu0 0.0
        %9161 = vmatpush.msra.mxu0 0.0
        %9162 = vmatpush.msra.mxu0 0.0
        %9163 = vmatpush.msra.mxu0 0.0
        %9164 = vmatpush.msra.mxu0 0.0
        %9165 = vmatpush.msra.mxu0 0.0
        %9166 = vmatpush.msra.mxu0 0.0
        %9167 = vmatpush.msra.mxu0 0.0
        %9168 = vmatpush.msra.mxu0 0.0
        %9169 = vmatpush.msra.mxu0 0.0
        %9170 = vmatpush.msra.mxu0 0.0
        %9171 = vmatpush.msra.mxu0 0.0
        %9172 = vmatpush.msra.mxu0 0.0
        %9173 = vmatpush.msra.mxu0 0.0
        %9174 = vmatpush.msra.mxu0 0.0
        %9175 = vmatpush.msra.mxu0 %v9158
        %9176 = vmatmul.f32.gmra.mxu0 %v9062
        %v9177 = vpop.f32.mrf.mxu0
        %v9178 = vadd.f32 0.0, %v9177
        %9179 = vmatmul.f32.gmra.mxu0 %v9065
        %v9180 = vpop.f32.mrf.mxu0
        %v9181 = vadd.f32 0.0, %v9180
        %9182 = vmatmul.f32.gmra.mxu0 %v9068
        %v9183 = vpop.f32.mrf.mxu0
        %v9184 = vadd.f32 0.0, %v9183
        %9185 = vmatmul.f32.gmra.mxu0 %v9071
        %v9186 = vpop.f32.mrf.mxu0
        %v9187 = vadd.f32 0.0, %v9186
        %9188 = vmatmul.f32.gmra.mxu0 %v9074
        %v9189 = vpop.f32.mrf.mxu0
        %v9190 = vadd.f32 0.0, %v9189
        %9191 = vmatmul.f32.gmra.mxu0 %v9077
        %v9192 = vpop.f32.mrf.mxu0
        %v9193 = vadd.f32 0.0, %v9192
        %9194 = vmatmul.f32.gmra.mxu0 %v9080
        %v9195 = vpop.f32.mrf.mxu0
        %v9196 = vadd.f32 0.0, %v9195
        %9197 = vmatmul.f32.gmra.mxu0 %v9083
        %v9198 = vpop.f32.mrf.mxu0
        %v9199 = vadd.f32 0.0, %v9198
        %9200 = vmatmul.f32.gmra.mxu0 %v9086
        %v9201 = vpop.f32.mrf.mxu0
        %v9202 = vadd.f32 0.0, %v9201
        %9203 = vmatmul.f32.gmra.mxu0 %v9089
        %v9204 = vpop.f32.mrf.mxu0
        %v9205 = vadd.f32 0.0, %v9204
        %9206 = vmatmul.f32.gmra.mxu0 %v9092
        %v9207 = vpop.f32.mrf.mxu0
        %v9208 = vadd.f32 0.0, %v9207
        %9209 = vmatmul.f32.gmra.mxu0 %v9095
        %v9210 = vpop.f32.mrf.mxu0
        %v9211 = vadd.f32 0.0, %v9210
        %9212 = vmatmul.f32.gmra.mxu0 %v9098
        %v9213 = vpop.f32.mrf.mxu0
        %v9214 = vadd.f32 0.0, %v9213
        %9215 = vmatmul.f32.gmra.mxu0 %v9101
        %v9216 = vpop.f32.mrf.mxu0
        %v9217 = vadd.f32 0.0, %v9216
        %9218 = vmatmul.f32.gmra.mxu0 %v9104
        %v9219 = vpop.f32.mrf.mxu0
        %v9220 = vadd.f32 0.0, %v9219
        %9221 = vmatmul.f32.gmra.mxu0 %v9107
        %v9222 = vpop.f32.mrf.mxu0
        %v9223 = vadd.f32 0.0, %v9222
        %9224 = vmatmul.f32.gmra.mxu0 %v9110
        %v9225 = vpop.f32.mrf.mxu0
        %v9226 = vadd.f32 0.0, %v9225
        %9227 = vmatmul.f32.gmra.mxu0 %v9113
        %v9228 = vpop.f32.mrf.mxu0
        %v9229 = vadd.f32 0.0, %v9228
        %9230 = vmatmul.f32.gmra.mxu0 %v9116
        %v9231 = vpop.f32.mrf.mxu0
        %v9232 = vadd.f32 0.0, %v9231
        %9233 = vmatmul.f32.gmra.mxu0 %v9119
        %v9234 = vpop.f32.mrf.mxu0
        %v9235 = vadd.f32 0.0, %v9234
        %9236 = vmatmul.f32.gmra.mxu0 %v9122
        %v9237 = vpop.f32.mrf.mxu0
        %v9238 = vadd.f32 0.0, %v9237
        %9239 = vmatmul.f32.gmra.mxu0 %v9125
        %v9240 = vpop.f32.mrf.mxu0
        %v9241 = vadd.f32 0.0, %v9240
        %9242 = vmatmul.f32.gmra.mxu0 %v9128
        %v9243 = vpop.f32.mrf.mxu0
        %v9244 = vadd.f32 0.0, %v9243
        %9245 = vmatmul.f32.gmra.mxu0 %v9131
        %v9246 = vpop.f32.mrf.mxu0
        %v9247 = vadd.f32 0.0, %v9246
        %9248 = vmatmul.f32.gmra.mxu0 %v9134
        %v9249 = vpop.f32.mrf.mxu0
        %v9250 = vadd.f32 0.0, %v9249
        %9251 = vmatmul.f32.gmra.mxu0 %v9137
        %v9252 = vpop.f32.mrf.mxu0
        %v9253 = vadd.f32 0.0, %v9252
        %9254 = vmatmul.f32.gmra.mxu0 %v9140
        %v9255 = vpop.f32.mrf.mxu0
        %v9256 = vadd.f32 0.0, %v9255
        %9257 = vmatmul.f32.gmra.mxu0 %v9143
        %v9258 = vpop.f32.mrf.mxu0
        %v9259 = vadd.f32 0.0, %v9258
        %9260 = vmatmul.f32.gmra.mxu0 %v9146
        %v9261 = vpop.f32.mrf.mxu0
        %v9262 = vadd.f32 0.0, %v9261
        %9263 = vmatmul.f32.gmra.mxu0 %v9149
        %v9264 = vpop.f32.mrf.mxu0
        %v9265 = vadd.f32 0.0, %v9264
        %9266 = vmatmul.f32.gmra.mxu0 %v9152
        %v9267 = vpop.f32.mrf.mxu0
        %v9268 = vadd.f32 0.0, %v9267
        %9269 = vmatmul.f32.gmra.mxu0 %v9155
        %v9270 = vpop.f32.mrf.mxu0
        %v9271 = vadd.f32 0.0, %v9270
        %9272 = vdwg.mxu0
        %v9273 = vadd.f32 %v8987, %v9178
        %v9274 = vadd.f32 %v8988, %v9181
        %v9275 = vadd.f32 %v8989, %v9184
        %v9276 = vadd.f32 %v8990, %v9187
        %v9277 = vadd.f32 %v8991, %v9190
        %v9278 = vadd.f32 %v8992, %v9193
        %v9279 = vadd.f32 %v8993, %v9196
        %v9280 = vadd.f32 %v8994, %v9199
        %v9281 = vadd.f32 %v8995, %v9202
        %v9282 = vadd.f32 %v8996, %v9205
        %v9283 = vadd.f32 %v8997, %v9208
        %v9284 = vadd.f32 %v8998, %v9211
        %v9285 = vadd.f32 %v8999, %v9214
        %v9286 = vadd.f32 %v9000, %v9217
        %v9287 = vadd.f32 %v9001, %v9220
        %v9288 = vadd.f32 %v9002, %v9223
        %v9289 = vadd.f32 %v9003, %v9226
        %v9290 = vadd.f32 %v9004, %v9229
        %v9291 = vadd.f32 %v9005, %v9232
        %v9292 = vadd.f32 %v9006, %v9235
        %v9293 = vadd.f32 %v9007, %v9238
        %v9294 = vadd.f32 %v9008, %v9241
        %v9295 = vadd.f32 %v9009, %v9244
        %v9296 = vadd.f32 %v9010, %v9247
        %v9297 = vadd.f32 %v9011, %v9250
        %v9298 = vadd.f32 %v9012, %v9253
        %v9299 = vadd.f32 %v9013, %v9256
        %v9300 = vadd.f32 %v9014, %v9259
        %v9301 = vadd.f32 %v9015, %v9262
        %v9302 = vadd.f32 %v9016, %v9265
        %v9303 = vadd.f32 %v9017, %v9268
        %v9304 = vadd.f32 %v9018, %v9271
        %v9313 = vrot.slane %v9020, 1
        %v9314 = vrot.slane %v9021, 1
        %v9315 = vsel %vm468, %v9313, %v9314
        %v9316 = vrot.slane %v9022, 1
        %v9317 = vsel %vm468, %v9314, %v9316
        %v9318 = vrot.slane %v9023, 1
        %v9319 = vsel %vm468, %v9316, %v9318
        %v9320 = vrot.slane %v9024, 1
        %v9321 = vsel %vm468, %v9318, %v9320
        %v9322 = vrot.slane %v9025, 1
        %v9323 = vrot.slane %v9026, 1
        %v9324 = vsel %vm468, %v9322, %v9323
        %v9325 = vrot.slane %v9027, 1
        %v9326 = vsel %vm468, %v9323, %v9325
        %v9327 = vrot.slane %v9028, 1
        %v9328 = vsel %vm468, %v9325, %v9327
        %v9329 = vrot.slane %v9029, 1
        %v9330 = vsel %vm468, %v9327, %v9329
        %v9331 = vrot.slane %v9030, 1
        %v9332 = vrot.slane %v9031, 1
        %v9333 = vsel %vm468, %v9331, %v9332
        %v9334 = vrot.slane %v9032, 1
        %v9335 = vsel %vm468, %v9332, %v9334
        %v9336 = vrot.slane %v9033, 1
        %v9337 = vsel %vm468, %v9334, %v9336
        %v9338 = vrot.slane %v9034, 1
        %v9339 = vsel %vm468, %v9336, %v9338
        %v9340 = vrot.slane %v9035, 1
        %v9341 = vrot.slane %v9036, 1
        %v9342 = vsel %vm468, %v9340, %v9341
        %v9343 = vrot.slane %v9037, 1
        %v9344 = vsel %vm468, %v9341, %v9343
        %v9345 = vrot.slane %v9038, 1
        %v9346 = vsel %vm468, %v9343, %v9345
        %v9347 = vrot.slane %v9039, 1
        %v9348 = vsel %vm468, %v9345, %v9347
        %v9349 = vrot.slane %v9040, 1
        %v9350 = vrot.slane %v9041, 1
        %v9351 = vsel %vm468, %v9349, %v9350
        %v9352 = vrot.slane %v9042, 1
        %v9353 = vsel %vm468, %v9350, %v9352
        %v9354 = vrot.slane %v9043, 1
        %v9355 = vsel %vm468, %v9352, %v9354
        %v9356 = vrot.slane %v9044, 1
        %v9357 = vsel %vm468, %v9354, %v9356
        %v9358 = vrot.slane %v9045, 1
        %v9359 = vrot.slane %v9046, 1
        %v9360 = vsel %vm468, %v9358, %v9359
        %v9361 = vrot.slane %v9047, 1
        %v9362 = vsel %vm468, %v9359, %v9361
        %v9363 = vrot.slane %v9048, 1
        %v9364 = vsel %vm468, %v9361, %v9363
        %v9365 = vrot.slane %v9049, 1
        %v9366 = vsel %vm468, %v9363, %v9365
        %v9367 = vrot.slane %v9050, 1
        %v9368 = vrot.slane %v9051, 1
        %v9369 = vsel %vm468, %v9367, %v9368
        %v9370 = vrot.slane %v9052, 1
        %v9371 = vsel %vm468, %v9368, %v9370
        %v9372 = vrot.slane %v9053, 1
        %v9373 = vsel %vm468, %v9370, %v9372
        %v9374 = vrot.slane %v9054, 1
        %v9375 = vsel %vm468, %v9372, %v9374
        %v9376 = vrot.slane %v9055, 1
        %v9377 = vrot.slane %v9056, 1
        %v9378 = vsel %vm468, %v9376, %v9377
        %v9379 = vrot.slane %v9057, 1
        %v9380 = vsel %vm468, %v9377, %v9379
        %v9381 = vrot.slane %v9058, 1
        %v9382 = vsel %vm468, %v9379, %v9381
        %v9383 = vrot.slane %v9059, 1
        %v9384 = vsel %vm468, %v9381, %v9383
        %v9385 = vld [vmem:[%s1409] sm:$0x7]
        %v9386 = vsel %vm214, %v9315, 0
        %v9388 = vsel %vm214, %v9317, 0
        %v9390 = vsel %vm214, %v9319, 0
        %v9392 = vsel %vm214, %v9321, 0
        %v9394 = vsel %vm214, %v9324, 0
        %v9396 = vsel %vm214, %v9326, 0
        %v9398 = vsel %vm214, %v9328, 0
        %v9400 = vsel %vm214, %v9330, 0
        %v9402 = vsel %vm214, %v9333, 0
        %v9404 = vsel %vm214, %v9335, 0
        %v9406 = vsel %vm214, %v9337, 0
        %v9408 = vsel %vm214, %v9339, 0
        %v9410 = vsel %vm214, %v9342, 0
        %v9412 = vsel %vm214, %v9344, 0
        %v9414 = vsel %vm214, %v9346, 0
        %v9416 = vsel %vm214, %v9348, 0
        %v9418 = vsel %vm214, %v9351, 0
        %v9420 = vsel %vm214, %v9353, 0
        %v9422 = vsel %vm214, %v9355, 0
        %v9424 = vsel %vm214, %v9357, 0
        %v9426 = vsel %vm214, %v9360, 0
        %v9428 = vsel %vm214, %v9362, 0
        %v9430 = vsel %vm214, %v9364, 0
        %v9432 = vsel %vm214, %v9366, 0
        %v9434 = vsel %vm214, %v9369, 0
        %v9436 = vsel %vm214, %v9371, 0
        %v9438 = vsel %vm214, %v9373, 0
        %v9440 = vsel %vm214, %v9375, 0
        %v9442 = vsel %vm214, %v9378, 0
        %v9444 = vsel %vm214, %v9380, 0
        %v9446 = vsel %vm214, %v9382, 0
        %v9448 = vsel %vm214, %v9384, 0
        %v9451 = vsel %vm311, %v9385, 0
        %9453 = vmatpush.msra.mxu0 0.0
        %9454 = vmatpush.msra.mxu0 0.0
        %9455 = vmatpush.msra.mxu0 0.0
        %9456 = vmatpush.msra.mxu0 0.0
        %9457 = vmatpush.msra.mxu0 0.0
        %9458 = vmatpush.msra.mxu0 0.0
        %9459 = vmatpush.msra.mxu0 0.0
        %9460 = vmatpush.msra.mxu0 0.0
        %9461 = vmatpush.msra.mxu0 0.0
        %9462 = vmatpush.msra.mxu0 0.0
        %9463 = vmatpush.msra.mxu0 0.0
        %9464 = vmatpush.msra.mxu0 0.0
        %9465 = vmatpush.msra.mxu0 0.0
        %9466 = vmatpush.msra.mxu0 0.0
        %9467 = vmatpush.msra.mxu0 0.0
        %9468 = vmatpush.msra.mxu0 %v9451
        %9469 = vmatmul.f32.gmra.mxu0 %v9386
        %v9470 = vpop.f32.mrf.mxu0
        %v9471 = vadd.f32 0.0, %v9470
        %9472 = vmatmul.f32.gmra.mxu0 %v9388
        %v9473 = vpop.f32.mrf.mxu0
        %v9474 = vadd.f32 0.0, %v9473
        %9475 = vmatmul.f32.gmra.mxu0 %v9390
        %v9476 = vpop.f32.mrf.mxu0
        %v9477 = vadd.f32 0.0, %v9476
        %9478 = vmatmul.f32.gmra.mxu0 %v9392
        %v9479 = vpop.f32.mrf.mxu0
        %v9480 = vadd.f32 0.0, %v9479
        %9481 = vmatmul.f32.gmra.mxu0 %v9394
        %v9482 = vpop.f32.mrf.mxu0
        %v9483 = vadd.f32 0.0, %v9482
        %9484 = vmatmul.f32.gmra.mxu0 %v9396
        %v9485 = vpop.f32.mrf.mxu0
        %v9486 = vadd.f32 0.0, %v9485
        %9487 = vmatmul.f32.gmra.mxu0 %v9398
        %v9488 = vpop.f32.mrf.mxu0
        %v9489 = vadd.f32 0.0, %v9488
        %9490 = vmatmul.f32.gmra.mxu0 %v9400
        %v9491 = vpop.f32.mrf.mxu0
        %v9492 = vadd.f32 0.0, %v9491
        %9493 = vmatmul.f32.gmra.mxu0 %v9402
        %v9494 = vpop.f32.mrf.mxu0
        %v9495 = vadd.f32 0.0, %v9494
        %9496 = vmatmul.f32.gmra.mxu0 %v9404
        %v9497 = vpop.f32.mrf.mxu0
        %v9498 = vadd.f32 0.0, %v9497
        %9499 = vmatmul.f32.gmra.mxu0 %v9406
        %v9500 = vpop.f32.mrf.mxu0
        %v9501 = vadd.f32 0.0, %v9500
        %9502 = vmatmul.f32.gmra.mxu0 %v9408
        %v9503 = vpop.f32.mrf.mxu0
        %v9504 = vadd.f32 0.0, %v9503
        %9505 = vmatmul.f32.gmra.mxu0 %v9410
        %v9506 = vpop.f32.mrf.mxu0
        %v9507 = vadd.f32 0.0, %v9506
        %9508 = vmatmul.f32.gmra.mxu0 %v9412
        %v9509 = vpop.f32.mrf.mxu0
        %v9510 = vadd.f32 0.0, %v9509
        %9511 = vmatmul.f32.gmra.mxu0 %v9414
        %v9512 = vpop.f32.mrf.mxu0
        %v9513 = vadd.f32 0.0, %v9512
        %9514 = vmatmul.f32.gmra.mxu0 %v9416
        %v9515 = vpop.f32.mrf.mxu0
        %v9516 = vadd.f32 0.0, %v9515
        %9517 = vmatmul.f32.gmra.mxu0 %v9418
        %v9518 = vpop.f32.mrf.mxu0
        %v9519 = vadd.f32 0.0, %v9518
        %9520 = vmatmul.f32.gmra.mxu0 %v9420
        %v9521 = vpop.f32.mrf.mxu0
        %v9522 = vadd.f32 0.0, %v9521
        %9523 = vmatmul.f32.gmra.mxu0 %v9422
        %v9524 = vpop.f32.mrf.mxu0
        %v9525 = vadd.f32 0.0, %v9524
        %9526 = vmatmul.f32.gmra.mxu0 %v9424
        %v9527 = vpop.f32.mrf.mxu0
        %v9528 = vadd.f32 0.0, %v9527
        %9529 = vmatmul.f32.gmra.mxu0 %v9426
        %v9530 = vpop.f32.mrf.mxu0
        %v9531 = vadd.f32 0.0, %v9530
        %9532 = vmatmul.f32.gmra.mxu0 %v9428
        %v9533 = vpop.f32.mrf.mxu0
        %v9534 = vadd.f32 0.0, %v9533
        %9535 = vmatmul.f32.gmra.mxu0 %v9430
        %v9536 = vpop.f32.mrf.mxu0
        %v9537 = vadd.f32 0.0, %v9536
        %9538 = vmatmul.f32.gmra.mxu0 %v9432
        %v9539 = vpop.f32.mrf.mxu0
        %v9540 = vadd.f32 0.0, %v9539
        %9541 = vmatmul.f32.gmra.mxu0 %v9434
        %v9542 = vpop.f32.mrf.mxu0
        %v9543 = vadd.f32 0.0, %v9542
        %9544 = vmatmul.f32.gmra.mxu0 %v9436
        %v9545 = vpop.f32.mrf.mxu0
        %v9546 = vadd.f32 0.0, %v9545
        %9547 = vmatmul.f32.gmra.mxu0 %v9438
        %v9548 = vpop.f32.mrf.mxu0
        %v9549 = vadd.f32 0.0, %v9548
        %9550 = vmatmul.f32.gmra.mxu0 %v9440
        %v9551 = vpop.f32.mrf.mxu0
        %v9552 = vadd.f32 0.0, %v9551
        %9553 = vmatmul.f32.gmra.mxu0 %v9442
        %v9554 = vpop.f32.mrf.mxu0
        %v9555 = vadd.f32 0.0, %v9554
        %9556 = vmatmul.f32.gmra.mxu0 %v9444
        %v9557 = vpop.f32.mrf.mxu0
        %v9558 = vadd.f32 0.0, %v9557
        %9559 = vmatmul.f32.gmra.mxu0 %v9446
        %v9560 = vpop.f32.mrf.mxu0
        %v9561 = vadd.f32 0.0, %v9560
        %9562 = vmatmul.f32.gmra.mxu0 %v9448
        %v9563 = vpop.f32.mrf.mxu0
        %v9564 = vadd.f32 0.0, %v9563
        %9565 = vdwg.mxu0
        %v9566 = vadd.f32 %v9273, %v9471
        %v9567 = vadd.f32 %v9274, %v9474
        %v9568 = vadd.f32 %v9275, %v9477
        %v9569 = vadd.f32 %v9276, %v9480
        %v9570 = vadd.f32 %v9277, %v9483
        %v9571 = vadd.f32 %v9278, %v9486
        %v9572 = vadd.f32 %v9279, %v9489
        %v9573 = vadd.f32 %v9280, %v9492
        %v9574 = vadd.f32 %v9281, %v9495
        %v9575 = vadd.f32 %v9282, %v9498
        %v9576 = vadd.f32 %v9283, %v9501
        %v9577 = vadd.f32 %v9284, %v9504
        %v9578 = vadd.f32 %v9285, %v9507
        %v9579 = vadd.f32 %v9286, %v9510
        %v9580 = vadd.f32 %v9287, %v9513
        %v9581 = vadd.f32 %v9288, %v9516
        %v9582 = vadd.f32 %v9289, %v9519
        %v9583 = vadd.f32 %v9290, %v9522
        %v9584 = vadd.f32 %v9291, %v9525
        %v9585 = vadd.f32 %v9292, %v9528
        %v9586 = vadd.f32 %v9293, %v9531
        %v9587 = vadd.f32 %v9294, %v9534
        %v9588 = vadd.f32 %v9295, %v9537
        %v9589 = vadd.f32 %v9296, %v9540
        %v9590 = vadd.f32 %v9297, %v9543
        %v9591 = vadd.f32 %v9298, %v9546
        %v9592 = vadd.f32 %v9299, %v9549
        %v9593 = vadd.f32 %v9300, %v9552
        %v9594 = vadd.f32 %v9301, %v9555
        %v9595 = vadd.f32 %v9302, %v9558
        %v9596 = vadd.f32 %v9303, %v9561
        %v9597 = vadd.f32 %v9304, %v9564
        %v9598 = vrot.slane %v9020, 2
        %v9599 = vrot.slane %v9021, 2
        %v9600 = vsel %vm755, %v9598, %v9599
        %v9601 = vrot.slane %v9022, 2
        %v9602 = vsel %vm755, %v9599, %v9601
        %v9603 = vrot.slane %v9023, 2
        %v9604 = vsel %vm755, %v9601, %v9603
        %v9605 = vrot.slane %v9024, 2
        %v9606 = vsel %vm755, %v9603, %v9605
        %v9607 = vrot.slane %v9025, 2
        %v9608 = vrot.slane %v9026, 2
        %v9609 = vsel %vm755, %v9607, %v9608
        %v9610 = vrot.slane %v9027, 2
        %v9611 = vsel %vm755, %v9608, %v9610
        %v9612 = vrot.slane %v9028, 2
        %v9613 = vsel %vm755, %v9610, %v9612
        %v9614 = vrot.slane %v9029, 2
        %v9615 = vsel %vm755, %v9612, %v9614
        %v9616 = vrot.slane %v9030, 2
        %v9617 = vrot.slane %v9031, 2
        %v9618 = vsel %vm755, %v9616, %v9617
        %v9619 = vrot.slane %v9032, 2
        %v9620 = vsel %vm755, %v9617, %v9619
        %v9621 = vrot.slane %v9033, 2
        %v9622 = vsel %vm755, %v9619, %v9621
        %v9623 = vrot.slane %v9034, 2
        %v9624 = vsel %vm755, %v9621, %v9623
        %v9625 = vrot.slane %v9035, 2
        %v9626 = vrot.slane %v9036, 2
        %v9627 = vsel %vm755, %v9625, %v9626
        %v9628 = vrot.slane %v9037, 2
        %v9629 = vsel %vm755, %v9626, %v9628
        %v9630 = vrot.slane %v9038, 2
        %v9631 = vsel %vm755, %v9628, %v9630
        %v9632 = vrot.slane %v9039, 2
        %v9633 = vsel %vm755, %v9630, %v9632
        %v9634 = vrot.slane %v9040, 2
        %v9635 = vrot.slane %v9041, 2
        %v9636 = vsel %vm755, %v9634, %v9635
        %v9637 = vrot.slane %v9042, 2
        %v9638 = vsel %vm755, %v9635, %v9637
        %v9639 = vrot.slane %v9043, 2
        %v9640 = vsel %vm755, %v9637, %v9639
        %v9641 = vrot.slane %v9044, 2
        %v9642 = vsel %vm755, %v9639, %v9641
        %v9643 = vrot.slane %v9045, 2
        %v9644 = vrot.slane %v9046, 2
        %v9645 = vsel %vm755, %v9643, %v9644
        %v9646 = vrot.slane %v9047, 2
        %v9647 = vsel %vm755, %v9644, %v9646
        %v9648 = vrot.slane %v9048, 2
        %v9649 = vsel %vm755, %v9646, %v9648
        %v9650 = vrot.slane %v9049, 2
        %v9651 = vsel %vm755, %v9648, %v9650
        %v9652 = vrot.slane %v9050, 2
        %v9653 = vrot.slane %v9051, 2
        %v9654 = vsel %vm755, %v9652, %v9653
        %v9655 = vrot.slane %v9052, 2
        %v9656 = vsel %vm755, %v9653, %v9655
        %v9657 = vrot.slane %v9053, 2
        %v9658 = vsel %vm755, %v9655, %v9657
        %v9659 = vrot.slane %v9054, 2
        %v9660 = vsel %vm755, %v9657, %v9659
        %v9661 = vrot.slane %v9055, 2
        %v9662 = vrot.slane %v9056, 2
        %v9663 = vsel %vm755, %v9661, %v9662
        %v9664 = vrot.slane %v9057, 2
        %v9665 = vsel %vm755, %v9662, %v9664
        %v9666 = vrot.slane %v9058, 2
        %v9667 = vsel %vm755, %v9664, %v9666
        %v9668 = vrot.slane %v9059, 2
        %v9669 = vsel %vm755, %v9666, %v9668
        %v9670 = vld [vmem:[%s1695] sm:$0x7]
        %v9671 = vsel %vm214, %v9600, 0
        %v9673 = vsel %vm214, %v9602, 0
        %v9675 = vsel %vm214, %v9604, 0
        %v9677 = vsel %vm214, %v9606, 0
        %v9679 = vsel %vm214, %v9609, 0
        %v9681 = vsel %vm214, %v9611, 0
        %v9683 = vsel %vm214, %v9613, 0
        %v9685 = vsel %vm214, %v9615, 0
        %v9687 = vsel %vm214, %v9618, 0
        %v9689 = vsel %vm214, %v9620, 0
        %v9691 = vsel %vm214, %v9622, 0
        %v9693 = vsel %vm214, %v9624, 0
        %v9695 = vsel %vm214, %v9627, 0
        %v9697 = vsel %vm214, %v9629, 0
        %v9699 = vsel %vm214, %v9631, 0
        %v9701 = vsel %vm214, %v9633, 0
        %v9703 = vsel %vm214, %v9636, 0
        %v9705 = vsel %vm214, %v9638, 0
        %v9707 = vsel %vm214, %v9640, 0
        %v9709 = vsel %vm214, %v9642, 0
        %v9711 = vsel %vm214, %v9645, 0
        %v9713 = vsel %vm214, %v9647, 0
        %v9715 = vsel %vm214, %v9649, 0
        %v9717 = vsel %vm214, %v9651, 0
        %v9719 = vsel %vm214, %v9654, 0
        %v9721 = vsel %vm214, %v9656, 0
        %v9723 = vsel %vm214, %v9658, 0
        %v9725 = vsel %vm214, %v9660, 0
        %v9727 = vsel %vm214, %v9663, 0
        %v9729 = vsel %vm214, %v9665, 0
        %v9731 = vsel %vm214, %v9667, 0
        %v9733 = vsel %vm214, %v9669, 0
        %v9736 = vsel %vm311, %v9670, 0
        %9738 = vmatpush.msra.mxu0 0.0
        %9739 = vmatpush.msra.mxu0 0.0
        %9740 = vmatpush.msra.mxu0 0.0
        %9741 = vmatpush.msra.mxu0 0.0
        %9742 = vmatpush.msra.mxu0 0.0
        %9743 = vmatpush.msra.mxu0 0.0
        %9744 = vmatpush.msra.mxu0 0.0
        %9745 = vmatpush.msra.mxu0 0.0
        %9746 = vmatpush.msra.mxu0 0.0
        %9747 = vmatpush.msra.mxu0 0.0
        %9748 = vmatpush.msra.mxu0 0.0
        %9749 = vmatpush.msra.mxu0 0.0
        %9750 = vmatpush.msra.mxu0 0.0
        %9751 = vmatpush.msra.mxu0 0.0
        %9752 = vmatpush.msra.mxu0 0.0
        %9753 = vmatpush.msra.mxu0 %v9736
        %9754 = vmatmul.f32.gmra.mxu0 %v9671
        %v9755 = vpop.f32.mrf.mxu0
        %v9756 = vadd.f32 0.0, %v9755
        %9757 = vmatmul.f32.gmra.mxu0 %v9673
        %v9758 = vpop.f32.mrf.mxu0
        %v9759 = vadd.f32 0.0, %v9758
        %9760 = vmatmul.f32.gmra.mxu0 %v9675
        %v9761 = vpop.f32.mrf.mxu0
        %v9762 = vadd.f32 0.0, %v9761
        %9763 = vmatmul.f32.gmra.mxu0 %v9677
        %v9764 = vpop.f32.mrf.mxu0
        %v9765 = vadd.f32 0.0, %v9764
        %9766 = vmatmul.f32.gmra.mxu0 %v9679
        %v9767 = vpop.f32.mrf.mxu0
        %v9768 = vadd.f32 0.0, %v9767
        %9769 = vmatmul.f32.gmra.mxu0 %v9681
        %v9770 = vpop.f32.mrf.mxu0
        %v9771 = vadd.f32 0.0, %v9770
        %9772 = vmatmul.f32.gmra.mxu0 %v9683
        %v9773 = vpop.f32.mrf.mxu0
        %v9774 = vadd.f32 0.0, %v9773
        %9775 = vmatmul.f32.gmra.mxu0 %v9685
        %v9776 = vpop.f32.mrf.mxu0
        %v9777 = vadd.f32 0.0, %v9776
        %9778 = vmatmul.f32.gmra.mxu0 %v9687
        %v9779 = vpop.f32.mrf.mxu0
        %v9780 = vadd.f32 0.0, %v9779
        %9781 = vmatmul.f32.gmra.mxu0 %v9689
        %v9782 = vpop.f32.mrf.mxu0
        %v9783 = vadd.f32 0.0, %v9782
        %9784 = vmatmul.f32.gmra.mxu0 %v9691
        %v9785 = vpop.f32.mrf.mxu0
        %v9786 = vadd.f32 0.0, %v9785
        %9787 = vmatmul.f32.gmra.mxu0 %v9693
        %v9788 = vpop.f32.mrf.mxu0
        %v9789 = vadd.f32 0.0, %v9788
        %9790 = vmatmul.f32.gmra.mxu0 %v9695
        %v9791 = vpop.f32.mrf.mxu0
        %v9792 = vadd.f32 0.0, %v9791
        %9793 = vmatmul.f32.gmra.mxu0 %v9697
        %v9794 = vpop.f32.mrf.mxu0
        %v9795 = vadd.f32 0.0, %v9794
        %9796 = vmatmul.f32.gmra.mxu0 %v9699
        %v9797 = vpop.f32.mrf.mxu0
        %v9798 = vadd.f32 0.0, %v9797
        %9799 = vmatmul.f32.gmra.mxu0 %v9701
        %v9800 = vpop.f32.mrf.mxu0
        %v9801 = vadd.f32 0.0, %v9800
        %9802 = vmatmul.f32.gmra.mxu0 %v9703
        %v9803 = vpop.f32.mrf.mxu0
        %v9804 = vadd.f32 0.0, %v9803
        %9805 = vmatmul.f32.gmra.mxu0 %v9705
        %v9806 = vpop.f32.mrf.mxu0
        %v9807 = vadd.f32 0.0, %v9806
        %9808 = vmatmul.f32.gmra.mxu0 %v9707
        %v9809 = vpop.f32.mrf.mxu0
        %v9810 = vadd.f32 0.0, %v9809
        %9811 = vmatmul.f32.gmra.mxu0 %v9709
        %v9812 = vpop.f32.mrf.mxu0
        %v9813 = vadd.f32 0.0, %v9812
        %9814 = vmatmul.f32.gmra.mxu0 %v9711
        %v9815 = vpop.f32.mrf.mxu0
        %v9816 = vadd.f32 0.0, %v9815
        %9817 = vmatmul.f32.gmra.mxu0 %v9713
        %v9818 = vpop.f32.mrf.mxu0
        %v9819 = vadd.f32 0.0, %v9818
        %9820 = vmatmul.f32.gmra.mxu0 %v9715
        %v9821 = vpop.f32.mrf.mxu0
        %v9822 = vadd.f32 0.0, %v9821
        %9823 = vmatmul.f32.gmra.mxu0 %v9717
        %v9824 = vpop.f32.mrf.mxu0
        %v9825 = vadd.f32 0.0, %v9824
        %9826 = vmatmul.f32.gmra.mxu0 %v9719
        %v9827 = vpop.f32.mrf.mxu0
        %v9828 = vadd.f32 0.0, %v9827
        %9829 = vmatmul.f32.gmra.mxu0 %v9721
        %v9830 = vpop.f32.mrf.mxu0
        %v9831 = vadd.f32 0.0, %v9830
        %9832 = vmatmul.f32.gmra.mxu0 %v9723
        %v9833 = vpop.f32.mrf.mxu0
        %v9834 = vadd.f32 0.0, %v9833
        %9835 = vmatmul.f32.gmra.mxu0 %v9725
        %v9836 = vpop.f32.mrf.mxu0
        %v9837 = vadd.f32 0.0, %v9836
        %9838 = vmatmul.f32.gmra.mxu0 %v9727
        %v9839 = vpop.f32.mrf.mxu0
        %v9840 = vadd.f32 0.0, %v9839
        %9841 = vmatmul.f32.gmra.mxu0 %v9729
        %v9842 = vpop.f32.mrf.mxu0
        %v9843 = vadd.f32 0.0, %v9842
        %9844 = vmatmul.f32.gmra.mxu0 %v9731
        %v9845 = vpop.f32.mrf.mxu0
        %v9846 = vadd.f32 0.0, %v9845
        %9847 = vmatmul.f32.gmra.mxu0 %v9733
        %v9848 = vpop.f32.mrf.mxu0
        %v9849 = vadd.f32 0.0, %v9848
        %9850 = vdwg.mxu0
        %v9851 = vadd.f32 %v9566, %v9756
        %v9852 = vadd.f32 %v9567, %v9759
        %v9853 = vadd.f32 %v9568, %v9762
        %v9854 = vadd.f32 %v9569, %v9765
        %v9855 = vadd.f32 %v9570, %v9768
        %v9856 = vadd.f32 %v9571, %v9771
        %v9857 = vadd.f32 %v9572, %v9774
        %v9858 = vadd.f32 %v9573, %v9777
        %v9859 = vadd.f32 %v9574, %v9780
        %v9860 = vadd.f32 %v9575, %v9783
        %v9861 = vadd.f32 %v9576, %v9786
        %v9862 = vadd.f32 %v9577, %v9789
        %v9863 = vadd.f32 %v9578, %v9792
        %v9864 = vadd.f32 %v9579, %v9795
        %v9865 = vadd.f32 %v9580, %v9798
        %v9866 = vadd.f32 %v9581, %v9801
        %v9867 = vadd.f32 %v9582, %v9804
        %v9868 = vadd.f32 %v9583, %v9807
        %v9869 = vadd.f32 %v9584, %v9810
        %v9870 = vadd.f32 %v9585, %v9813
        %v9871 = vadd.f32 %v9586, %v9816
        %v9872 = vadd.f32 %v9587, %v9819
        %v9873 = vadd.f32 %v9588, %v9822
        %v9874 = vadd.f32 %v9589, %v9825
        %v9875 = vadd.f32 %v9590, %v9828
        %v9876 = vadd.f32 %v9591, %v9831
        %v9877 = vadd.f32 %v9592, %v9834
        %v9878 = vadd.f32 %v9593, %v9837
        %v9879 = vadd.f32 %v9594, %v9840
        %v9880 = vadd.f32 %v9595, %v9843
        %v9881 = vadd.f32 %v9596, %v9846
        %v9882 = vadd.f32 %v9597, %v9849
        %s9883 = scalar_lea.vmem %s168, 1040
        %v9884 = vld [vmem:[%s9883] sm:$0xff]
        %v9885 = vld [vmem:[%s9883 + $0x8] sm:$0xff]
        %v9886 = vld [vmem:[%s9883 + $0x10] sm:$0xff]
        %v9887 = vld [vmem:[%s9883 + $0x18] sm:$0xff]
        %v9888 = vld [vmem:[%s9883 + $0x20] sm:$0x3]
        %v9889 = vld [vmem:[%s9883 + $0x28] sm:$0xff]
        %v9890 = vld [vmem:[%s9883 + $0x30] sm:$0xff]
        %v9891 = vld [vmem:[%s9883 + $0x38] sm:$0xff]
        %v9892 = vld [vmem:[%s9883 + $0x40] sm:$0xff]
        %v9893 = vld [vmem:[%s9883 + $0x48] sm:$0x3]
        %v9894 = vld [vmem:[%s9883 + $0x50] sm:$0xff]
        %v9895 = vld [vmem:[%s9883 + $0x58] sm:$0xff]
        %v9896 = vld [vmem:[%s9883 + $0x60] sm:$0xff]
        %v9897 = vld [vmem:[%s9883 + $0x68] sm:$0xff]
        %v9898 = vld [vmem:[%s9883 + $0x70] sm:$0x3]
        %v9899 = vld [vmem:[%s9883 + $0x78] sm:$0xff]
        %v9900 = vld [vmem:[%s9883 + $0x80] sm:$0xff]
        %v9901 = vld [vmem:[%s9883 + $0x88] sm:$0xff]
        %v9902 = vld [vmem:[%s9883 + $0x90] sm:$0xff]
        %v9903 = vld [vmem:[%s9883 + $0x98] sm:$0x3]
        %v9904 = vld [vmem:[%s9883 + $0xa0] sm:$0xff]
        %v9905 = vld [vmem:[%s9883 + $0xa8] sm:$0xff]
        %v9906 = vld [vmem:[%s9883 + $0xb0] sm:$0xff]
        %v9907 = vld [vmem:[%s9883 + $0xb8] sm:$0xff]
        %v9908 = vld [vmem:[%s9883 + $0xc0] sm:$0x3]
        %v9909 = vld [vmem:[%s9883 + $0xc8] sm:$0xff]
        %v9910 = vld [vmem:[%s9883 + $0xd0] sm:$0xff]
        %v9911 = vld [vmem:[%s9883 + $0xd8] sm:$0xff]
        %v9912 = vld [vmem:[%s9883 + $0xe0] sm:$0xff]
        %v9913 = vld [vmem:[%s9883 + $0xe8] sm:$0x3]
        %v9914 = vld [vmem:[%s9883 + $0xf0] sm:$0xff]
        %v9915 = vld [vmem:[%s9883 + $0xf8] sm:$0xff]
        %v9916 = vld [vmem:[%s9883 + $0x100] sm:$0xff]
        %v9917 = vld [vmem:[%s9883 + $0x108] sm:$0xff]
        %v9918 = vld [vmem:[%s9883 + $0x110] sm:$0x3]
        %v9919 = vld [vmem:[%s9883 + $0x118] sm:$0xff]
        %v9920 = vld [vmem:[%s9883 + $0x120] sm:$0xff]
        %v9921 = vld [vmem:[%s9883 + $0x128] sm:$0xff]
        %v9922 = vld [vmem:[%s9883 + $0x130] sm:$0xff]
        %v9923 = vld [vmem:[%s9883 + $0x138] sm:$0x3]
        %v9924 = vld [vmem:[%s1950] sm:$0x7]
        %v9926 = vsel %vm214, %v9884, 0
        %v9929 = vsel %vm214, %v9885, 0
        %v9932 = vsel %vm214, %v9886, 0
        %v9935 = vsel %vm214, %v9887, 0
        %v9938 = vsel %vm214, %v9889, 0
        %v9941 = vsel %vm214, %v9890, 0
        %v9944 = vsel %vm214, %v9891, 0
        %v9947 = vsel %vm214, %v9892, 0
        %v9950 = vsel %vm214, %v9894, 0
        %v9953 = vsel %vm214, %v9895, 0
        %v9956 = vsel %vm214, %v9896, 0
        %v9959 = vsel %vm214, %v9897, 0
        %v9962 = vsel %vm214, %v9899, 0
        %v9965 = vsel %vm214, %v9900, 0
        %v9968 = vsel %vm214, %v9901, 0
        %v9971 = vsel %vm214, %v9902, 0
        %v9974 = vsel %vm214, %v9904, 0
        %v9977 = vsel %vm214, %v9905, 0
        %v9980 = vsel %vm214, %v9906, 0
        %v9983 = vsel %vm214, %v9907, 0
        %v9986 = vsel %vm214, %v9909, 0
        %v9989 = vsel %vm214, %v9910, 0
        %v9992 = vsel %vm214, %v9911, 0
        %v9995 = vsel %vm214, %v9912, 0
        %v9998 = vsel %vm214, %v9914, 0
        %v10001 = vsel %vm214, %v9915, 0
        %v10004 = vsel %vm214, %v9916, 0
        %v10007 = vsel %vm214, %v9917, 0
        %v10010 = vsel %vm214, %v9919, 0
        %v10013 = vsel %vm214, %v9920, 0
        %v10016 = vsel %vm214, %v9921, 0
        %v10019 = vsel %vm214, %v9922, 0
        %v10022 = vsel %vm311, %v9924, 0
        %10024 = vmatpush.msra.mxu0 0.0
        %10025 = vmatpush.msra.mxu0 0.0
        %10026 = vmatpush.msra.mxu0 0.0
        %10027 = vmatpush.msra.mxu0 0.0
        %10028 = vmatpush.msra.mxu0 0.0
        %10029 = vmatpush.msra.mxu0 0.0
        %10030 = vmatpush.msra.mxu0 0.0
        %10031 = vmatpush.msra.mxu0 0.0
        %10032 = vmatpush.msra.mxu0 0.0
        %10033 = vmatpush.msra.mxu0 0.0
        %10034 = vmatpush.msra.mxu0 0.0
        %10035 = vmatpush.msra.mxu0 0.0
        %10036 = vmatpush.msra.mxu0 0.0
        %10037 = vmatpush.msra.mxu0 0.0
        %10038 = vmatpush.msra.mxu0 0.0
        %10039 = vmatpush.msra.mxu0 %v10022
        %10040 = vmatmul.f32.gmra.mxu0 %v9926
        %v10041 = vpop.f32.mrf.mxu0
        %v10042 = vadd.f32 0.0, %v10041
        %10043 = vmatmul.f32.gmra.mxu0 %v9929
        %v10044 = vpop.f32.mrf.mxu0
        %v10045 = vadd.f32 0.0, %v10044
        %10046 = vmatmul.f32.gmra.mxu0 %v9932
        %v10047 = vpop.f32.mrf.mxu0
        %v10048 = vadd.f32 0.0, %v10047
        %10049 = vmatmul.f32.gmra.mxu0 %v9935
        %v10050 = vpop.f32.mrf.mxu0
        %v10051 = vadd.f32 0.0, %v10050
        %10052 = vmatmul.f32.gmra.mxu0 %v9938
        %v10053 = vpop.f32.mrf.mxu0
        %v10054 = vadd.f32 0.0, %v10053
        %10055 = vmatmul.f32.gmra.mxu0 %v9941
        %v10056 = vpop.f32.mrf.mxu0
        %v10057 = vadd.f32 0.0, %v10056
        %10058 = vmatmul.f32.gmra.mxu0 %v9944
        %v10059 = vpop.f32.mrf.mxu0
        %v10060 = vadd.f32 0.0, %v10059
        %10061 = vmatmul.f32.gmra.mxu0 %v9947
        %v10062 = vpop.f32.mrf.mxu0
        %v10063 = vadd.f32 0.0, %v10062
        %10064 = vmatmul.f32.gmra.mxu0 %v9950
        %v10065 = vpop.f32.mrf.mxu0
        %v10066 = vadd.f32 0.0, %v10065
        %10067 = vmatmul.f32.gmra.mxu0 %v9953
        %v10068 = vpop.f32.mrf.mxu0
        %v10069 = vadd.f32 0.0, %v10068
        %10070 = vmatmul.f32.gmra.mxu0 %v9956
        %v10071 = vpop.f32.mrf.mxu0
        %v10072 = vadd.f32 0.0, %v10071
        %10073 = vmatmul.f32.gmra.mxu0 %v9959
        %v10074 = vpop.f32.mrf.mxu0
        %v10075 = vadd.f32 0.0, %v10074
        %10076 = vmatmul.f32.gmra.mxu0 %v9962
        %v10077 = vpop.f32.mrf.mxu0
        %v10078 = vadd.f32 0.0, %v10077
        %10079 = vmatmul.f32.gmra.mxu0 %v9965
        %v10080 = vpop.f32.mrf.mxu0
        %v10081 = vadd.f32 0.0, %v10080
        %10082 = vmatmul.f32.gmra.mxu0 %v9968
        %v10083 = vpop.f32.mrf.mxu0
        %v10084 = vadd.f32 0.0, %v10083
        %10085 = vmatmul.f32.gmra.mxu0 %v9971
        %v10086 = vpop.f32.mrf.mxu0
        %v10087 = vadd.f32 0.0, %v10086
        %10088 = vmatmul.f32.gmra.mxu0 %v9974
        %v10089 = vpop.f32.mrf.mxu0
        %v10090 = vadd.f32 0.0, %v10089
        %10091 = vmatmul.f32.gmra.mxu0 %v9977
        %v10092 = vpop.f32.mrf.mxu0
        %v10093 = vadd.f32 0.0, %v10092
        %10094 = vmatmul.f32.gmra.mxu0 %v9980
        %v10095 = vpop.f32.mrf.mxu0
        %v10096 = vadd.f32 0.0, %v10095
        %10097 = vmatmul.f32.gmra.mxu0 %v9983
        %v10098 = vpop.f32.mrf.mxu0
        %v10099 = vadd.f32 0.0, %v10098
        %10100 = vmatmul.f32.gmra.mxu0 %v9986
        %v10101 = vpop.f32.mrf.mxu0
        %v10102 = vadd.f32 0.0, %v10101
        %10103 = vmatmul.f32.gmra.mxu0 %v9989
        %v10104 = vpop.f32.mrf.mxu0
        %v10105 = vadd.f32 0.0, %v10104
        %10106 = vmatmul.f32.gmra.mxu0 %v9992
        %v10107 = vpop.f32.mrf.mxu0
        %v10108 = vadd.f32 0.0, %v10107
        %10109 = vmatmul.f32.gmra.mxu0 %v9995
        %v10110 = vpop.f32.mrf.mxu0
        %v10111 = vadd.f32 0.0, %v10110
        %10112 = vmatmul.f32.gmra.mxu0 %v9998
        %v10113 = vpop.f32.mrf.mxu0
        %v10114 = vadd.f32 0.0, %v10113
        %10115 = vmatmul.f32.gmra.mxu0 %v10001
        %v10116 = vpop.f32.mrf.mxu0
        %v10117 = vadd.f32 0.0, %v10116
        %10118 = vmatmul.f32.gmra.mxu0 %v10004
        %v10119 = vpop.f32.mrf.mxu0
        %v10120 = vadd.f32 0.0, %v10119
        %10121 = vmatmul.f32.gmra.mxu0 %v10007
        %v10122 = vpop.f32.mrf.mxu0
        %v10123 = vadd.f32 0.0, %v10122
        %10124 = vmatmul.f32.gmra.mxu0 %v10010
        %v10125 = vpop.f32.mrf.mxu0
        %v10126 = vadd.f32 0.0, %v10125
        %10127 = vmatmul.f32.gmra.mxu0 %v10013
        %v10128 = vpop.f32.mrf.mxu0
        %v10129 = vadd.f32 0.0, %v10128
        %10130 = vmatmul.f32.gmra.mxu0 %v10016
        %v10131 = vpop.f32.mrf.mxu0
        %v10132 = vadd.f32 0.0, %v10131
        %10133 = vmatmul.f32.gmra.mxu0 %v10019
        %v10134 = vpop.f32.mrf.mxu0
        %v10135 = vadd.f32 0.0, %v10134
        %10136 = vdwg.mxu0
        %v10137 = vadd.f32 %v9851, %v10042
        %v10138 = vadd.f32 %v9852, %v10045
        %v10139 = vadd.f32 %v9853, %v10048
        %v10140 = vadd.f32 %v9854, %v10051
        %v10141 = vadd.f32 %v9855, %v10054
        %v10142 = vadd.f32 %v9856, %v10057
        %v10143 = vadd.f32 %v9857, %v10060
        %v10144 = vadd.f32 %v9858, %v10063
        %v10145 = vadd.f32 %v9859, %v10066
        %v10146 = vadd.f32 %v9860, %v10069
        %v10147 = vadd.f32 %v9861, %v10072
        %v10148 = vadd.f32 %v9862, %v10075
        %v10149 = vadd.f32 %v9863, %v10078
        %v10150 = vadd.f32 %v9864, %v10081
        %v10151 = vadd.f32 %v9865, %v10084
        %v10152 = vadd.f32 %v9866, %v10087
        %v10153 = vadd.f32 %v9867, %v10090
        %v10154 = vadd.f32 %v9868, %v10093
        %v10155 = vadd.f32 %v9869, %v10096
        %v10156 = vadd.f32 %v9870, %v10099
        %v10157 = vadd.f32 %v9871, %v10102
        %v10158 = vadd.f32 %v9872, %v10105
        %v10159 = vadd.f32 %v9873, %v10108
        %v10160 = vadd.f32 %v9874, %v10111
        %v10161 = vadd.f32 %v9875, %v10114
        %v10162 = vadd.f32 %v9876, %v10117
        %v10163 = vadd.f32 %v9877, %v10120
        %v10164 = vadd.f32 %v9878, %v10123
        %v10165 = vadd.f32 %v9879, %v10126
        %v10166 = vadd.f32 %v9880, %v10129
        %v10167 = vadd.f32 %v9881, %v10132
        %v10168 = vadd.f32 %v9882, %v10135
        %v10177 = vrot.slane %v9884, 1
        %v10178 = vrot.slane %v9885, 1
        %v10179 = vsel %vm468, %v10177, %v10178
        %v10180 = vrot.slane %v9886, 1
        %v10181 = vsel %vm468, %v10178, %v10180
        %v10182 = vrot.slane %v9887, 1
        %v10183 = vsel %vm468, %v10180, %v10182
        %v10184 = vrot.slane %v9888, 1
        %v10185 = vsel %vm468, %v10182, %v10184
        %v10186 = vrot.slane %v9889, 1
        %v10187 = vrot.slane %v9890, 1
        %v10188 = vsel %vm468, %v10186, %v10187
        %v10189 = vrot.slane %v9891, 1
        %v10190 = vsel %vm468, %v10187, %v10189
        %v10191 = vrot.slane %v9892, 1
        %v10192 = vsel %vm468, %v10189, %v10191
        %v10193 = vrot.slane %v9893, 1
        %v10194 = vsel %vm468, %v10191, %v10193
        %v10195 = vrot.slane %v9894, 1
        %v10196 = vrot.slane %v9895, 1
        %v10197 = vsel %vm468, %v10195, %v10196
        %v10198 = vrot.slane %v9896, 1
        %v10199 = vsel %vm468, %v10196, %v10198
        %v10200 = vrot.slane %v9897, 1
        %v10201 = vsel %vm468, %v10198, %v10200
        %v10202 = vrot.slane %v9898, 1
        %v10203 = vsel %vm468, %v10200, %v10202
        %v10204 = vrot.slane %v9899, 1
        %v10205 = vrot.slane %v9900, 1
        %v10206 = vsel %vm468, %v10204, %v10205
        %v10207 = vrot.slane %v9901, 1
        %v10208 = vsel %vm468, %v10205, %v10207
        %v10209 = vrot.slane %v9902, 1
        %v10210 = vsel %vm468, %v10207, %v10209
        %v10211 = vrot.slane %v9903, 1
        %v10212 = vsel %vm468, %v10209, %v10211
        %v10213 = vrot.slane %v9904, 1
        %v10214 = vrot.slane %v9905, 1
        %v10215 = vsel %vm468, %v10213, %v10214
        %v10216 = vrot.slane %v9906, 1
        %v10217 = vsel %vm468, %v10214, %v10216
        %v10218 = vrot.slane %v9907, 1
        %v10219 = vsel %vm468, %v10216, %v10218
        %v10220 = vrot.slane %v9908, 1
        %v10221 = vsel %vm468, %v10218, %v10220
        %v10222 = vrot.slane %v9909, 1
        %v10223 = vrot.slane %v9910, 1
        %v10224 = vsel %vm468, %v10222, %v10223
        %v10225 = vrot.slane %v9911, 1
        %v10226 = vsel %vm468, %v10223, %v10225
        %v10227 = vrot.slane %v9912, 1
        %v10228 = vsel %vm468, %v10225, %v10227
        %v10229 = vrot.slane %v9913, 1
        %v10230 = vsel %vm468, %v10227, %v10229
        %v10231 = vrot.slane %v9914, 1
        %v10232 = vrot.slane %v9915, 1
        %v10233 = vsel %vm468, %v10231, %v10232
        %v10234 = vrot.slane %v9916, 1
        %v10235 = vsel %vm468, %v10232, %v10234
        %v10236 = vrot.slane %v9917, 1
        %v10237 = vsel %vm468, %v10234, %v10236
        %v10238 = vrot.slane %v9918, 1
        %v10239 = vsel %vm468, %v10236, %v10238
        %v10240 = vrot.slane %v9919, 1
        %v10241 = vrot.slane %v9920, 1
        %v10242 = vsel %vm468, %v10240, %v10241
        %v10243 = vrot.slane %v9921, 1
        %v10244 = vsel %vm468, %v10241, %v10243
        %v10245 = vrot.slane %v9922, 1
        %v10246 = vsel %vm468, %v10243, %v10245
        %v10247 = vrot.slane %v9923, 1
        %v10248 = vsel %vm468, %v10245, %v10247
        %v10249 = vld [vmem:[%s2276] sm:$0x7]
        %v10250 = vsel %vm214, %v10179, 0
        %v10252 = vsel %vm214, %v10181, 0
        %v10254 = vsel %vm214, %v10183, 0
        %v10256 = vsel %vm214, %v10185, 0
        %v10258 = vsel %vm214, %v10188, 0
        %v10260 = vsel %vm214, %v10190, 0
        %v10262 = vsel %vm214, %v10192, 0
        %v10264 = vsel %vm214, %v10194, 0
        %v10266 = vsel %vm214, %v10197, 0
        %v10268 = vsel %vm214, %v10199, 0
        %v10270 = vsel %vm214, %v10201, 0
        %v10272 = vsel %vm214, %v10203, 0
        %v10274 = vsel %vm214, %v10206, 0
        %v10276 = vsel %vm214, %v10208, 0
        %v10278 = vsel %vm214, %v10210, 0
        %v10280 = vsel %vm214, %v10212, 0
        %v10282 = vsel %vm214, %v10215, 0
        %v10284 = vsel %vm214, %v10217, 0
        %v10286 = vsel %vm214, %v10219, 0
        %v10288 = vsel %vm214, %v10221, 0
        %v10290 = vsel %vm214, %v10224, 0
        %v10292 = vsel %vm214, %v10226, 0
        %v10294 = vsel %vm214, %v10228, 0
        %v10296 = vsel %vm214, %v10230, 0
        %v10298 = vsel %vm214, %v10233, 0
        %v10300 = vsel %vm214, %v10235, 0
        %v10302 = vsel %vm214, %v10237, 0
        %v10304 = vsel %vm214, %v10239, 0
        %v10306 = vsel %vm214, %v10242, 0
        %v10308 = vsel %vm214, %v10244, 0
        %v10310 = vsel %vm214, %v10246, 0
        %v10312 = vsel %vm214, %v10248, 0
        %v10315 = vsel %vm311, %v10249, 0
        %10317 = vmatpush.msra.mxu0 0.0
        %10318 = vmatpush.msra.mxu0 0.0
        %10319 = vmatpush.msra.mxu0 0.0
        %10320 = vmatpush.msra.mxu0 0.0
        %10321 = vmatpush.msra.mxu0 0.0
        %10322 = vmatpush.msra.mxu0 0.0
        %10323 = vmatpush.msra.mxu0 0.0
        %10324 = vmatpush.msra.mxu0 0.0
        %10325 = vmatpush.msra.mxu0 0.0
        %10326 = vmatpush.msra.mxu0 0.0
        %10327 = vmatpush.msra.mxu0 0.0
        %10328 = vmatpush.msra.mxu0 0.0
        %10329 = vmatpush.msra.mxu0 0.0
        %10330 = vmatpush.msra.mxu0 0.0
        %10331 = vmatpush.msra.mxu0 0.0
        %10332 = vmatpush.msra.mxu0 %v10315
        %10333 = vmatmul.f32.gmra.mxu0 %v10250
        %v10334 = vpop.f32.mrf.mxu0
        %v10335 = vadd.f32 0.0, %v10334
        %10336 = vmatmul.f32.gmra.mxu0 %v10252
        %v10337 = vpop.f32.mrf.mxu0
        %v10338 = vadd.f32 0.0, %v10337
        %10339 = vmatmul.f32.gmra.mxu0 %v10254
        %v10340 = vpop.f32.mrf.mxu0
        %v10341 = vadd.f32 0.0, %v10340
        %10342 = vmatmul.f32.gmra.mxu0 %v10256
        %v10343 = vpop.f32.mrf.mxu0
        %v10344 = vadd.f32 0.0, %v10343
        %10345 = vmatmul.f32.gmra.mxu0 %v10258
        %v10346 = vpop.f32.mrf.mxu0
        %v10347 = vadd.f32 0.0, %v10346
        %10348 = vmatmul.f32.gmra.mxu0 %v10260
        %v10349 = vpop.f32.mrf.mxu0
        %v10350 = vadd.f32 0.0, %v10349
        %10351 = vmatmul.f32.gmra.mxu0 %v10262
        %v10352 = vpop.f32.mrf.mxu0
        %v10353 = vadd.f32 0.0, %v10352
        %10354 = vmatmul.f32.gmra.mxu0 %v10264
        %v10355 = vpop.f32.mrf.mxu0
        %v10356 = vadd.f32 0.0, %v10355
        %10357 = vmatmul.f32.gmra.mxu0 %v10266
        %v10358 = vpop.f32.mrf.mxu0
        %v10359 = vadd.f32 0.0, %v10358
        %10360 = vmatmul.f32.gmra.mxu0 %v10268
        %v10361 = vpop.f32.mrf.mxu0
        %v10362 = vadd.f32 0.0, %v10361
        %10363 = vmatmul.f32.gmra.mxu0 %v10270
        %v10364 = vpop.f32.mrf.mxu0
        %v10365 = vadd.f32 0.0, %v10364
        %10366 = vmatmul.f32.gmra.mxu0 %v10272
        %v10367 = vpop.f32.mrf.mxu0
        %v10368 = vadd.f32 0.0, %v10367
        %10369 = vmatmul.f32.gmra.mxu0 %v10274
        %v10370 = vpop.f32.mrf.mxu0
        %v10371 = vadd.f32 0.0, %v10370
        %10372 = vmatmul.f32.gmra.mxu0 %v10276
        %v10373 = vpop.f32.mrf.mxu0
        %v10374 = vadd.f32 0.0, %v10373
        %10375 = vmatmul.f32.gmra.mxu0 %v10278
        %v10376 = vpop.f32.mrf.mxu0
        %v10377 = vadd.f32 0.0, %v10376
        %10378 = vmatmul.f32.gmra.mxu0 %v10280
        %v10379 = vpop.f32.mrf.mxu0
        %v10380 = vadd.f32 0.0, %v10379
        %10381 = vmatmul.f32.gmra.mxu0 %v10282
        %v10382 = vpop.f32.mrf.mxu0
        %v10383 = vadd.f32 0.0, %v10382
        %10384 = vmatmul.f32.gmra.mxu0 %v10284
        %v10385 = vpop.f32.mrf.mxu0
        %v10386 = vadd.f32 0.0, %v10385
        %10387 = vmatmul.f32.gmra.mxu0 %v10286
        %v10388 = vpop.f32.mrf.mxu0
        %v10389 = vadd.f32 0.0, %v10388
        %10390 = vmatmul.f32.gmra.mxu0 %v10288
        %v10391 = vpop.f32.mrf.mxu0
        %v10392 = vadd.f32 0.0, %v10391
        %10393 = vmatmul.f32.gmra.mxu0 %v10290
        %v10394 = vpop.f32.mrf.mxu0
        %v10395 = vadd.f32 0.0, %v10394
        %10396 = vmatmul.f32.gmra.mxu0 %v10292
        %v10397 = vpop.f32.mrf.mxu0
        %v10398 = vadd.f32 0.0, %v10397
        %10399 = vmatmul.f32.gmra.mxu0 %v10294
        %v10400 = vpop.f32.mrf.mxu0
        %v10401 = vadd.f32 0.0, %v10400
        %10402 = vmatmul.f32.gmra.mxu0 %v10296
        %v10403 = vpop.f32.mrf.mxu0
        %v10404 = vadd.f32 0.0, %v10403
        %10405 = vmatmul.f32.gmra.mxu0 %v10298
        %v10406 = vpop.f32.mrf.mxu0
        %v10407 = vadd.f32 0.0, %v10406
        %10408 = vmatmul.f32.gmra.mxu0 %v10300
        %v10409 = vpop.f32.mrf.mxu0
        %v10410 = vadd.f32 0.0, %v10409
        %10411 = vmatmul.f32.gmra.mxu0 %v10302
        %v10412 = vpop.f32.mrf.mxu0
        %v10413 = vadd.f32 0.0, %v10412
        %10414 = vmatmul.f32.gmra.mxu0 %v10304
        %v10415 = vpop.f32.mrf.mxu0
        %v10416 = vadd.f32 0.0, %v10415
        %10417 = vmatmul.f32.gmra.mxu0 %v10306
        %v10418 = vpop.f32.mrf.mxu0
        %v10419 = vadd.f32 0.0, %v10418
        %10420 = vmatmul.f32.gmra.mxu0 %v10308
        %v10421 = vpop.f32.mrf.mxu0
        %v10422 = vadd.f32 0.0, %v10421
        %10423 = vmatmul.f32.gmra.mxu0 %v10310
        %v10424 = vpop.f32.mrf.mxu0
        %v10425 = vadd.f32 0.0, %v10424
        %10426 = vmatmul.f32.gmra.mxu0 %v10312
        %v10427 = vpop.f32.mrf.mxu0
        %v10428 = vadd.f32 0.0, %v10427
        %10429 = vdwg.mxu0
        %v10430 = vadd.f32 %v10137, %v10335
        %v10431 = vadd.f32 %v10138, %v10338
        %v10432 = vadd.f32 %v10139, %v10341
        %v10433 = vadd.f32 %v10140, %v10344
        %v10434 = vadd.f32 %v10141, %v10347
        %v10435 = vadd.f32 %v10142, %v10350
        %v10436 = vadd.f32 %v10143, %v10353
        %v10437 = vadd.f32 %v10144, %v10356
        %v10438 = vadd.f32 %v10145, %v10359
        %v10439 = vadd.f32 %v10146, %v10362
        %v10440 = vadd.f32 %v10147, %v10365
        %v10441 = vadd.f32 %v10148, %v10368
        %v10442 = vadd.f32 %v10149, %v10371
        %v10443 = vadd.f32 %v10150, %v10374
        %v10444 = vadd.f32 %v10151, %v10377
        %v10445 = vadd.f32 %v10152, %v10380
        %v10446 = vadd.f32 %v10153, %v10383
        %v10447 = vadd.f32 %v10154, %v10386
        %v10448 = vadd.f32 %v10155, %v10389
        %v10449 = vadd.f32 %v10156, %v10392
        %v10450 = vadd.f32 %v10157, %v10395
        %v10451 = vadd.f32 %v10158, %v10398
        %v10452 = vadd.f32 %v10159, %v10401
        %v10453 = vadd.f32 %v10160, %v10404
        %v10454 = vadd.f32 %v10161, %v10407
        %v10455 = vadd.f32 %v10162, %v10410
        %v10456 = vadd.f32 %v10163, %v10413
        %v10457 = vadd.f32 %v10164, %v10416
        %v10458 = vadd.f32 %v10165, %v10419
        %v10459 = vadd.f32 %v10166, %v10422
        %v10460 = vadd.f32 %v10167, %v10425
        %v10461 = vadd.f32 %v10168, %v10428
        %v10462 = vrot.slane %v9884, 2
        %v10463 = vrot.slane %v9885, 2
        %v10464 = vsel %vm755, %v10462, %v10463
        %v10465 = vrot.slane %v9886, 2
        %v10466 = vsel %vm755, %v10463, %v10465
        %v10467 = vrot.slane %v9887, 2
        %v10468 = vsel %vm755, %v10465, %v10467
        %v10469 = vrot.slane %v9888, 2
        %v10470 = vsel %vm755, %v10467, %v10469
        %v10471 = vrot.slane %v9889, 2
        %v10472 = vrot.slane %v9890, 2
        %v10473 = vsel %vm755, %v10471, %v10472
        %v10474 = vrot.slane %v9891, 2
        %v10475 = vsel %vm755, %v10472, %v10474
        %v10476 = vrot.slane %v9892, 2
        %v10477 = vsel %vm755, %v10474, %v10476
        %v10478 = vrot.slane %v9893, 2
        %v10479 = vsel %vm755, %v10476, %v10478
        %v10480 = vrot.slane %v9894, 2
        %v10481 = vrot.slane %v9895, 2
        %v10482 = vsel %vm755, %v10480, %v10481
        %v10483 = vrot.slane %v9896, 2
        %v10484 = vsel %vm755, %v10481, %v10483
        %v10485 = vrot.slane %v9897, 2
        %v10486 = vsel %vm755, %v10483, %v10485
        %v10487 = vrot.slane %v9898, 2
        %v10488 = vsel %vm755, %v10485, %v10487
        %v10489 = vrot.slane %v9899, 2
        %v10490 = vrot.slane %v9900, 2
        %v10491 = vsel %vm755, %v10489, %v10490
        %v10492 = vrot.slane %v9901, 2
        %v10493 = vsel %vm755, %v10490, %v10492
        %v10494 = vrot.slane %v9902, 2
        %v10495 = vsel %vm755, %v10492, %v10494
        %v10496 = vrot.slane %v9903, 2
        %v10497 = vsel %vm755, %v10494, %v10496
        %v10498 = vrot.slane %v9904, 2
        %v10499 = vrot.slane %v9905, 2
        %v10500 = vsel %vm755, %v10498, %v10499
        %v10501 = vrot.slane %v9906, 2
        %v10502 = vsel %vm755, %v10499, %v10501
        %v10503 = vrot.slane %v9907, 2
        %v10504 = vsel %vm755, %v10501, %v10503
        %v10505 = vrot.slane %v9908, 2
        %v10506 = vsel %vm755, %v10503, %v10505
        %v10507 = vrot.slane %v9909, 2
        %v10508 = vrot.slane %v9910, 2
        %v10509 = vsel %vm755, %v10507, %v10508
        %v10510 = vrot.slane %v9911, 2
        %v10511 = vsel %vm755, %v10508, %v10510
        %v10512 = vrot.slane %v9912, 2
        %v10513 = vsel %vm755, %v10510, %v10512
        %v10514 = vrot.slane %v9913, 2
        %v10515 = vsel %vm755, %v10512, %v10514
        %v10516 = vrot.slane %v9914, 2
        %v10517 = vrot.slane %v9915, 2
        %v10518 = vsel %vm755, %v10516, %v10517
        %v10519 = vrot.slane %v9916, 2
        %v10520 = vsel %vm755, %v10517, %v10519
        %v10521 = vrot.slane %v9917, 2
        %v10522 = vsel %vm755, %v10519, %v10521
        %v10523 = vrot.slane %v9918, 2
        %v10524 = vsel %vm755, %v10521, %v10523
        %v10525 = vrot.slane %v9919, 2
        %v10526 = vrot.slane %v9920, 2
        %v10527 = vsel %vm755, %v10525, %v10526
        %v10528 = vrot.slane %v9921, 2
        %v10529 = vsel %vm755, %v10526, %v10528
        %v10530 = vrot.slane %v9922, 2
        %v10531 = vsel %vm755, %v10528, %v10530
        %v10532 = vrot.slane %v9923, 2
        %v10533 = vsel %vm755, %v10530, %v10532
        %v10534 = vld [vmem:[%s2562] sm:$0x7]
        %v10535 = vsel %vm214, %v10464, 0
        %v10537 = vsel %vm214, %v10466, 0
        %v10539 = vsel %vm214, %v10468, 0
        %v10541 = vsel %vm214, %v10470, 0
        %v10543 = vsel %vm214, %v10473, 0
        %v10545 = vsel %vm214, %v10475, 0
        %v10547 = vsel %vm214, %v10477, 0
        %v10549 = vsel %vm214, %v10479, 0
        %v10551 = vsel %vm214, %v10482, 0
        %v10553 = vsel %vm214, %v10484, 0
        %v10555 = vsel %vm214, %v10486, 0
        %v10557 = vsel %vm214, %v10488, 0
        %v10559 = vsel %vm214, %v10491, 0
        %v10561 = vsel %vm214, %v10493, 0
        %v10563 = vsel %vm214, %v10495, 0
        %v10565 = vsel %vm214, %v10497, 0
        %v10567 = vsel %vm214, %v10500, 0
        %v10569 = vsel %vm214, %v10502, 0
        %v10571 = vsel %vm214, %v10504, 0
        %v10573 = vsel %vm214, %v10506, 0
        %v10575 = vsel %vm214, %v10509, 0
        %v10577 = vsel %vm214, %v10511, 0
        %v10579 = vsel %vm214, %v10513, 0
        %v10581 = vsel %vm214, %v10515, 0
        %v10583 = vsel %vm214, %v10518, 0
        %v10585 = vsel %vm214, %v10520, 0
        %v10587 = vsel %vm214, %v10522, 0
        %v10589 = vsel %vm214, %v10524, 0
        %v10591 = vsel %vm214, %v10527, 0
        %v10593 = vsel %vm214, %v10529, 0
        %v10595 = vsel %vm214, %v10531, 0
        %v10597 = vsel %vm214, %v10533, 0
        %v10600 = vsel %vm311, %v10534, 0
        %10602 = vmatpush.msra.mxu0 0.0
        %10603 = vmatpush.msra.mxu0 0.0
        %10604 = vmatpush.msra.mxu0 0.0
        %10605 = vmatpush.msra.mxu0 0.0
        %10606 = vmatpush.msra.mxu0 0.0
        %10607 = vmatpush.msra.mxu0 0.0
        %10608 = vmatpush.msra.mxu0 0.0
        %10609 = vmatpush.msra.mxu0 0.0
        %10610 = vmatpush.msra.mxu0 0.0
        %10611 = vmatpush.msra.mxu0 0.0
        %10612 = vmatpush.msra.mxu0 0.0
        %10613 = vmatpush.msra.mxu0 0.0
        %10614 = vmatpush.msra.mxu0 0.0
        %10615 = vmatpush.msra.mxu0 0.0
        %10616 = vmatpush.msra.mxu0 0.0
        %10617 = vmatpush.msra.mxu0 %v10600
        %10618 = vmatmul.f32.gmra.mxu0 %v10535
        %v10619 = vpop.f32.mrf.mxu0
        %v10620 = vadd.f32 0.0, %v10619
        %10621 = vmatmul.f32.gmra.mxu0 %v10537
        %v10622 = vpop.f32.mrf.mxu0
        %v10623 = vadd.f32 0.0, %v10622
        %10624 = vmatmul.f32.gmra.mxu0 %v10539
        %v10625 = vpop.f32.mrf.mxu0
        %v10626 = vadd.f32 0.0, %v10625
        %10627 = vmatmul.f32.gmra.mxu0 %v10541
        %v10628 = vpop.f32.mrf.mxu0
        %v10629 = vadd.f32 0.0, %v10628
        %10630 = vmatmul.f32.gmra.mxu0 %v10543
        %v10631 = vpop.f32.mrf.mxu0
        %v10632 = vadd.f32 0.0, %v10631
        %10633 = vmatmul.f32.gmra.mxu0 %v10545
        %v10634 = vpop.f32.mrf.mxu0
        %v10635 = vadd.f32 0.0, %v10634
        %10636 = vmatmul.f32.gmra.mxu0 %v10547
        %v10637 = vpop.f32.mrf.mxu0
        %v10638 = vadd.f32 0.0, %v10637
        %10639 = vmatmul.f32.gmra.mxu0 %v10549
        %v10640 = vpop.f32.mrf.mxu0
        %v10641 = vadd.f32 0.0, %v10640
        %10642 = vmatmul.f32.gmra.mxu0 %v10551
        %v10643 = vpop.f32.mrf.mxu0
        %v10644 = vadd.f32 0.0, %v10643
        %10645 = vmatmul.f32.gmra.mxu0 %v10553
        %v10646 = vpop.f32.mrf.mxu0
        %v10647 = vadd.f32 0.0, %v10646
        %10648 = vmatmul.f32.gmra.mxu0 %v10555
        %v10649 = vpop.f32.mrf.mxu0
        %v10650 = vadd.f32 0.0, %v10649
        %10651 = vmatmul.f32.gmra.mxu0 %v10557
        %v10652 = vpop.f32.mrf.mxu0
        %v10653 = vadd.f32 0.0, %v10652
        %10654 = vmatmul.f32.gmra.mxu0 %v10559
        %v10655 = vpop.f32.mrf.mxu0
        %v10656 = vadd.f32 0.0, %v10655
        %10657 = vmatmul.f32.gmra.mxu0 %v10561
        %v10658 = vpop.f32.mrf.mxu0
        %v10659 = vadd.f32 0.0, %v10658
        %10660 = vmatmul.f32.gmra.mxu0 %v10563
        %v10661 = vpop.f32.mrf.mxu0
        %v10662 = vadd.f32 0.0, %v10661
        %10663 = vmatmul.f32.gmra.mxu0 %v10565
        %v10664 = vpop.f32.mrf.mxu0
        %v10665 = vadd.f32 0.0, %v10664
        %10666 = vmatmul.f32.gmra.mxu0 %v10567
        %v10667 = vpop.f32.mrf.mxu0
        %v10668 = vadd.f32 0.0, %v10667
        %10669 = vmatmul.f32.gmra.mxu0 %v10569
        %v10670 = vpop.f32.mrf.mxu0
        %v10671 = vadd.f32 0.0, %v10670
        %10672 = vmatmul.f32.gmra.mxu0 %v10571
        %v10673 = vpop.f32.mrf.mxu0
        %v10674 = vadd.f32 0.0, %v10673
        %10675 = vmatmul.f32.gmra.mxu0 %v10573
        %v10676 = vpop.f32.mrf.mxu0
        %v10677 = vadd.f32 0.0, %v10676
        %10678 = vmatmul.f32.gmra.mxu0 %v10575
        %v10679 = vpop.f32.mrf.mxu0
        %v10680 = vadd.f32 0.0, %v10679
        %10681 = vmatmul.f32.gmra.mxu0 %v10577
        %v10682 = vpop.f32.mrf.mxu0
        %v10683 = vadd.f32 0.0, %v10682
        %10684 = vmatmul.f32.gmra.mxu0 %v10579
        %v10685 = vpop.f32.mrf.mxu0
        %v10686 = vadd.f32 0.0, %v10685
        %10687 = vmatmul.f32.gmra.mxu0 %v10581
        %v10688 = vpop.f32.mrf.mxu0
        %v10689 = vadd.f32 0.0, %v10688
        %10690 = vmatmul.f32.gmra.mxu0 %v10583
        %v10691 = vpop.f32.mrf.mxu0
        %v10692 = vadd.f32 0.0, %v10691
        %10693 = vmatmul.f32.gmra.mxu0 %v10585
        %v10694 = vpop.f32.mrf.mxu0
        %v10695 = vadd.f32 0.0, %v10694
        %10696 = vmatmul.f32.gmra.mxu0 %v10587
        %v10697 = vpop.f32.mrf.mxu0
        %v10698 = vadd.f32 0.0, %v10697
        %10699 = vmatmul.f32.gmra.mxu0 %v10589
        %v10700 = vpop.f32.mrf.mxu0
        %v10701 = vadd.f32 0.0, %v10700
        %10702 = vmatmul.f32.gmra.mxu0 %v10591
        %v10703 = vpop.f32.mrf.mxu0
        %v10704 = vadd.f32 0.0, %v10703
        %10705 = vmatmul.f32.gmra.mxu0 %v10593
        %v10706 = vpop.f32.mrf.mxu0
        %v10707 = vadd.f32 0.0, %v10706
        %10708 = vmatmul.f32.gmra.mxu0 %v10595
        %v10709 = vpop.f32.mrf.mxu0
        %v10710 = vadd.f32 0.0, %v10709
        %10711 = vmatmul.f32.gmra.mxu0 %v10597
        %v10712 = vpop.f32.mrf.mxu0
        %v10713 = vadd.f32 0.0, %v10712
        %10714 = vdwg.mxu0
        %v10715 = vadd.f32 %v10430, %v10620
        %v10716 = vadd.f32 %v10431, %v10623
        %v10717 = vadd.f32 %v10432, %v10626
        %v10718 = vadd.f32 %v10433, %v10629
        %v10719 = vadd.f32 %v10434, %v10632
        %v10720 = vadd.f32 %v10435, %v10635
        %v10721 = vadd.f32 %v10436, %v10638
        %v10722 = vadd.f32 %v10437, %v10641
        %v10723 = vadd.f32 %v10438, %v10644
        %v10724 = vadd.f32 %v10439, %v10647
        %v10725 = vadd.f32 %v10440, %v10650
        %v10726 = vadd.f32 %v10441, %v10653
        %v10727 = vadd.f32 %v10442, %v10656
        %v10728 = vadd.f32 %v10443, %v10659
        %v10729 = vadd.f32 %v10444, %v10662
        %v10730 = vadd.f32 %v10445, %v10665
        %v10731 = vadd.f32 %v10446, %v10668
        %v10732 = vadd.f32 %v10447, %v10671
        %v10733 = vadd.f32 %v10448, %v10674
        %v10734 = vadd.f32 %v10449, %v10677
        %v10735 = vadd.f32 %v10450, %v10680
        %v10736 = vadd.f32 %v10451, %v10683
        %v10737 = vadd.f32 %v10452, %v10686
        %v10738 = vadd.f32 %v10453, %v10689
        %v10739 = vadd.f32 %v10454, %v10692
        %v10740 = vadd.f32 %v10455, %v10695
        %v10741 = vadd.f32 %v10456, %v10698
        %v10742 = vadd.f32 %v10457, %v10701
        %v10743 = vadd.f32 %v10458, %v10704
        %v10744 = vadd.f32 %v10459, %v10707
        %v10745 = vadd.f32 %v10460, %v10710
        %v10746 = vadd.f32 %v10461, %v10713
        %v10747 = vmax.f32 %v10715, 0.0
        %v10748 = vmax.f32 %v10716, 0.0
        %v10749 = vmax.f32 %v10717, 0.0
        %v10750 = vmax.f32 %v10718, 0.0
        %v10751 = vmax.f32 %v10719, 0.0
        %v10752 = vmax.f32 %v10720, 0.0
        %v10753 = vmax.f32 %v10721, 0.0
        %v10754 = vmax.f32 %v10722, 0.0
        %v10755 = vmax.f32 %v10723, 0.0
        %v10756 = vmax.f32 %v10724, 0.0
        %v10757 = vmax.f32 %v10725, 0.0
        %v10758 = vmax.f32 %v10726, 0.0
        %v10759 = vmax.f32 %v10727, 0.0
        %v10760 = vmax.f32 %v10728, 0.0
        %v10761 = vmax.f32 %v10729, 0.0
        %v10762 = vmax.f32 %v10730, 0.0
        %v10763 = vmax.f32 %v10731, 0.0
        %v10764 = vmax.f32 %v10732, 0.0
        %v10765 = vmax.f32 %v10733, 0.0
        %v10766 = vmax.f32 %v10734, 0.0
        %v10767 = vmax.f32 %v10735, 0.0
        %v10768 = vmax.f32 %v10736, 0.0
        %v10769 = vmax.f32 %v10737, 0.0
        %v10770 = vmax.f32 %v10738, 0.0
        %v10771 = vmax.f32 %v10739, 0.0
        %v10772 = vmax.f32 %v10740, 0.0
        %v10773 = vmax.f32 %v10741, 0.0
        %v10774 = vmax.f32 %v10742, 0.0
        %v10775 = vmax.f32 %v10743, 0.0
        %v10776 = vmax.f32 %v10744, 0.0
        %v10777 = vmax.f32 %v10745, 0.0
        %v10778 = vmax.f32 %v10746, 0.0
        %s10779 = scalar_lea.vmem %s163, 768 [#allocation2]
        %10780 = vst.msk [vmem:[%s10779] sm:$0xff] %vm2808, %v10747
        %10781 = vst.msk [vmem:[%s10779 + $0x8] sm:$0xff] %vm2808, %v10748
        %10782 = vst.msk [vmem:[%s10779 + $0x10] sm:$0xff] %vm2808, %v10749
        %10783 = vst.msk [vmem:[%s10779 + $0x18] sm:$0xff] %vm2808, %v10750
        %10784 = vst.msk [vmem:[%s10779 + $0x20] sm:$0xff] %vm2808, %v10751
        %10785 = vst.msk [vmem:[%s10779 + $0x28] sm:$0xff] %vm2808, %v10752
        %10786 = vst.msk [vmem:[%s10779 + $0x30] sm:$0xff] %vm2808, %v10753
        %10787 = vst.msk [vmem:[%s10779 + $0x38] sm:$0xff] %vm2808, %v10754
        %10788 = vst.msk [vmem:[%s10779 + $0x40] sm:$0xff] %vm2808, %v10755
        %10789 = vst.msk [vmem:[%s10779 + $0x48] sm:$0xff] %vm2808, %v10756
        %10790 = vst.msk [vmem:[%s10779 + $0x50] sm:$0xff] %vm2808, %v10757
        %10791 = vst.msk [vmem:[%s10779 + $0x58] sm:$0xff] %vm2808, %v10758
        %10792 = vst.msk [vmem:[%s10779 + $0x60] sm:$0xff] %vm2808, %v10759
        %10793 = vst.msk [vmem:[%s10779 + $0x68] sm:$0xff] %vm2808, %v10760
        %10794 = vst.msk [vmem:[%s10779 + $0x70] sm:$0xff] %vm2808, %v10761
        %10795 = vst.msk [vmem:[%s10779 + $0x78] sm:$0xff] %vm2808, %v10762
        %10796 = vst.msk [vmem:[%s10779 + $0x80] sm:$0xff] %vm2808, %v10763
        %10797 = vst.msk [vmem:[%s10779 + $0x88] sm:$0xff] %vm2808, %v10764
        %10798 = vst.msk [vmem:[%s10779 + $0x90] sm:$0xff] %vm2808, %v10765
        %10799 = vst.msk [vmem:[%s10779 + $0x98] sm:$0xff] %vm2808, %v10766
        %10800 = vst.msk [vmem:[%s10779 + $0xa0] sm:$0xff] %vm2808, %v10767
        %10801 = vst.msk [vmem:[%s10779 + $0xa8] sm:$0xff] %vm2808, %v10768
        %10802 = vst.msk [vmem:[%s10779 + $0xb0] sm:$0xff] %vm2808, %v10769
        %10803 = vst.msk [vmem:[%s10779 + $0xb8] sm:$0xff] %vm2808, %v10770
        %10804 = vst.msk [vmem:[%s10779 + $0xc0] sm:$0xff] %vm2808, %v10771
        %10805 = vst.msk [vmem:[%s10779 + $0xc8] sm:$0xff] %vm2808, %v10772
        %10806 = vst.msk [vmem:[%s10779 + $0xd0] sm:$0xff] %vm2808, %v10773
        %10807 = vst.msk [vmem:[%s10779 + $0xd8] sm:$0xff] %vm2808, %v10774
        %10808 = vst.msk [vmem:[%s10779 + $0xe0] sm:$0xff] %vm2808, %v10775
        %10809 = vst.msk [vmem:[%s10779 + $0xe8] sm:$0xff] %vm2808, %v10776
        %10810 = vst.msk [vmem:[%s10779 + $0xf0] sm:$0xff] %vm2808, %v10777
        %10811 = vst.msk [vmem:[%s10779 + $0xf8] sm:$0xff] %vm2808, %v10778
        %s10812 = sand.u32 %s93, 1
        %s10813 = scalar_lea.sflag [#allocation3], %s10812
        %s10814 = sand.u32 %s93, 1
        %s10815 = smul.addr %s10814, 1024
        %s10816 = scalar_lea.vmem [#allocation2], %s10815
        // Predicated region
        $region33: #{tpu_custom_call.1} parent=31 // pred_check
          %p10817 = pneg %p103
        $region34: #{tpu_custom_call.1} parent=31 // pred_check_branch
          %10819 = sbr.rel (%p10817) target = $region36
        $region35: #{tpu_custom_call.1} parent=31 // pred_region
          %10821 = vsyncadd %s10813, 0
          %s10822 = smul.addr %s17, 128
          %s10823 = smul.addr %s10822, 8
          %s10824 = scalar_lea.hbm %s3, %s10823
          %s10825 = sshll.u32 %s10816, 4
          %s10826 = int_to_ptr.vmem [resolvable:$true] %s10825
          %s10827 = sshll.u32 %s10824, 4
          %s10828 = int_to_ptr.hbm [resolvable:$true] %s10827
          %10833 = dma.vmem_to_hbm [thread:$0]  %s10826, 16384, %s10828, %s10813, 128, 128, 8
        $region36: #{tpu_custom_call.1} parent=31 // pred_fallthru
          _
      $region32: #{tpu_custom_call.1} parent=5 // pred_fallthru
        _
      %p10834 = scmp.le.s32.totalorder 2, %s12
      // Predicated region
      $region37: #{tpu_custom_call.1} parent=5 // pred_check
        %p10835 = pneg %p10834
      $region38: #{tpu_custom_call.1} parent=5 // pred_check_branch
        %10837 = sbr.rel (%p10835) target = $region40
      $region39: #{tpu_custom_call.1} parent=5 // pred_region
        %s10838 = ssub.s32 %s12, 2
        // Predicated region
        $region41: #{tpu_custom_call.1} parent=39 // pred_check
          %p10839 = pneg %p109
        $region42: #{tpu_custom_call.1} parent=39 // pred_check_branch
          %10841 = sbr.rel (%p10839) target = $region44
        $region43: #{tpu_custom_call.1} parent=39 // pred_region
          %s10842 = sand.u32 %s94, 1
          %s10843 = scalar_lea.sflag [#allocation3], %s10842
          %s10844 = sand.u32 %s94, 1
          %s10845 = smul.addr %s10844, 1024
          %s10846 = scalar_lea.vmem [#allocation2], %s10845
          %10848 = dma.done %s10843, 16384
        $region44: #{tpu_custom_call.1} parent=39 // pred_fallthru
          _
      $region40: #{tpu_custom_call.1} parent=5 // pred_fallthru
        _
    $region6: #{tpu_custom_call.1} parent=1 // loop_footer
      %s16 = sadd.s32 1, %s12
    $region7: #{tpu_custom_call.1} parent=1 // loop_footer_branch
      %11 = sbr.rel target = $region3
    $region8: #{tpu_custom_call.1} parent=1 // loop_exit
      _
    %10849 = vsyncpa [#allocation3], 1
    %s10850 = scalar_lea.sflag [#allocation3], 1
    %10851 = vsyncpa %s10850, 1

</llo_original>
